<compile_context>
chip_gen: v6e
topology: v6e:2x2x1
jax: 0.10.0
libtpu: 0.0.40
codegen_flags: <defaults>
</compile_context>

<pallas_src>
import numpy as np
import jax
import jax.numpy as jnp
from jax import lax
from jax.experimental import pallas as pl
from jax.experimental.pallas import tpu as pltpu

MAX_ITER = 40          # fista(dic, x, 0.05, 40)
GAMMA_CONST = 0.05     # the hard-coded Gamma passed to fista in forward()


# ----------------------------------------------------------------------------
# Glue: DYAN dictionary construction (creatRealDictionary), plain JAX.
# ----------------------------------------------------------------------------
def creat_real_dictionary(T, rr, theta):
    """rr, theta: (N,) float32 -> dictionary (T, 4N+1), column-normalized."""
    i_f = jnp.arange(T, dtype=jnp.float32)[:, None]            # (T, 1)
    i_i = jnp.arange(T)[:, None]                                # (T, 1) int
    r = rr[None, :]                                             # (1, N)
    th = theta[None, :]                                         # (1, N)
    pow_r = jnp.power(r, i_f)                                   # r^i
    sign = jnp.where((i_i % 2) == 0, 1.0, -1.0).astype(jnp.float32)
    pow_nr = sign * pow_r                                       # (-r)^i
    W1 = pow_r * jnp.cos(i_f * th)
    W2 = pow_nr * jnp.cos(i_f * th)
    W3 = pow_r * jnp.sin(i_f * th)
    W4 = pow_nr * jnp.sin(i_f * th)
    ones = jnp.ones((T, 1), jnp.float32)
    dic = jnp.concatenate([ones, W1, W2, W3, W4], axis=1)       # (T, 4N+1)
    G = jnp.linalg.norm(dic, axis=0)
    G = jnp.where(G == 0.0, jnp.sqrt(jnp.float32(T)), G)
    return dic / G


def precompute_tt(max_iter):
    """Data-independent FISTA momentum coefficients tt_k = (t_k - 1)/t_{k+1},
    computed exactly as PyTorch does (float64 np.sqrt)."""
    tt = np.zeros((max_iter,), np.float64)
    t = 1.0
    for k in range(max_iter):
        t_new = (1.0 + np.sqrt(1.0 + 4.0 * t * t)) / 2.0
        tt[k] = (t - 1.0) / t_new
        t = t_new
    return jnp.asarray(tt, jnp.float32)


def _round_up(a, b):
    return ((a + b - 1) // b) * b


# ----------------------------------------------------------------------------
# Pallas kernel: FISTA iteration loop on one lane-dense column tile.
# ----------------------------------------------------------------------------
def sclayer_fista_kernel(tt_ref, lambd_ref, a_ref, dl_ref, y_ref, o_ref):
    # tt_ref    : SMEM (MAX_ITER,)       momentum coefficients
    # lambd_ref : SMEM (1,)              soft threshold Gamma*linv
    # a_ref     : VMEM (K_pad, K_pad)    A = I - DtD*linv (zero-padded)
    # dl_ref    : VMEM (T, K_pad)        D*linv (zero-padded columns)
    # y_ref     : VMEM (T, TILE_N)       column slab of Y = x^T (batch fused)
    # o_ref     : VMEM (K_pad, TILE_N)   sparse-code tile
    A = a_ref[...]
    Dl = dl_ref[...]
    Y = y_ref[...]
    hi = lambd_ref[0]
    lo = -hi

    # DtY = (D*linv)^T Y   (K_pad, TILE_N); padded rows are exactly zero.
    DtY = lax.dot_general(Dl, Y, (((0,), (0,)), ((), ())),
                          preferred_element_type=jnp.float32)
    x0 = jnp.zeros_like(DtY)

    def body(k, carry):
        x_old, y_old = carry
        z = jnp.dot(A, y_old, preferred_element_type=jnp.float32) + DtY
        # soft threshold via shrink identity: sign(z)*max(|z|-lam, 0)
        x_new = z - jnp.clip(z, lo, hi)
        tt = tt_ref[k]
        y_new = x_new + tt * (x_new - x_old)
        return (x_new, y_new)

    x_final, _ = lax.fori_loop(0, MAX_ITER, body, (x0, x0), unroll=True)
    o_ref[...] = x_final


# ----------------------------------------------------------------------------
# Wrapper
# ----------------------------------------------------------------------------
def sclayer_forward(x, rr, theta, T, tile_n=512):
    """x: (B, T, P) float32 -> sparse code (B, K, P), K = 4*len(rr) + 1."""
    B, T_in, P = x.shape
    assert T_in == T
    D = creat_real_dictionary(T, rr, theta)        # (T, K)
    K = D.shape[1]
    K_pad = _round_up(K, 8)

    # Batch-independent prologue, hoisted out of the kernel (plain JAX).
    DtD = D.T @ D                                  # (K, K)
    L = jnp.sqrt(jnp.sum(DtD * DtD))               # torch.norm(DtD, p=2) == Frobenius
    linv = jnp.where(L == 0.0, jnp.float32(0.0), 1.0 / L)
    lambd = jnp.reshape(GAMMA_CONST * linv, (1,)).astype(jnp.float32)
    A = jnp.eye(K, dtype=jnp.float32) - DtD * linv
    A_pad = jnp.zeros((K_pad, K_pad), jnp.float32).at[:K, :K].set(A)
    Dl_pad = jnp.zeros((T, K_pad), jnp.float32).at[:, :K].set(D * linv)

    tt = precompute_tt(MAX_ITER)                   # (MAX_ITER,)

    # Fuse batch into the lane dimension: (B, T, P) -> (T, B*P).
    N_total = B * P
    Yw = jnp.transpose(x, (1, 0, 2)).reshape(T, N_total)

    # Lane-dense column tile (multiple of 128); zero-pad columns if needed.
    TILE_N = _round_up(min(tile_n, _round_up(N_total, 128)), 128)
    N_pad = _round_up(N_total, TILE_N)
    if N_pad != N_total:
        Yw = jnp.zeros((T, N_pad), jnp.float32).at[:, :N_total].set(Yw)
    num_tiles = N_pad // TILE_N

    out_pad = pl.pallas_call(
        sclayer_fista_kernel,
        out_shape=jax.ShapeDtypeStruct((K_pad, N_pad), jnp.float32),
        grid=(num_tiles,),
        in_specs=[
            pl.BlockSpec(memory_space=pltpu.MemorySpace.SMEM),     # tt
            pl.BlockSpec(memory_space=pltpu.MemorySpace.SMEM),     # lambd
            pl.BlockSpec((K_pad, K_pad), lambda n: (0, 0)),        # A (full)
            pl.BlockSpec((T, K_pad), lambda n: (0, 0)),            # D*linv (full)
            pl.BlockSpec((T, TILE_N), lambda n: (0, n)),           # Y column tile
        ],
        out_specs=pl.BlockSpec((K_pad, TILE_N), lambda n: (0, n)),
        compiler_params=pltpu.CompilerParams(
            dimension_semantics=("parallel",)),
    )(tt, lambd, A_pad, Dl_pad, Yw)

    # Strip K / column padding and un-fuse the batch dimension.
    out = out_pad[:K, :N_total]                        # (K, B*P)
    return jnp.transpose(out.reshape(K, B, P), (1, 0, 2))   # (B, K, P)


# ----------------------------------------------------------------------------
# Pure-JAX reference (mirrors the PyTorch fista exactly)
# ----------------------------------------------------------------------------
def sclayer_ref(x, rr, theta, T):
    D = creat_real_dictionary(T, rr, theta)
    DtD = D.T @ D
    L = jnp.linalg.norm(DtD)                       # Frobenius
    linv = jnp.where(L == 0.0, 0.0, 1.0 / L)
    DtY = jnp.einsum("tk,btp->bkp", D, x) * linv
    lambd = GAMMA_CONST * linv
    A = jnp.eye(DtD.shape[0], dtype=jnp.float32) - DtD * linv
    x_old = jnp.zeros_like(DtY)
    y_old = x_old
    t = 1.0
    for _ in range(MAX_ITER):
        Ay = jnp.einsum("kj,bjp->bkp", A, y_old)
        z = Ay + DtY
        x_new = jnp.sign(z) * jnp.maximum(jnp.abs(z) - lambd, 0.0)
        t_new = (1.0 + np.sqrt(1.0 + 4.0 * t * t)) / 2.0
        tt = (t - 1.0) / t_new
        y_old = x_new * (1.0 + tt) - x_old * tt
        t = t_new
        x_old = x_new
    return x_old


if __name__ == "__main__":
    key = jax.random.PRNGKey(0)
    B, T, N = 2, 8, 4              # batch, seq length, number of poles
    H = W = 16
    P = H * W                      # 256 flattened pixels per frame
    K = 4 * N + 1                  # 17 dictionary atoms

    k1, k2, k3, k4 = jax.random.split(key, 4)
    # Deterministic parameter init (module __init__ shapes: Drr/Dtheta (N,), Gamma (K,))
    Drr = jax.random.uniform(k1, (N,), jnp.float32, 0.8, 1.1)
    Dtheta = jax.random.uniform(k2, (N,), jnp.float32, 0.0, float(np.pi))
    Gamma = jax.random.uniform(k3, (K,), jnp.float32)  # unused in forward (fista gets 0.05)
    x = jax.random.normal(k4, (B, T, P), jnp.float32)

    out = sclayer_forward(x, Drr, Dtheta, T)
    out = jax.block_until_ready(out)
    assert out.shape == (B, K, P), out.shape

    ref = sclayer_ref(x, Drr, Dtheta, T)
    np.testing.assert_allclose(np.asarray(out), np.asarray(ref),
                               rtol=1e-2, atol=2e-3)

    # TODO(synk): autograd Variable/requires_grad wrapping and .cuda(gpu_id)
    # placement have no Pallas equivalent (forward-only kernel).
    print("KERNEL_OK")
</pallas_src>

<mosaic_0001>
module attributes {stable_mosaic.version = 11 : i64} {
  func.func @sclayer_fista_kernel(%arg0: i32, %arg1: memref<40xf32, #tpu.memory_space<smem>>, %arg2: memref<1xf32, #tpu.memory_space<smem>>, %arg3: memref<24x24xf32, #tpu.memory_space<vmem>>, %arg4: memref<8x24xf32, #tpu.memory_space<vmem>>, %arg5: memref<8x512xf32, #tpu.memory_space<vmem>>, %arg6: memref<24x512xf32, #tpu.memory_space<vmem>>) attributes {dimension_semantics = [#tpu.dimension_semantics<parallel>], iteration_bounds = array<i64: 1>, scalar_prefetch = 0 : i64, scratch_operands = 0 : i64, tpu.core_type = #tpu.core_type<tc>, window_params = [{transform_indices = @transform_0, window_bounds = array<i64: 40>}, {transform_indices = @transform_1, window_bounds = array<i64: 1>}, {pipeline_mode = #tpu.pipeline_mode<synchronous>, transform_indices = @transform_2, window_bounds = array<i64: 24, 24>}, {pipeline_mode = #tpu.pipeline_mode<synchronous>, transform_indices = @transform_3, window_bounds = array<i64: 8, 24>}, {transform_indices = @transform_4, window_bounds = array<i64: 8, 512>}, {transform_indices = @transform_5, window_bounds = array<i64: 24, 512>}]} {
    %c0 = arith.constant 0 : index
    %c0_0 = arith.constant 0 : index
    %0 = vector.load %arg3[%c0, %c0_0] : memref<24x24xf32, #tpu.memory_space<vmem>>, vector<24x24xf32>
    %c0_1 = arith.constant 0 : index
    %c0_2 = arith.constant 0 : index
    %1 = vector.load %arg4[%c0_1, %c0_2] : memref<8x24xf32, #tpu.memory_space<vmem>>, vector<8x24xf32>
    %c0_3 = arith.constant 0 : index
    %c0_4 = arith.constant 0 : index
    %2 = vector.load %arg5[%c0_3, %c0_4] : memref<8x512xf32, #tpu.memory_space<vmem>>, vector<8x512xf32>
    %c0_5 = arith.constant 0 : index
    %3 = memref.load %arg2[%c0_5] : memref<1xf32, #tpu.memory_space<smem>>
    %cst = arith.constant 0.000000e+00 : f32
    %4 = arith.subf %cst, %3 : f32
    %cst_6 = arith.constant dense<0.000000e+00> : vector<24x512xf32>
    %5 = tpu.matmul %1, %2, %cst_6 {dimension_numbers = #tpu.dot_dimension_numbers<[0], [0], [1], [1], [0, 1, 1, 1], [], []>} : vector<8x24xf32>, vector<8x512xf32>, vector<24x512xf32> -> vector<24x512xf32>
    %cst_7 = arith.constant 0.000000e+00 : f32
    %6 = vector.broadcast %cst_7 : f32 to vector<24x512xf32>
    %c0_i32 = arith.constant 0 : i32
    %cst_8 = arith.constant dense<0.000000e+00> : vector<24x512xf32>
    %7 = tpu.matmul %0, %6, %cst_8 {dimension_numbers = #tpu.dot_dimension_numbers<[1], [0], [0], [1], [0, 0, 1, 1], [], []>} : vector<24x24xf32>, vector<24x512xf32>, vector<24x512xf32> -> vector<24x512xf32>
    %8 = arith.addf %7, %5 : vector<24x512xf32>
    %9 = vector.broadcast %4 : f32 to vector<24x512xf32>
    %10 = arith.maximumf %9, %8 : vector<24x512xf32>
    %11 = vector.broadcast %3 : f32 to vector<24x512xf32>
    %12 = arith.minimumf %11, %10 : vector<24x512xf32>
    %13 = arith.subf %8, %12 : vector<24x512xf32>
    %14 = arith.index_cast %c0_i32 : i32 to index
    %15 = memref.load %arg1[%14] : memref<40xf32, #tpu.memory_space<smem>>
    %16 = arith.subf %13, %6 : vector<24x512xf32>
    %17 = vector.broadcast %15 : f32 to vector<24x512xf32>
    %18 = arith.mulf %17, %16 : vector<24x512xf32>
    %19 = arith.addf %13, %18 : vector<24x512xf32>
    %c1_i32 = arith.constant 1 : i32
    %cst_9 = arith.constant dense<0.000000e+00> : vector<24x512xf32>
    %20 = tpu.matmul %0, %19, %cst_9 {dimension_numbers = #tpu.dot_dimension_numbers<[1], [0], [0], [1], [0, 0, 1, 1], [], []>} : vector<24x24xf32>, vector<24x512xf32>, vector<24x512xf32> -> vector<24x512xf32>
    %21 = arith.addf %20, %5 : vector<24x512xf32>
    %22 = vector.broadcast %4 : f32 to vector<24x512xf32>
    %23 = arith.maximumf %22, %21 : vector<24x512xf32>
    %24 = vector.broadcast %3 : f32 to vector<24x512xf32>
    %25 = arith.minimumf %24, %23 : vector<24x512xf32>
    %26 = arith.subf %21, %25 : vector<24x512xf32>
    %27 = arith.index_cast %c1_i32 : i32 to index
    %28 = memref.load %arg1[%27] : memref<40xf32, #tpu.memory_space<smem>>
    %29 = arith.subf %26, %13 : vector<24x512xf32>
    %30 = vector.broadcast %28 : f32 to vector<24x512xf32>
    %31 = arith.mulf %30, %29 : vector<24x512xf32>
    %32 = arith.addf %26, %31 : vector<24x512xf32>
    %c2_i32 = arith.constant 2 : i32
    %cst_10 = arith.constant dense<0.000000e+00> : vector<24x512xf32>
    %33 = tpu.matmul %0, %32, %cst_10 {dimension_numbers = #tpu.dot_dimension_numbers<[1], [0], [0], [1], [0, 0, 1, 1], [], []>} : vector<24x24xf32>, vector<24x512xf32>, vector<24x512xf32> -> vector<24x512xf32>
    %34 = arith.addf %33, %5 : vector<24x512xf32>
    %35 = vector.broadcast %4 : f32 to vector<24x512xf32>
    %36 = arith.maximumf %35, %34 : vector<24x512xf32>
    %37 = vector.broadcast %3 : f32 to vector<24x512xf32>
    %38 = arith.minimumf %37, %36 : vector<24x512xf32>
    %39 = arith.subf %34, %38 : vector<24x512xf32>
    %40 = arith.index_cast %c2_i32 : i32 to index
    %41 = memref.load %arg1[%40] : memref<40xf32, #tpu.memory_space<smem>>
    %42 = arith.subf %39, %26 : vector<24x512xf32>
    %43 = vector.broadcast %41 : f32 to vector<24x512xf32>
    %44 = arith.mulf %43, %42 : vector<24x512xf32>
    %45 = arith.addf %39, %44 : vector<24x512xf32>
    %c3_i32 = arith.constant 3 : i32
    %cst_11 = arith.constant dense<0.000000e+00> : vector<24x512xf32>
    %46 = tpu.matmul %0, %45, %cst_11 {dimension_numbers = #tpu.dot_dimension_numbers<[1], [0], [0], [1], [0, 0, 1, 1], [], []>} : vector<24x24xf32>, vector<24x512xf32>, vector<24x512xf32> -> vector<24x512xf32>
    %47 = arith.addf %46, %5 : vector<24x512xf32>
    %48 = vector.broadcast %4 : f32 to vector<24x512xf32>
    %49 = arith.maximumf %48, %47 : vector<24x512xf32>
    %50 = vector.broadcast %3 : f32 to vector<24x512xf32>
    %51 = arith.minimumf %50, %49 : vector<24x512xf32>
    %52 = arith.subf %47, %51 : vector<24x512xf32>
    %53 = arith.index_cast %c3_i32 : i32 to index
    %54 = memref.load %arg1[%53] : memref<40xf32, #tpu.memory_space<smem>>
    %55 = arith.subf %52, %39 : vector<24x512xf32>
    %56 = vector.broadcast %54 : f32 to vector<24x512xf32>
    %57 = arith.mulf %56, %55 : vector<24x512xf32>
    %58 = arith.addf %52, %57 : vector<24x512xf32>
    %c4_i32 = arith.constant 4 : i32
    %cst_12 = arith.constant dense<0.000000e+00> : vector<24x512xf32>
    %59 = tpu.matmul %0, %58, %cst_12 {dimension_numbers = #tpu.dot_dimension_numbers<[1], [0], [0], [1], [0, 0, 1, 1], [], []>} : vector<24x24xf32>, vector<24x512xf32>, vector<24x512xf32> -> vector<24x512xf32>
    %60 = arith.addf %59, %5 : vector<24x512xf32>
    %61 = vector.broadcast %4 : f32 to vector<24x512xf32>
    %62 = arith.maximumf %61, %60 : vector<24x512xf32>
    %63 = vector.broadcast %3 : f32 to vector<24x512xf32>
    %64 = arith.minimumf %63, %62 : vector<24x512xf32>
    %65 = arith.subf %60, %64 : vector<24x512xf32>
    %66 = arith.index_cast %c4_i32 : i32 to index
    %67 = memref.load %arg1[%66] : memref<40xf32, #tpu.memory_space<smem>>
    %68 = arith.subf %65, %52 : vector<24x512xf32>
    %69 = vector.broadcast %67 : f32 to vector<24x512xf32>
    %70 = arith.mulf %69, %68 : vector<24x512xf32>
    %71 = arith.addf %65, %70 : vector<24x512xf32>
    %c5_i32 = arith.constant 5 : i32
    %cst_13 = arith.constant dense<0.000000e+00> : vector<24x512xf32>
    %72 = tpu.matmul %0, %71, %cst_13 {dimension_numbers = #tpu.dot_dimension_numbers<[1], [0], [0], [1], [0, 0, 1, 1], [], []>} : vector<24x24xf32>, vector<24x512xf32>, vector<24x512xf32> -> vector<24x512xf32>
    %73 = arith.addf %72, %5 : vector<24x512xf32>
    %74 = vector.broadcast %4 : f32 to vector<24x512xf32>
    %75 = arith.maximumf %74, %73 : vector<24x512xf32>
    %76 = vector.broadcast %3 : f32 to vector<24x512xf32>
    %77 = arith.minimumf %76, %75 : vector<24x512xf32>
    %78 = arith.subf %73, %77 : vector<24x512xf32>
    %79 = arith.index_cast %c5_i32 : i32 to index
    %80 = memref.load %arg1[%79] : memref<40xf32, #tpu.memory_space<smem>>
    %81 = arith.subf %78, %65 : vector<24x512xf32>
    %82 = vector.broadcast %80 : f32 to vector<24x512xf32>
    %83 = arith.mulf %82, %81 : vector<24x512xf32>
    %84 = arith.addf %78, %83 : vector<24x512xf32>
    %c6_i32 = arith.constant 6 : i32
    %cst_14 = arith.constant dense<0.000000e+00> : vector<24x512xf32>
    %85 = tpu.matmul %0, %84, %cst_14 {dimension_numbers = #tpu.dot_dimension_numbers<[1], [0], [0], [1], [0, 0, 1, 1], [], []>} : vector<24x24xf32>, vector<24x512xf32>, vector<24x512xf32> -> vector<24x512xf32>
    %86 = arith.addf %85, %5 : vector<24x512xf32>
    %87 = vector.broadcast %4 : f32 to vector<24x512xf32>
    %88 = arith.maximumf %87, %86 : vector<24x512xf32>
    %89 = vector.broadcast %3 : f32 to vector<24x512xf32>
    %90 = arith.minimumf %89, %88 : vector<24x512xf32>
    %91 = arith.subf %86, %90 : vector<24x512xf32>
    %92 = arith.index_cast %c6_i32 : i32 to index
    %93 = memref.load %arg1[%92] : memref<40xf32, #tpu.memory_space<smem>>
    %94 = arith.subf %91, %78 : vector<24x512xf32>
    %95 = vector.broadcast %93 : f32 to vector<24x512xf32>
    %96 = arith.mulf %95, %94 : vector<24x512xf32>
    %97 = arith.addf %91, %96 : vector<24x512xf32>
    %c7_i32 = arith.constant 7 : i32
    %cst_15 = arith.constant dense<0.000000e+00> : vector<24x512xf32>
    %98 = tpu.matmul %0, %97, %cst_15 {dimension_numbers = #tpu.dot_dimension_numbers<[1], [0], [0], [1], [0, 0, 1, 1], [], []>} : vector<24x24xf32>, vector<24x512xf32>, vector<24x512xf32> -> vector<24x512xf32>
    %99 = arith.addf %98, %5 : vector<24x512xf32>
    %100 = vector.broadcast %4 : f32 to vector<24x512xf32>
    %101 = arith.maximumf %100, %99 : vector<24x512xf32>
    %102 = vector.broadcast %3 : f32 to vector<24x512xf32>
    %103 = arith.minimumf %102, %101 : vector<24x512xf32>
    %104 = arith.subf %99, %103 : vector<24x512xf32>
    %105 = arith.index_cast %c7_i32 : i32 to index
    %106 = memref.load %arg1[%105] : memref<40xf32, #tpu.memory_space<smem>>
    %107 = arith.subf %104, %91 : vector<24x512xf32>
    %108 = vector.broadcast %106 : f32 to vector<24x512xf32>
    %109 = arith.mulf %108, %107 : vector<24x512xf32>
    %110 = arith.addf %104, %109 : vector<24x512xf32>
    %c8_i32 = arith.constant 8 : i32
    %cst_16 = arith.constant dense<0.000000e+00> : vector<24x512xf32>
    %111 = tpu.matmul %0, %110, %cst_16 {dimension_numbers = #tpu.dot_dimension_numbers<[1], [0], [0], [1], [0, 0, 1, 1], [], []>} : vector<24x24xf32>, vector<24x512xf32>, vector<24x512xf32> -> vector<24x512xf32>
    %112 = arith.addf %111, %5 : vector<24x512xf32>
    %113 = vector.broadcast %4 : f32 to vector<24x512xf32>
    %114 = arith.maximumf %113, %112 : vector<24x512xf32>
    %115 = vector.broadcast %3 : f32 to vector<24x512xf32>
    %116 = arith.minimumf %115, %114 : vector<24x512xf32>
    %117 = arith.subf %112, %116 : vector<24x512xf32>
    %118 = arith.index_cast %c8_i32 : i32 to index
    %119 = memref.load %arg1[%118] : memref<40xf32, #tpu.memory_space<smem>>
    %120 = arith.subf %117, %104 : vector<24x512xf32>
    %121 = vector.broadcast %119 : f32 to vector<24x512xf32>
    %122 = arith.mulf %121, %120 : vector<24x512xf32>
    %123 = arith.addf %117, %122 : vector<24x512xf32>
    %c9_i32 = arith.constant 9 : i32
    %cst_17 = arith.constant dense<0.000000e+00> : vector<24x512xf32>
    %124 = tpu.matmul %0, %123, %cst_17 {dimension_numbers = #tpu.dot_dimension_numbers<[1], [0], [0], [1], [0, 0, 1, 1], [], []>} : vector<24x24xf32>, vector<24x512xf32>, vector<24x512xf32> -> vector<24x512xf32>
    %125 = arith.addf %124, %5 : vector<24x512xf32>
    %126 = vector.broadcast %4 : f32 to vector<24x512xf32>
    %127 = arith.maximumf %126, %125 : vector<24x512xf32>
    %128 = vector.broadcast %3 : f32 to vector<24x512xf32>
    %129 = arith.minimumf %128, %127 : vector<24x512xf32>
    %130 = arith.subf %125, %129 : vector<24x512xf32>
    %131 = arith.index_cast %c9_i32 : i32 to index
    %132 = memref.load %arg1[%131] : memref<40xf32, #tpu.memory_space<smem>>
    %133 = arith.subf %130, %117 : vector<24x512xf32>
    %134 = vector.broadcast %132 : f32 to vector<24x512xf32>
    %135 = arith.mulf %134, %133 : vector<24x512xf32>
    %136 = arith.addf %130, %135 : vector<24x512xf32>
    %c10_i32 = arith.constant 10 : i32
    %cst_18 = arith.constant dense<0.000000e+00> : vector<24x512xf32>
    %137 = tpu.matmul %0, %136, %cst_18 {dimension_numbers = #tpu.dot_dimension_numbers<[1], [0], [0], [1], [0, 0, 1, 1], [], []>} : vector<24x24xf32>, vector<24x512xf32>, vector<24x512xf32> -> vector<24x512xf32>
    %138 = arith.addf %137, %5 : vector<24x512xf32>
    %139 = vector.broadcast %4 : f32 to vector<24x512xf32>
    %140 = arith.maximumf %139, %138 : vector<24x512xf32>
    %141 = vector.broadcast %3 : f32 to vector<24x512xf32>
    %142 = arith.minimumf %141, %140 : vector<24x512xf32>
    %143 = arith.subf %138, %142 : vector<24x512xf32>
    %144 = arith.index_cast %c10_i32 : i32 to index
    %145 = memref.load %arg1[%144] : memref<40xf32, #tpu.memory_space<smem>>
    %146 = arith.subf %143, %130 : vector<24x512xf32>
    %147 = vector.broadcast %145 : f32 to vector<24x512xf32>
    %148 = arith.mulf %147, %146 : vector<24x512xf32>
    %149 = arith.addf %143, %148 : vector<24x512xf32>
    %c11_i32 = arith.constant 11 : i32
    %cst_19 = arith.constant dense<0.000000e+00> : vector<24x512xf32>
    %150 = tpu.matmul %0, %149, %cst_19 {dimension_numbers = #tpu.dot_dimension_numbers<[1], [0], [0], [1], [0, 0, 1, 1], [], []>} : vector<24x24xf32>, vector<24x512xf32>, vector<24x512xf32> -> vector<24x512xf32>
    %151 = arith.addf %150, %5 : vector<24x512xf32>
    %152 = vector.broadcast %4 : f32 to vector<24x512xf32>
    %153 = arith.maximumf %152, %151 : vector<24x512xf32>
    %154 = vector.broadcast %3 : f32 to vector<24x512xf32>
    %155 = arith.minimumf %154, %153 : vector<24x512xf32>
    %156 = arith.subf %151, %155 : vector<24x512xf32>
    %157 = arith.index_cast %c11_i32 : i32 to index
    %158 = memref.load %arg1[%157] : memref<40xf32, #tpu.memory_space<smem>>
    %159 = arith.subf %156, %143 : vector<24x512xf32>
    %160 = vector.broadcast %158 : f32 to vector<24x512xf32>
    %161 = arith.mulf %160, %159 : vector<24x512xf32>
    %162 = arith.addf %156, %161 : vector<24x512xf32>
    %c12_i32 = arith.constant 12 : i32
    %cst_20 = arith.constant dense<0.000000e+00> : vector<24x512xf32>
    %163 = tpu.matmul %0, %162, %cst_20 {dimension_numbers = #tpu.dot_dimension_numbers<[1], [0], [0], [1], [0, 0, 1, 1], [], []>} : vector<24x24xf32>, vector<24x512xf32>, vector<24x512xf32> -> vector<24x512xf32>
    %164 = arith.addf %163, %5 : vector<24x512xf32>
    %165 = vector.broadcast %4 : f32 to vector<24x512xf32>
    %166 = arith.maximumf %165, %164 : vector<24x512xf32>
    %167 = vector.broadcast %3 : f32 to vector<24x512xf32>
    %168 = arith.minimumf %167, %166 : vector<24x512xf32>
    %169 = arith.subf %164, %168 : vector<24x512xf32>
    %170 = arith.index_cast %c12_i32 : i32 to index
    %171 = memref.load %arg1[%170] : memref<40xf32, #tpu.memory_space<smem>>
    %172 = arith.subf %169, %156 : vector<24x512xf32>
    %173 = vector.broadcast %171 : f32 to vector<24x512xf32>
    %174 = arith.mulf %173, %172 : vector<24x512xf32>
    %175 = arith.addf %169, %174 : vector<24x512xf32>
    %c13_i32 = arith.constant 13 : i32
    %cst_21 = arith.constant dense<0.000000e+00> : vector<24x512xf32>
    %176 = tpu.matmul %0, %175, %cst_21 {dimension_numbers = #tpu.dot_dimension_numbers<[1], [0], [0], [1], [0, 0, 1, 1], [], []>} : vector<24x24xf32>, vector<24x512xf32>, vector<24x512xf32> -> vector<24x512xf32>
    %177 = arith.addf %176, %5 : vector<24x512xf32>
    %178 = vector.broadcast %4 : f32 to vector<24x512xf32>
    %179 = arith.maximumf %178, %177 : vector<24x512xf32>
    %180 = vector.broadcast %3 : f32 to vector<24x512xf32>
    %181 = arith.minimumf %180, %179 : vector<24x512xf32>
    %182 = arith.subf %177, %181 : vector<24x512xf32>
    %183 = arith.index_cast %c13_i32 : i32 to index
    %184 = memref.load %arg1[%183] : memref<40xf32, #tpu.memory_space<smem>>
    %185 = arith.subf %182, %169 : vector<24x512xf32>
    %186 = vector.broadcast %184 : f32 to vector<24x512xf32>
    %187 = arith.mulf %186, %185 : vector<24x512xf32>
    %188 = arith.addf %182, %187 : vector<24x512xf32>
    %c14_i32 = arith.constant 14 : i32
    %cst_22 = arith.constant dense<0.000000e+00> : vector<24x512xf32>
    %189 = tpu.matmul %0, %188, %cst_22 {dimension_numbers = #tpu.dot_dimension_numbers<[1], [0], [0], [1], [0, 0, 1, 1], [], []>} : vector<24x24xf32>, vector<24x512xf32>, vector<24x512xf32> -> vector<24x512xf32>
    %190 = arith.addf %189, %5 : vector<24x512xf32>
    %191 = vector.broadcast %4 : f32 to vector<24x512xf32>
    %192 = arith.maximumf %191, %190 : vector<24x512xf32>
    %193 = vector.broadcast %3 : f32 to vector<24x512xf32>
    %194 = arith.minimumf %193, %192 : vector<24x512xf32>
    %195 = arith.subf %190, %194 : vector<24x512xf32>
    %196 = arith.index_cast %c14_i32 : i32 to index
    %197 = memref.load %arg1[%196] : memref<40xf32, #tpu.memory_space<smem>>
    %198 = arith.subf %195, %182 : vector<24x512xf32>
    %199 = vector.broadcast %197 : f32 to vector<24x512xf32>
    %200 = arith.mulf %199, %198 : vector<24x512xf32>
    %201 = arith.addf %195, %200 : vector<24x512xf32>
    %c15_i32 = arith.constant 15 : i32
    %cst_23 = arith.constant dense<0.000000e+00> : vector<24x512xf32>
    %202 = tpu.matmul %0, %201, %cst_23 {dimension_numbers = #tpu.dot_dimension_numbers<[1], [0], [0], [1], [0, 0, 1, 1], [], []>} : vector<24x24xf32>, vector<24x512xf32>, vector<24x512xf32> -> vector<24x512xf32>
    %203 = arith.addf %202, %5 : vector<24x512xf32>
    %204 = vector.broadcast %4 : f32 to vector<24x512xf32>
    %205 = arith.maximumf %204, %203 : vector<24x512xf32>
    %206 = vector.broadcast %3 : f32 to vector<24x512xf32>
    %207 = arith.minimumf %206, %205 : vector<24x512xf32>
    %208 = arith.subf %203, %207 : vector<24x512xf32>
    %209 = arith.index_cast %c15_i32 : i32 to index
    %210 = memref.load %arg1[%209] : memref<40xf32, #tpu.memory_space<smem>>
    %211 = arith.subf %208, %195 : vector<24x512xf32>
    %212 = vector.broadcast %210 : f32 to vector<24x512xf32>
    %213 = arith.mulf %212, %211 : vector<24x512xf32>
    %214 = arith.addf %208, %213 : vector<24x512xf32>
    %c16_i32 = arith.constant 16 : i32
    %cst_24 = arith.constant dense<0.000000e+00> : vector<24x512xf32>
    %215 = tpu.matmul %0, %214, %cst_24 {dimension_numbers = #tpu.dot_dimension_numbers<[1], [0], [0], [1], [0, 0, 1, 1], [], []>} : vector<24x24xf32>, vector<24x512xf32>, vector<24x512xf32> -> vector<24x512xf32>
    %216 = arith.addf %215, %5 : vector<24x512xf32>
    %217 = vector.broadcast %4 : f32 to vector<24x512xf32>
    %218 = arith.maximumf %217, %216 : vector<24x512xf32>
    %219 = vector.broadcast %3 : f32 to vector<24x512xf32>
    %220 = arith.minimumf %219, %218 : vector<24x512xf32>
    %221 = arith.subf %216, %220 : vector<24x512xf32>
    %222 = arith.index_cast %c16_i32 : i32 to index
    %223 = memref.load %arg1[%222] : memref<40xf32, #tpu.memory_space<smem>>
    %224 = arith.subf %221, %208 : vector<24x512xf32>
    %225 = vector.broadcast %223 : f32 to vector<24x512xf32>
    %226 = arith.mulf %225, %224 : vector<24x512xf32>
    %227 = arith.addf %221, %226 : vector<24x512xf32>
    %c17_i32 = arith.constant 17 : i32
    %cst_25 = arith.constant dense<0.000000e+00> : vector<24x512xf32>
    %228 = tpu.matmul %0, %227, %cst_25 {dimension_numbers = #tpu.dot_dimension_numbers<[1], [0], [0], [1], [0, 0, 1, 1], [], []>} : vector<24x24xf32>, vector<24x512xf32>, vector<24x512xf32> -> vector<24x512xf32>
    %229 = arith.addf %228, %5 : vector<24x512xf32>
    %230 = vector.broadcast %4 : f32 to vector<24x512xf32>
    %231 = arith.maximumf %230, %229 : vector<24x512xf32>
    %232 = vector.broadcast %3 : f32 to vector<24x512xf32>
    %233 = arith.minimumf %232, %231 : vector<24x512xf32>
    %234 = arith.subf %229, %233 : vector<24x512xf32>
    %235 = arith.index_cast %c17_i32 : i32 to index
    %236 = memref.load %arg1[%235] : memref<40xf32, #tpu.memory_space<smem>>
    %237 = arith.subf %234, %221 : vector<24x512xf32>
    %238 = vector.broadcast %236 : f32 to vector<24x512xf32>
    %239 = arith.mulf %238, %237 : vector<24x512xf32>
    %240 = arith.addf %234, %239 : vector<24x512xf32>
    %c18_i32 = arith.constant 18 : i32
    %cst_26 = arith.constant dense<0.000000e+00> : vector<24x512xf32>
    %241 = tpu.matmul %0, %240, %cst_26 {dimension_numbers = #tpu.dot_dimension_numbers<[1], [0], [0], [1], [0, 0, 1, 1], [], []>} : vector<24x24xf32>, vector<24x512xf32>, vector<24x512xf32> -> vector<24x512xf32>
    %242 = arith.addf %241, %5 : vector<24x512xf32>
    %243 = vector.broadcast %4 : f32 to vector<24x512xf32>
    %244 = arith.maximumf %243, %242 : vector<24x512xf32>
    %245 = vector.broadcast %3 : f32 to vector<24x512xf32>
    %246 = arith.minimumf %245, %244 : vector<24x512xf32>
    %247 = arith.subf %242, %246 : vector<24x512xf32>
    %248 = arith.index_cast %c18_i32 : i32 to index
    %249 = memref.load %arg1[%248] : memref<40xf32, #tpu.memory_space<smem>>
    %250 = arith.subf %247, %234 : vector<24x512xf32>
    %251 = vector.broadcast %249 : f32 to vector<24x512xf32>
    %252 = arith.mulf %251, %250 : vector<24x512xf32>
    %253 = arith.addf %247, %252 : vector<24x512xf32>
    %c19_i32 = arith.constant 19 : i32
    %cst_27 = arith.constant dense<0.000000e+00> : vector<24x512xf32>
    %254 = tpu.matmul %0, %253, %cst_27 {dimension_numbers = #tpu.dot_dimension_numbers<[1], [0], [0], [1], [0, 0, 1, 1], [], []>} : vector<24x24xf32>, vector<24x512xf32>, vector<24x512xf32> -> vector<24x512xf32>
    %255 = arith.addf %254, %5 : vector<24x512xf32>
    %256 = vector.broadcast %4 : f32 to vector<24x512xf32>
    %257 = arith.maximumf %256, %255 : vector<24x512xf32>
    %258 = vector.broadcast %3 : f32 to vector<24x512xf32>
    %259 = arith.minimumf %258, %257 : vector<24x512xf32>
    %260 = arith.subf %255, %259 : vector<24x512xf32>
    %261 = arith.index_cast %c19_i32 : i32 to index
    %262 = memref.load %arg1[%261] : memref<40xf32, #tpu.memory_space<smem>>
    %263 = arith.subf %260, %247 : vector<24x512xf32>
    %264 = vector.broadcast %262 : f32 to vector<24x512xf32>
    %265 = arith.mulf %264, %263 : vector<24x512xf32>
    %266 = arith.addf %260, %265 : vector<24x512xf32>
    %c20_i32 = arith.constant 20 : i32
    %cst_28 = arith.constant dense<0.000000e+00> : vector<24x512xf32>
    %267 = tpu.matmul %0, %266, %cst_28 {dimension_numbers = #tpu.dot_dimension_numbers<[1], [0], [0], [1], [0, 0, 1, 1], [], []>} : vector<24x24xf32>, vector<24x512xf32>, vector<24x512xf32> -> vector<24x512xf32>
    %268 = arith.addf %267, %5 : vector<24x512xf32>
    %269 = vector.broadcast %4 : f32 to vector<24x512xf32>
    %270 = arith.maximumf %269, %268 : vector<24x512xf32>
    %271 = vector.broadcast %3 : f32 to vector<24x512xf32>
    %272 = arith.minimumf %271, %270 : vector<24x512xf32>
    %273 = arith.subf %268, %272 : vector<24x512xf32>
    %274 = arith.index_cast %c20_i32 : i32 to index
    %275 = memref.load %arg1[%274] : memref<40xf32, #tpu.memory_space<smem>>
    %276 = arith.subf %273, %260 : vector<24x512xf32>
    %277 = vector.broadcast %275 : f32 to vector<24x512xf32>
    %278 = arith.mulf %277, %276 : vector<24x512xf32>
    %279 = arith.addf %273, %278 : vector<24x512xf32>
    %c21_i32 = arith.constant 21 : i32
    %cst_29 = arith.constant dense<0.000000e+00> : vector<24x512xf32>
    %280 = tpu.matmul %0, %279, %cst_29 {dimension_numbers = #tpu.dot_dimension_numbers<[1], [0], [0], [1], [0, 0, 1, 1], [], []>} : vector<24x24xf32>, vector<24x512xf32>, vector<24x512xf32> -> vector<24x512xf32>
    %281 = arith.addf %280, %5 : vector<24x512xf32>
    %282 = vector.broadcast %4 : f32 to vector<24x512xf32>
    %283 = arith.maximumf %282, %281 : vector<24x512xf32>
    %284 = vector.broadcast %3 : f32 to vector<24x512xf32>
    %285 = arith.minimumf %284, %283 : vector<24x512xf32>
    %286 = arith.subf %281, %285 : vector<24x512xf32>
    %287 = arith.index_cast %c21_i32 : i32 to index
    %288 = memref.load %arg1[%287] : memref<40xf32, #tpu.memory_space<smem>>
    %289 = arith.subf %286, %273 : vector<24x512xf32>
    %290 = vector.broadcast %288 : f32 to vector<24x512xf32>
    %291 = arith.mulf %290, %289 : vector<24x512xf32>
    %292 = arith.addf %286, %291 : vector<24x512xf32>
    %c22_i32 = arith.constant 22 : i32
    %cst_30 = arith.constant dense<0.000000e+00> : vector<24x512xf32>
    %293 = tpu.matmul %0, %292, %cst_30 {dimension_numbers = #tpu.dot_dimension_numbers<[1], [0], [0], [1], [0, 0, 1, 1], [], []>} : vector<24x24xf32>, vector<24x512xf32>, vector<24x512xf32> -> vector<24x512xf32>
    %294 = arith.addf %293, %5 : vector<24x512xf32>
    %295 = vector.broadcast %4 : f32 to vector<24x512xf32>
    %296 = arith.maximumf %295, %294 : vector<24x512xf32>
    %297 = vector.broadcast %3 : f32 to vector<24x512xf32>
    %298 = arith.minimumf %297, %296 : vector<24x512xf32>
    %299 = arith.subf %294, %298 : vector<24x512xf32>
    %300 = arith.index_cast %c22_i32 : i32 to index
    %301 = memref.load %arg1[%300] : memref<40xf32, #tpu.memory_space<smem>>
    %302 = arith.subf %299, %286 : vector<24x512xf32>
    %303 = vector.broadcast %301 : f32 to vector<24x512xf32>
    %304 = arith.mulf %303, %302 : vector<24x512xf32>
    %305 = arith.addf %299, %304 : vector<24x512xf32>
    %c23_i32 = arith.constant 23 : i32
    %cst_31 = arith.constant dense<0.000000e+00> : vector<24x512xf32>
    %306 = tpu.matmul %0, %305, %cst_31 {dimension_numbers = #tpu.dot_dimension_numbers<[1], [0], [0], [1], [0, 0, 1, 1], [], []>} : vector<24x24xf32>, vector<24x512xf32>, vector<24x512xf32> -> vector<24x512xf32>
    %307 = arith.addf %306, %5 : vector<24x512xf32>
    %308 = vector.broadcast %4 : f32 to vector<24x512xf32>
    %309 = arith.maximumf %308, %307 : vector<24x512xf32>
    %310 = vector.broadcast %3 : f32 to vector<24x512xf32>
    %311 = arith.minimumf %310, %309 : vector<24x512xf32>
    %312 = arith.subf %307, %311 : vector<24x512xf32>
    %313 = arith.index_cast %c23_i32 : i32 to index
    %314 = memref.load %arg1[%313] : memref<40xf32, #tpu.memory_space<smem>>
    %315 = arith.subf %312, %299 : vector<24x512xf32>
    %316 = vector.broadcast %314 : f32 to vector<24x512xf32>
    %317 = arith.mulf %316, %315 : vector<24x512xf32>
    %318 = arith.addf %312, %317 : vector<24x512xf32>
    %c24_i32 = arith.constant 24 : i32
    %cst_32 = arith.constant dense<0.000000e+00> : vector<24x512xf32>
    %319 = tpu.matmul %0, %318, %cst_32 {dimension_numbers = #tpu.dot_dimension_numbers<[1], [0], [0], [1], [0, 0, 1, 1], [], []>} : vector<24x24xf32>, vector<24x512xf32>, vector<24x512xf32> -> vector<24x512xf32>
    %320 = arith.addf %319, %5 : vector<24x512xf32>
    %321 = vector.broadcast %4 : f32 to vector<24x512xf32>
    %322 = arith.maximumf %321, %320 : vector<24x512xf32>
    %323 = vector.broadcast %3 : f32 to vector<24x512xf32>
    %324 = arith.minimumf %323, %322 : vector<24x512xf32>
    %325 = arith.subf %320, %324 : vector<24x512xf32>
    %326 = arith.index_cast %c24_i32 : i32 to index
    %327 = memref.load %arg1[%326] : memref<40xf32, #tpu.memory_space<smem>>
    %328 = arith.subf %325, %312 : vector<24x512xf32>
    %329 = vector.broadcast %327 : f32 to vector<24x512xf32>
    %330 = arith.mulf %329, %328 : vector<24x512xf32>
    %331 = arith.addf %325, %330 : vector<24x512xf32>
    %c25_i32 = arith.constant 25 : i32
    %cst_33 = arith.constant dense<0.000000e+00> : vector<24x512xf32>
    %332 = tpu.matmul %0, %331, %cst_33 {dimension_numbers = #tpu.dot_dimension_numbers<[1], [0], [0], [1], [0, 0, 1, 1], [], []>} : vector<24x24xf32>, vector<24x512xf32>, vector<24x512xf32> -> vector<24x512xf32>
    %333 = arith.addf %332, %5 : vector<24x512xf32>
    %334 = vector.broadcast %4 : f32 to vector<24x512xf32>
    %335 = arith.maximumf %334, %333 : vector<24x512xf32>
    %336 = vector.broadcast %3 : f32 to vector<24x512xf32>
    %337 = arith.minimumf %336, %335 : vector<24x512xf32>
    %338 = arith.subf %333, %337 : vector<24x512xf32>
    %339 = arith.index_cast %c25_i32 : i32 to index
    %340 = memref.load %arg1[%339] : memref<40xf32, #tpu.memory_space<smem>>
    %341 = arith.subf %338, %325 : vector<24x512xf32>
    %342 = vector.broadcast %340 : f32 to vector<24x512xf32>
    %343 = arith.mulf %342, %341 : vector<24x512xf32>
    %344 = arith.addf %338, %343 : vector<24x512xf32>
    %c26_i32 = arith.constant 26 : i32
    %cst_34 = arith.constant dense<0.000000e+00> : vector<24x512xf32>
    %345 = tpu.matmul %0, %344, %cst_34 {dimension_numbers = #tpu.dot_dimension_numbers<[1], [0], [0], [1], [0, 0, 1, 1], [], []>} : vector<24x24xf32>, vector<24x512xf32>, vector<24x512xf32> -> vector<24x512xf32>
    %346 = arith.addf %345, %5 : vector<24x512xf32>
    %347 = vector.broadcast %4 : f32 to vector<24x512xf32>
    %348 = arith.maximumf %347, %346 : vector<24x512xf32>
    %349 = vector.broadcast %3 : f32 to vector<24x512xf32>
    %350 = arith.minimumf %349, %348 : vector<24x512xf32>
    %351 = arith.subf %346, %350 : vector<24x512xf32>
    %352 = arith.index_cast %c26_i32 : i32 to index
    %353 = memref.load %arg1[%352] : memref<40xf32, #tpu.memory_space<smem>>
    %354 = arith.subf %351, %338 : vector<24x512xf32>
    %355 = vector.broadcast %353 : f32 to vector<24x512xf32>
    %356 = arith.mulf %355, %354 : vector<24x512xf32>
    %357 = arith.addf %351, %356 : vector<24x512xf32>
    %c27_i32 = arith.constant 27 : i32
    %cst_35 = arith.constant dense<0.000000e+00> : vector<24x512xf32>
    %358 = tpu.matmul %0, %357, %cst_35 {dimension_numbers = #tpu.dot_dimension_numbers<[1], [0], [0], [1], [0, 0, 1, 1], [], []>} : vector<24x24xf32>, vector<24x512xf32>, vector<24x512xf32> -> vector<24x512xf32>
    %359 = arith.addf %358, %5 : vector<24x512xf32>
    %360 = vector.broadcast %4 : f32 to vector<24x512xf32>
    %361 = arith.maximumf %360, %359 : vector<24x512xf32>
    %362 = vector.broadcast %3 : f32 to vector<24x512xf32>
    %363 = arith.minimumf %362, %361 : vector<24x512xf32>
    %364 = arith.subf %359, %363 : vector<24x512xf32>
    %365 = arith.index_cast %c27_i32 : i32 to index
    %366 = memref.load %arg1[%365] : memref<40xf32, #tpu.memory_space<smem>>
    %367 = arith.subf %364, %351 : vector<24x512xf32>
    %368 = vector.broadcast %366 : f32 to vector<24x512xf32>
    %369 = arith.mulf %368, %367 : vector<24x512xf32>
    %370 = arith.addf %364, %369 : vector<24x512xf32>
    %c28_i32 = arith.constant 28 : i32
    %cst_36 = arith.constant dense<0.000000e+00> : vector<24x512xf32>
    %371 = tpu.matmul %0, %370, %cst_36 {dimension_numbers = #tpu.dot_dimension_numbers<[1], [0], [0], [1], [0, 0, 1, 1], [], []>} : vector<24x24xf32>, vector<24x512xf32>, vector<24x512xf32> -> vector<24x512xf32>
    %372 = arith.addf %371, %5 : vector<24x512xf32>
    %373 = vector.broadcast %4 : f32 to vector<24x512xf32>
    %374 = arith.maximumf %373, %372 : vector<24x512xf32>
    %375 = vector.broadcast %3 : f32 to vector<24x512xf32>
    %376 = arith.minimumf %375, %374 : vector<24x512xf32>
    %377 = arith.subf %372, %376 : vector<24x512xf32>
    %378 = arith.index_cast %c28_i32 : i32 to index
    %379 = memref.load %arg1[%378] : memref<40xf32, #tpu.memory_space<smem>>
    %380 = arith.subf %377, %364 : vector<24x512xf32>
    %381 = vector.broadcast %379 : f32 to vector<24x512xf32>
    %382 = arith.mulf %381, %380 : vector<24x512xf32>
    %383 = arith.addf %377, %382 : vector<24x512xf32>
    %c29_i32 = arith.constant 29 : i32
    %cst_37 = arith.constant dense<0.000000e+00> : vector<24x512xf32>
    %384 = tpu.matmul %0, %383, %cst_37 {dimension_numbers = #tpu.dot_dimension_numbers<[1], [0], [0], [1], [0, 0, 1, 1], [], []>} : vector<24x24xf32>, vector<24x512xf32>, vector<24x512xf32> -> vector<24x512xf32>
    %385 = arith.addf %384, %5 : vector<24x512xf32>
    %386 = vector.broadcast %4 : f32 to vector<24x512xf32>
    %387 = arith.maximumf %386, %385 : vector<24x512xf32>
    %388 = vector.broadcast %3 : f32 to vector<24x512xf32>
    %389 = arith.minimumf %388, %387 : vector<24x512xf32>
    %390 = arith.subf %385, %389 : vector<24x512xf32>
    %391 = arith.index_cast %c29_i32 : i32 to index
    %392 = memref.load %arg1[%391] : memref<40xf32, #tpu.memory_space<smem>>
    %393 = arith.subf %390, %377 : vector<24x512xf32>
    %394 = vector.broadcast %392 : f32 to vector<24x512xf32>
    %395 = arith.mulf %394, %393 : vector<24x512xf32>
    %396 = arith.addf %390, %395 : vector<24x512xf32>
    %c30_i32 = arith.constant 30 : i32
    %cst_38 = arith.constant dense<0.000000e+00> : vector<24x512xf32>
    %397 = tpu.matmul %0, %396, %cst_38 {dimension_numbers = #tpu.dot_dimension_numbers<[1], [0], [0], [1], [0, 0, 1, 1], [], []>} : vector<24x24xf32>, vector<24x512xf32>, vector<24x512xf32> -> vector<24x512xf32>
    %398 = arith.addf %397, %5 : vector<24x512xf32>
    %399 = vector.broadcast %4 : f32 to vector<24x512xf32>
    %400 = arith.maximumf %399, %398 : vector<24x512xf32>
    %401 = vector.broadcast %3 : f32 to vector<24x512xf32>
    %402 = arith.minimumf %401, %400 : vector<24x512xf32>
    %403 = arith.subf %398, %402 : vector<24x512xf32>
    %404 = arith.index_cast %c30_i32 : i32 to index
    %405 = memref.load %arg1[%404] : memref<40xf32, #tpu.memory_space<smem>>
    %406 = arith.subf %403, %390 : vector<24x512xf32>
    %407 = vector.broadcast %405 : f32 to vector<24x512xf32>
    %408 = arith.mulf %407, %406 : vector<24x512xf32>
    %409 = arith.addf %403, %408 : vector<24x512xf32>
    %c31_i32 = arith.constant 31 : i32
    %cst_39 = arith.constant dense<0.000000e+00> : vector<24x512xf32>
    %410 = tpu.matmul %0, %409, %cst_39 {dimension_numbers = #tpu.dot_dimension_numbers<[1], [0], [0], [1], [0, 0, 1, 1], [], []>} : vector<24x24xf32>, vector<24x512xf32>, vector<24x512xf32> -> vector<24x512xf32>
    %411 = arith.addf %410, %5 : vector<24x512xf32>
    %412 = vector.broadcast %4 : f32 to vector<24x512xf32>
    %413 = arith.maximumf %412, %411 : vector<24x512xf32>
    %414 = vector.broadcast %3 : f32 to vector<24x512xf32>
    %415 = arith.minimumf %414, %413 : vector<24x512xf32>
    %416 = arith.subf %411, %415 : vector<24x512xf32>
    %417 = arith.index_cast %c31_i32 : i32 to index
    %418 = memref.load %arg1[%417] : memref<40xf32, #tpu.memory_space<smem>>
    %419 = arith.subf %416, %403 : vector<24x512xf32>
    %420 = vector.broadcast %418 : f32 to vector<24x512xf32>
    %421 = arith.mulf %420, %419 : vector<24x512xf32>
    %422 = arith.addf %416, %421 : vector<24x512xf32>
    %c32_i32 = arith.constant 32 : i32
    %cst_40 = arith.constant dense<0.000000e+00> : vector<24x512xf32>
    %423 = tpu.matmul %0, %422, %cst_40 {dimension_numbers = #tpu.dot_dimension_numbers<[1], [0], [0], [1], [0, 0, 1, 1], [], []>} : vector<24x24xf32>, vector<24x512xf32>, vector<24x512xf32> -> vector<24x512xf32>
    %424 = arith.addf %423, %5 : vector<24x512xf32>
    %425 = vector.broadcast %4 : f32 to vector<24x512xf32>
    %426 = arith.maximumf %425, %424 : vector<24x512xf32>
    %427 = vector.broadcast %3 : f32 to vector<24x512xf32>
    %428 = arith.minimumf %427, %426 : vector<24x512xf32>
    %429 = arith.subf %424, %428 : vector<24x512xf32>
    %430 = arith.index_cast %c32_i32 : i32 to index
    %431 = memref.load %arg1[%430] : memref<40xf32, #tpu.memory_space<smem>>
    %432 = arith.subf %429, %416 : vector<24x512xf32>
    %433 = vector.broadcast %431 : f32 to vector<24x512xf32>
    %434 = arith.mulf %433, %432 : vector<24x512xf32>
    %435 = arith.addf %429, %434 : vector<24x512xf32>
    %c33_i32 = arith.constant 33 : i32
    %cst_41 = arith.constant dense<0.000000e+00> : vector<24x512xf32>
    %436 = tpu.matmul %0, %435, %cst_41 {dimension_numbers = #tpu.dot_dimension_numbers<[1], [0], [0], [1], [0, 0, 1, 1], [], []>} : vector<24x24xf32>, vector<24x512xf32>, vector<24x512xf32> -> vector<24x512xf32>
    %437 = arith.addf %436, %5 : vector<24x512xf32>
    %438 = vector.broadcast %4 : f32 to vector<24x512xf32>
    %439 = arith.maximumf %438, %437 : vector<24x512xf32>
    %440 = vector.broadcast %3 : f32 to vector<24x512xf32>
    %441 = arith.minimumf %440, %439 : vector<24x512xf32>
    %442 = arith.subf %437, %441 : vector<24x512xf32>
    %443 = arith.index_cast %c33_i32 : i32 to index
    %444 = memref.load %arg1[%443] : memref<40xf32, #tpu.memory_space<smem>>
    %445 = arith.subf %442, %429 : vector<24x512xf32>
    %446 = vector.broadcast %444 : f32 to vector<24x512xf32>
    %447 = arith.mulf %446, %445 : vector<24x512xf32>
    %448 = arith.addf %442, %447 : vector<24x512xf32>
    %c34_i32 = arith.constant 34 : i32
    %cst_42 = arith.constant dense<0.000000e+00> : vector<24x512xf32>
    %449 = tpu.matmul %0, %448, %cst_42 {dimension_numbers = #tpu.dot_dimension_numbers<[1], [0], [0], [1], [0, 0, 1, 1], [], []>} : vector<24x24xf32>, vector<24x512xf32>, vector<24x512xf32> -> vector<24x512xf32>
    %450 = arith.addf %449, %5 : vector<24x512xf32>
    %451 = vector.broadcast %4 : f32 to vector<24x512xf32>
    %452 = arith.maximumf %451, %450 : vector<24x512xf32>
    %453 = vector.broadcast %3 : f32 to vector<24x512xf32>
    %454 = arith.minimumf %453, %452 : vector<24x512xf32>
    %455 = arith.subf %450, %454 : vector<24x512xf32>
    %456 = arith.index_cast %c34_i32 : i32 to index
    %457 = memref.load %arg1[%456] : memref<40xf32, #tpu.memory_space<smem>>
    %458 = arith.subf %455, %442 : vector<24x512xf32>
    %459 = vector.broadcast %457 : f32 to vector<24x512xf32>
    %460 = arith.mulf %459, %458 : vector<24x512xf32>
    %461 = arith.addf %455, %460 : vector<24x512xf32>
    %c35_i32 = arith.constant 35 : i32
    %cst_43 = arith.constant dense<0.000000e+00> : vector<24x512xf32>
    %462 = tpu.matmul %0, %461, %cst_43 {dimension_numbers = #tpu.dot_dimension_numbers<[1], [0], [0], [1], [0, 0, 1, 1], [], []>} : vector<24x24xf32>, vector<24x512xf32>, vector<24x512xf32> -> vector<24x512xf32>
    %463 = arith.addf %462, %5 : vector<24x512xf32>
    %464 = vector.broadcast %4 : f32 to vector<24x512xf32>
    %465 = arith.maximumf %464, %463 : vector<24x512xf32>
    %466 = vector.broadcast %3 : f32 to vector<24x512xf32>
    %467 = arith.minimumf %466, %465 : vector<24x512xf32>
    %468 = arith.subf %463, %467 : vector<24x512xf32>
    %469 = arith.index_cast %c35_i32 : i32 to index
    %470 = memref.load %arg1[%469] : memref<40xf32, #tpu.memory_space<smem>>
    %471 = arith.subf %468, %455 : vector<24x512xf32>
    %472 = vector.broadcast %470 : f32 to vector<24x512xf32>
    %473 = arith.mulf %472, %471 : vector<24x512xf32>
    %474 = arith.addf %468, %473 : vector<24x512xf32>
    %c36_i32 = arith.constant 36 : i32
    %cst_44 = arith.constant dense<0.000000e+00> : vector<24x512xf32>
    %475 = tpu.matmul %0, %474, %cst_44 {dimension_numbers = #tpu.dot_dimension_numbers<[1], [0], [0], [1], [0, 0, 1, 1], [], []>} : vector<24x24xf32>, vector<24x512xf32>, vector<24x512xf32> -> vector<24x512xf32>
    %476 = arith.addf %475, %5 : vector<24x512xf32>
    %477 = vector.broadcast %4 : f32 to vector<24x512xf32>
    %478 = arith.maximumf %477, %476 : vector<24x512xf32>
    %479 = vector.broadcast %3 : f32 to vector<24x512xf32>
    %480 = arith.minimumf %479, %478 : vector<24x512xf32>
    %481 = arith.subf %476, %480 : vector<24x512xf32>
    %482 = arith.index_cast %c36_i32 : i32 to index
    %483 = memref.load %arg1[%482] : memref<40xf32, #tpu.memory_space<smem>>
    %484 = arith.subf %481, %468 : vector<24x512xf32>
    %485 = vector.broadcast %483 : f32 to vector<24x512xf32>
    %486 = arith.mulf %485, %484 : vector<24x512xf32>
    %487 = arith.addf %481, %486 : vector<24x512xf32>
    %c37_i32 = arith.constant 37 : i32
    %cst_45 = arith.constant dense<0.000000e+00> : vector<24x512xf32>
    %488 = tpu.matmul %0, %487, %cst_45 {dimension_numbers = #tpu.dot_dimension_numbers<[1], [0], [0], [1], [0, 0, 1, 1], [], []>} : vector<24x24xf32>, vector<24x512xf32>, vector<24x512xf32> -> vector<24x512xf32>
    %489 = arith.addf %488, %5 : vector<24x512xf32>
    %490 = vector.broadcast %4 : f32 to vector<24x512xf32>
    %491 = arith.maximumf %490, %489 : vector<24x512xf32>
    %492 = vector.broadcast %3 : f32 to vector<24x512xf32>
    %493 = arith.minimumf %492, %491 : vector<24x512xf32>
    %494 = arith.subf %489, %493 : vector<24x512xf32>
    %495 = arith.index_cast %c37_i32 : i32 to index
    %496 = memref.load %arg1[%495] : memref<40xf32, #tpu.memory_space<smem>>
    %497 = arith.subf %494, %481 : vector<24x512xf32>
    %498 = vector.broadcast %496 : f32 to vector<24x512xf32>
    %499 = arith.mulf %498, %497 : vector<24x512xf32>
    %500 = arith.addf %494, %499 : vector<24x512xf32>
    %c38_i32 = arith.constant 38 : i32
    %cst_46 = arith.constant dense<0.000000e+00> : vector<24x512xf32>
    %501 = tpu.matmul %0, %500, %cst_46 {dimension_numbers = #tpu.dot_dimension_numbers<[1], [0], [0], [1], [0, 0, 1, 1], [], []>} : vector<24x24xf32>, vector<24x512xf32>, vector<24x512xf32> -> vector<24x512xf32>
    %502 = arith.addf %501, %5 : vector<24x512xf32>
    %503 = vector.broadcast %4 : f32 to vector<24x512xf32>
    %504 = arith.maximumf %503, %502 : vector<24x512xf32>
    %505 = vector.broadcast %3 : f32 to vector<24x512xf32>
    %506 = arith.minimumf %505, %504 : vector<24x512xf32>
    %507 = arith.subf %502, %506 : vector<24x512xf32>
    %508 = arith.index_cast %c38_i32 : i32 to index
    %509 = memref.load %arg1[%508] : memref<40xf32, #tpu.memory_space<smem>>
    %510 = arith.subf %507, %494 : vector<24x512xf32>
    %511 = vector.broadcast %509 : f32 to vector<24x512xf32>
    %512 = arith.mulf %511, %510 : vector<24x512xf32>
    %513 = arith.addf %507, %512 : vector<24x512xf32>
    %c39_i32 = arith.constant 39 : i32
    %cst_47 = arith.constant dense<0.000000e+00> : vector<24x512xf32>
    %514 = tpu.matmul %0, %513, %cst_47 {dimension_numbers = #tpu.dot_dimension_numbers<[1], [0], [0], [1], [0, 0, 1, 1], [], []>} : vector<24x24xf32>, vector<24x512xf32>, vector<24x512xf32> -> vector<24x512xf32>
    %515 = arith.addf %514, %5 : vector<24x512xf32>
    %516 = vector.broadcast %4 : f32 to vector<24x512xf32>
    %517 = arith.maximumf %516, %515 : vector<24x512xf32>
    %518 = vector.broadcast %3 : f32 to vector<24x512xf32>
    %519 = arith.minimumf %518, %517 : vector<24x512xf32>
    %520 = arith.subf %515, %519 : vector<24x512xf32>
    %521 = arith.index_cast %c39_i32 : i32 to index
    %522 = memref.load %arg1[%521] : memref<40xf32, #tpu.memory_space<smem>>
    %523 = arith.subf %520, %507 : vector<24x512xf32>
    %524 = vector.broadcast %522 : f32 to vector<24x512xf32>
    %525 = arith.mulf %524, %523 : vector<24x512xf32>
    %526 = arith.addf %520, %525 : vector<24x512xf32>
    %c40_i32 = arith.constant 40 : i32
    %c0_48 = arith.constant 0 : index
    %c0_49 = arith.constant 0 : index
    %527 = vector.load %arg6[%c0_48, %c0_49] : memref<24x512xf32, #tpu.memory_space<vmem>>, vector<24x512xf32>
    tpu.vector_store %arg6[%c0_48, %c0_49], %520 {strides = array<i32>} : memref<24x512xf32, #tpu.memory_space<vmem>>, vector<24x512xf32>,
    return
  }
  func.func @transform_0(%arg0: i32) -> i32 {
    %c0_i32 = arith.constant 0 : i32
    %c0_i32_0 = arith.constant 0 : i32
    return %c0_i32 : i32
  }
  func.func @transform_1(%arg0: i32) -> i32 {
    %c0_i32 = arith.constant 0 : i32
    %c0_i32_0 = arith.constant 0 : i32
    return %c0_i32 : i32
  }
  func.func @transform_2(%arg0: i32) -> (i32, i32) {
    %c0_i32 = arith.constant 0 : i32
    %c0_i32_0 = arith.constant 0 : i32
    %c0_i32_1 = arith.constant 0 : i32
    return %c0_i32, %c0_i32_0 : i32, i32
  }
  func.func @transform_3(%arg0: i32) -> (i32, i32) {
    %c0_i32 = arith.constant 0 : i32
    %c0_i32_0 = arith.constant 0 : i32
    %c0_i32_1 = arith.constant 0 : i32
    return %c0_i32, %c0_i32_0 : i32, i32
  }
  func.func @transform_4(%arg0: i32) -> (i32, i32) {
    %c0_i32 = arith.constant 0 : i32
    %c0_i32_0 = arith.constant 0 : i32
    return %c0_i32, %arg0 : i32, i32
  }
  func.func @transform_5(%arg0: i32) -> (i32, i32) {
    %c0_i32 = arith.constant 0 : i32
    %c0_i32_0 = arith.constant 0 : i32
    return %c0_i32, %arg0 : i32, i32
  }
}

</mosaic_0001>

<llo_original>
// kernel: tpu_custom_call.1
$region0: #{tpu_custom_call.1}
  #allocation0 [shape = 'u32[]', space=smem, size = 0x4, offset = 0x4, fixed_abs, tag = 'smem constant byte address 0x4 - core index']
  #allocation1 [shape = 'u32[144,128]{1,0:T(1,128)}', space=vmem, size = 0x12000, scoped, tag = 'internal scratch']
  #allocation2 [shape = 'f32[1]{0:T(128)S(6)}', space=smem, size = 0x200, scoped, tag = 'scoped memory for tpu_custom_call.1']
  %s0 = inlined_call_operand.vmem [shape: f32[40], index: 0, kind: input, shape index: {}]
  %s1 = inlined_call_operand.<no memory space> [shape: f32[1], index: 1, kind: input, shape index: {}]
  %s2 = inlined_call_operand.hbm [shape: f32[24,24], index: 2, kind: input, shape index: {}]
  %s3 = inlined_call_operand.hbm [shape: f32[8,24], index: 3, kind: input, shape index: {}]
  %s4 = inlined_call_operand.hbm [shape: f32[8,512], index: 4, kind: input, shape index: {}]
  %s5 = inlined_call_operand.hbm [shape: f32[24,512], index: 5, kind: output, shape index: {}]
  %s6 = sld [smem:[#allocation0]]
  $region46: #{tpu_custom_call.1} parent=0
    _
  %s8 = ssub.s32 1, %s6
  %s9 = scalar_select 0, %s8, %s6
  %10 = sst [smem:[#allocation2]] %s1
  $region1: #{tpu_custom_call.1} parent=0
    #allocation3 [shape = 'u8[512]{0}', space=smem, size = 0x200, scoped, tag = 'input window, operand 0, single buffered']
    #allocation4 [shape = 's32[1]{0}', space=sflag, size = 0x4, scoped, tag = 'scoped memory for tpu_custom_call.1']
    #allocation5 [shape = 's32[1]{0}', space=sflag, size = 0x4, scoped, tag = 'scoped memory for tpu_custom_call.1']
    #allocation6 [shape = 's32[1]{0}', space=sflag, size = 0x4, scoped, tag = 'scoped memory for tpu_custom_call.1']
    #allocation7 [shape = 'u8[12288]{0}', space=vmem, size = 0x3000, scoped, tag = 'input window, operand 2, single buffered']
    #allocation8 [shape = 'u8[4096]{0}', space=vmem, size = 0x1000, scoped, tag = 'input window, operand 3, single buffered']
    #allocation9 [shape = 's32[1]{0}', space=sflag, size = 0x4, scoped, tag = 'scoped memory for tpu_custom_call.1']
    #allocation10 [shape = 'u8[16384]{0}', space=vmem, size = 0x4000, scoped, tag = 'input window, operand 4, single buffered']
    #allocation11 [shape = 'u8[49152]{0}', space=vmem, size = 0xc000, scoped, tag = 'output window, operand 0, single buffered']
    %11 = vsyncpa [#allocation6], 0
    %12 = vsyncpa [#allocation4], 0
    %13 = vsyncpa [#allocation9], 0
    %14 = vsyncpa [#allocation5], 0
    // Predicated region
    $region2: #{tpu_custom_call.1} parent=1 // pred_check
      _
    $region3: #{tpu_custom_call.1} parent=1 // pred_check_branch
      %16 = sbr.rel (0) target = $region5
    $region4: #{tpu_custom_call.1} parent=1 // pred_region
      %s18 = ssub.s32 16, 16
      %19 = vsyncadd [#allocation6], %s18
      %s21 = sshll.u32 %s0, 4
      %s22 = int_to_ptr.vmem [resolvable:$true] %s21
      %24 = dma.vmem_to_smem %s22, 16, [#allocation3], [#allocation6]
    $region5: #{tpu_custom_call.1} parent=1 // pred_fallthru
      _
    // Predicated region
    $region6: #{tpu_custom_call.1} parent=1 // pred_check
      _
    $region7: #{tpu_custom_call.1} parent=1 // pred_check_branch
      %26 = sbr.rel (0) target = $region9
    $region8: #{tpu_custom_call.1} parent=1 // pred_region
      _
    $region9: #{tpu_custom_call.1} parent=1 // pred_fallthru
      _
    // Predicated region
    $region10: #{tpu_custom_call.1} parent=1 // pred_check
      _
    $region11: #{tpu_custom_call.1} parent=1 // pred_check_branch
      %28 = sbr.rel (0) target = $region13
    $region12: #{tpu_custom_call.1} parent=1 // pred_region
      %s30 = ssub.s32 384, 384
      %31 = vsyncadd [#allocation4], %s30
      %s32 = sshll.u32 [#allocation7], 4
      %s33 = int_to_ptr.vmem [resolvable:$true] %s32
      %38 = dma.hbm_to_vmem [thread:$0]  %s2, 384, %s33, [#allocation4], 128, 128, 8
    $region13: #{tpu_custom_call.1} parent=1 // pred_fallthru
      _
    // Predicated region
    $region14: #{tpu_custom_call.1} parent=1 // pred_check
      _
    $region15: #{tpu_custom_call.1} parent=1 // pred_check_branch
      %40 = sbr.rel (0) target = $region17
    $region16: #{tpu_custom_call.1} parent=1 // pred_region
      %s42 = ssub.s32 128, 128
      %43 = vsyncadd [#allocation9], %s42
      %s45 = sshll.u32 [#allocation8], 4
      %s46 = int_to_ptr.vmem [resolvable:$true] %s45
      %48 = dma.hbm_to_vmem [thread:$0]  %s3, 128, %s46, [#allocation9]
    $region17: #{tpu_custom_call.1} parent=1 // pred_fallthru
      _
    // Predicated region
    $region18: #{tpu_custom_call.1} parent=1 // pred_check
      _
    $region19: #{tpu_custom_call.1} parent=1 // pred_check_branch
      %50 = sbr.rel (0) target = $region21
    $region20: #{tpu_custom_call.1} parent=1 // pred_region
      %s52 = ssub.s32 512, 512
      %53 = vsyncadd [#allocation9], %s52
      %s55 = sshll.u32 [#allocation10], 4
      %s56 = int_to_ptr.vmem [resolvable:$true] %s55
      %58 = dma.hbm_to_vmem [thread:$0]  %s4, 512, %s56, [#allocation9]
    $region21: #{tpu_custom_call.1} parent=1 // pred_fallthru
      _
    // Predicated region
    $region22: #{tpu_custom_call.1} parent=1 // pred_check
      _
    $region23: #{tpu_custom_call.1} parent=1 // pred_check_branch
      %60 = sbr.rel (0) target = $region25
    $region24: #{tpu_custom_call.1} parent=1 // pred_region
      %61 = dma.done [#allocation6], 16
    $region25: #{tpu_custom_call.1} parent=1 // pred_fallthru
      _
    // Predicated region
    $region26: #{tpu_custom_call.1} parent=1 // pred_check
      _
    $region27: #{tpu_custom_call.1} parent=1 // pred_check_branch
      %63 = sbr.rel (0) target = $region29
    $region28: #{tpu_custom_call.1} parent=1 // pred_region
      %64 = dma.done [#allocation4], 384
    $region29: #{tpu_custom_call.1} parent=1 // pred_fallthru
      _
    // Predicated region
    $region30: #{tpu_custom_call.1} parent=1 // pred_check
      _
    $region31: #{tpu_custom_call.1} parent=1 // pred_check_branch
      %66 = sbr.rel (0) target = $region33
    $region32: #{tpu_custom_call.1} parent=1 // pred_region
      %67 = dma.done [#allocation9], 128
    $region33: #{tpu_custom_call.1} parent=1 // pred_fallthru
      _
    // Predicated region
    $region34: #{tpu_custom_call.1} parent=1 // pred_check
      _
    $region35: #{tpu_custom_call.1} parent=1 // pred_check_branch
      %69 = sbr.rel (0) target = $region37
    $region36: #{tpu_custom_call.1} parent=1 // pred_region
      %70 = dma.done [#allocation9], 512
    $region37: #{tpu_custom_call.1} parent=1 // pred_fallthru
      _
    %71 = sfence
    %v72 = vld [vmem:[#allocation7] sm:$0xff]
    %v73 = vld [vmem:[#allocation7 + $0x8] sm:$0xff]
    %v74 = vld [vmem:[#allocation7 + $0x10] sm:$0xff]
    %v75 = vld [vmem:[#allocation8] sm:$0xff]
    %v76 = vld [vmem:[#allocation10] sm:$0xff]
    %v77 = vld [vmem:[#allocation10 + $0x8] sm:$0xff]
    %v78 = vld [vmem:[#allocation10 + $0x10] sm:$0xff]
    %v79 = vld [vmem:[#allocation10 + $0x18] sm:$0xff]
    %s80 = sld [smem:[#allocation2]]
    %s81 = ssub.f32 0.0, %s80
    %82 = vxpose.xlu0.b32.start [1/16] %v75, 128
    %83 = vxpose.xlu0.b32.cont [2/16] 0.0, 128
    %84 = vxpose.xlu0.b32.cont [3/16] 0.0, 128
    %85 = vxpose.xlu0.b32.cont [4/16] 0.0, 128
    %86 = vxpose.xlu0.b32.cont [5/16] 0.0, 128
    %87 = vxpose.xlu0.b32.cont [6/16] 0.0, 128
    %88 = vxpose.xlu0.b32.cont [7/16] 0.0, 128
    %89 = vxpose.xlu0.b32.cont [8/16] 0.0, 128
    %90 = vxpose.xlu0.b32.cont [9/16] 0.0, 128
    %91 = vxpose.xlu0.b32.cont [10/16] 0.0, 128
    %92 = vxpose.xlu0.b32.cont [11/16] 0.0, 128
    %93 = vxpose.xlu0.b32.cont [12/16] 0.0, 128
    %94 = vxpose.xlu0.b32.cont [13/16] 0.0, 128
    %95 = vxpose.xlu0.b32.cont [14/16] 0.0, 128
    %96 = vxpose.xlu0.b32.cont [15/16] 0.0, 128
    %97 = vxpose.xlu0.b32.end [16/16] 0.0, 128
    %v98 = vpop.trf.xlu0
    %v99 = vpop.trf.xlu0
    %v100 = vpop.trf.xlu0
    %v101 = vpop.trf.xlu0
    %v102 = vpop.trf.xlu0
    %v103 = vpop.trf.xlu0
    %v104 = vpop.trf.xlu0
    %v105 = vpop.trf.xlu0
    %v106 = vpop.trf.xlu0
    %v107 = vpop.trf.xlu0
    %v108 = vpop.trf.xlu0
    %v109 = vpop.trf.xlu0
    %v110 = vpop.trf.xlu0
    %v111 = vpop.trf.xlu0
    %v112 = vpop.trf.xlu0
    %v113 = vpop.trf.xlu0
    %vm114 = vcmask 64512
    %v116 = vsel %vm114, %v98, 0
    %v119 = vsel %vm114, %v99, 0
    %v122 = vsel %vm114, %v100, 0
    %124 = vmatprep.subr.mxu0 0.0
    %125 = vmatpush1.msra.mxu0 0.0
    %126 = vmatprep.subr.mxu0 0.0
    %127 = vmatpush1.msra.mxu0 0.0
    %128 = vmatprep.subr.mxu0 0.0
    %129 = vmatpush1.msra.mxu0 0.0
    %130 = vmatprep.subr.mxu0 0.0
    %131 = vmatpush1.msra.mxu0 0.0
    %132 = vmatprep.subr.mxu0 0.0
    %133 = vmatpush1.msra.mxu0 0.0
    %134 = vmatprep.subr.mxu0 0.0
    %135 = vmatpush1.msra.mxu0 0.0
    %136 = vmatprep.subr.mxu0 0.0
    %137 = vmatpush1.msra.mxu0 0.0
    %138 = vmatprep.subr.mxu0 0.0
    %139 = vmatpush1.msra.mxu0 0.0
    %140 = vmatprep.subr.mxu0 0.0
    %141 = vmatpush1.msra.mxu0 0.0
    %142 = vmatprep.subr.mxu0 0.0
    %143 = vmatpush1.msra.mxu0 0.0
    %144 = vmatprep.subr.mxu0 0.0
    %145 = vmatpush1.msra.mxu0 0.0
    %146 = vmatprep.subr.mxu0 0.0
    %147 = vmatpush1.msra.mxu0 0.0
    %148 = vmatprep.subr.mxu0 0.0
    %149 = vmatpush1.msra.mxu0 0.0
    %150 = vmatprep.subr.mxu0 0.0
    %151 = vmatpush1.msra.mxu0 0.0
    %152 = vmatprep.subr.mxu0 0.0
    %153 = vmatpush1.msra.mxu0 0.0
    %154 = vmatprep.subr.mxu0 %v77
    %155 = vmatpush1.msra.mxu0 %v76
    %156 = vmatprep.subr.mxu0 0.0
    %157 = vmatpush2.msra.mxu0 0.0
    %158 = vmatprep.subr.mxu0 0.0
    %159 = vmatpush2.msra.mxu0 0.0
    %160 = vmatprep.subr.mxu0 0.0
    %161 = vmatpush2.msra.mxu0 0.0
    %162 = vmatprep.subr.mxu0 0.0
    %163 = vmatpush2.msra.mxu0 0.0
    %164 = vmatprep.subr.mxu0 0.0
    %165 = vmatpush2.msra.mxu0 0.0
    %166 = vmatprep.subr.mxu0 0.0
    %167 = vmatpush2.msra.mxu0 0.0
    %168 = vmatprep.subr.mxu0 0.0
    %169 = vmatpush2.msra.mxu0 0.0
    %170 = vmatprep.subr.mxu0 0.0
    %171 = vmatpush2.msra.mxu0 0.0
    %172 = vmatprep.subr.mxu0 0.0
    %173 = vmatpush2.msra.mxu0 0.0
    %174 = vmatprep.subr.mxu0 0.0
    %175 = vmatpush2.msra.mxu0 0.0
    %176 = vmatprep.subr.mxu0 0.0
    %177 = vmatpush2.msra.mxu0 0.0
    %178 = vmatprep.subr.mxu0 0.0
    %179 = vmatpush2.msra.mxu0 0.0
    %180 = vmatprep.subr.mxu0 0.0
    %181 = vmatpush2.msra.mxu0 0.0
    %182 = vmatprep.subr.mxu0 0.0
    %183 = vmatpush2.msra.mxu0 0.0
    %184 = vmatprep.subr.mxu0 0.0
    %185 = vmatpush2.msra.mxu0 0.0
    %186 = vmatprep.subr.mxu0 0.0
    %187 = vmatpush2.msra.mxu0 0.0
    %188 = vmatprep.mubr.f32.mxu0 0.0
    %189 = vmatmul.mubr.f32.gmra.mxu0 %v116
    %v190 = vpop.f32.mrf.mxu0
    %v191 = vadd.f32 0.0, %v190
    %v192 = vpop.f32.mrf.mxu0
    %v193 = vadd.f32 0.0, %v192
    %194 = vmatprep.mubr.f32.mxu0 0.0
    %195 = vmatmul.mubr.f32.gmra.mxu0 %v119
    %v196 = vpop.f32.mrf.mxu0
    %v197 = vadd.f32 0.0, %v196
    %v198 = vpop.f32.mrf.mxu0
    %v199 = vadd.f32 0.0, %v198
    %200 = vmatprep.mubr.f32.mxu0 0.0
    %201 = vmatmul.mubr.f32.gmra.mxu0 %v122
    %v202 = vpop.f32.mrf.mxu0
    %v203 = vadd.f32 0.0, %v202
    %v204 = vpop.f32.mrf.mxu0
    %v205 = vadd.f32 0.0, %v204
    %206 = vdwg.mxu0
    %207 = vmatprep.subr.mxu0 0.0
    %208 = vmatpush1.msra.mxu0 0.0
    %209 = vmatprep.subr.mxu0 0.0
    %210 = vmatpush1.msra.mxu0 0.0
    %211 = vmatprep.subr.mxu0 0.0
    %212 = vmatpush1.msra.mxu0 0.0
    %213 = vmatprep.subr.mxu0 0.0
    %214 = vmatpush1.msra.mxu0 0.0
    %215 = vmatprep.subr.mxu0 0.0
    %216 = vmatpush1.msra.mxu0 0.0
    %217 = vmatprep.subr.mxu0 0.0
    %218 = vmatpush1.msra.mxu0 0.0
    %219 = vmatprep.subr.mxu0 0.0
    %220 = vmatpush1.msra.mxu0 0.0
    %221 = vmatprep.subr.mxu0 0.0
    %222 = vmatpush1.msra.mxu0 0.0
    %223 = vmatprep.subr.mxu0 0.0
    %224 = vmatpush1.msra.mxu0 0.0
    %225 = vmatprep.subr.mxu0 0.0
    %226 = vmatpush1.msra.mxu0 0.0
    %227 = vmatprep.subr.mxu0 0.0
    %228 = vmatpush1.msra.mxu0 0.0
    %229 = vmatprep.subr.mxu0 0.0
    %230 = vmatpush1.msra.mxu0 0.0
    %231 = vmatprep.subr.mxu0 0.0
    %232 = vmatpush1.msra.mxu0 0.0
    %233 = vmatprep.subr.mxu0 0.0
    %234 = vmatpush1.msra.mxu0 0.0
    %235 = vmatprep.subr.mxu0 0.0
    %236 = vmatpush1.msra.mxu0 0.0
    %237 = vmatprep.subr.mxu0 %v79
    %238 = vmatpush1.msra.mxu0 %v78
    %239 = vmatprep.subr.mxu0 0.0
    %240 = vmatpush2.msra.mxu0 0.0
    %241 = vmatprep.subr.mxu0 0.0
    %242 = vmatpush2.msra.mxu0 0.0
    %243 = vmatprep.subr.mxu0 0.0
    %244 = vmatpush2.msra.mxu0 0.0
    %245 = vmatprep.subr.mxu0 0.0
    %246 = vmatpush2.msra.mxu0 0.0
    %247 = vmatprep.subr.mxu0 0.0
    %248 = vmatpush2.msra.mxu0 0.0
    %249 = vmatprep.subr.mxu0 0.0
    %250 = vmatpush2.msra.mxu0 0.0
    %251 = vmatprep.subr.mxu0 0.0
    %252 = vmatpush2.msra.mxu0 0.0
    %253 = vmatprep.subr.mxu0 0.0
    %254 = vmatpush2.msra.mxu0 0.0
    %255 = vmatprep.subr.mxu0 0.0
    %256 = vmatpush2.msra.mxu0 0.0
    %257 = vmatprep.subr.mxu0 0.0
    %258 = vmatpush2.msra.mxu0 0.0
    %259 = vmatprep.subr.mxu0 0.0
    %260 = vmatpush2.msra.mxu0 0.0
    %261 = vmatprep.subr.mxu0 0.0
    %262 = vmatpush2.msra.mxu0 0.0
    %263 = vmatprep.subr.mxu0 0.0
    %264 = vmatpush2.msra.mxu0 0.0
    %265 = vmatprep.subr.mxu0 0.0
    %266 = vmatpush2.msra.mxu0 0.0
    %267 = vmatprep.subr.mxu0 0.0
    %268 = vmatpush2.msra.mxu0 0.0
    %269 = vmatprep.subr.mxu0 0.0
    %270 = vmatpush2.msra.mxu0 0.0
    %271 = vmatprep.mubr.f32.mxu0 0.0
    %272 = vmatmul.mubr.f32.gmra.mxu0 %v116
    %v273 = vpop.f32.mrf.mxu0
    %v274 = vadd.f32 0.0, %v273
    %v275 = vpop.f32.mrf.mxu0
    %v276 = vadd.f32 0.0, %v275
    %277 = vmatprep.mubr.f32.mxu0 0.0
    %278 = vmatmul.mubr.f32.gmra.mxu0 %v119
    %v279 = vpop.f32.mrf.mxu0
    %v280 = vadd.f32 0.0, %v279
    %v281 = vpop.f32.mrf.mxu0
    %v282 = vadd.f32 0.0, %v281
    %283 = vmatprep.mubr.f32.mxu0 0.0
    %284 = vmatmul.mubr.f32.gmra.mxu0 %v122
    %v285 = vpop.f32.mrf.mxu0
    %v286 = vadd.f32 0.0, %v285
    %v287 = vpop.f32.mrf.mxu0
    %v288 = vadd.f32 0.0, %v287
    %289 = vdwg.mxu0
    %vm290 = vcmask 195584
    %v292 = vsel %vm290, %v72, 0
    %v295 = vsel %vm290, %v73, 0
    %v298 = vsel %vm290, %v74, 0
    %300 = vmatprep.subr.mxu0 0.0
    %301 = vmatpush1.msra.mxu0 0.0
    %302 = vmatprep.subr.mxu0 0.0
    %303 = vmatpush1.msra.mxu0 0.0
    %304 = vmatprep.subr.mxu0 0.0
    %305 = vmatpush1.msra.mxu0 0.0
    %306 = vmatprep.subr.mxu0 0.0
    %307 = vmatpush1.msra.mxu0 0.0
    %308 = vmatprep.subr.mxu0 0.0
    %309 = vmatpush1.msra.mxu0 0.0
    %310 = vmatprep.subr.mxu0 0.0
    %311 = vmatpush1.msra.mxu0 0.0
    %312 = vmatprep.subr.mxu0 0.0
    %313 = vmatpush1.msra.mxu0 0.0
    %314 = vmatprep.subr.mxu0 0.0
    %315 = vmatpush1.msra.mxu0 0.0
    %316 = vmatprep.subr.mxu0 0.0
    %317 = vmatpush1.msra.mxu0 0.0
    %318 = vmatprep.subr.mxu0 0.0
    %319 = vmatpush1.msra.mxu0 0.0
    %320 = vmatprep.subr.mxu0 0.0
    %321 = vmatpush1.msra.mxu0 0.0
    %322 = vmatprep.subr.mxu0 0.0
    %323 = vmatpush1.msra.mxu0 0.0
    %324 = vmatprep.subr.mxu0 0.0
    %325 = vmatpush1.msra.mxu0 0.0
    %326 = vmatprep.subr.mxu0 0.0
    %327 = vmatpush1.msra.mxu0 0.0
    %328 = vmatprep.subr.mxu0 0.0
    %329 = vmatpush1.msra.mxu0 0.0
    %330 = vmatprep.subr.mxu0 0.0
    %331 = vmatpush1.msra.mxu0 0.0
    %332 = vmatprep.subr.mxu0 0.0
    %333 = vmatpush2.msra.mxu0 0.0
    %334 = vmatprep.subr.mxu0 0.0
    %335 = vmatpush2.msra.mxu0 0.0
    %336 = vmatprep.subr.mxu0 0.0
    %337 = vmatpush2.msra.mxu0 0.0
    %338 = vmatprep.subr.mxu0 0.0
    %339 = vmatpush2.msra.mxu0 0.0
    %340 = vmatprep.subr.mxu0 0.0
    %341 = vmatpush2.msra.mxu0 0.0
    %342 = vmatprep.subr.mxu0 0.0
    %343 = vmatpush2.msra.mxu0 0.0
    %344 = vmatprep.subr.mxu0 0.0
    %345 = vmatpush2.msra.mxu0 0.0
    %346 = vmatprep.subr.mxu0 0.0
    %347 = vmatpush2.msra.mxu0 0.0
    %348 = vmatprep.subr.mxu0 0.0
    %349 = vmatpush2.msra.mxu0 0.0
    %350 = vmatprep.subr.mxu0 0.0
    %351 = vmatpush2.msra.mxu0 0.0
    %352 = vmatprep.subr.mxu0 0.0
    %353 = vmatpush2.msra.mxu0 0.0
    %354 = vmatprep.subr.mxu0 0.0
    %355 = vmatpush2.msra.mxu0 0.0
    %356 = vmatprep.subr.mxu0 0.0
    %357 = vmatpush2.msra.mxu0 0.0
    %358 = vmatprep.subr.mxu0 0.0
    %359 = vmatpush2.msra.mxu0 0.0
    %360 = vmatprep.subr.mxu0 0.0
    %361 = vmatpush2.msra.mxu0 0.0
    %362 = vmatprep.subr.mxu0 0.0
    %363 = vmatpush2.msra.mxu0 0.0
    %364 = vmatprep.mubr.f32.mxu0 0.0
    %365 = vmatmul.mubr.f32.gmra.mxu0 %v292
    %v366 = vpop.f32.mrf.mxu0
    %v367 = vadd.f32 %v191, %v366
    %v368 = vpop.f32.mrf.mxu0
    %v369 = vadd.f32 %v193, %v368
    %370 = vmatprep.mubr.f32.mxu0 0.0
    %371 = vmatmul.mubr.f32.gmra.mxu0 %v295
    %v372 = vpop.f32.mrf.mxu0
    %v373 = vadd.f32 %v197, %v372
    %v374 = vpop.f32.mrf.mxu0
    %v375 = vadd.f32 %v199, %v374
    %376 = vmatprep.mubr.f32.mxu0 0.0
    %377 = vmatmul.mubr.f32.gmra.mxu0 %v298
    %v378 = vpop.f32.mrf.mxu0
    %v379 = vadd.f32 %v203, %v378
    %v380 = vpop.f32.mrf.mxu0
    %v381 = vadd.f32 %v205, %v380
    %382 = vdwg.mxu0
    %383 = vmatprep.subr.mxu0 0.0
    %384 = vmatpush1.msra.mxu0 0.0
    %385 = vmatprep.subr.mxu0 0.0
    %386 = vmatpush1.msra.mxu0 0.0
    %387 = vmatprep.subr.mxu0 0.0
    %388 = vmatpush1.msra.mxu0 0.0
    %389 = vmatprep.subr.mxu0 0.0
    %390 = vmatpush1.msra.mxu0 0.0
    %391 = vmatprep.subr.mxu0 0.0
    %392 = vmatpush1.msra.mxu0 0.0
    %393 = vmatprep.subr.mxu0 0.0
    %394 = vmatpush1.msra.mxu0 0.0
    %395 = vmatprep.subr.mxu0 0.0
    %396 = vmatpush1.msra.mxu0 0.0
    %397 = vmatprep.subr.mxu0 0.0
    %398 = vmatpush1.msra.mxu0 0.0
    %399 = vmatprep.subr.mxu0 0.0
    %400 = vmatpush1.msra.mxu0 0.0
    %401 = vmatprep.subr.mxu0 0.0
    %402 = vmatpush1.msra.mxu0 0.0
    %403 = vmatprep.subr.mxu0 0.0
    %404 = vmatpush1.msra.mxu0 0.0
    %405 = vmatprep.subr.mxu0 0.0
    %406 = vmatpush1.msra.mxu0 0.0
    %407 = vmatprep.subr.mxu0 0.0
    %408 = vmatpush1.msra.mxu0 0.0
    %409 = vmatprep.subr.mxu0 0.0
    %410 = vmatpush1.msra.mxu0 0.0
    %411 = vmatprep.subr.mxu0 0.0
    %412 = vmatpush1.msra.mxu0 0.0
    %413 = vmatprep.subr.mxu0 0.0
    %414 = vmatpush1.msra.mxu0 0.0
    %415 = vmatprep.subr.mxu0 0.0
    %416 = vmatpush2.msra.mxu0 0.0
    %417 = vmatprep.subr.mxu0 0.0
    %418 = vmatpush2.msra.mxu0 0.0
    %419 = vmatprep.subr.mxu0 0.0
    %420 = vmatpush2.msra.mxu0 0.0
    %421 = vmatprep.subr.mxu0 0.0
    %422 = vmatpush2.msra.mxu0 0.0
    %423 = vmatprep.subr.mxu0 0.0
    %424 = vmatpush2.msra.mxu0 0.0
    %425 = vmatprep.subr.mxu0 0.0
    %426 = vmatpush2.msra.mxu0 0.0
    %427 = vmatprep.subr.mxu0 0.0
    %428 = vmatpush2.msra.mxu0 0.0
    %429 = vmatprep.subr.mxu0 0.0
    %430 = vmatpush2.msra.mxu0 0.0
    %431 = vmatprep.subr.mxu0 0.0
    %432 = vmatpush2.msra.mxu0 0.0
    %433 = vmatprep.subr.mxu0 0.0
    %434 = vmatpush2.msra.mxu0 0.0
    %435 = vmatprep.subr.mxu0 0.0
    %436 = vmatpush2.msra.mxu0 0.0
    %437 = vmatprep.subr.mxu0 0.0
    %438 = vmatpush2.msra.mxu0 0.0
    %439 = vmatprep.subr.mxu0 0.0
    %440 = vmatpush2.msra.mxu0 0.0
    %441 = vmatprep.subr.mxu0 0.0
    %442 = vmatpush2.msra.mxu0 0.0
    %443 = vmatprep.subr.mxu0 0.0
    %444 = vmatpush2.msra.mxu0 0.0
    %445 = vmatprep.subr.mxu0 0.0
    %446 = vmatpush2.msra.mxu0 0.0
    %447 = vmatprep.mubr.f32.mxu0 0.0
    %448 = vmatmul.mubr.f32.gmra.mxu0 %v292
    %v449 = vpop.f32.mrf.mxu0
    %v450 = vadd.f32 %v274, %v449
    %v451 = vpop.f32.mrf.mxu0
    %v452 = vadd.f32 %v276, %v451
    %453 = vmatprep.mubr.f32.mxu0 0.0
    %454 = vmatmul.mubr.f32.gmra.mxu0 %v295
    %v455 = vpop.f32.mrf.mxu0
    %v456 = vadd.f32 %v280, %v455
    %v457 = vpop.f32.mrf.mxu0
    %v458 = vadd.f32 %v282, %v457
    %459 = vmatprep.mubr.f32.mxu0 0.0
    %460 = vmatmul.mubr.f32.gmra.mxu0 %v298
    %v461 = vpop.f32.mrf.mxu0
    %v462 = vadd.f32 %v286, %v461
    %v463 = vpop.f32.mrf.mxu0
    %v464 = vadd.f32 %v288, %v463
    %465 = vdwg.mxu0
    %v466 = vstv %s81
    %v467 = vmax.f32 %v466, %v367
    %v468 = vmax.f32 %v466, %v369
    %v469 = vmax.f32 %v466, %v450
    %v470 = vmax.f32 %v466, %v452
    %v471 = vmax.f32 %v466, %v373
    %v472 = vmax.f32 %v466, %v375
    %v473 = vmax.f32 %v466, %v456
    %v474 = vmax.f32 %v466, %v458
    %v475 = vmax.f32 %v466, %v379
    %v476 = vmax.f32 %v466, %v381
    %v477 = vmax.f32 %v466, %v462
    %v478 = vmax.f32 %v466, %v464
    %v479 = vstv %s80
    %v480 = vmin.f32 %v479, %v467
    %v481 = vmin.f32 %v479, %v468
    %v482 = vmin.f32 %v479, %v469
    %v483 = vmin.f32 %v479, %v470
    %v484 = vmin.f32 %v479, %v471
    %v485 = vmin.f32 %v479, %v472
    %v486 = vmin.f32 %v479, %v473
    %v487 = vmin.f32 %v479, %v474
    %v488 = vmin.f32 %v479, %v475
    %v489 = vmin.f32 %v479, %v476
    %v490 = vmin.f32 %v479, %v477
    %v491 = vmin.f32 %v479, %v478
    %v492 = vsub.f32 %v367, %v480
    %v493 = vsub.f32 %v369, %v481
    %v494 = vsub.f32 %v450, %v482
    %v495 = vsub.f32 %v452, %v483
    %v496 = vsub.f32 %v373, %v484
    %v497 = vsub.f32 %v375, %v485
    %v498 = vsub.f32 %v456, %v486
    %v499 = vsub.f32 %v458, %v487
    %v500 = vsub.f32 %v379, %v488
    %v501 = vsub.f32 %v381, %v489
    %v502 = vsub.f32 %v462, %v490
    %v503 = vsub.f32 %v464, %v491
    %s504 = sld [smem:[#allocation3]]
    %v505 = vstv %s504
    %v506 = vmul.f32 %v505, %v492
    %v507 = vmul.f32 %v505, %v493
    %v508 = vmul.f32 %v505, %v494
    %v509 = vmul.f32 %v505, %v495
    %v510 = vmul.f32 %v505, %v496
    %v511 = vmul.f32 %v505, %v497
    %v512 = vmul.f32 %v505, %v498
    %v513 = vmul.f32 %v505, %v499
    %v514 = vmul.f32 %v505, %v500
    %v515 = vmul.f32 %v505, %v501
    %v516 = vmul.f32 %v505, %v502
    %v517 = vmul.f32 %v505, %v503
    %v518 = vadd.f32 %v492, %v506
    %v519 = vadd.f32 %v493, %v507
    %v520 = vadd.f32 %v494, %v508
    %v521 = vadd.f32 %v495, %v509
    %v522 = vadd.f32 %v496, %v510
    %v523 = vadd.f32 %v497, %v511
    %v524 = vadd.f32 %v498, %v512
    %v525 = vadd.f32 %v499, %v513
    %v526 = vadd.f32 %v500, %v514
    %v527 = vadd.f32 %v501, %v515
    %v528 = vadd.f32 %v502, %v516
    %v529 = vadd.f32 %v503, %v517
    %530 = vmatprep.subr.mxu0 0.0
    %531 = vmatpush1.msra.mxu0 0.0
    %532 = vmatprep.subr.mxu0 0.0
    %533 = vmatpush1.msra.mxu0 0.0
    %534 = vmatprep.subr.mxu0 0.0
    %535 = vmatpush1.msra.mxu0 0.0
    %536 = vmatprep.subr.mxu0 0.0
    %537 = vmatpush1.msra.mxu0 0.0
    %538 = vmatprep.subr.mxu0 0.0
    %539 = vmatpush1.msra.mxu0 0.0
    %540 = vmatprep.subr.mxu0 0.0
    %541 = vmatpush1.msra.mxu0 0.0
    %542 = vmatprep.subr.mxu0 0.0
    %543 = vmatpush1.msra.mxu0 0.0
    %544 = vmatprep.subr.mxu0 0.0
    %545 = vmatpush1.msra.mxu0 0.0
    %546 = vmatprep.subr.mxu0 0.0
    %547 = vmatpush1.msra.mxu0 0.0
    %548 = vmatprep.subr.mxu0 0.0
    %549 = vmatpush1.msra.mxu0 0.0
    %550 = vmatprep.subr.mxu0 0.0
    %551 = vmatpush1.msra.mxu0 0.0
    %552 = vmatprep.subr.mxu0 0.0
    %553 = vmatpush1.msra.mxu0 0.0
    %554 = vmatprep.subr.mxu0 0.0
    %555 = vmatpush1.msra.mxu0 0.0
    %556 = vmatprep.subr.mxu0 %v527
    %557 = vmatpush1.msra.mxu0 %v526
    %558 = vmatprep.subr.mxu0 %v523
    %559 = vmatpush1.msra.mxu0 %v522
    %560 = vmatprep.subr.mxu0 %v519
    %561 = vmatpush1.msra.mxu0 %v518
    %562 = vmatprep.subr.mxu0 0.0
    %563 = vmatpush2.msra.mxu0 0.0
    %564 = vmatprep.subr.mxu0 0.0
    %565 = vmatpush2.msra.mxu0 0.0
    %566 = vmatprep.subr.mxu0 0.0
    %567 = vmatpush2.msra.mxu0 0.0
    %568 = vmatprep.subr.mxu0 0.0
    %569 = vmatpush2.msra.mxu0 0.0
    %570 = vmatprep.subr.mxu0 0.0
    %571 = vmatpush2.msra.mxu0 0.0
    %572 = vmatprep.subr.mxu0 0.0
    %573 = vmatpush2.msra.mxu0 0.0
    %574 = vmatprep.subr.mxu0 0.0
    %575 = vmatpush2.msra.mxu0 0.0
    %576 = vmatprep.subr.mxu0 0.0
    %577 = vmatpush2.msra.mxu0 0.0
    %578 = vmatprep.subr.mxu0 0.0
    %579 = vmatpush2.msra.mxu0 0.0
    %580 = vmatprep.subr.mxu0 0.0
    %581 = vmatpush2.msra.mxu0 0.0
    %582 = vmatprep.subr.mxu0 0.0
    %583 = vmatpush2.msra.mxu0 0.0
    %584 = vmatprep.subr.mxu0 0.0
    %585 = vmatpush2.msra.mxu0 0.0
    %586 = vmatprep.subr.mxu0 0.0
    %587 = vmatpush2.msra.mxu0 0.0
    %588 = vmatprep.subr.mxu0 0.0
    %589 = vmatpush2.msra.mxu0 0.0
    %590 = vmatprep.subr.mxu0 0.0
    %591 = vmatpush2.msra.mxu0 0.0
    %592 = vmatprep.subr.mxu0 0.0
    %593 = vmatpush2.msra.mxu0 0.0
    %594 = vmatprep.mubr.f32.mxu0 0.0
    %595 = vmatmul.mubr.f32.gmra.mxu0 %v292
    %v596 = vpop.f32.mrf.mxu0
    %v597 = vadd.f32 %v191, %v596
    %v598 = vpop.f32.mrf.mxu0
    %v599 = vadd.f32 %v193, %v598
    %600 = vmatprep.mubr.f32.mxu0 0.0
    %601 = vmatmul.mubr.f32.gmra.mxu0 %v295
    %v602 = vpop.f32.mrf.mxu0
    %v603 = vadd.f32 %v197, %v602
    %v604 = vpop.f32.mrf.mxu0
    %v605 = vadd.f32 %v199, %v604
    %606 = vmatprep.mubr.f32.mxu0 0.0
    %607 = vmatmul.mubr.f32.gmra.mxu0 %v298
    %v608 = vpop.f32.mrf.mxu0
    %v609 = vadd.f32 %v203, %v608
    %v610 = vpop.f32.mrf.mxu0
    %v611 = vadd.f32 %v205, %v610
    %612 = vdwg.mxu0
    %613 = vmatprep.subr.mxu0 0.0
    %614 = vmatpush1.msra.mxu0 0.0
    %615 = vmatprep.subr.mxu0 0.0
    %616 = vmatpush1.msra.mxu0 0.0
    %617 = vmatprep.subr.mxu0 0.0
    %618 = vmatpush1.msra.mxu0 0.0
    %619 = vmatprep.subr.mxu0 0.0
    %620 = vmatpush1.msra.mxu0 0.0
    %621 = vmatprep.subr.mxu0 0.0
    %622 = vmatpush1.msra.mxu0 0.0
    %623 = vmatprep.subr.mxu0 0.0
    %624 = vmatpush1.msra.mxu0 0.0
    %625 = vmatprep.subr.mxu0 0.0
    %626 = vmatpush1.msra.mxu0 0.0
    %627 = vmatprep.subr.mxu0 0.0
    %628 = vmatpush1.msra.mxu0 0.0
    %629 = vmatprep.subr.mxu0 0.0
    %630 = vmatpush1.msra.mxu0 0.0
    %631 = vmatprep.subr.mxu0 0.0
    %632 = vmatpush1.msra.mxu0 0.0
    %633 = vmatprep.subr.mxu0 0.0
    %634 = vmatpush1.msra.mxu0 0.0
    %635 = vmatprep.subr.mxu0 0.0
    %636 = vmatpush1.msra.mxu0 0.0
    %637 = vmatprep.subr.mxu0 0.0
    %638 = vmatpush1.msra.mxu0 0.0
    %639 = vmatprep.subr.mxu0 %v529
    %640 = vmatpush1.msra.mxu0 %v528
    %641 = vmatprep.subr.mxu0 %v525
    %642 = vmatpush1.msra.mxu0 %v524
    %643 = vmatprep.subr.mxu0 %v521
    %644 = vmatpush1.msra.mxu0 %v520
    %645 = vmatprep.subr.mxu0 0.0
    %646 = vmatpush2.msra.mxu0 0.0
    %647 = vmatprep.subr.mxu0 0.0
    %648 = vmatpush2.msra.mxu0 0.0
    %649 = vmatprep.subr.mxu0 0.0
    %650 = vmatpush2.msra.mxu0 0.0
    %651 = vmatprep.subr.mxu0 0.0
    %652 = vmatpush2.msra.mxu0 0.0
    %653 = vmatprep.subr.mxu0 0.0
    %654 = vmatpush2.msra.mxu0 0.0
    %655 = vmatprep.subr.mxu0 0.0
    %656 = vmatpush2.msra.mxu0 0.0
    %657 = vmatprep.subr.mxu0 0.0
    %658 = vmatpush2.msra.mxu0 0.0
    %659 = vmatprep.subr.mxu0 0.0
    %660 = vmatpush2.msra.mxu0 0.0
    %661 = vmatprep.subr.mxu0 0.0
    %662 = vmatpush2.msra.mxu0 0.0
    %663 = vmatprep.subr.mxu0 0.0
    %664 = vmatpush2.msra.mxu0 0.0
    %665 = vmatprep.subr.mxu0 0.0
    %666 = vmatpush2.msra.mxu0 0.0
    %667 = vmatprep.subr.mxu0 0.0
    %668 = vmatpush2.msra.mxu0 0.0
    %669 = vmatprep.subr.mxu0 0.0
    %670 = vmatpush2.msra.mxu0 0.0
    %671 = vmatprep.subr.mxu0 0.0
    %672 = vmatpush2.msra.mxu0 0.0
    %673 = vmatprep.subr.mxu0 0.0
    %674 = vmatpush2.msra.mxu0 0.0
    %675 = vmatprep.subr.mxu0 0.0
    %676 = vmatpush2.msra.mxu0 0.0
    %677 = vmatprep.mubr.f32.mxu0 0.0
    %678 = vmatmul.mubr.f32.gmra.mxu0 %v292
    %v679 = vpop.f32.mrf.mxu0
    %v680 = vadd.f32 %v274, %v679
    %v681 = vpop.f32.mrf.mxu0
    %v682 = vadd.f32 %v276, %v681
    %683 = vmatprep.mubr.f32.mxu0 0.0
    %684 = vmatmul.mubr.f32.gmra.mxu0 %v295
    %v685 = vpop.f32.mrf.mxu0
    %v686 = vadd.f32 %v280, %v685
    %v687 = vpop.f32.mrf.mxu0
    %v688 = vadd.f32 %v282, %v687
    %689 = vmatprep.mubr.f32.mxu0 0.0
    %690 = vmatmul.mubr.f32.gmra.mxu0 %v298
    %v691 = vpop.f32.mrf.mxu0
    %v692 = vadd.f32 %v286, %v691
    %v693 = vpop.f32.mrf.mxu0
    %v694 = vadd.f32 %v288, %v693
    %695 = vdwg.mxu0
    %v696 = vmax.f32 %v466, %v597
    %v697 = vmax.f32 %v466, %v599
    %v698 = vmax.f32 %v466, %v680
    %v699 = vmax.f32 %v466, %v682
    %v700 = vmax.f32 %v466, %v603
    %v701 = vmax.f32 %v466, %v605
    %v702 = vmax.f32 %v466, %v686
    %v703 = vmax.f32 %v466, %v688
    %v704 = vmax.f32 %v466, %v609
    %v705 = vmax.f32 %v466, %v611
    %v706 = vmax.f32 %v466, %v692
    %v707 = vmax.f32 %v466, %v694
    %v708 = vmin.f32 %v479, %v696
    %v709 = vmin.f32 %v479, %v697
    %v710 = vmin.f32 %v479, %v698
    %v711 = vmin.f32 %v479, %v699
    %v712 = vmin.f32 %v479, %v700
    %v713 = vmin.f32 %v479, %v701
    %v714 = vmin.f32 %v479, %v702
    %v715 = vmin.f32 %v479, %v703
    %v716 = vmin.f32 %v479, %v704
    %v717 = vmin.f32 %v479, %v705
    %v718 = vmin.f32 %v479, %v706
    %v719 = vmin.f32 %v479, %v707
    %v720 = vsub.f32 %v597, %v708
    %v721 = vsub.f32 %v599, %v709
    %v722 = vsub.f32 %v680, %v710
    %v723 = vsub.f32 %v682, %v711
    %v724 = vsub.f32 %v603, %v712
    %v725 = vsub.f32 %v605, %v713
    %v726 = vsub.f32 %v686, %v714
    %v727 = vsub.f32 %v688, %v715
    %v728 = vsub.f32 %v609, %v716
    %v729 = vsub.f32 %v611, %v717
    %v730 = vsub.f32 %v692, %v718
    %v731 = vsub.f32 %v694, %v719
    %s732 = sld [smem:[#allocation3 + $0x1]]
    %v733 = vsub.f32 %v720, %v492
    %v734 = vsub.f32 %v721, %v493
    %v735 = vsub.f32 %v722, %v494
    %v736 = vsub.f32 %v723, %v495
    %v737 = vsub.f32 %v724, %v496
    %v738 = vsub.f32 %v725, %v497
    %v739 = vsub.f32 %v726, %v498
    %v740 = vsub.f32 %v727, %v499
    %v741 = vsub.f32 %v728, %v500
    %v742 = vsub.f32 %v729, %v501
    %v743 = vsub.f32 %v730, %v502
    %v744 = vsub.f32 %v731, %v503
    %v745 = vstv %s732
    %v746 = vmul.f32 %v745, %v733
    %v747 = vmul.f32 %v745, %v734
    %v748 = vmul.f32 %v745, %v735
    %v749 = vmul.f32 %v745, %v736
    %v750 = vmul.f32 %v745, %v737
    %v751 = vmul.f32 %v745, %v738
    %v752 = vmul.f32 %v745, %v739
    %v753 = vmul.f32 %v745, %v740
    %v754 = vmul.f32 %v745, %v741
    %v755 = vmul.f32 %v745, %v742
    %v756 = vmul.f32 %v745, %v743
    %v757 = vmul.f32 %v745, %v744
    %v758 = vadd.f32 %v720, %v746
    %v759 = vadd.f32 %v721, %v747
    %v760 = vadd.f32 %v722, %v748
    %v761 = vadd.f32 %v723, %v749
    %v762 = vadd.f32 %v724, %v750
    %v763 = vadd.f32 %v725, %v751
    %v764 = vadd.f32 %v726, %v752
    %v765 = vadd.f32 %v727, %v753
    %v766 = vadd.f32 %v728, %v754
    %v767 = vadd.f32 %v729, %v755
    %v768 = vadd.f32 %v730, %v756
    %v769 = vadd.f32 %v731, %v757
    %770 = vmatprep.subr.mxu0 0.0
    %771 = vmatpush1.msra.mxu0 0.0
    %772 = vmatprep.subr.mxu0 0.0
    %773 = vmatpush1.msra.mxu0 0.0
    %774 = vmatprep.subr.mxu0 0.0
    %775 = vmatpush1.msra.mxu0 0.0
    %776 = vmatprep.subr.mxu0 0.0
    %777 = vmatpush1.msra.mxu0 0.0
    %778 = vmatprep.subr.mxu0 0.0
    %779 = vmatpush1.msra.mxu0 0.0
    %780 = vmatprep.subr.mxu0 0.0
    %781 = vmatpush1.msra.mxu0 0.0
    %782 = vmatprep.subr.mxu0 0.0
    %783 = vmatpush1.msra.mxu0 0.0
    %784 = vmatprep.subr.mxu0 0.0
    %785 = vmatpush1.msra.mxu0 0.0
    %786 = vmatprep.subr.mxu0 0.0
    %787 = vmatpush1.msra.mxu0 0.0
    %788 = vmatprep.subr.mxu0 0.0
    %789 = vmatpush1.msra.mxu0 0.0
    %790 = vmatprep.subr.mxu0 0.0
    %791 = vmatpush1.msra.mxu0 0.0
    %792 = vmatprep.subr.mxu0 0.0
    %793 = vmatpush1.msra.mxu0 0.0
    %794 = vmatprep.subr.mxu0 0.0
    %795 = vmatpush1.msra.mxu0 0.0
    %796 = vmatprep.subr.mxu0 %v767
    %797 = vmatpush1.msra.mxu0 %v766
    %798 = vmatprep.subr.mxu0 %v763
    %799 = vmatpush1.msra.mxu0 %v762
    %800 = vmatprep.subr.mxu0 %v759
    %801 = vmatpush1.msra.mxu0 %v758
    %802 = vmatprep.subr.mxu0 0.0
    %803 = vmatpush2.msra.mxu0 0.0
    %804 = vmatprep.subr.mxu0 0.0
    %805 = vmatpush2.msra.mxu0 0.0
    %806 = vmatprep.subr.mxu0 0.0
    %807 = vmatpush2.msra.mxu0 0.0
    %808 = vmatprep.subr.mxu0 0.0
    %809 = vmatpush2.msra.mxu0 0.0
    %810 = vmatprep.subr.mxu0 0.0
    %811 = vmatpush2.msra.mxu0 0.0
    %812 = vmatprep.subr.mxu0 0.0
    %813 = vmatpush2.msra.mxu0 0.0
    %814 = vmatprep.subr.mxu0 0.0
    %815 = vmatpush2.msra.mxu0 0.0
    %816 = vmatprep.subr.mxu0 0.0
    %817 = vmatpush2.msra.mxu0 0.0
    %818 = vmatprep.subr.mxu0 0.0
    %819 = vmatpush2.msra.mxu0 0.0
    %820 = vmatprep.subr.mxu0 0.0
    %821 = vmatpush2.msra.mxu0 0.0
    %822 = vmatprep.subr.mxu0 0.0
    %823 = vmatpush2.msra.mxu0 0.0
    %824 = vmatprep.subr.mxu0 0.0
    %825 = vmatpush2.msra.mxu0 0.0
    %826 = vmatprep.subr.mxu0 0.0
    %827 = vmatpush2.msra.mxu0 0.0
    %828 = vmatprep.subr.mxu0 0.0
    %829 = vmatpush2.msra.mxu0 0.0
    %830 = vmatprep.subr.mxu0 0.0
    %831 = vmatpush2.msra.mxu0 0.0
    %832 = vmatprep.subr.mxu0 0.0
    %833 = vmatpush2.msra.mxu0 0.0
    %834 = vmatprep.mubr.f32.mxu0 0.0
    %835 = vmatmul.mubr.f32.gmra.mxu0 %v292
    %v836 = vpop.f32.mrf.mxu0
    %v837 = vadd.f32 %v191, %v836
    %v838 = vpop.f32.mrf.mxu0
    %v839 = vadd.f32 %v193, %v838
    %840 = vmatprep.mubr.f32.mxu0 0.0
    %841 = vmatmul.mubr.f32.gmra.mxu0 %v295
    %v842 = vpop.f32.mrf.mxu0
    %v843 = vadd.f32 %v197, %v842
    %v844 = vpop.f32.mrf.mxu0
    %v845 = vadd.f32 %v199, %v844
    %846 = vmatprep.mubr.f32.mxu0 0.0
    %847 = vmatmul.mubr.f32.gmra.mxu0 %v298
    %v848 = vpop.f32.mrf.mxu0
    %v849 = vadd.f32 %v203, %v848
    %v850 = vpop.f32.mrf.mxu0
    %v851 = vadd.f32 %v205, %v850
    %852 = vdwg.mxu0
    %853 = vmatprep.subr.mxu0 0.0
    %854 = vmatpush1.msra.mxu0 0.0
    %855 = vmatprep.subr.mxu0 0.0
    %856 = vmatpush1.msra.mxu0 0.0
    %857 = vmatprep.subr.mxu0 0.0
    %858 = vmatpush1.msra.mxu0 0.0
    %859 = vmatprep.subr.mxu0 0.0
    %860 = vmatpush1.msra.mxu0 0.0
    %861 = vmatprep.subr.mxu0 0.0
    %862 = vmatpush1.msra.mxu0 0.0
    %863 = vmatprep.subr.mxu0 0.0
    %864 = vmatpush1.msra.mxu0 0.0
    %865 = vmatprep.subr.mxu0 0.0
    %866 = vmatpush1.msra.mxu0 0.0
    %867 = vmatprep.subr.mxu0 0.0
    %868 = vmatpush1.msra.mxu0 0.0
    %869 = vmatprep.subr.mxu0 0.0
    %870 = vmatpush1.msra.mxu0 0.0
    %871 = vmatprep.subr.mxu0 0.0
    %872 = vmatpush1.msra.mxu0 0.0
    %873 = vmatprep.subr.mxu0 0.0
    %874 = vmatpush1.msra.mxu0 0.0
    %875 = vmatprep.subr.mxu0 0.0
    %876 = vmatpush1.msra.mxu0 0.0
    %877 = vmatprep.subr.mxu0 0.0
    %878 = vmatpush1.msra.mxu0 0.0
    %879 = vmatprep.subr.mxu0 %v769
    %880 = vmatpush1.msra.mxu0 %v768
    %881 = vmatprep.subr.mxu0 %v765
    %882 = vmatpush1.msra.mxu0 %v764
    %883 = vmatprep.subr.mxu0 %v761
    %884 = vmatpush1.msra.mxu0 %v760
    %885 = vmatprep.subr.mxu0 0.0
    %886 = vmatpush2.msra.mxu0 0.0
    %887 = vmatprep.subr.mxu0 0.0
    %888 = vmatpush2.msra.mxu0 0.0
    %889 = vmatprep.subr.mxu0 0.0
    %890 = vmatpush2.msra.mxu0 0.0
    %891 = vmatprep.subr.mxu0 0.0
    %892 = vmatpush2.msra.mxu0 0.0
    %893 = vmatprep.subr.mxu0 0.0
    %894 = vmatpush2.msra.mxu0 0.0
    %895 = vmatprep.subr.mxu0 0.0
    %896 = vmatpush2.msra.mxu0 0.0
    %897 = vmatprep.subr.mxu0 0.0
    %898 = vmatpush2.msra.mxu0 0.0
    %899 = vmatprep.subr.mxu0 0.0
    %900 = vmatpush2.msra.mxu0 0.0
    %901 = vmatprep.subr.mxu0 0.0
    %902 = vmatpush2.msra.mxu0 0.0
    %903 = vmatprep.subr.mxu0 0.0
    %904 = vmatpush2.msra.mxu0 0.0
    %905 = vmatprep.subr.mxu0 0.0
    %906 = vmatpush2.msra.mxu0 0.0
    %907 = vmatprep.subr.mxu0 0.0
    %908 = vmatpush2.msra.mxu0 0.0
    %909 = vmatprep.subr.mxu0 0.0
    %910 = vmatpush2.msra.mxu0 0.0
    %911 = vmatprep.subr.mxu0 0.0
    %912 = vmatpush2.msra.mxu0 0.0
    %913 = vmatprep.subr.mxu0 0.0
    %914 = vmatpush2.msra.mxu0 0.0
    %915 = vmatprep.subr.mxu0 0.0
    %916 = vmatpush2.msra.mxu0 0.0
    %917 = vmatprep.mubr.f32.mxu0 0.0
    %918 = vmatmul.mubr.f32.gmra.mxu0 %v292
    %v919 = vpop.f32.mrf.mxu0
    %v920 = vadd.f32 %v274, %v919
    %v921 = vpop.f32.mrf.mxu0
    %v922 = vadd.f32 %v276, %v921
    %923 = vmatprep.mubr.f32.mxu0 0.0
    %924 = vmatmul.mubr.f32.gmra.mxu0 %v295
    %v925 = vpop.f32.mrf.mxu0
    %v926 = vadd.f32 %v280, %v925
    %v927 = vpop.f32.mrf.mxu0
    %v928 = vadd.f32 %v282, %v927
    %929 = vmatprep.mubr.f32.mxu0 0.0
    %930 = vmatmul.mubr.f32.gmra.mxu0 %v298
    %v931 = vpop.f32.mrf.mxu0
    %v932 = vadd.f32 %v286, %v931
    %v933 = vpop.f32.mrf.mxu0
    %v934 = vadd.f32 %v288, %v933
    %935 = vdwg.mxu0
    %v936 = vmax.f32 %v466, %v837
    %v937 = vmax.f32 %v466, %v839
    %v938 = vmax.f32 %v466, %v920
    %v939 = vmax.f32 %v466, %v922
    %v940 = vmax.f32 %v466, %v843
    %v941 = vmax.f32 %v466, %v845
    %v942 = vmax.f32 %v466, %v926
    %v943 = vmax.f32 %v466, %v928
    %v944 = vmax.f32 %v466, %v849
    %v945 = vmax.f32 %v466, %v851
    %v946 = vmax.f32 %v466, %v932
    %v947 = vmax.f32 %v466, %v934
    %v948 = vmin.f32 %v479, %v936
    %v949 = vmin.f32 %v479, %v937
    %v950 = vmin.f32 %v479, %v938
    %v951 = vmin.f32 %v479, %v939
    %v952 = vmin.f32 %v479, %v940
    %v953 = vmin.f32 %v479, %v941
    %v954 = vmin.f32 %v479, %v942
    %v955 = vmin.f32 %v479, %v943
    %v956 = vmin.f32 %v479, %v944
    %v957 = vmin.f32 %v479, %v945
    %v958 = vmin.f32 %v479, %v946
    %v959 = vmin.f32 %v479, %v947
    %v960 = vsub.f32 %v837, %v948
    %v961 = vsub.f32 %v839, %v949
    %v962 = vsub.f32 %v920, %v950
    %v963 = vsub.f32 %v922, %v951
    %v964 = vsub.f32 %v843, %v952
    %v965 = vsub.f32 %v845, %v953
    %v966 = vsub.f32 %v926, %v954
    %v967 = vsub.f32 %v928, %v955
    %v968 = vsub.f32 %v849, %v956
    %v969 = vsub.f32 %v851, %v957
    %v970 = vsub.f32 %v932, %v958
    %v971 = vsub.f32 %v934, %v959
    %s972 = sld [smem:[#allocation3 + $0x2]]
    %v973 = vsub.f32 %v960, %v720
    %v974 = vsub.f32 %v961, %v721
    %v975 = vsub.f32 %v962, %v722
    %v976 = vsub.f32 %v963, %v723
    %v977 = vsub.f32 %v964, %v724
    %v978 = vsub.f32 %v965, %v725
    %v979 = vsub.f32 %v966, %v726
    %v980 = vsub.f32 %v967, %v727
    %v981 = vsub.f32 %v968, %v728
    %v982 = vsub.f32 %v969, %v729
    %v983 = vsub.f32 %v970, %v730
    %v984 = vsub.f32 %v971, %v731
    %v985 = vstv %s972
    %v986 = vmul.f32 %v985, %v973
    %v987 = vmul.f32 %v985, %v974
    %v988 = vmul.f32 %v985, %v975
    %v989 = vmul.f32 %v985, %v976
    %v990 = vmul.f32 %v985, %v977
    %v991 = vmul.f32 %v985, %v978
    %v992 = vmul.f32 %v985, %v979
    %v993 = vmul.f32 %v985, %v980
    %v994 = vmul.f32 %v985, %v981
    %v995 = vmul.f32 %v985, %v982
    %v996 = vmul.f32 %v985, %v983
    %v997 = vmul.f32 %v985, %v984
    %v998 = vadd.f32 %v960, %v986
    %v999 = vadd.f32 %v961, %v987
    %v1000 = vadd.f32 %v962, %v988
    %v1001 = vadd.f32 %v963, %v989
    %v1002 = vadd.f32 %v964, %v990
    %v1003 = vadd.f32 %v965, %v991
    %v1004 = vadd.f32 %v966, %v992
    %v1005 = vadd.f32 %v967, %v993
    %v1006 = vadd.f32 %v968, %v994
    %v1007 = vadd.f32 %v969, %v995
    %v1008 = vadd.f32 %v970, %v996
    %v1009 = vadd.f32 %v971, %v997
    %1010 = vmatprep.subr.mxu0 0.0
    %1011 = vmatpush1.msra.mxu0 0.0
    %1012 = vmatprep.subr.mxu0 0.0
    %1013 = vmatpush1.msra.mxu0 0.0
    %1014 = vmatprep.subr.mxu0 0.0
    %1015 = vmatpush1.msra.mxu0 0.0
    %1016 = vmatprep.subr.mxu0 0.0
    %1017 = vmatpush1.msra.mxu0 0.0
    %1018 = vmatprep.subr.mxu0 0.0
    %1019 = vmatpush1.msra.mxu0 0.0
    %1020 = vmatprep.subr.mxu0 0.0
    %1021 = vmatpush1.msra.mxu0 0.0
    %1022 = vmatprep.subr.mxu0 0.0
    %1023 = vmatpush1.msra.mxu0 0.0
    %1024 = vmatprep.subr.mxu0 0.0
    %1025 = vmatpush1.msra.mxu0 0.0
    %1026 = vmatprep.subr.mxu0 0.0
    %1027 = vmatpush1.msra.mxu0 0.0
    %1028 = vmatprep.subr.mxu0 0.0
    %1029 = vmatpush1.msra.mxu0 0.0
    %1030 = vmatprep.subr.mxu0 0.0
    %1031 = vmatpush1.msra.mxu0 0.0
    %1032 = vmatprep.subr.mxu0 0.0
    %1033 = vmatpush1.msra.mxu0 0.0
    %1034 = vmatprep.subr.mxu0 0.0
    %1035 = vmatpush1.msra.mxu0 0.0
    %1036 = vmatprep.subr.mxu0 %v1007
    %1037 = vmatpush1.msra.mxu0 %v1006
    %1038 = vmatprep.subr.mxu0 %v1003
    %1039 = vmatpush1.msra.mxu0 %v1002
    %1040 = vmatprep.subr.mxu0 %v999
    %1041 = vmatpush1.msra.mxu0 %v998
    %1042 = vmatprep.subr.mxu0 0.0
    %1043 = vmatpush2.msra.mxu0 0.0
    %1044 = vmatprep.subr.mxu0 0.0
    %1045 = vmatpush2.msra.mxu0 0.0
    %1046 = vmatprep.subr.mxu0 0.0
    %1047 = vmatpush2.msra.mxu0 0.0
    %1048 = vmatprep.subr.mxu0 0.0
    %1049 = vmatpush2.msra.mxu0 0.0
    %1050 = vmatprep.subr.mxu0 0.0
    %1051 = vmatpush2.msra.mxu0 0.0
    %1052 = vmatprep.subr.mxu0 0.0
    %1053 = vmatpush2.msra.mxu0 0.0
    %1054 = vmatprep.subr.mxu0 0.0
    %1055 = vmatpush2.msra.mxu0 0.0
    %1056 = vmatprep.subr.mxu0 0.0
    %1057 = vmatpush2.msra.mxu0 0.0
    %1058 = vmatprep.subr.mxu0 0.0
    %1059 = vmatpush2.msra.mxu0 0.0
    %1060 = vmatprep.subr.mxu0 0.0
    %1061 = vmatpush2.msra.mxu0 0.0
    %1062 = vmatprep.subr.mxu0 0.0
    %1063 = vmatpush2.msra.mxu0 0.0
    %1064 = vmatprep.subr.mxu0 0.0
    %1065 = vmatpush2.msra.mxu0 0.0
    %1066 = vmatprep.subr.mxu0 0.0
    %1067 = vmatpush2.msra.mxu0 0.0
    %1068 = vmatprep.subr.mxu0 0.0
    %1069 = vmatpush2.msra.mxu0 0.0
    %1070 = vmatprep.subr.mxu0 0.0
    %1071 = vmatpush2.msra.mxu0 0.0
    %1072 = vmatprep.subr.mxu0 0.0
    %1073 = vmatpush2.msra.mxu0 0.0
    %1074 = vmatprep.mubr.f32.mxu0 0.0
    %1075 = vmatmul.mubr.f32.gmra.mxu0 %v292
    %v1076 = vpop.f32.mrf.mxu0
    %v1077 = vadd.f32 %v191, %v1076
    %v1078 = vpop.f32.mrf.mxu0
    %v1079 = vadd.f32 %v193, %v1078
    %1080 = vmatprep.mubr.f32.mxu0 0.0
    %1081 = vmatmul.mubr.f32.gmra.mxu0 %v295
    %v1082 = vpop.f32.mrf.mxu0
    %v1083 = vadd.f32 %v197, %v1082
    %v1084 = vpop.f32.mrf.mxu0
    %v1085 = vadd.f32 %v199, %v1084
    %1086 = vmatprep.mubr.f32.mxu0 0.0
    %1087 = vmatmul.mubr.f32.gmra.mxu0 %v298
    %v1088 = vpop.f32.mrf.mxu0
    %v1089 = vadd.f32 %v203, %v1088
    %v1090 = vpop.f32.mrf.mxu0
    %v1091 = vadd.f32 %v205, %v1090
    %1092 = vdwg.mxu0
    %1093 = vmatprep.subr.mxu0 0.0
    %1094 = vmatpush1.msra.mxu0 0.0
    %1095 = vmatprep.subr.mxu0 0.0
    %1096 = vmatpush1.msra.mxu0 0.0
    %1097 = vmatprep.subr.mxu0 0.0
    %1098 = vmatpush1.msra.mxu0 0.0
    %1099 = vmatprep.subr.mxu0 0.0
    %1100 = vmatpush1.msra.mxu0 0.0
    %1101 = vmatprep.subr.mxu0 0.0
    %1102 = vmatpush1.msra.mxu0 0.0
    %1103 = vmatprep.subr.mxu0 0.0
    %1104 = vmatpush1.msra.mxu0 0.0
    %1105 = vmatprep.subr.mxu0 0.0
    %1106 = vmatpush1.msra.mxu0 0.0
    %1107 = vmatprep.subr.mxu0 0.0
    %1108 = vmatpush1.msra.mxu0 0.0
    %1109 = vmatprep.subr.mxu0 0.0
    %1110 = vmatpush1.msra.mxu0 0.0
    %1111 = vmatprep.subr.mxu0 0.0
    %1112 = vmatpush1.msra.mxu0 0.0
    %1113 = vmatprep.subr.mxu0 0.0
    %1114 = vmatpush1.msra.mxu0 0.0
    %1115 = vmatprep.subr.mxu0 0.0
    %1116 = vmatpush1.msra.mxu0 0.0
    %1117 = vmatprep.subr.mxu0 0.0
    %1118 = vmatpush1.msra.mxu0 0.0
    %1119 = vmatprep.subr.mxu0 %v1009
    %1120 = vmatpush1.msra.mxu0 %v1008
    %1121 = vmatprep.subr.mxu0 %v1005
    %1122 = vmatpush1.msra.mxu0 %v1004
    %1123 = vmatprep.subr.mxu0 %v1001
    %1124 = vmatpush1.msra.mxu0 %v1000
    %1125 = vmatprep.subr.mxu0 0.0
    %1126 = vmatpush2.msra.mxu0 0.0
    %1127 = vmatprep.subr.mxu0 0.0
    %1128 = vmatpush2.msra.mxu0 0.0
    %1129 = vmatprep.subr.mxu0 0.0
    %1130 = vmatpush2.msra.mxu0 0.0
    %1131 = vmatprep.subr.mxu0 0.0
    %1132 = vmatpush2.msra.mxu0 0.0
    %1133 = vmatprep.subr.mxu0 0.0
    %1134 = vmatpush2.msra.mxu0 0.0
    %1135 = vmatprep.subr.mxu0 0.0
    %1136 = vmatpush2.msra.mxu0 0.0
    %1137 = vmatprep.subr.mxu0 0.0
    %1138 = vmatpush2.msra.mxu0 0.0
    %1139 = vmatprep.subr.mxu0 0.0
    %1140 = vmatpush2.msra.mxu0 0.0
    %1141 = vmatprep.subr.mxu0 0.0
    %1142 = vmatpush2.msra.mxu0 0.0
    %1143 = vmatprep.subr.mxu0 0.0
    %1144 = vmatpush2.msra.mxu0 0.0
    %1145 = vmatprep.subr.mxu0 0.0
    %1146 = vmatpush2.msra.mxu0 0.0
    %1147 = vmatprep.subr.mxu0 0.0
    %1148 = vmatpush2.msra.mxu0 0.0
    %1149 = vmatprep.subr.mxu0 0.0
    %1150 = vmatpush2.msra.mxu0 0.0
    %1151 = vmatprep.subr.mxu0 0.0
    %1152 = vmatpush2.msra.mxu0 0.0
    %1153 = vmatprep.subr.mxu0 0.0
    %1154 = vmatpush2.msra.mxu0 0.0
    %1155 = vmatprep.subr.mxu0 0.0
    %1156 = vmatpush2.msra.mxu0 0.0
    %1157 = vmatprep.mubr.f32.mxu0 0.0
    %1158 = vmatmul.mubr.f32.gmra.mxu0 %v292
    %v1159 = vpop.f32.mrf.mxu0
    %v1160 = vadd.f32 %v274, %v1159
    %v1161 = vpop.f32.mrf.mxu0
    %v1162 = vadd.f32 %v276, %v1161
    %1163 = vmatprep.mubr.f32.mxu0 0.0
    %1164 = vmatmul.mubr.f32.gmra.mxu0 %v295
    %v1165 = vpop.f32.mrf.mxu0
    %v1166 = vadd.f32 %v280, %v1165
    %v1167 = vpop.f32.mrf.mxu0
    %v1168 = vadd.f32 %v282, %v1167
    %1169 = vmatprep.mubr.f32.mxu0 0.0
    %1170 = vmatmul.mubr.f32.gmra.mxu0 %v298
    %v1171 = vpop.f32.mrf.mxu0
    %v1172 = vadd.f32 %v286, %v1171
    %v1173 = vpop.f32.mrf.mxu0
    %v1174 = vadd.f32 %v288, %v1173
    %1175 = vdwg.mxu0
    %v1176 = vmax.f32 %v466, %v1077
    %v1177 = vmax.f32 %v466, %v1079
    %v1178 = vmax.f32 %v466, %v1160
    %v1179 = vmax.f32 %v466, %v1162
    %v1180 = vmax.f32 %v466, %v1083
    %v1181 = vmax.f32 %v466, %v1085
    %v1182 = vmax.f32 %v466, %v1166
    %v1183 = vmax.f32 %v466, %v1168
    %v1184 = vmax.f32 %v466, %v1089
    %v1185 = vmax.f32 %v466, %v1091
    %v1186 = vmax.f32 %v466, %v1172
    %v1187 = vmax.f32 %v466, %v1174
    %v1188 = vmin.f32 %v479, %v1176
    %v1189 = vmin.f32 %v479, %v1177
    %v1190 = vmin.f32 %v479, %v1178
    %v1191 = vmin.f32 %v479, %v1179
    %v1192 = vmin.f32 %v479, %v1180
    %v1193 = vmin.f32 %v479, %v1181
    %v1194 = vmin.f32 %v479, %v1182
    %v1195 = vmin.f32 %v479, %v1183
    %v1196 = vmin.f32 %v479, %v1184
    %v1197 = vmin.f32 %v479, %v1185
    %v1198 = vmin.f32 %v479, %v1186
    %v1199 = vmin.f32 %v479, %v1187
    %v1200 = vsub.f32 %v1077, %v1188
    %v1201 = vsub.f32 %v1079, %v1189
    %v1202 = vsub.f32 %v1160, %v1190
    %v1203 = vsub.f32 %v1162, %v1191
    %v1204 = vsub.f32 %v1083, %v1192
    %v1205 = vsub.f32 %v1085, %v1193
    %v1206 = vsub.f32 %v1166, %v1194
    %v1207 = vsub.f32 %v1168, %v1195
    %v1208 = vsub.f32 %v1089, %v1196
    %v1209 = vsub.f32 %v1091, %v1197
    %v1210 = vsub.f32 %v1172, %v1198
    %v1211 = vsub.f32 %v1174, %v1199
    %s1212 = sld [smem:[#allocation3 + $0x3]]
    %v1213 = vsub.f32 %v1200, %v960
    %v1214 = vsub.f32 %v1201, %v961
    %v1215 = vsub.f32 %v1202, %v962
    %v1216 = vsub.f32 %v1203, %v963
    %v1217 = vsub.f32 %v1204, %v964
    %v1218 = vsub.f32 %v1205, %v965
    %v1219 = vsub.f32 %v1206, %v966
    %v1220 = vsub.f32 %v1207, %v967
    %v1221 = vsub.f32 %v1208, %v968
    %v1222 = vsub.f32 %v1209, %v969
    %v1223 = vsub.f32 %v1210, %v970
    %v1224 = vsub.f32 %v1211, %v971
    %v1225 = vstv %s1212
    %v1226 = vmul.f32 %v1225, %v1213
    %v1227 = vmul.f32 %v1225, %v1214
    %v1228 = vmul.f32 %v1225, %v1215
    %v1229 = vmul.f32 %v1225, %v1216
    %v1230 = vmul.f32 %v1225, %v1217
    %v1231 = vmul.f32 %v1225, %v1218
    %v1232 = vmul.f32 %v1225, %v1219
    %v1233 = vmul.f32 %v1225, %v1220
    %v1234 = vmul.f32 %v1225, %v1221
    %v1235 = vmul.f32 %v1225, %v1222
    %v1236 = vmul.f32 %v1225, %v1223
    %v1237 = vmul.f32 %v1225, %v1224
    %v1238 = vadd.f32 %v1200, %v1226
    %v1239 = vadd.f32 %v1201, %v1227
    %v1240 = vadd.f32 %v1202, %v1228
    %v1241 = vadd.f32 %v1203, %v1229
    %v1242 = vadd.f32 %v1204, %v1230
    %v1243 = vadd.f32 %v1205, %v1231
    %v1244 = vadd.f32 %v1206, %v1232
    %v1245 = vadd.f32 %v1207, %v1233
    %v1246 = vadd.f32 %v1208, %v1234
    %v1247 = vadd.f32 %v1209, %v1235
    %v1248 = vadd.f32 %v1210, %v1236
    %v1249 = vadd.f32 %v1211, %v1237
    %1250 = vmatprep.subr.mxu0 0.0
    %1251 = vmatpush1.msra.mxu0 0.0
    %1252 = vmatprep.subr.mxu0 0.0
    %1253 = vmatpush1.msra.mxu0 0.0
    %1254 = vmatprep.subr.mxu0 0.0
    %1255 = vmatpush1.msra.mxu0 0.0
    %1256 = vmatprep.subr.mxu0 0.0
    %1257 = vmatpush1.msra.mxu0 0.0
    %1258 = vmatprep.subr.mxu0 0.0
    %1259 = vmatpush1.msra.mxu0 0.0
    %1260 = vmatprep.subr.mxu0 0.0
    %1261 = vmatpush1.msra.mxu0 0.0
    %1262 = vmatprep.subr.mxu0 0.0
    %1263 = vmatpush1.msra.mxu0 0.0
    %1264 = vmatprep.subr.mxu0 0.0
    %1265 = vmatpush1.msra.mxu0 0.0
    %1266 = vmatprep.subr.mxu0 0.0
    %1267 = vmatpush1.msra.mxu0 0.0
    %1268 = vmatprep.subr.mxu0 0.0
    %1269 = vmatpush1.msra.mxu0 0.0
    %1270 = vmatprep.subr.mxu0 0.0
    %1271 = vmatpush1.msra.mxu0 0.0
    %1272 = vmatprep.subr.mxu0 0.0
    %1273 = vmatpush1.msra.mxu0 0.0
    %1274 = vmatprep.subr.mxu0 0.0
    %1275 = vmatpush1.msra.mxu0 0.0
    %1276 = vmatprep.subr.mxu0 %v1247
    %1277 = vmatpush1.msra.mxu0 %v1246
    %1278 = vmatprep.subr.mxu0 %v1243
    %1279 = vmatpush1.msra.mxu0 %v1242
    %1280 = vmatprep.subr.mxu0 %v1239
    %1281 = vmatpush1.msra.mxu0 %v1238
    %1282 = vmatprep.subr.mxu0 0.0
    %1283 = vmatpush2.msra.mxu0 0.0
    %1284 = vmatprep.subr.mxu0 0.0
    %1285 = vmatpush2.msra.mxu0 0.0
    %1286 = vmatprep.subr.mxu0 0.0
    %1287 = vmatpush2.msra.mxu0 0.0
    %1288 = vmatprep.subr.mxu0 0.0
    %1289 = vmatpush2.msra.mxu0 0.0
    %1290 = vmatprep.subr.mxu0 0.0
    %1291 = vmatpush2.msra.mxu0 0.0
    %1292 = vmatprep.subr.mxu0 0.0
    %1293 = vmatpush2.msra.mxu0 0.0
    %1294 = vmatprep.subr.mxu0 0.0
    %1295 = vmatpush2.msra.mxu0 0.0
    %1296 = vmatprep.subr.mxu0 0.0
    %1297 = vmatpush2.msra.mxu0 0.0
    %1298 = vmatprep.subr.mxu0 0.0
    %1299 = vmatpush2.msra.mxu0 0.0
    %1300 = vmatprep.subr.mxu0 0.0
    %1301 = vmatpush2.msra.mxu0 0.0
    %1302 = vmatprep.subr.mxu0 0.0
    %1303 = vmatpush2.msra.mxu0 0.0
    %1304 = vmatprep.subr.mxu0 0.0
    %1305 = vmatpush2.msra.mxu0 0.0
    %1306 = vmatprep.subr.mxu0 0.0
    %1307 = vmatpush2.msra.mxu0 0.0
    %1308 = vmatprep.subr.mxu0 0.0
    %1309 = vmatpush2.msra.mxu0 0.0
    %1310 = vmatprep.subr.mxu0 0.0
    %1311 = vmatpush2.msra.mxu0 0.0
    %1312 = vmatprep.subr.mxu0 0.0
    %1313 = vmatpush2.msra.mxu0 0.0
    %1314 = vmatprep.mubr.f32.mxu0 0.0
    %1315 = vmatmul.mubr.f32.gmra.mxu0 %v292
    %v1316 = vpop.f32.mrf.mxu0
    %v1317 = vadd.f32 %v191, %v1316
    %v1318 = vpop.f32.mrf.mxu0
    %v1319 = vadd.f32 %v193, %v1318
    %1320 = vmatprep.mubr.f32.mxu0 0.0
    %1321 = vmatmul.mubr.f32.gmra.mxu0 %v295
    %v1322 = vpop.f32.mrf.mxu0
    %v1323 = vadd.f32 %v197, %v1322
    %v1324 = vpop.f32.mrf.mxu0
    %v1325 = vadd.f32 %v199, %v1324
    %1326 = vmatprep.mubr.f32.mxu0 0.0
    %1327 = vmatmul.mubr.f32.gmra.mxu0 %v298
    %v1328 = vpop.f32.mrf.mxu0
    %v1329 = vadd.f32 %v203, %v1328
    %v1330 = vpop.f32.mrf.mxu0
    %v1331 = vadd.f32 %v205, %v1330
    %1332 = vdwg.mxu0
    %1333 = vmatprep.subr.mxu0 0.0
    %1334 = vmatpush1.msra.mxu0 0.0
    %1335 = vmatprep.subr.mxu0 0.0
    %1336 = vmatpush1.msra.mxu0 0.0
    %1337 = vmatprep.subr.mxu0 0.0
    %1338 = vmatpush1.msra.mxu0 0.0
    %1339 = vmatprep.subr.mxu0 0.0
    %1340 = vmatpush1.msra.mxu0 0.0
    %1341 = vmatprep.subr.mxu0 0.0
    %1342 = vmatpush1.msra.mxu0 0.0
    %1343 = vmatprep.subr.mxu0 0.0
    %1344 = vmatpush1.msra.mxu0 0.0
    %1345 = vmatprep.subr.mxu0 0.0
    %1346 = vmatpush1.msra.mxu0 0.0
    %1347 = vmatprep.subr.mxu0 0.0
    %1348 = vmatpush1.msra.mxu0 0.0
    %1349 = vmatprep.subr.mxu0 0.0
    %1350 = vmatpush1.msra.mxu0 0.0
    %1351 = vmatprep.subr.mxu0 0.0
    %1352 = vmatpush1.msra.mxu0 0.0
    %1353 = vmatprep.subr.mxu0 0.0
    %1354 = vmatpush1.msra.mxu0 0.0
    %1355 = vmatprep.subr.mxu0 0.0
    %1356 = vmatpush1.msra.mxu0 0.0
    %1357 = vmatprep.subr.mxu0 0.0
    %1358 = vmatpush1.msra.mxu0 0.0
    %1359 = vmatprep.subr.mxu0 %v1249
    %1360 = vmatpush1.msra.mxu0 %v1248
    %1361 = vmatprep.subr.mxu0 %v1245
    %1362 = vmatpush1.msra.mxu0 %v1244
    %1363 = vmatprep.subr.mxu0 %v1241
    %1364 = vmatpush1.msra.mxu0 %v1240
    %1365 = vmatprep.subr.mxu0 0.0
    %1366 = vmatpush2.msra.mxu0 0.0
    %1367 = vmatprep.subr.mxu0 0.0
    %1368 = vmatpush2.msra.mxu0 0.0
    %1369 = vmatprep.subr.mxu0 0.0
    %1370 = vmatpush2.msra.mxu0 0.0
    %1371 = vmatprep.subr.mxu0 0.0
    %1372 = vmatpush2.msra.mxu0 0.0
    %1373 = vmatprep.subr.mxu0 0.0
    %1374 = vmatpush2.msra.mxu0 0.0
    %1375 = vmatprep.subr.mxu0 0.0
    %1376 = vmatpush2.msra.mxu0 0.0
    %1377 = vmatprep.subr.mxu0 0.0
    %1378 = vmatpush2.msra.mxu0 0.0
    %1379 = vmatprep.subr.mxu0 0.0
    %1380 = vmatpush2.msra.mxu0 0.0
    %1381 = vmatprep.subr.mxu0 0.0
    %1382 = vmatpush2.msra.mxu0 0.0
    %1383 = vmatprep.subr.mxu0 0.0
    %1384 = vmatpush2.msra.mxu0 0.0
    %1385 = vmatprep.subr.mxu0 0.0
    %1386 = vmatpush2.msra.mxu0 0.0
    %1387 = vmatprep.subr.mxu0 0.0
    %1388 = vmatpush2.msra.mxu0 0.0
    %1389 = vmatprep.subr.mxu0 0.0
    %1390 = vmatpush2.msra.mxu0 0.0
    %1391 = vmatprep.subr.mxu0 0.0
    %1392 = vmatpush2.msra.mxu0 0.0
    %1393 = vmatprep.subr.mxu0 0.0
    %1394 = vmatpush2.msra.mxu0 0.0
    %1395 = vmatprep.subr.mxu0 0.0
    %1396 = vmatpush2.msra.mxu0 0.0
    %1397 = vmatprep.mubr.f32.mxu0 0.0
    %1398 = vmatmul.mubr.f32.gmra.mxu0 %v292
    %v1399 = vpop.f32.mrf.mxu0
    %v1400 = vadd.f32 %v274, %v1399
    %v1401 = vpop.f32.mrf.mxu0
    %v1402 = vadd.f32 %v276, %v1401
    %1403 = vmatprep.mubr.f32.mxu0 0.0
    %1404 = vmatmul.mubr.f32.gmra.mxu0 %v295
    %v1405 = vpop.f32.mrf.mxu0
    %v1406 = vadd.f32 %v280, %v1405
    %v1407 = vpop.f32.mrf.mxu0
    %v1408 = vadd.f32 %v282, %v1407
    %1409 = vmatprep.mubr.f32.mxu0 0.0
    %1410 = vmatmul.mubr.f32.gmra.mxu0 %v298
    %v1411 = vpop.f32.mrf.mxu0
    %v1412 = vadd.f32 %v286, %v1411
    %v1413 = vpop.f32.mrf.mxu0
    %v1414 = vadd.f32 %v288, %v1413
    %1415 = vdwg.mxu0
    %v1416 = vmax.f32 %v466, %v1317
    %v1417 = vmax.f32 %v466, %v1319
    %v1418 = vmax.f32 %v466, %v1400
    %v1419 = vmax.f32 %v466, %v1402
    %v1420 = vmax.f32 %v466, %v1323
    %v1421 = vmax.f32 %v466, %v1325
    %v1422 = vmax.f32 %v466, %v1406
    %v1423 = vmax.f32 %v466, %v1408
    %v1424 = vmax.f32 %v466, %v1329
    %v1425 = vmax.f32 %v466, %v1331
    %v1426 = vmax.f32 %v466, %v1412
    %v1427 = vmax.f32 %v466, %v1414
    %v1428 = vmin.f32 %v479, %v1416
    %v1429 = vmin.f32 %v479, %v1417
    %v1430 = vmin.f32 %v479, %v1418
    %v1431 = vmin.f32 %v479, %v1419
    %v1432 = vmin.f32 %v479, %v1420
    %v1433 = vmin.f32 %v479, %v1421
    %v1434 = vmin.f32 %v479, %v1422
    %v1435 = vmin.f32 %v479, %v1423
    %v1436 = vmin.f32 %v479, %v1424
    %v1437 = vmin.f32 %v479, %v1425
    %v1438 = vmin.f32 %v479, %v1426
    %v1439 = vmin.f32 %v479, %v1427
    %v1440 = vsub.f32 %v1317, %v1428
    %v1441 = vsub.f32 %v1319, %v1429
    %v1442 = vsub.f32 %v1400, %v1430
    %v1443 = vsub.f32 %v1402, %v1431
    %v1444 = vsub.f32 %v1323, %v1432
    %v1445 = vsub.f32 %v1325, %v1433
    %v1446 = vsub.f32 %v1406, %v1434
    %v1447 = vsub.f32 %v1408, %v1435
    %v1448 = vsub.f32 %v1329, %v1436
    %v1449 = vsub.f32 %v1331, %v1437
    %v1450 = vsub.f32 %v1412, %v1438
    %v1451 = vsub.f32 %v1414, %v1439
    %s1452 = sld [smem:[#allocation3 + $0x4]]
    %v1453 = vsub.f32 %v1440, %v1200
    %v1454 = vsub.f32 %v1441, %v1201
    %v1455 = vsub.f32 %v1442, %v1202
    %v1456 = vsub.f32 %v1443, %v1203
    %v1457 = vsub.f32 %v1444, %v1204
    %v1458 = vsub.f32 %v1445, %v1205
    %v1459 = vsub.f32 %v1446, %v1206
    %v1460 = vsub.f32 %v1447, %v1207
    %v1461 = vsub.f32 %v1448, %v1208
    %v1462 = vsub.f32 %v1449, %v1209
    %v1463 = vsub.f32 %v1450, %v1210
    %v1464 = vsub.f32 %v1451, %v1211
    %v1465 = vstv %s1452
    %v1466 = vmul.f32 %v1465, %v1453
    %v1467 = vmul.f32 %v1465, %v1454
    %v1468 = vmul.f32 %v1465, %v1455
    %v1469 = vmul.f32 %v1465, %v1456
    %v1470 = vmul.f32 %v1465, %v1457
    %v1471 = vmul.f32 %v1465, %v1458
    %v1472 = vmul.f32 %v1465, %v1459
    %v1473 = vmul.f32 %v1465, %v1460
    %v1474 = vmul.f32 %v1465, %v1461
    %v1475 = vmul.f32 %v1465, %v1462
    %v1476 = vmul.f32 %v1465, %v1463
    %v1477 = vmul.f32 %v1465, %v1464
    %v1478 = vadd.f32 %v1440, %v1466
    %v1479 = vadd.f32 %v1441, %v1467
    %v1480 = vadd.f32 %v1442, %v1468
    %v1481 = vadd.f32 %v1443, %v1469
    %v1482 = vadd.f32 %v1444, %v1470
    %v1483 = vadd.f32 %v1445, %v1471
    %v1484 = vadd.f32 %v1446, %v1472
    %v1485 = vadd.f32 %v1447, %v1473
    %v1486 = vadd.f32 %v1448, %v1474
    %v1487 = vadd.f32 %v1449, %v1475
    %v1488 = vadd.f32 %v1450, %v1476
    %v1489 = vadd.f32 %v1451, %v1477
    %1490 = vmatprep.subr.mxu0 0.0
    %1491 = vmatpush1.msra.mxu0 0.0
    %1492 = vmatprep.subr.mxu0 0.0
    %1493 = vmatpush1.msra.mxu0 0.0
    %1494 = vmatprep.subr.mxu0 0.0
    %1495 = vmatpush1.msra.mxu0 0.0
    %1496 = vmatprep.subr.mxu0 0.0
    %1497 = vmatpush1.msra.mxu0 0.0
    %1498 = vmatprep.subr.mxu0 0.0
    %1499 = vmatpush1.msra.mxu0 0.0
    %1500 = vmatprep.subr.mxu0 0.0
    %1501 = vmatpush1.msra.mxu0 0.0
    %1502 = vmatprep.subr.mxu0 0.0
    %1503 = vmatpush1.msra.mxu0 0.0
    %1504 = vmatprep.subr.mxu0 0.0
    %1505 = vmatpush1.msra.mxu0 0.0
    %1506 = vmatprep.subr.mxu0 0.0
    %1507 = vmatpush1.msra.mxu0 0.0
    %1508 = vmatprep.subr.mxu0 0.0
    %1509 = vmatpush1.msra.mxu0 0.0
    %1510 = vmatprep.subr.mxu0 0.0
    %1511 = vmatpush1.msra.mxu0 0.0
    %1512 = vmatprep.subr.mxu0 0.0
    %1513 = vmatpush1.msra.mxu0 0.0
    %1514 = vmatprep.subr.mxu0 0.0
    %1515 = vmatpush1.msra.mxu0 0.0
    %1516 = vmatprep.subr.mxu0 %v1487
    %1517 = vmatpush1.msra.mxu0 %v1486
    %1518 = vmatprep.subr.mxu0 %v1483
    %1519 = vmatpush1.msra.mxu0 %v1482
    %1520 = vmatprep.subr.mxu0 %v1479
    %1521 = vmatpush1.msra.mxu0 %v1478
    %1522 = vmatprep.subr.mxu0 0.0
    %1523 = vmatpush2.msra.mxu0 0.0
    %1524 = vmatprep.subr.mxu0 0.0
    %1525 = vmatpush2.msra.mxu0 0.0
    %1526 = vmatprep.subr.mxu0 0.0
    %1527 = vmatpush2.msra.mxu0 0.0
    %1528 = vmatprep.subr.mxu0 0.0
    %1529 = vmatpush2.msra.mxu0 0.0
    %1530 = vmatprep.subr.mxu0 0.0
    %1531 = vmatpush2.msra.mxu0 0.0
    %1532 = vmatprep.subr.mxu0 0.0
    %1533 = vmatpush2.msra.mxu0 0.0
    %1534 = vmatprep.subr.mxu0 0.0
    %1535 = vmatpush2.msra.mxu0 0.0
    %1536 = vmatprep.subr.mxu0 0.0
    %1537 = vmatpush2.msra.mxu0 0.0
    %1538 = vmatprep.subr.mxu0 0.0
    %1539 = vmatpush2.msra.mxu0 0.0
    %1540 = vmatprep.subr.mxu0 0.0
    %1541 = vmatpush2.msra.mxu0 0.0
    %1542 = vmatprep.subr.mxu0 0.0
    %1543 = vmatpush2.msra.mxu0 0.0
    %1544 = vmatprep.subr.mxu0 0.0
    %1545 = vmatpush2.msra.mxu0 0.0
    %1546 = vmatprep.subr.mxu0 0.0
    %1547 = vmatpush2.msra.mxu0 0.0
    %1548 = vmatprep.subr.mxu0 0.0
    %1549 = vmatpush2.msra.mxu0 0.0
    %1550 = vmatprep.subr.mxu0 0.0
    %1551 = vmatpush2.msra.mxu0 0.0
    %1552 = vmatprep.subr.mxu0 0.0
    %1553 = vmatpush2.msra.mxu0 0.0
    %1554 = vmatprep.mubr.f32.mxu0 0.0
    %1555 = vmatmul.mubr.f32.gmra.mxu0 %v292
    %v1556 = vpop.f32.mrf.mxu0
    %v1557 = vadd.f32 %v191, %v1556
    %v1558 = vpop.f32.mrf.mxu0
    %v1559 = vadd.f32 %v193, %v1558
    %1560 = vmatprep.mubr.f32.mxu0 0.0
    %1561 = vmatmul.mubr.f32.gmra.mxu0 %v295
    %v1562 = vpop.f32.mrf.mxu0
    %v1563 = vadd.f32 %v197, %v1562
    %v1564 = vpop.f32.mrf.mxu0
    %v1565 = vadd.f32 %v199, %v1564
    %1566 = vmatprep.mubr.f32.mxu0 0.0
    %1567 = vmatmul.mubr.f32.gmra.mxu0 %v298
    %v1568 = vpop.f32.mrf.mxu0
    %v1569 = vadd.f32 %v203, %v1568
    %v1570 = vpop.f32.mrf.mxu0
    %v1571 = vadd.f32 %v205, %v1570
    %1572 = vdwg.mxu0
    %1573 = vmatprep.subr.mxu0 0.0
    %1574 = vmatpush1.msra.mxu0 0.0
    %1575 = vmatprep.subr.mxu0 0.0
    %1576 = vmatpush1.msra.mxu0 0.0
    %1577 = vmatprep.subr.mxu0 0.0
    %1578 = vmatpush1.msra.mxu0 0.0
    %1579 = vmatprep.subr.mxu0 0.0
    %1580 = vmatpush1.msra.mxu0 0.0
    %1581 = vmatprep.subr.mxu0 0.0
    %1582 = vmatpush1.msra.mxu0 0.0
    %1583 = vmatprep.subr.mxu0 0.0
    %1584 = vmatpush1.msra.mxu0 0.0
    %1585 = vmatprep.subr.mxu0 0.0
    %1586 = vmatpush1.msra.mxu0 0.0
    %1587 = vmatprep.subr.mxu0 0.0
    %1588 = vmatpush1.msra.mxu0 0.0
    %1589 = vmatprep.subr.mxu0 0.0
    %1590 = vmatpush1.msra.mxu0 0.0
    %1591 = vmatprep.subr.mxu0 0.0
    %1592 = vmatpush1.msra.mxu0 0.0
    %1593 = vmatprep.subr.mxu0 0.0
    %1594 = vmatpush1.msra.mxu0 0.0
    %1595 = vmatprep.subr.mxu0 0.0
    %1596 = vmatpush1.msra.mxu0 0.0
    %1597 = vmatprep.subr.mxu0 0.0
    %1598 = vmatpush1.msra.mxu0 0.0
    %1599 = vmatprep.subr.mxu0 %v1489
    %1600 = vmatpush1.msra.mxu0 %v1488
    %1601 = vmatprep.subr.mxu0 %v1485
    %1602 = vmatpush1.msra.mxu0 %v1484
    %1603 = vmatprep.subr.mxu0 %v1481
    %1604 = vmatpush1.msra.mxu0 %v1480
    %1605 = vmatprep.subr.mxu0 0.0
    %1606 = vmatpush2.msra.mxu0 0.0
    %1607 = vmatprep.subr.mxu0 0.0
    %1608 = vmatpush2.msra.mxu0 0.0
    %1609 = vmatprep.subr.mxu0 0.0
    %1610 = vmatpush2.msra.mxu0 0.0
    %1611 = vmatprep.subr.mxu0 0.0
    %1612 = vmatpush2.msra.mxu0 0.0
    %1613 = vmatprep.subr.mxu0 0.0
    %1614 = vmatpush2.msra.mxu0 0.0
    %1615 = vmatprep.subr.mxu0 0.0
    %1616 = vmatpush2.msra.mxu0 0.0
    %1617 = vmatprep.subr.mxu0 0.0
    %1618 = vmatpush2.msra.mxu0 0.0
    %1619 = vmatprep.subr.mxu0 0.0
    %1620 = vmatpush2.msra.mxu0 0.0
    %1621 = vmatprep.subr.mxu0 0.0
    %1622 = vmatpush2.msra.mxu0 0.0
    %1623 = vmatprep.subr.mxu0 0.0
    %1624 = vmatpush2.msra.mxu0 0.0
    %1625 = vmatprep.subr.mxu0 0.0
    %1626 = vmatpush2.msra.mxu0 0.0
    %1627 = vmatprep.subr.mxu0 0.0
    %1628 = vmatpush2.msra.mxu0 0.0
    %1629 = vmatprep.subr.mxu0 0.0
    %1630 = vmatpush2.msra.mxu0 0.0
    %1631 = vmatprep.subr.mxu0 0.0
    %1632 = vmatpush2.msra.mxu0 0.0
    %1633 = vmatprep.subr.mxu0 0.0
    %1634 = vmatpush2.msra.mxu0 0.0
    %1635 = vmatprep.subr.mxu0 0.0
    %1636 = vmatpush2.msra.mxu0 0.0
    %1637 = vmatprep.mubr.f32.mxu0 0.0
    %1638 = vmatmul.mubr.f32.gmra.mxu0 %v292
    %v1639 = vpop.f32.mrf.mxu0
    %v1640 = vadd.f32 %v274, %v1639
    %v1641 = vpop.f32.mrf.mxu0
    %v1642 = vadd.f32 %v276, %v1641
    %1643 = vmatprep.mubr.f32.mxu0 0.0
    %1644 = vmatmul.mubr.f32.gmra.mxu0 %v295
    %v1645 = vpop.f32.mrf.mxu0
    %v1646 = vadd.f32 %v280, %v1645
    %v1647 = vpop.f32.mrf.mxu0
    %v1648 = vadd.f32 %v282, %v1647
    %1649 = vmatprep.mubr.f32.mxu0 0.0
    %1650 = vmatmul.mubr.f32.gmra.mxu0 %v298
    %v1651 = vpop.f32.mrf.mxu0
    %v1652 = vadd.f32 %v286, %v1651
    %v1653 = vpop.f32.mrf.mxu0
    %v1654 = vadd.f32 %v288, %v1653
    %1655 = vdwg.mxu0
    %v1656 = vmax.f32 %v466, %v1557
    %v1657 = vmax.f32 %v466, %v1559
    %v1658 = vmax.f32 %v466, %v1640
    %v1659 = vmax.f32 %v466, %v1642
    %v1660 = vmax.f32 %v466, %v1563
    %v1661 = vmax.f32 %v466, %v1565
    %v1662 = vmax.f32 %v466, %v1646
    %v1663 = vmax.f32 %v466, %v1648
    %v1664 = vmax.f32 %v466, %v1569
    %v1665 = vmax.f32 %v466, %v1571
    %v1666 = vmax.f32 %v466, %v1652
    %v1667 = vmax.f32 %v466, %v1654
    %v1668 = vmin.f32 %v479, %v1656
    %v1669 = vmin.f32 %v479, %v1657
    %v1670 = vmin.f32 %v479, %v1658
    %v1671 = vmin.f32 %v479, %v1659
    %v1672 = vmin.f32 %v479, %v1660
    %v1673 = vmin.f32 %v479, %v1661
    %v1674 = vmin.f32 %v479, %v1662
    %v1675 = vmin.f32 %v479, %v1663
    %v1676 = vmin.f32 %v479, %v1664
    %v1677 = vmin.f32 %v479, %v1665
    %v1678 = vmin.f32 %v479, %v1666
    %v1679 = vmin.f32 %v479, %v1667
    %v1680 = vsub.f32 %v1557, %v1668
    %v1681 = vsub.f32 %v1559, %v1669
    %v1682 = vsub.f32 %v1640, %v1670
    %v1683 = vsub.f32 %v1642, %v1671
    %v1684 = vsub.f32 %v1563, %v1672
    %v1685 = vsub.f32 %v1565, %v1673
    %v1686 = vsub.f32 %v1646, %v1674
    %v1687 = vsub.f32 %v1648, %v1675
    %v1688 = vsub.f32 %v1569, %v1676
    %v1689 = vsub.f32 %v1571, %v1677
    %v1690 = vsub.f32 %v1652, %v1678
    %v1691 = vsub.f32 %v1654, %v1679
    %s1692 = sld [smem:[#allocation3 + $0x5]]
    %v1693 = vsub.f32 %v1680, %v1440
    %v1694 = vsub.f32 %v1681, %v1441
    %v1695 = vsub.f32 %v1682, %v1442
    %v1696 = vsub.f32 %v1683, %v1443
    %v1697 = vsub.f32 %v1684, %v1444
    %v1698 = vsub.f32 %v1685, %v1445
    %v1699 = vsub.f32 %v1686, %v1446
    %v1700 = vsub.f32 %v1687, %v1447
    %v1701 = vsub.f32 %v1688, %v1448
    %v1702 = vsub.f32 %v1689, %v1449
    %v1703 = vsub.f32 %v1690, %v1450
    %v1704 = vsub.f32 %v1691, %v1451
    %v1705 = vstv %s1692
    %v1706 = vmul.f32 %v1705, %v1693
    %v1707 = vmul.f32 %v1705, %v1694
    %v1708 = vmul.f32 %v1705, %v1695
    %v1709 = vmul.f32 %v1705, %v1696
    %v1710 = vmul.f32 %v1705, %v1697
    %v1711 = vmul.f32 %v1705, %v1698
    %v1712 = vmul.f32 %v1705, %v1699
    %v1713 = vmul.f32 %v1705, %v1700
    %v1714 = vmul.f32 %v1705, %v1701
    %v1715 = vmul.f32 %v1705, %v1702
    %v1716 = vmul.f32 %v1705, %v1703
    %v1717 = vmul.f32 %v1705, %v1704
    %v1718 = vadd.f32 %v1680, %v1706
    %v1719 = vadd.f32 %v1681, %v1707
    %v1720 = vadd.f32 %v1682, %v1708
    %v1721 = vadd.f32 %v1683, %v1709
    %v1722 = vadd.f32 %v1684, %v1710
    %v1723 = vadd.f32 %v1685, %v1711
    %v1724 = vadd.f32 %v1686, %v1712
    %v1725 = vadd.f32 %v1687, %v1713
    %v1726 = vadd.f32 %v1688, %v1714
    %v1727 = vadd.f32 %v1689, %v1715
    %v1728 = vadd.f32 %v1690, %v1716
    %v1729 = vadd.f32 %v1691, %v1717
    %1730 = vmatprep.subr.mxu0 0.0
    %1731 = vmatpush1.msra.mxu0 0.0
    %1732 = vmatprep.subr.mxu0 0.0
    %1733 = vmatpush1.msra.mxu0 0.0
    %1734 = vmatprep.subr.mxu0 0.0
    %1735 = vmatpush1.msra.mxu0 0.0
    %1736 = vmatprep.subr.mxu0 0.0
    %1737 = vmatpush1.msra.mxu0 0.0
    %1738 = vmatprep.subr.mxu0 0.0
    %1739 = vmatpush1.msra.mxu0 0.0
    %1740 = vmatprep.subr.mxu0 0.0
    %1741 = vmatpush1.msra.mxu0 0.0
    %1742 = vmatprep.subr.mxu0 0.0
    %1743 = vmatpush1.msra.mxu0 0.0
    %1744 = vmatprep.subr.mxu0 0.0
    %1745 = vmatpush1.msra.mxu0 0.0
    %1746 = vmatprep.subr.mxu0 0.0
    %1747 = vmatpush1.msra.mxu0 0.0
    %1748 = vmatprep.subr.mxu0 0.0
    %1749 = vmatpush1.msra.mxu0 0.0
    %1750 = vmatprep.subr.mxu0 0.0
    %1751 = vmatpush1.msra.mxu0 0.0
    %1752 = vmatprep.subr.mxu0 0.0
    %1753 = vmatpush1.msra.mxu0 0.0
    %1754 = vmatprep.subr.mxu0 0.0
    %1755 = vmatpush1.msra.mxu0 0.0
    %1756 = vmatprep.subr.mxu0 %v1727
    %1757 = vmatpush1.msra.mxu0 %v1726
    %1758 = vmatprep.subr.mxu0 %v1723
    %1759 = vmatpush1.msra.mxu0 %v1722
    %1760 = vmatprep.subr.mxu0 %v1719
    %1761 = vmatpush1.msra.mxu0 %v1718
    %1762 = vmatprep.subr.mxu0 0.0
    %1763 = vmatpush2.msra.mxu0 0.0
    %1764 = vmatprep.subr.mxu0 0.0
    %1765 = vmatpush2.msra.mxu0 0.0
    %1766 = vmatprep.subr.mxu0 0.0
    %1767 = vmatpush2.msra.mxu0 0.0
    %1768 = vmatprep.subr.mxu0 0.0
    %1769 = vmatpush2.msra.mxu0 0.0
    %1770 = vmatprep.subr.mxu0 0.0
    %1771 = vmatpush2.msra.mxu0 0.0
    %1772 = vmatprep.subr.mxu0 0.0
    %1773 = vmatpush2.msra.mxu0 0.0
    %1774 = vmatprep.subr.mxu0 0.0
    %1775 = vmatpush2.msra.mxu0 0.0
    %1776 = vmatprep.subr.mxu0 0.0
    %1777 = vmatpush2.msra.mxu0 0.0
    %1778 = vmatprep.subr.mxu0 0.0
    %1779 = vmatpush2.msra.mxu0 0.0
    %1780 = vmatprep.subr.mxu0 0.0
    %1781 = vmatpush2.msra.mxu0 0.0
    %1782 = vmatprep.subr.mxu0 0.0
    %1783 = vmatpush2.msra.mxu0 0.0
    %1784 = vmatprep.subr.mxu0 0.0
    %1785 = vmatpush2.msra.mxu0 0.0
    %1786 = vmatprep.subr.mxu0 0.0
    %1787 = vmatpush2.msra.mxu0 0.0
    %1788 = vmatprep.subr.mxu0 0.0
    %1789 = vmatpush2.msra.mxu0 0.0
    %1790 = vmatprep.subr.mxu0 0.0
    %1791 = vmatpush2.msra.mxu0 0.0
    %1792 = vmatprep.subr.mxu0 0.0
    %1793 = vmatpush2.msra.mxu0 0.0
    %1794 = vmatprep.mubr.f32.mxu0 0.0
    %1795 = vmatmul.mubr.f32.gmra.mxu0 %v292
    %v1796 = vpop.f32.mrf.mxu0
    %v1797 = vadd.f32 %v191, %v1796
    %v1798 = vpop.f32.mrf.mxu0
    %v1799 = vadd.f32 %v193, %v1798
    %1800 = vmatprep.mubr.f32.mxu0 0.0
    %1801 = vmatmul.mubr.f32.gmra.mxu0 %v295
    %v1802 = vpop.f32.mrf.mxu0
    %v1803 = vadd.f32 %v197, %v1802
    %v1804 = vpop.f32.mrf.mxu0
    %v1805 = vadd.f32 %v199, %v1804
    %1806 = vmatprep.mubr.f32.mxu0 0.0
    %1807 = vmatmul.mubr.f32.gmra.mxu0 %v298
    %v1808 = vpop.f32.mrf.mxu0
    %v1809 = vadd.f32 %v203, %v1808
    %v1810 = vpop.f32.mrf.mxu0
    %v1811 = vadd.f32 %v205, %v1810
    %1812 = vdwg.mxu0
    %1813 = vmatprep.subr.mxu0 0.0
    %1814 = vmatpush1.msra.mxu0 0.0
    %1815 = vmatprep.subr.mxu0 0.0
    %1816 = vmatpush1.msra.mxu0 0.0
    %1817 = vmatprep.subr.mxu0 0.0
    %1818 = vmatpush1.msra.mxu0 0.0
    %1819 = vmatprep.subr.mxu0 0.0
    %1820 = vmatpush1.msra.mxu0 0.0
    %1821 = vmatprep.subr.mxu0 0.0
    %1822 = vmatpush1.msra.mxu0 0.0
    %1823 = vmatprep.subr.mxu0 0.0
    %1824 = vmatpush1.msra.mxu0 0.0
    %1825 = vmatprep.subr.mxu0 0.0
    %1826 = vmatpush1.msra.mxu0 0.0
    %1827 = vmatprep.subr.mxu0 0.0
    %1828 = vmatpush1.msra.mxu0 0.0
    %1829 = vmatprep.subr.mxu0 0.0
    %1830 = vmatpush1.msra.mxu0 0.0
    %1831 = vmatprep.subr.mxu0 0.0
    %1832 = vmatpush1.msra.mxu0 0.0
    %1833 = vmatprep.subr.mxu0 0.0
    %1834 = vmatpush1.msra.mxu0 0.0
    %1835 = vmatprep.subr.mxu0 0.0
    %1836 = vmatpush1.msra.mxu0 0.0
    %1837 = vmatprep.subr.mxu0 0.0
    %1838 = vmatpush1.msra.mxu0 0.0
    %1839 = vmatprep.subr.mxu0 %v1729
    %1840 = vmatpush1.msra.mxu0 %v1728
    %1841 = vmatprep.subr.mxu0 %v1725
    %1842 = vmatpush1.msra.mxu0 %v1724
    %1843 = vmatprep.subr.mxu0 %v1721
    %1844 = vmatpush1.msra.mxu0 %v1720
    %1845 = vmatprep.subr.mxu0 0.0
    %1846 = vmatpush2.msra.mxu0 0.0
    %1847 = vmatprep.subr.mxu0 0.0
    %1848 = vmatpush2.msra.mxu0 0.0
    %1849 = vmatprep.subr.mxu0 0.0
    %1850 = vmatpush2.msra.mxu0 0.0
    %1851 = vmatprep.subr.mxu0 0.0
    %1852 = vmatpush2.msra.mxu0 0.0
    %1853 = vmatprep.subr.mxu0 0.0
    %1854 = vmatpush2.msra.mxu0 0.0
    %1855 = vmatprep.subr.mxu0 0.0
    %1856 = vmatpush2.msra.mxu0 0.0
    %1857 = vmatprep.subr.mxu0 0.0
    %1858 = vmatpush2.msra.mxu0 0.0
    %1859 = vmatprep.subr.mxu0 0.0
    %1860 = vmatpush2.msra.mxu0 0.0
    %1861 = vmatprep.subr.mxu0 0.0
    %1862 = vmatpush2.msra.mxu0 0.0
    %1863 = vmatprep.subr.mxu0 0.0
    %1864 = vmatpush2.msra.mxu0 0.0
    %1865 = vmatprep.subr.mxu0 0.0
    %1866 = vmatpush2.msra.mxu0 0.0
    %1867 = vmatprep.subr.mxu0 0.0
    %1868 = vmatpush2.msra.mxu0 0.0
    %1869 = vmatprep.subr.mxu0 0.0
    %1870 = vmatpush2.msra.mxu0 0.0
    %1871 = vmatprep.subr.mxu0 0.0
    %1872 = vmatpush2.msra.mxu0 0.0
    %1873 = vmatprep.subr.mxu0 0.0
    %1874 = vmatpush2.msra.mxu0 0.0
    %1875 = vmatprep.subr.mxu0 0.0
    %1876 = vmatpush2.msra.mxu0 0.0
    %1877 = vmatprep.mubr.f32.mxu0 0.0
    %1878 = vmatmul.mubr.f32.gmra.mxu0 %v292
    %v1879 = vpop.f32.mrf.mxu0
    %v1880 = vadd.f32 %v274, %v1879
    %v1881 = vpop.f32.mrf.mxu0
    %v1882 = vadd.f32 %v276, %v1881
    %1883 = vmatprep.mubr.f32.mxu0 0.0
    %1884 = vmatmul.mubr.f32.gmra.mxu0 %v295
    %v1885 = vpop.f32.mrf.mxu0
    %v1886 = vadd.f32 %v280, %v1885
    %v1887 = vpop.f32.mrf.mxu0
    %v1888 = vadd.f32 %v282, %v1887
    %1889 = vmatprep.mubr.f32.mxu0 0.0
    %1890 = vmatmul.mubr.f32.gmra.mxu0 %v298
    %v1891 = vpop.f32.mrf.mxu0
    %v1892 = vadd.f32 %v286, %v1891
    %v1893 = vpop.f32.mrf.mxu0
    %v1894 = vadd.f32 %v288, %v1893
    %1895 = vdwg.mxu0
    %v1896 = vmax.f32 %v466, %v1797
    %v1897 = vmax.f32 %v466, %v1799
    %v1898 = vmax.f32 %v466, %v1880
    %v1899 = vmax.f32 %v466, %v1882
    %v1900 = vmax.f32 %v466, %v1803
    %v1901 = vmax.f32 %v466, %v1805
    %v1902 = vmax.f32 %v466, %v1886
    %v1903 = vmax.f32 %v466, %v1888
    %v1904 = vmax.f32 %v466, %v1809
    %v1905 = vmax.f32 %v466, %v1811
    %v1906 = vmax.f32 %v466, %v1892
    %v1907 = vmax.f32 %v466, %v1894
    %v1908 = vmin.f32 %v479, %v1896
    %v1909 = vmin.f32 %v479, %v1897
    %v1910 = vmin.f32 %v479, %v1898
    %v1911 = vmin.f32 %v479, %v1899
    %v1912 = vmin.f32 %v479, %v1900
    %v1913 = vmin.f32 %v479, %v1901
    %v1914 = vmin.f32 %v479, %v1902
    %v1915 = vmin.f32 %v479, %v1903
    %v1916 = vmin.f32 %v479, %v1904
    %v1917 = vmin.f32 %v479, %v1905
    %v1918 = vmin.f32 %v479, %v1906
    %v1919 = vmin.f32 %v479, %v1907
    %v1920 = vsub.f32 %v1797, %v1908
    %v1921 = vsub.f32 %v1799, %v1909
    %v1922 = vsub.f32 %v1880, %v1910
    %v1923 = vsub.f32 %v1882, %v1911
    %v1924 = vsub.f32 %v1803, %v1912
    %v1925 = vsub.f32 %v1805, %v1913
    %v1926 = vsub.f32 %v1886, %v1914
    %v1927 = vsub.f32 %v1888, %v1915
    %v1928 = vsub.f32 %v1809, %v1916
    %v1929 = vsub.f32 %v1811, %v1917
    %v1930 = vsub.f32 %v1892, %v1918
    %v1931 = vsub.f32 %v1894, %v1919
    %s1932 = sld [smem:[#allocation3 + $0x6]]
    %v1933 = vsub.f32 %v1920, %v1680
    %v1934 = vsub.f32 %v1921, %v1681
    %v1935 = vsub.f32 %v1922, %v1682
    %v1936 = vsub.f32 %v1923, %v1683
    %v1937 = vsub.f32 %v1924, %v1684
    %v1938 = vsub.f32 %v1925, %v1685
    %v1939 = vsub.f32 %v1926, %v1686
    %v1940 = vsub.f32 %v1927, %v1687
    %v1941 = vsub.f32 %v1928, %v1688
    %v1942 = vsub.f32 %v1929, %v1689
    %v1943 = vsub.f32 %v1930, %v1690
    %v1944 = vsub.f32 %v1931, %v1691
    %v1945 = vstv %s1932
    %v1946 = vmul.f32 %v1945, %v1933
    %v1947 = vmul.f32 %v1945, %v1934
    %v1948 = vmul.f32 %v1945, %v1935
    %v1949 = vmul.f32 %v1945, %v1936
    %v1950 = vmul.f32 %v1945, %v1937
    %v1951 = vmul.f32 %v1945, %v1938
    %v1952 = vmul.f32 %v1945, %v1939
    %v1953 = vmul.f32 %v1945, %v1940
    %v1954 = vmul.f32 %v1945, %v1941
    %v1955 = vmul.f32 %v1945, %v1942
    %v1956 = vmul.f32 %v1945, %v1943
    %v1957 = vmul.f32 %v1945, %v1944
    %v1958 = vadd.f32 %v1920, %v1946
    %v1959 = vadd.f32 %v1921, %v1947
    %v1960 = vadd.f32 %v1922, %v1948
    %v1961 = vadd.f32 %v1923, %v1949
    %v1962 = vadd.f32 %v1924, %v1950
    %v1963 = vadd.f32 %v1925, %v1951
    %v1964 = vadd.f32 %v1926, %v1952
    %v1965 = vadd.f32 %v1927, %v1953
    %v1966 = vadd.f32 %v1928, %v1954
    %v1967 = vadd.f32 %v1929, %v1955
    %v1968 = vadd.f32 %v1930, %v1956
    %v1969 = vadd.f32 %v1931, %v1957
    %1970 = vmatprep.subr.mxu0 0.0
    %1971 = vmatpush1.msra.mxu0 0.0
    %1972 = vmatprep.subr.mxu0 0.0
    %1973 = vmatpush1.msra.mxu0 0.0
    %1974 = vmatprep.subr.mxu0 0.0
    %1975 = vmatpush1.msra.mxu0 0.0
    %1976 = vmatprep.subr.mxu0 0.0
    %1977 = vmatpush1.msra.mxu0 0.0
    %1978 = vmatprep.subr.mxu0 0.0
    %1979 = vmatpush1.msra.mxu0 0.0
    %1980 = vmatprep.subr.mxu0 0.0
    %1981 = vmatpush1.msra.mxu0 0.0
    %1982 = vmatprep.subr.mxu0 0.0
    %1983 = vmatpush1.msra.mxu0 0.0
    %1984 = vmatprep.subr.mxu0 0.0
    %1985 = vmatpush1.msra.mxu0 0.0
    %1986 = vmatprep.subr.mxu0 0.0
    %1987 = vmatpush1.msra.mxu0 0.0
    %1988 = vmatprep.subr.mxu0 0.0
    %1989 = vmatpush1.msra.mxu0 0.0
    %1990 = vmatprep.subr.mxu0 0.0
    %1991 = vmatpush1.msra.mxu0 0.0
    %1992 = vmatprep.subr.mxu0 0.0
    %1993 = vmatpush1.msra.mxu0 0.0
    %1994 = vmatprep.subr.mxu0 0.0
    %1995 = vmatpush1.msra.mxu0 0.0
    %1996 = vmatprep.subr.mxu0 %v1967
    %1997 = vmatpush1.msra.mxu0 %v1966
    %1998 = vmatprep.subr.mxu0 %v1963
    %1999 = vmatpush1.msra.mxu0 %v1962
    %2000 = vmatprep.subr.mxu0 %v1959
    %2001 = vmatpush1.msra.mxu0 %v1958
    %2002 = vmatprep.subr.mxu0 0.0
    %2003 = vmatpush2.msra.mxu0 0.0
    %2004 = vmatprep.subr.mxu0 0.0
    %2005 = vmatpush2.msra.mxu0 0.0
    %2006 = vmatprep.subr.mxu0 0.0
    %2007 = vmatpush2.msra.mxu0 0.0
    %2008 = vmatprep.subr.mxu0 0.0
    %2009 = vmatpush2.msra.mxu0 0.0
    %2010 = vmatprep.subr.mxu0 0.0
    %2011 = vmatpush2.msra.mxu0 0.0
    %2012 = vmatprep.subr.mxu0 0.0
    %2013 = vmatpush2.msra.mxu0 0.0
    %2014 = vmatprep.subr.mxu0 0.0
    %2015 = vmatpush2.msra.mxu0 0.0
    %2016 = vmatprep.subr.mxu0 0.0
    %2017 = vmatpush2.msra.mxu0 0.0
    %2018 = vmatprep.subr.mxu0 0.0
    %2019 = vmatpush2.msra.mxu0 0.0
    %2020 = vmatprep.subr.mxu0 0.0
    %2021 = vmatpush2.msra.mxu0 0.0
    %2022 = vmatprep.subr.mxu0 0.0
    %2023 = vmatpush2.msra.mxu0 0.0
    %2024 = vmatprep.subr.mxu0 0.0
    %2025 = vmatpush2.msra.mxu0 0.0
    %2026 = vmatprep.subr.mxu0 0.0
    %2027 = vmatpush2.msra.mxu0 0.0
    %2028 = vmatprep.subr.mxu0 0.0
    %2029 = vmatpush2.msra.mxu0 0.0
    %2030 = vmatprep.subr.mxu0 0.0
    %2031 = vmatpush2.msra.mxu0 0.0
    %2032 = vmatprep.subr.mxu0 0.0
    %2033 = vmatpush2.msra.mxu0 0.0
    %2034 = vmatprep.mubr.f32.mxu0 0.0
    %2035 = vmatmul.mubr.f32.gmra.mxu0 %v292
    %v2036 = vpop.f32.mrf.mxu0
    %v2037 = vadd.f32 %v191, %v2036
    %v2038 = vpop.f32.mrf.mxu0
    %v2039 = vadd.f32 %v193, %v2038
    %2040 = vmatprep.mubr.f32.mxu0 0.0
    %2041 = vmatmul.mubr.f32.gmra.mxu0 %v295
    %v2042 = vpop.f32.mrf.mxu0
    %v2043 = vadd.f32 %v197, %v2042
    %v2044 = vpop.f32.mrf.mxu0
    %v2045 = vadd.f32 %v199, %v2044
    %2046 = vmatprep.mubr.f32.mxu0 0.0
    %2047 = vmatmul.mubr.f32.gmra.mxu0 %v298
    %v2048 = vpop.f32.mrf.mxu0
    %v2049 = vadd.f32 %v203, %v2048
    %v2050 = vpop.f32.mrf.mxu0
    %v2051 = vadd.f32 %v205, %v2050
    %2052 = vdwg.mxu0
    %2053 = vmatprep.subr.mxu0 0.0
    %2054 = vmatpush1.msra.mxu0 0.0
    %2055 = vmatprep.subr.mxu0 0.0
    %2056 = vmatpush1.msra.mxu0 0.0
    %2057 = vmatprep.subr.mxu0 0.0
    %2058 = vmatpush1.msra.mxu0 0.0
    %2059 = vmatprep.subr.mxu0 0.0
    %2060 = vmatpush1.msra.mxu0 0.0
    %2061 = vmatprep.subr.mxu0 0.0
    %2062 = vmatpush1.msra.mxu0 0.0
    %2063 = vmatprep.subr.mxu0 0.0
    %2064 = vmatpush1.msra.mxu0 0.0
    %2065 = vmatprep.subr.mxu0 0.0
    %2066 = vmatpush1.msra.mxu0 0.0
    %2067 = vmatprep.subr.mxu0 0.0
    %2068 = vmatpush1.msra.mxu0 0.0
    %2069 = vmatprep.subr.mxu0 0.0
    %2070 = vmatpush1.msra.mxu0 0.0
    %2071 = vmatprep.subr.mxu0 0.0
    %2072 = vmatpush1.msra.mxu0 0.0
    %2073 = vmatprep.subr.mxu0 0.0
    %2074 = vmatpush1.msra.mxu0 0.0
    %2075 = vmatprep.subr.mxu0 0.0
    %2076 = vmatpush1.msra.mxu0 0.0
    %2077 = vmatprep.subr.mxu0 0.0
    %2078 = vmatpush1.msra.mxu0 0.0
    %2079 = vmatprep.subr.mxu0 %v1969
    %2080 = vmatpush1.msra.mxu0 %v1968
    %2081 = vmatprep.subr.mxu0 %v1965
    %2082 = vmatpush1.msra.mxu0 %v1964
    %2083 = vmatprep.subr.mxu0 %v1961
    %2084 = vmatpush1.msra.mxu0 %v1960
    %2085 = vmatprep.subr.mxu0 0.0
    %2086 = vmatpush2.msra.mxu0 0.0
    %2087 = vmatprep.subr.mxu0 0.0
    %2088 = vmatpush2.msra.mxu0 0.0
    %2089 = vmatprep.subr.mxu0 0.0
    %2090 = vmatpush2.msra.mxu0 0.0
    %2091 = vmatprep.subr.mxu0 0.0
    %2092 = vmatpush2.msra.mxu0 0.0
    %2093 = vmatprep.subr.mxu0 0.0
    %2094 = vmatpush2.msra.mxu0 0.0
    %2095 = vmatprep.subr.mxu0 0.0
    %2096 = vmatpush2.msra.mxu0 0.0
    %2097 = vmatprep.subr.mxu0 0.0
    %2098 = vmatpush2.msra.mxu0 0.0
    %2099 = vmatprep.subr.mxu0 0.0
    %2100 = vmatpush2.msra.mxu0 0.0
    %2101 = vmatprep.subr.mxu0 0.0
    %2102 = vmatpush2.msra.mxu0 0.0
    %2103 = vmatprep.subr.mxu0 0.0
    %2104 = vmatpush2.msra.mxu0 0.0
    %2105 = vmatprep.subr.mxu0 0.0
    %2106 = vmatpush2.msra.mxu0 0.0
    %2107 = vmatprep.subr.mxu0 0.0
    %2108 = vmatpush2.msra.mxu0 0.0
    %2109 = vmatprep.subr.mxu0 0.0
    %2110 = vmatpush2.msra.mxu0 0.0
    %2111 = vmatprep.subr.mxu0 0.0
    %2112 = vmatpush2.msra.mxu0 0.0
    %2113 = vmatprep.subr.mxu0 0.0
    %2114 = vmatpush2.msra.mxu0 0.0
    %2115 = vmatprep.subr.mxu0 0.0
    %2116 = vmatpush2.msra.mxu0 0.0
    %2117 = vmatprep.mubr.f32.mxu0 0.0
    %2118 = vmatmul.mubr.f32.gmra.mxu0 %v292
    %v2119 = vpop.f32.mrf.mxu0
    %v2120 = vadd.f32 %v274, %v2119
    %v2121 = vpop.f32.mrf.mxu0
    %v2122 = vadd.f32 %v276, %v2121
    %2123 = vmatprep.mubr.f32.mxu0 0.0
    %2124 = vmatmul.mubr.f32.gmra.mxu0 %v295
    %v2125 = vpop.f32.mrf.mxu0
    %v2126 = vadd.f32 %v280, %v2125
    %v2127 = vpop.f32.mrf.mxu0
    %v2128 = vadd.f32 %v282, %v2127
    %2129 = vmatprep.mubr.f32.mxu0 0.0
    %2130 = vmatmul.mubr.f32.gmra.mxu0 %v298
    %v2131 = vpop.f32.mrf.mxu0
    %v2132 = vadd.f32 %v286, %v2131
    %v2133 = vpop.f32.mrf.mxu0
    %v2134 = vadd.f32 %v288, %v2133
    %2135 = vdwg.mxu0
    %v2136 = vmax.f32 %v466, %v2037
    %v2137 = vmax.f32 %v466, %v2039
    %v2138 = vmax.f32 %v466, %v2120
    %v2139 = vmax.f32 %v466, %v2122
    %v2140 = vmax.f32 %v466, %v2043
    %v2141 = vmax.f32 %v466, %v2045
    %v2142 = vmax.f32 %v466, %v2126
    %v2143 = vmax.f32 %v466, %v2128
    %v2144 = vmax.f32 %v466, %v2049
    %v2145 = vmax.f32 %v466, %v2051
    %v2146 = vmax.f32 %v466, %v2132
    %v2147 = vmax.f32 %v466, %v2134
    %v2148 = vmin.f32 %v479, %v2136
    %v2149 = vmin.f32 %v479, %v2137
    %v2150 = vmin.f32 %v479, %v2138
    %v2151 = vmin.f32 %v479, %v2139
    %v2152 = vmin.f32 %v479, %v2140
    %v2153 = vmin.f32 %v479, %v2141
    %v2154 = vmin.f32 %v479, %v2142
    %v2155 = vmin.f32 %v479, %v2143
    %v2156 = vmin.f32 %v479, %v2144
    %v2157 = vmin.f32 %v479, %v2145
    %v2158 = vmin.f32 %v479, %v2146
    %v2159 = vmin.f32 %v479, %v2147
    %v2160 = vsub.f32 %v2037, %v2148
    %v2161 = vsub.f32 %v2039, %v2149
    %v2162 = vsub.f32 %v2120, %v2150
    %v2163 = vsub.f32 %v2122, %v2151
    %v2164 = vsub.f32 %v2043, %v2152
    %v2165 = vsub.f32 %v2045, %v2153
    %v2166 = vsub.f32 %v2126, %v2154
    %v2167 = vsub.f32 %v2128, %v2155
    %v2168 = vsub.f32 %v2049, %v2156
    %v2169 = vsub.f32 %v2051, %v2157
    %v2170 = vsub.f32 %v2132, %v2158
    %v2171 = vsub.f32 %v2134, %v2159
    %s2172 = sld [smem:[#allocation3 + $0x7]]
    %v2173 = vsub.f32 %v2160, %v1920
    %v2174 = vsub.f32 %v2161, %v1921
    %v2175 = vsub.f32 %v2162, %v1922
    %v2176 = vsub.f32 %v2163, %v1923
    %v2177 = vsub.f32 %v2164, %v1924
    %v2178 = vsub.f32 %v2165, %v1925
    %v2179 = vsub.f32 %v2166, %v1926
    %v2180 = vsub.f32 %v2167, %v1927
    %v2181 = vsub.f32 %v2168, %v1928
    %v2182 = vsub.f32 %v2169, %v1929
    %v2183 = vsub.f32 %v2170, %v1930
    %v2184 = vsub.f32 %v2171, %v1931
    %v2185 = vstv %s2172
    %v2186 = vmul.f32 %v2185, %v2173
    %v2187 = vmul.f32 %v2185, %v2174
    %v2188 = vmul.f32 %v2185, %v2175
    %v2189 = vmul.f32 %v2185, %v2176
    %v2190 = vmul.f32 %v2185, %v2177
    %v2191 = vmul.f32 %v2185, %v2178
    %v2192 = vmul.f32 %v2185, %v2179
    %v2193 = vmul.f32 %v2185, %v2180
    %v2194 = vmul.f32 %v2185, %v2181
    %v2195 = vmul.f32 %v2185, %v2182
    %v2196 = vmul.f32 %v2185, %v2183
    %v2197 = vmul.f32 %v2185, %v2184
    %v2198 = vadd.f32 %v2160, %v2186
    %v2199 = vadd.f32 %v2161, %v2187
    %v2200 = vadd.f32 %v2162, %v2188
    %v2201 = vadd.f32 %v2163, %v2189
    %v2202 = vadd.f32 %v2164, %v2190
    %v2203 = vadd.f32 %v2165, %v2191
    %v2204 = vadd.f32 %v2166, %v2192
    %v2205 = vadd.f32 %v2167, %v2193
    %v2206 = vadd.f32 %v2168, %v2194
    %v2207 = vadd.f32 %v2169, %v2195
    %v2208 = vadd.f32 %v2170, %v2196
    %v2209 = vadd.f32 %v2171, %v2197
    %2210 = vmatprep.subr.mxu0 0.0
    %2211 = vmatpush1.msra.mxu0 0.0
    %2212 = vmatprep.subr.mxu0 0.0
    %2213 = vmatpush1.msra.mxu0 0.0
    %2214 = vmatprep.subr.mxu0 0.0
    %2215 = vmatpush1.msra.mxu0 0.0
    %2216 = vmatprep.subr.mxu0 0.0
    %2217 = vmatpush1.msra.mxu0 0.0
    %2218 = vmatprep.subr.mxu0 0.0
    %2219 = vmatpush1.msra.mxu0 0.0
    %2220 = vmatprep.subr.mxu0 0.0
    %2221 = vmatpush1.msra.mxu0 0.0
    %2222 = vmatprep.subr.mxu0 0.0
    %2223 = vmatpush1.msra.mxu0 0.0
    %2224 = vmatprep.subr.mxu0 0.0
    %2225 = vmatpush1.msra.mxu0 0.0
    %2226 = vmatprep.subr.mxu0 0.0
    %2227 = vmatpush1.msra.mxu0 0.0
    %2228 = vmatprep.subr.mxu0 0.0
    %2229 = vmatpush1.msra.mxu0 0.0
    %2230 = vmatprep.subr.mxu0 0.0
    %2231 = vmatpush1.msra.mxu0 0.0
    %2232 = vmatprep.subr.mxu0 0.0
    %2233 = vmatpush1.msra.mxu0 0.0
    %2234 = vmatprep.subr.mxu0 0.0
    %2235 = vmatpush1.msra.mxu0 0.0
    %2236 = vmatprep.subr.mxu0 %v2207
    %2237 = vmatpush1.msra.mxu0 %v2206
    %2238 = vmatprep.subr.mxu0 %v2203
    %2239 = vmatpush1.msra.mxu0 %v2202
    %2240 = vmatprep.subr.mxu0 %v2199
    %2241 = vmatpush1.msra.mxu0 %v2198
    %2242 = vmatprep.subr.mxu0 0.0
    %2243 = vmatpush2.msra.mxu0 0.0
    %2244 = vmatprep.subr.mxu0 0.0
    %2245 = vmatpush2.msra.mxu0 0.0
    %2246 = vmatprep.subr.mxu0 0.0
    %2247 = vmatpush2.msra.mxu0 0.0
    %2248 = vmatprep.subr.mxu0 0.0
    %2249 = vmatpush2.msra.mxu0 0.0
    %2250 = vmatprep.subr.mxu0 0.0
    %2251 = vmatpush2.msra.mxu0 0.0
    %2252 = vmatprep.subr.mxu0 0.0
    %2253 = vmatpush2.msra.mxu0 0.0
    %2254 = vmatprep.subr.mxu0 0.0
    %2255 = vmatpush2.msra.mxu0 0.0
    %2256 = vmatprep.subr.mxu0 0.0
    %2257 = vmatpush2.msra.mxu0 0.0
    %2258 = vmatprep.subr.mxu0 0.0
    %2259 = vmatpush2.msra.mxu0 0.0
    %2260 = vmatprep.subr.mxu0 0.0
    %2261 = vmatpush2.msra.mxu0 0.0
    %2262 = vmatprep.subr.mxu0 0.0
    %2263 = vmatpush2.msra.mxu0 0.0
    %2264 = vmatprep.subr.mxu0 0.0
    %2265 = vmatpush2.msra.mxu0 0.0
    %2266 = vmatprep.subr.mxu0 0.0
    %2267 = vmatpush2.msra.mxu0 0.0
    %2268 = vmatprep.subr.mxu0 0.0
    %2269 = vmatpush2.msra.mxu0 0.0
    %2270 = vmatprep.subr.mxu0 0.0
    %2271 = vmatpush2.msra.mxu0 0.0
    %2272 = vmatprep.subr.mxu0 0.0
    %2273 = vmatpush2.msra.mxu0 0.0
    %2274 = vmatprep.mubr.f32.mxu0 0.0
    %2275 = vmatmul.mubr.f32.gmra.mxu0 %v292
    %v2276 = vpop.f32.mrf.mxu0
    %v2277 = vadd.f32 %v191, %v2276
    %v2278 = vpop.f32.mrf.mxu0
    %v2279 = vadd.f32 %v193, %v2278
    %2280 = vmatprep.mubr.f32.mxu0 0.0
    %2281 = vmatmul.mubr.f32.gmra.mxu0 %v295
    %v2282 = vpop.f32.mrf.mxu0
    %v2283 = vadd.f32 %v197, %v2282
    %v2284 = vpop.f32.mrf.mxu0
    %v2285 = vadd.f32 %v199, %v2284
    %2286 = vmatprep.mubr.f32.mxu0 0.0
    %2287 = vmatmul.mubr.f32.gmra.mxu0 %v298
    %v2288 = vpop.f32.mrf.mxu0
    %v2289 = vadd.f32 %v203, %v2288
    %v2290 = vpop.f32.mrf.mxu0
    %v2291 = vadd.f32 %v205, %v2290
    %2292 = vdwg.mxu0
    %2293 = vmatprep.subr.mxu0 0.0
    %2294 = vmatpush1.msra.mxu0 0.0
    %2295 = vmatprep.subr.mxu0 0.0
    %2296 = vmatpush1.msra.mxu0 0.0
    %2297 = vmatprep.subr.mxu0 0.0
    %2298 = vmatpush1.msra.mxu0 0.0
    %2299 = vmatprep.subr.mxu0 0.0
    %2300 = vmatpush1.msra.mxu0 0.0
    %2301 = vmatprep.subr.mxu0 0.0
    %2302 = vmatpush1.msra.mxu0 0.0
    %2303 = vmatprep.subr.mxu0 0.0
    %2304 = vmatpush1.msra.mxu0 0.0
    %2305 = vmatprep.subr.mxu0 0.0
    %2306 = vmatpush1.msra.mxu0 0.0
    %2307 = vmatprep.subr.mxu0 0.0
    %2308 = vmatpush1.msra.mxu0 0.0
    %2309 = vmatprep.subr.mxu0 0.0
    %2310 = vmatpush1.msra.mxu0 0.0
    %2311 = vmatprep.subr.mxu0 0.0
    %2312 = vmatpush1.msra.mxu0 0.0
    %2313 = vmatprep.subr.mxu0 0.0
    %2314 = vmatpush1.msra.mxu0 0.0
    %2315 = vmatprep.subr.mxu0 0.0
    %2316 = vmatpush1.msra.mxu0 0.0
    %2317 = vmatprep.subr.mxu0 0.0
    %2318 = vmatpush1.msra.mxu0 0.0
    %2319 = vmatprep.subr.mxu0 %v2209
    %2320 = vmatpush1.msra.mxu0 %v2208
    %2321 = vmatprep.subr.mxu0 %v2205
    %2322 = vmatpush1.msra.mxu0 %v2204
    %2323 = vmatprep.subr.mxu0 %v2201
    %2324 = vmatpush1.msra.mxu0 %v2200
    %2325 = vmatprep.subr.mxu0 0.0
    %2326 = vmatpush2.msra.mxu0 0.0
    %2327 = vmatprep.subr.mxu0 0.0
    %2328 = vmatpush2.msra.mxu0 0.0
    %2329 = vmatprep.subr.mxu0 0.0
    %2330 = vmatpush2.msra.mxu0 0.0
    %2331 = vmatprep.subr.mxu0 0.0
    %2332 = vmatpush2.msra.mxu0 0.0
    %2333 = vmatprep.subr.mxu0 0.0
    %2334 = vmatpush2.msra.mxu0 0.0
    %2335 = vmatprep.subr.mxu0 0.0
    %2336 = vmatpush2.msra.mxu0 0.0
    %2337 = vmatprep.subr.mxu0 0.0
    %2338 = vmatpush2.msra.mxu0 0.0
    %2339 = vmatprep.subr.mxu0 0.0
    %2340 = vmatpush2.msra.mxu0 0.0
    %2341 = vmatprep.subr.mxu0 0.0
    %2342 = vmatpush2.msra.mxu0 0.0
    %2343 = vmatprep.subr.mxu0 0.0
    %2344 = vmatpush2.msra.mxu0 0.0
    %2345 = vmatprep.subr.mxu0 0.0
    %2346 = vmatpush2.msra.mxu0 0.0
    %2347 = vmatprep.subr.mxu0 0.0
    %2348 = vmatpush2.msra.mxu0 0.0
    %2349 = vmatprep.subr.mxu0 0.0
    %2350 = vmatpush2.msra.mxu0 0.0
    %2351 = vmatprep.subr.mxu0 0.0
    %2352 = vmatpush2.msra.mxu0 0.0
    %2353 = vmatprep.subr.mxu0 0.0
    %2354 = vmatpush2.msra.mxu0 0.0
    %2355 = vmatprep.subr.mxu0 0.0
    %2356 = vmatpush2.msra.mxu0 0.0
    %2357 = vmatprep.mubr.f32.mxu0 0.0
    %2358 = vmatmul.mubr.f32.gmra.mxu0 %v292
    %v2359 = vpop.f32.mrf.mxu0
    %v2360 = vadd.f32 %v274, %v2359
    %v2361 = vpop.f32.mrf.mxu0
    %v2362 = vadd.f32 %v276, %v2361
    %2363 = vmatprep.mubr.f32.mxu0 0.0
    %2364 = vmatmul.mubr.f32.gmra.mxu0 %v295
    %v2365 = vpop.f32.mrf.mxu0
    %v2366 = vadd.f32 %v280, %v2365
    %v2367 = vpop.f32.mrf.mxu0
    %v2368 = vadd.f32 %v282, %v2367
    %2369 = vmatprep.mubr.f32.mxu0 0.0
    %2370 = vmatmul.mubr.f32.gmra.mxu0 %v298
    %v2371 = vpop.f32.mrf.mxu0
    %v2372 = vadd.f32 %v286, %v2371
    %v2373 = vpop.f32.mrf.mxu0
    %v2374 = vadd.f32 %v288, %v2373
    %2375 = vdwg.mxu0
    %v2376 = vmax.f32 %v466, %v2277
    %v2377 = vmax.f32 %v466, %v2279
    %v2378 = vmax.f32 %v466, %v2360
    %v2379 = vmax.f32 %v466, %v2362
    %v2380 = vmax.f32 %v466, %v2283
    %v2381 = vmax.f32 %v466, %v2285
    %v2382 = vmax.f32 %v466, %v2366
    %v2383 = vmax.f32 %v466, %v2368
    %v2384 = vmax.f32 %v466, %v2289
    %v2385 = vmax.f32 %v466, %v2291
    %v2386 = vmax.f32 %v466, %v2372
    %v2387 = vmax.f32 %v466, %v2374
    %v2388 = vmin.f32 %v479, %v2376
    %v2389 = vmin.f32 %v479, %v2377
    %v2390 = vmin.f32 %v479, %v2378
    %v2391 = vmin.f32 %v479, %v2379
    %v2392 = vmin.f32 %v479, %v2380
    %v2393 = vmin.f32 %v479, %v2381
    %v2394 = vmin.f32 %v479, %v2382
    %v2395 = vmin.f32 %v479, %v2383
    %v2396 = vmin.f32 %v479, %v2384
    %v2397 = vmin.f32 %v479, %v2385
    %v2398 = vmin.f32 %v479, %v2386
    %v2399 = vmin.f32 %v479, %v2387
    %v2400 = vsub.f32 %v2277, %v2388
    %v2401 = vsub.f32 %v2279, %v2389
    %v2402 = vsub.f32 %v2360, %v2390
    %v2403 = vsub.f32 %v2362, %v2391
    %v2404 = vsub.f32 %v2283, %v2392
    %v2405 = vsub.f32 %v2285, %v2393
    %v2406 = vsub.f32 %v2366, %v2394
    %v2407 = vsub.f32 %v2368, %v2395
    %v2408 = vsub.f32 %v2289, %v2396
    %v2409 = vsub.f32 %v2291, %v2397
    %v2410 = vsub.f32 %v2372, %v2398
    %v2411 = vsub.f32 %v2374, %v2399
    %s2412 = sld [smem:[#allocation3 + $0x8]]
    %v2413 = vsub.f32 %v2400, %v2160
    %v2414 = vsub.f32 %v2401, %v2161
    %v2415 = vsub.f32 %v2402, %v2162
    %v2416 = vsub.f32 %v2403, %v2163
    %v2417 = vsub.f32 %v2404, %v2164
    %v2418 = vsub.f32 %v2405, %v2165
    %v2419 = vsub.f32 %v2406, %v2166
    %v2420 = vsub.f32 %v2407, %v2167
    %v2421 = vsub.f32 %v2408, %v2168
    %v2422 = vsub.f32 %v2409, %v2169
    %v2423 = vsub.f32 %v2410, %v2170
    %v2424 = vsub.f32 %v2411, %v2171
    %v2425 = vstv %s2412
    %v2426 = vmul.f32 %v2425, %v2413
    %v2427 = vmul.f32 %v2425, %v2414
    %v2428 = vmul.f32 %v2425, %v2415
    %v2429 = vmul.f32 %v2425, %v2416
    %v2430 = vmul.f32 %v2425, %v2417
    %v2431 = vmul.f32 %v2425, %v2418
    %v2432 = vmul.f32 %v2425, %v2419
    %v2433 = vmul.f32 %v2425, %v2420
    %v2434 = vmul.f32 %v2425, %v2421
    %v2435 = vmul.f32 %v2425, %v2422
    %v2436 = vmul.f32 %v2425, %v2423
    %v2437 = vmul.f32 %v2425, %v2424
    %v2438 = vadd.f32 %v2400, %v2426
    %v2439 = vadd.f32 %v2401, %v2427
    %v2440 = vadd.f32 %v2402, %v2428
    %v2441 = vadd.f32 %v2403, %v2429
    %v2442 = vadd.f32 %v2404, %v2430
    %v2443 = vadd.f32 %v2405, %v2431
    %v2444 = vadd.f32 %v2406, %v2432
    %v2445 = vadd.f32 %v2407, %v2433
    %v2446 = vadd.f32 %v2408, %v2434
    %v2447 = vadd.f32 %v2409, %v2435
    %v2448 = vadd.f32 %v2410, %v2436
    %v2449 = vadd.f32 %v2411, %v2437
    %2450 = vmatprep.subr.mxu0 0.0
    %2451 = vmatpush1.msra.mxu0 0.0
    %2452 = vmatprep.subr.mxu0 0.0
    %2453 = vmatpush1.msra.mxu0 0.0
    %2454 = vmatprep.subr.mxu0 0.0
    %2455 = vmatpush1.msra.mxu0 0.0
    %2456 = vmatprep.subr.mxu0 0.0
    %2457 = vmatpush1.msra.mxu0 0.0
    %2458 = vmatprep.subr.mxu0 0.0
    %2459 = vmatpush1.msra.mxu0 0.0
    %2460 = vmatprep.subr.mxu0 0.0
    %2461 = vmatpush1.msra.mxu0 0.0
    %2462 = vmatprep.subr.mxu0 0.0
    %2463 = vmatpush1.msra.mxu0 0.0
    %2464 = vmatprep.subr.mxu0 0.0
    %2465 = vmatpush1.msra.mxu0 0.0
    %2466 = vmatprep.subr.mxu0 0.0
    %2467 = vmatpush1.msra.mxu0 0.0
    %2468 = vmatprep.subr.mxu0 0.0
    %2469 = vmatpush1.msra.mxu0 0.0
    %2470 = vmatprep.subr.mxu0 0.0
    %2471 = vmatpush1.msra.mxu0 0.0
    %2472 = vmatprep.subr.mxu0 0.0
    %2473 = vmatpush1.msra.mxu0 0.0
    %2474 = vmatprep.subr.mxu0 0.0
    %2475 = vmatpush1.msra.mxu0 0.0
    %2476 = vmatprep.subr.mxu0 %v2447
    %2477 = vmatpush1.msra.mxu0 %v2446
    %2478 = vmatprep.subr.mxu0 %v2443
    %2479 = vmatpush1.msra.mxu0 %v2442
    %2480 = vmatprep.subr.mxu0 %v2439
    %2481 = vmatpush1.msra.mxu0 %v2438
    %2482 = vmatprep.subr.mxu0 0.0
    %2483 = vmatpush2.msra.mxu0 0.0
    %2484 = vmatprep.subr.mxu0 0.0
    %2485 = vmatpush2.msra.mxu0 0.0
    %2486 = vmatprep.subr.mxu0 0.0
    %2487 = vmatpush2.msra.mxu0 0.0
    %2488 = vmatprep.subr.mxu0 0.0
    %2489 = vmatpush2.msra.mxu0 0.0
    %2490 = vmatprep.subr.mxu0 0.0
    %2491 = vmatpush2.msra.mxu0 0.0
    %2492 = vmatprep.subr.mxu0 0.0
    %2493 = vmatpush2.msra.mxu0 0.0
    %2494 = vmatprep.subr.mxu0 0.0
    %2495 = vmatpush2.msra.mxu0 0.0
    %2496 = vmatprep.subr.mxu0 0.0
    %2497 = vmatpush2.msra.mxu0 0.0
    %2498 = vmatprep.subr.mxu0 0.0
    %2499 = vmatpush2.msra.mxu0 0.0
    %2500 = vmatprep.subr.mxu0 0.0
    %2501 = vmatpush2.msra.mxu0 0.0
    %2502 = vmatprep.subr.mxu0 0.0
    %2503 = vmatpush2.msra.mxu0 0.0
    %2504 = vmatprep.subr.mxu0 0.0
    %2505 = vmatpush2.msra.mxu0 0.0
    %2506 = vmatprep.subr.mxu0 0.0
    %2507 = vmatpush2.msra.mxu0 0.0
    %2508 = vmatprep.subr.mxu0 0.0
    %2509 = vmatpush2.msra.mxu0 0.0
    %2510 = vmatprep.subr.mxu0 0.0
    %2511 = vmatpush2.msra.mxu0 0.0
    %2512 = vmatprep.subr.mxu0 0.0
    %2513 = vmatpush2.msra.mxu0 0.0
    %2514 = vmatprep.mubr.f32.mxu0 0.0
    %2515 = vmatmul.mubr.f32.gmra.mxu0 %v292
    %v2516 = vpop.f32.mrf.mxu0
    %v2517 = vadd.f32 %v191, %v2516
    %v2518 = vpop.f32.mrf.mxu0
    %v2519 = vadd.f32 %v193, %v2518
    %2520 = vmatprep.mubr.f32.mxu0 0.0
    %2521 = vmatmul.mubr.f32.gmra.mxu0 %v295
    %v2522 = vpop.f32.mrf.mxu0
    %v2523 = vadd.f32 %v197, %v2522
    %v2524 = vpop.f32.mrf.mxu0
    %v2525 = vadd.f32 %v199, %v2524
    %2526 = vmatprep.mubr.f32.mxu0 0.0
    %2527 = vmatmul.mubr.f32.gmra.mxu0 %v298
    %v2528 = vpop.f32.mrf.mxu0
    %v2529 = vadd.f32 %v203, %v2528
    %v2530 = vpop.f32.mrf.mxu0
    %v2531 = vadd.f32 %v205, %v2530
    %2532 = vdwg.mxu0
    %2533 = vmatprep.subr.mxu0 0.0
    %2534 = vmatpush1.msra.mxu0 0.0
    %2535 = vmatprep.subr.mxu0 0.0
    %2536 = vmatpush1.msra.mxu0 0.0
    %2537 = vmatprep.subr.mxu0 0.0
    %2538 = vmatpush1.msra.mxu0 0.0
    %2539 = vmatprep.subr.mxu0 0.0
    %2540 = vmatpush1.msra.mxu0 0.0
    %2541 = vmatprep.subr.mxu0 0.0
    %2542 = vmatpush1.msra.mxu0 0.0
    %2543 = vmatprep.subr.mxu0 0.0
    %2544 = vmatpush1.msra.mxu0 0.0
    %2545 = vmatprep.subr.mxu0 0.0
    %2546 = vmatpush1.msra.mxu0 0.0
    %2547 = vmatprep.subr.mxu0 0.0
    %2548 = vmatpush1.msra.mxu0 0.0
    %2549 = vmatprep.subr.mxu0 0.0
    %2550 = vmatpush1.msra.mxu0 0.0
    %2551 = vmatprep.subr.mxu0 0.0
    %2552 = vmatpush1.msra.mxu0 0.0
    %2553 = vmatprep.subr.mxu0 0.0
    %2554 = vmatpush1.msra.mxu0 0.0
    %2555 = vmatprep.subr.mxu0 0.0
    %2556 = vmatpush1.msra.mxu0 0.0
    %2557 = vmatprep.subr.mxu0 0.0
    %2558 = vmatpush1.msra.mxu0 0.0
    %2559 = vmatprep.subr.mxu0 %v2449
    %2560 = vmatpush1.msra.mxu0 %v2448
    %2561 = vmatprep.subr.mxu0 %v2445
    %2562 = vmatpush1.msra.mxu0 %v2444
    %2563 = vmatprep.subr.mxu0 %v2441
    %2564 = vmatpush1.msra.mxu0 %v2440
    %2565 = vmatprep.subr.mxu0 0.0
    %2566 = vmatpush2.msra.mxu0 0.0
    %2567 = vmatprep.subr.mxu0 0.0
    %2568 = vmatpush2.msra.mxu0 0.0
    %2569 = vmatprep.subr.mxu0 0.0
    %2570 = vmatpush2.msra.mxu0 0.0
    %2571 = vmatprep.subr.mxu0 0.0
    %2572 = vmatpush2.msra.mxu0 0.0
    %2573 = vmatprep.subr.mxu0 0.0
    %2574 = vmatpush2.msra.mxu0 0.0
    %2575 = vmatprep.subr.mxu0 0.0
    %2576 = vmatpush2.msra.mxu0 0.0
    %2577 = vmatprep.subr.mxu0 0.0
    %2578 = vmatpush2.msra.mxu0 0.0
    %2579 = vmatprep.subr.mxu0 0.0
    %2580 = vmatpush2.msra.mxu0 0.0
    %2581 = vmatprep.subr.mxu0 0.0
    %2582 = vmatpush2.msra.mxu0 0.0
    %2583 = vmatprep.subr.mxu0 0.0
    %2584 = vmatpush2.msra.mxu0 0.0
    %2585 = vmatprep.subr.mxu0 0.0
    %2586 = vmatpush2.msra.mxu0 0.0
    %2587 = vmatprep.subr.mxu0 0.0
    %2588 = vmatpush2.msra.mxu0 0.0
    %2589 = vmatprep.subr.mxu0 0.0
    %2590 = vmatpush2.msra.mxu0 0.0
    %2591 = vmatprep.subr.mxu0 0.0
    %2592 = vmatpush2.msra.mxu0 0.0
    %2593 = vmatprep.subr.mxu0 0.0
    %2594 = vmatpush2.msra.mxu0 0.0
    %2595 = vmatprep.subr.mxu0 0.0
    %2596 = vmatpush2.msra.mxu0 0.0
    %2597 = vmatprep.mubr.f32.mxu0 0.0
    %2598 = vmatmul.mubr.f32.gmra.mxu0 %v292
    %v2599 = vpop.f32.mrf.mxu0
    %v2600 = vadd.f32 %v274, %v2599
    %v2601 = vpop.f32.mrf.mxu0
    %v2602 = vadd.f32 %v276, %v2601
    %2603 = vmatprep.mubr.f32.mxu0 0.0
    %2604 = vmatmul.mubr.f32.gmra.mxu0 %v295
    %v2605 = vpop.f32.mrf.mxu0
    %v2606 = vadd.f32 %v280, %v2605
    %v2607 = vpop.f32.mrf.mxu0
    %v2608 = vadd.f32 %v282, %v2607
    %2609 = vmatprep.mubr.f32.mxu0 0.0
    %2610 = vmatmul.mubr.f32.gmra.mxu0 %v298
    %v2611 = vpop.f32.mrf.mxu0
    %v2612 = vadd.f32 %v286, %v2611
    %v2613 = vpop.f32.mrf.mxu0
    %v2614 = vadd.f32 %v288, %v2613
    %2615 = vdwg.mxu0
    %v2616 = vmax.f32 %v466, %v2517
    %v2617 = vmax.f32 %v466, %v2519
    %v2618 = vmax.f32 %v466, %v2600
    %v2619 = vmax.f32 %v466, %v2602
    %v2620 = vmax.f32 %v466, %v2523
    %v2621 = vmax.f32 %v466, %v2525
    %v2622 = vmax.f32 %v466, %v2606
    %v2623 = vmax.f32 %v466, %v2608
    %v2624 = vmax.f32 %v466, %v2529
    %v2625 = vmax.f32 %v466, %v2531
    %v2626 = vmax.f32 %v466, %v2612
    %v2627 = vmax.f32 %v466, %v2614
    %v2628 = vmin.f32 %v479, %v2616
    %v2629 = vmin.f32 %v479, %v2617
    %v2630 = vmin.f32 %v479, %v2618
    %v2631 = vmin.f32 %v479, %v2619
    %v2632 = vmin.f32 %v479, %v2620
    %v2633 = vmin.f32 %v479, %v2621
    %v2634 = vmin.f32 %v479, %v2622
    %v2635 = vmin.f32 %v479, %v2623
    %v2636 = vmin.f32 %v479, %v2624
    %v2637 = vmin.f32 %v479, %v2625
    %v2638 = vmin.f32 %v479, %v2626
    %v2639 = vmin.f32 %v479, %v2627
    %v2640 = vsub.f32 %v2517, %v2628
    %v2641 = vsub.f32 %v2519, %v2629
    %v2642 = vsub.f32 %v2600, %v2630
    %v2643 = vsub.f32 %v2602, %v2631
    %v2644 = vsub.f32 %v2523, %v2632
    %v2645 = vsub.f32 %v2525, %v2633
    %v2646 = vsub.f32 %v2606, %v2634
    %v2647 = vsub.f32 %v2608, %v2635
    %v2648 = vsub.f32 %v2529, %v2636
    %v2649 = vsub.f32 %v2531, %v2637
    %v2650 = vsub.f32 %v2612, %v2638
    %v2651 = vsub.f32 %v2614, %v2639
    %s2652 = sld [smem:[#allocation3 + $0x9]]
    %v2653 = vsub.f32 %v2640, %v2400
    %v2654 = vsub.f32 %v2641, %v2401
    %v2655 = vsub.f32 %v2642, %v2402
    %v2656 = vsub.f32 %v2643, %v2403
    %v2657 = vsub.f32 %v2644, %v2404
    %v2658 = vsub.f32 %v2645, %v2405
    %v2659 = vsub.f32 %v2646, %v2406
    %v2660 = vsub.f32 %v2647, %v2407
    %v2661 = vsub.f32 %v2648, %v2408
    %v2662 = vsub.f32 %v2649, %v2409
    %v2663 = vsub.f32 %v2650, %v2410
    %v2664 = vsub.f32 %v2651, %v2411
    %v2665 = vstv %s2652
    %v2666 = vmul.f32 %v2665, %v2653
    %v2667 = vmul.f32 %v2665, %v2654
    %v2668 = vmul.f32 %v2665, %v2655
    %v2669 = vmul.f32 %v2665, %v2656
    %v2670 = vmul.f32 %v2665, %v2657
    %v2671 = vmul.f32 %v2665, %v2658
    %v2672 = vmul.f32 %v2665, %v2659
    %v2673 = vmul.f32 %v2665, %v2660
    %v2674 = vmul.f32 %v2665, %v2661
    %v2675 = vmul.f32 %v2665, %v2662
    %v2676 = vmul.f32 %v2665, %v2663
    %v2677 = vmul.f32 %v2665, %v2664
    %v2678 = vadd.f32 %v2640, %v2666
    %v2679 = vadd.f32 %v2641, %v2667
    %v2680 = vadd.f32 %v2642, %v2668
    %v2681 = vadd.f32 %v2643, %v2669
    %v2682 = vadd.f32 %v2644, %v2670
    %v2683 = vadd.f32 %v2645, %v2671
    %v2684 = vadd.f32 %v2646, %v2672
    %v2685 = vadd.f32 %v2647, %v2673
    %v2686 = vadd.f32 %v2648, %v2674
    %v2687 = vadd.f32 %v2649, %v2675
    %v2688 = vadd.f32 %v2650, %v2676
    %v2689 = vadd.f32 %v2651, %v2677
    %2690 = vmatprep.subr.mxu0 0.0
    %2691 = vmatpush1.msra.mxu0 0.0
    %2692 = vmatprep.subr.mxu0 0.0
    %2693 = vmatpush1.msra.mxu0 0.0
    %2694 = vmatprep.subr.mxu0 0.0
    %2695 = vmatpush1.msra.mxu0 0.0
    %2696 = vmatprep.subr.mxu0 0.0
    %2697 = vmatpush1.msra.mxu0 0.0
    %2698 = vmatprep.subr.mxu0 0.0
    %2699 = vmatpush1.msra.mxu0 0.0
    %2700 = vmatprep.subr.mxu0 0.0
    %2701 = vmatpush1.msra.mxu0 0.0
    %2702 = vmatprep.subr.mxu0 0.0
    %2703 = vmatpush1.msra.mxu0 0.0
    %2704 = vmatprep.subr.mxu0 0.0
    %2705 = vmatpush1.msra.mxu0 0.0
    %2706 = vmatprep.subr.mxu0 0.0
    %2707 = vmatpush1.msra.mxu0 0.0
    %2708 = vmatprep.subr.mxu0 0.0
    %2709 = vmatpush1.msra.mxu0 0.0
    %2710 = vmatprep.subr.mxu0 0.0
    %2711 = vmatpush1.msra.mxu0 0.0
    %2712 = vmatprep.subr.mxu0 0.0
    %2713 = vmatpush1.msra.mxu0 0.0
    %2714 = vmatprep.subr.mxu0 0.0
    %2715 = vmatpush1.msra.mxu0 0.0
    %2716 = vmatprep.subr.mxu0 %v2687
    %2717 = vmatpush1.msra.mxu0 %v2686
    %2718 = vmatprep.subr.mxu0 %v2683
    %2719 = vmatpush1.msra.mxu0 %v2682
    %2720 = vmatprep.subr.mxu0 %v2679
    %2721 = vmatpush1.msra.mxu0 %v2678
    %2722 = vmatprep.subr.mxu0 0.0
    %2723 = vmatpush2.msra.mxu0 0.0
    %2724 = vmatprep.subr.mxu0 0.0
    %2725 = vmatpush2.msra.mxu0 0.0
    %2726 = vmatprep.subr.mxu0 0.0
    %2727 = vmatpush2.msra.mxu0 0.0
    %2728 = vmatprep.subr.mxu0 0.0
    %2729 = vmatpush2.msra.mxu0 0.0
    %2730 = vmatprep.subr.mxu0 0.0
    %2731 = vmatpush2.msra.mxu0 0.0
    %2732 = vmatprep.subr.mxu0 0.0
    %2733 = vmatpush2.msra.mxu0 0.0
    %2734 = vmatprep.subr.mxu0 0.0
    %2735 = vmatpush2.msra.mxu0 0.0
    %2736 = vmatprep.subr.mxu0 0.0
    %2737 = vmatpush2.msra.mxu0 0.0
    %2738 = vmatprep.subr.mxu0 0.0
    %2739 = vmatpush2.msra.mxu0 0.0
    %2740 = vmatprep.subr.mxu0 0.0
    %2741 = vmatpush2.msra.mxu0 0.0
    %2742 = vmatprep.subr.mxu0 0.0
    %2743 = vmatpush2.msra.mxu0 0.0
    %2744 = vmatprep.subr.mxu0 0.0
    %2745 = vmatpush2.msra.mxu0 0.0
    %2746 = vmatprep.subr.mxu0 0.0
    %2747 = vmatpush2.msra.mxu0 0.0
    %2748 = vmatprep.subr.mxu0 0.0
    %2749 = vmatpush2.msra.mxu0 0.0
    %2750 = vmatprep.subr.mxu0 0.0
    %2751 = vmatpush2.msra.mxu0 0.0
    %2752 = vmatprep.subr.mxu0 0.0
    %2753 = vmatpush2.msra.mxu0 0.0
    %2754 = vmatprep.mubr.f32.mxu0 0.0
    %2755 = vmatmul.mubr.f32.gmra.mxu0 %v292
    %v2756 = vpop.f32.mrf.mxu0
    %v2757 = vadd.f32 %v191, %v2756
    %v2758 = vpop.f32.mrf.mxu0
    %v2759 = vadd.f32 %v193, %v2758
    %2760 = vmatprep.mubr.f32.mxu0 0.0
    %2761 = vmatmul.mubr.f32.gmra.mxu0 %v295
    %v2762 = vpop.f32.mrf.mxu0
    %v2763 = vadd.f32 %v197, %v2762
    %v2764 = vpop.f32.mrf.mxu0
    %v2765 = vadd.f32 %v199, %v2764
    %2766 = vmatprep.mubr.f32.mxu0 0.0
    %2767 = vmatmul.mubr.f32.gmra.mxu0 %v298
    %v2768 = vpop.f32.mrf.mxu0
    %v2769 = vadd.f32 %v203, %v2768
    %v2770 = vpop.f32.mrf.mxu0
    %v2771 = vadd.f32 %v205, %v2770
    %2772 = vdwg.mxu0
    %2773 = vmatprep.subr.mxu0 0.0
    %2774 = vmatpush1.msra.mxu0 0.0
    %2775 = vmatprep.subr.mxu0 0.0
    %2776 = vmatpush1.msra.mxu0 0.0
    %2777 = vmatprep.subr.mxu0 0.0
    %2778 = vmatpush1.msra.mxu0 0.0
    %2779 = vmatprep.subr.mxu0 0.0
    %2780 = vmatpush1.msra.mxu0 0.0
    %2781 = vmatprep.subr.mxu0 0.0
    %2782 = vmatpush1.msra.mxu0 0.0
    %2783 = vmatprep.subr.mxu0 0.0
    %2784 = vmatpush1.msra.mxu0 0.0
    %2785 = vmatprep.subr.mxu0 0.0
    %2786 = vmatpush1.msra.mxu0 0.0
    %2787 = vmatprep.subr.mxu0 0.0
    %2788 = vmatpush1.msra.mxu0 0.0
    %2789 = vmatprep.subr.mxu0 0.0
    %2790 = vmatpush1.msra.mxu0 0.0
    %2791 = vmatprep.subr.mxu0 0.0
    %2792 = vmatpush1.msra.mxu0 0.0
    %2793 = vmatprep.subr.mxu0 0.0
    %2794 = vmatpush1.msra.mxu0 0.0
    %2795 = vmatprep.subr.mxu0 0.0
    %2796 = vmatpush1.msra.mxu0 0.0
    %2797 = vmatprep.subr.mxu0 0.0
    %2798 = vmatpush1.msra.mxu0 0.0
    %2799 = vmatprep.subr.mxu0 %v2689
    %2800 = vmatpush1.msra.mxu0 %v2688
    %2801 = vmatprep.subr.mxu0 %v2685
    %2802 = vmatpush1.msra.mxu0 %v2684
    %2803 = vmatprep.subr.mxu0 %v2681
    %2804 = vmatpush1.msra.mxu0 %v2680
    %2805 = vmatprep.subr.mxu0 0.0
    %2806 = vmatpush2.msra.mxu0 0.0
    %2807 = vmatprep.subr.mxu0 0.0
    %2808 = vmatpush2.msra.mxu0 0.0
    %2809 = vmatprep.subr.mxu0 0.0
    %2810 = vmatpush2.msra.mxu0 0.0
    %2811 = vmatprep.subr.mxu0 0.0
    %2812 = vmatpush2.msra.mxu0 0.0
    %2813 = vmatprep.subr.mxu0 0.0
    %2814 = vmatpush2.msra.mxu0 0.0
    %2815 = vmatprep.subr.mxu0 0.0
    %2816 = vmatpush2.msra.mxu0 0.0
    %2817 = vmatprep.subr.mxu0 0.0
    %2818 = vmatpush2.msra.mxu0 0.0
    %2819 = vmatprep.subr.mxu0 0.0
    %2820 = vmatpush2.msra.mxu0 0.0
    %2821 = vmatprep.subr.mxu0 0.0
    %2822 = vmatpush2.msra.mxu0 0.0
    %2823 = vmatprep.subr.mxu0 0.0
    %2824 = vmatpush2.msra.mxu0 0.0
    %2825 = vmatprep.subr.mxu0 0.0
    %2826 = vmatpush2.msra.mxu0 0.0
    %2827 = vmatprep.subr.mxu0 0.0
    %2828 = vmatpush2.msra.mxu0 0.0
    %2829 = vmatprep.subr.mxu0 0.0
    %2830 = vmatpush2.msra.mxu0 0.0
    %2831 = vmatprep.subr.mxu0 0.0
    %2832 = vmatpush2.msra.mxu0 0.0
    %2833 = vmatprep.subr.mxu0 0.0
    %2834 = vmatpush2.msra.mxu0 0.0
    %2835 = vmatprep.subr.mxu0 0.0
    %2836 = vmatpush2.msra.mxu0 0.0
    %2837 = vmatprep.mubr.f32.mxu0 0.0
    %2838 = vmatmul.mubr.f32.gmra.mxu0 %v292
    %v2839 = vpop.f32.mrf.mxu0
    %v2840 = vadd.f32 %v274, %v2839
    %v2841 = vpop.f32.mrf.mxu0
    %v2842 = vadd.f32 %v276, %v2841
    %2843 = vmatprep.mubr.f32.mxu0 0.0
    %2844 = vmatmul.mubr.f32.gmra.mxu0 %v295
    %v2845 = vpop.f32.mrf.mxu0
    %v2846 = vadd.f32 %v280, %v2845
    %v2847 = vpop.f32.mrf.mxu0
    %v2848 = vadd.f32 %v282, %v2847
    %2849 = vmatprep.mubr.f32.mxu0 0.0
    %2850 = vmatmul.mubr.f32.gmra.mxu0 %v298
    %v2851 = vpop.f32.mrf.mxu0
    %v2852 = vadd.f32 %v286, %v2851
    %v2853 = vpop.f32.mrf.mxu0
    %v2854 = vadd.f32 %v288, %v2853
    %2855 = vdwg.mxu0
    %v2856 = vmax.f32 %v466, %v2757
    %v2857 = vmax.f32 %v466, %v2759
    %v2858 = vmax.f32 %v466, %v2840
    %v2859 = vmax.f32 %v466, %v2842
    %v2860 = vmax.f32 %v466, %v2763
    %v2861 = vmax.f32 %v466, %v2765
    %v2862 = vmax.f32 %v466, %v2846
    %v2863 = vmax.f32 %v466, %v2848
    %v2864 = vmax.f32 %v466, %v2769
    %v2865 = vmax.f32 %v466, %v2771
    %v2866 = vmax.f32 %v466, %v2852
    %v2867 = vmax.f32 %v466, %v2854
    %v2868 = vmin.f32 %v479, %v2856
    %v2869 = vmin.f32 %v479, %v2857
    %v2870 = vmin.f32 %v479, %v2858
    %v2871 = vmin.f32 %v479, %v2859
    %v2872 = vmin.f32 %v479, %v2860
    %v2873 = vmin.f32 %v479, %v2861
    %v2874 = vmin.f32 %v479, %v2862
    %v2875 = vmin.f32 %v479, %v2863
    %v2876 = vmin.f32 %v479, %v2864
    %v2877 = vmin.f32 %v479, %v2865
    %v2878 = vmin.f32 %v479, %v2866
    %v2879 = vmin.f32 %v479, %v2867
    %v2880 = vsub.f32 %v2757, %v2868
    %v2881 = vsub.f32 %v2759, %v2869
    %v2882 = vsub.f32 %v2840, %v2870
    %v2883 = vsub.f32 %v2842, %v2871
    %v2884 = vsub.f32 %v2763, %v2872
    %v2885 = vsub.f32 %v2765, %v2873
    %v2886 = vsub.f32 %v2846, %v2874
    %v2887 = vsub.f32 %v2848, %v2875
    %v2888 = vsub.f32 %v2769, %v2876
    %v2889 = vsub.f32 %v2771, %v2877
    %v2890 = vsub.f32 %v2852, %v2878
    %v2891 = vsub.f32 %v2854, %v2879
    %s2892 = sld [smem:[#allocation3 + $0xa]]
    %v2893 = vsub.f32 %v2880, %v2640
    %v2894 = vsub.f32 %v2881, %v2641
    %v2895 = vsub.f32 %v2882, %v2642
    %v2896 = vsub.f32 %v2883, %v2643
    %v2897 = vsub.f32 %v2884, %v2644
    %v2898 = vsub.f32 %v2885, %v2645
    %v2899 = vsub.f32 %v2886, %v2646
    %v2900 = vsub.f32 %v2887, %v2647
    %v2901 = vsub.f32 %v2888, %v2648
    %v2902 = vsub.f32 %v2889, %v2649
    %v2903 = vsub.f32 %v2890, %v2650
    %v2904 = vsub.f32 %v2891, %v2651
    %v2905 = vstv %s2892
    %v2906 = vmul.f32 %v2905, %v2893
    %v2907 = vmul.f32 %v2905, %v2894
    %v2908 = vmul.f32 %v2905, %v2895
    %v2909 = vmul.f32 %v2905, %v2896
    %v2910 = vmul.f32 %v2905, %v2897
    %v2911 = vmul.f32 %v2905, %v2898
    %v2912 = vmul.f32 %v2905, %v2899
    %v2913 = vmul.f32 %v2905, %v2900
    %v2914 = vmul.f32 %v2905, %v2901
    %v2915 = vmul.f32 %v2905, %v2902
    %v2916 = vmul.f32 %v2905, %v2903
    %v2917 = vmul.f32 %v2905, %v2904
    %v2918 = vadd.f32 %v2880, %v2906
    %v2919 = vadd.f32 %v2881, %v2907
    %v2920 = vadd.f32 %v2882, %v2908
    %v2921 = vadd.f32 %v2883, %v2909
    %v2922 = vadd.f32 %v2884, %v2910
    %v2923 = vadd.f32 %v2885, %v2911
    %v2924 = vadd.f32 %v2886, %v2912
    %v2925 = vadd.f32 %v2887, %v2913
    %v2926 = vadd.f32 %v2888, %v2914
    %v2927 = vadd.f32 %v2889, %v2915
    %v2928 = vadd.f32 %v2890, %v2916
    %v2929 = vadd.f32 %v2891, %v2917
    %2930 = vmatprep.subr.mxu0 0.0
    %2931 = vmatpush1.msra.mxu0 0.0
    %2932 = vmatprep.subr.mxu0 0.0
    %2933 = vmatpush1.msra.mxu0 0.0
    %2934 = vmatprep.subr.mxu0 0.0
    %2935 = vmatpush1.msra.mxu0 0.0
    %2936 = vmatprep.subr.mxu0 0.0
    %2937 = vmatpush1.msra.mxu0 0.0
    %2938 = vmatprep.subr.mxu0 0.0
    %2939 = vmatpush1.msra.mxu0 0.0
    %2940 = vmatprep.subr.mxu0 0.0
    %2941 = vmatpush1.msra.mxu0 0.0
    %2942 = vmatprep.subr.mxu0 0.0
    %2943 = vmatpush1.msra.mxu0 0.0
    %2944 = vmatprep.subr.mxu0 0.0
    %2945 = vmatpush1.msra.mxu0 0.0
    %2946 = vmatprep.subr.mxu0 0.0
    %2947 = vmatpush1.msra.mxu0 0.0
    %2948 = vmatprep.subr.mxu0 0.0
    %2949 = vmatpush1.msra.mxu0 0.0
    %2950 = vmatprep.subr.mxu0 0.0
    %2951 = vmatpush1.msra.mxu0 0.0
    %2952 = vmatprep.subr.mxu0 0.0
    %2953 = vmatpush1.msra.mxu0 0.0
    %2954 = vmatprep.subr.mxu0 0.0
    %2955 = vmatpush1.msra.mxu0 0.0
    %2956 = vmatprep.subr.mxu0 %v2927
    %2957 = vmatpush1.msra.mxu0 %v2926
    %2958 = vmatprep.subr.mxu0 %v2923
    %2959 = vmatpush1.msra.mxu0 %v2922
    %2960 = vmatprep.subr.mxu0 %v2919
    %2961 = vmatpush1.msra.mxu0 %v2918
    %2962 = vmatprep.subr.mxu0 0.0
    %2963 = vmatpush2.msra.mxu0 0.0
    %2964 = vmatprep.subr.mxu0 0.0
    %2965 = vmatpush2.msra.mxu0 0.0
    %2966 = vmatprep.subr.mxu0 0.0
    %2967 = vmatpush2.msra.mxu0 0.0
    %2968 = vmatprep.subr.mxu0 0.0
    %2969 = vmatpush2.msra.mxu0 0.0
    %2970 = vmatprep.subr.mxu0 0.0
    %2971 = vmatpush2.msra.mxu0 0.0
    %2972 = vmatprep.subr.mxu0 0.0
    %2973 = vmatpush2.msra.mxu0 0.0
    %2974 = vmatprep.subr.mxu0 0.0
    %2975 = vmatpush2.msra.mxu0 0.0
    %2976 = vmatprep.subr.mxu0 0.0
    %2977 = vmatpush2.msra.mxu0 0.0
    %2978 = vmatprep.subr.mxu0 0.0
    %2979 = vmatpush2.msra.mxu0 0.0
    %2980 = vmatprep.subr.mxu0 0.0
    %2981 = vmatpush2.msra.mxu0 0.0
    %2982 = vmatprep.subr.mxu0 0.0
    %2983 = vmatpush2.msra.mxu0 0.0
    %2984 = vmatprep.subr.mxu0 0.0
    %2985 = vmatpush2.msra.mxu0 0.0
    %2986 = vmatprep.subr.mxu0 0.0
    %2987 = vmatpush2.msra.mxu0 0.0
    %2988 = vmatprep.subr.mxu0 0.0
    %2989 = vmatpush2.msra.mxu0 0.0
    %2990 = vmatprep.subr.mxu0 0.0
    %2991 = vmatpush2.msra.mxu0 0.0
    %2992 = vmatprep.subr.mxu0 0.0
    %2993 = vmatpush2.msra.mxu0 0.0
    %2994 = vmatprep.mubr.f32.mxu0 0.0
    %2995 = vmatmul.mubr.f32.gmra.mxu0 %v292
    %v2996 = vpop.f32.mrf.mxu0
    %v2997 = vadd.f32 %v191, %v2996
    %v2998 = vpop.f32.mrf.mxu0
    %v2999 = vadd.f32 %v193, %v2998
    %3000 = vmatprep.mubr.f32.mxu0 0.0
    %3001 = vmatmul.mubr.f32.gmra.mxu0 %v295
    %v3002 = vpop.f32.mrf.mxu0
    %v3003 = vadd.f32 %v197, %v3002
    %v3004 = vpop.f32.mrf.mxu0
    %v3005 = vadd.f32 %v199, %v3004
    %3006 = vmatprep.mubr.f32.mxu0 0.0
    %3007 = vmatmul.mubr.f32.gmra.mxu0 %v298
    %v3008 = vpop.f32.mrf.mxu0
    %v3009 = vadd.f32 %v203, %v3008
    %v3010 = vpop.f32.mrf.mxu0
    %v3011 = vadd.f32 %v205, %v3010
    %3012 = vdwg.mxu0
    %3013 = vmatprep.subr.mxu0 0.0
    %3014 = vmatpush1.msra.mxu0 0.0
    %3015 = vmatprep.subr.mxu0 0.0
    %3016 = vmatpush1.msra.mxu0 0.0
    %3017 = vmatprep.subr.mxu0 0.0
    %3018 = vmatpush1.msra.mxu0 0.0
    %3019 = vmatprep.subr.mxu0 0.0
    %3020 = vmatpush1.msra.mxu0 0.0
    %3021 = vmatprep.subr.mxu0 0.0
    %3022 = vmatpush1.msra.mxu0 0.0
    %3023 = vmatprep.subr.mxu0 0.0
    %3024 = vmatpush1.msra.mxu0 0.0
    %3025 = vmatprep.subr.mxu0 0.0
    %3026 = vmatpush1.msra.mxu0 0.0
    %3027 = vmatprep.subr.mxu0 0.0
    %3028 = vmatpush1.msra.mxu0 0.0
    %3029 = vmatprep.subr.mxu0 0.0
    %3030 = vmatpush1.msra.mxu0 0.0
    %3031 = vmatprep.subr.mxu0 0.0
    %3032 = vmatpush1.msra.mxu0 0.0
    %3033 = vmatprep.subr.mxu0 0.0
    %3034 = vmatpush1.msra.mxu0 0.0
    %3035 = vmatprep.subr.mxu0 0.0
    %3036 = vmatpush1.msra.mxu0 0.0
    %3037 = vmatprep.subr.mxu0 0.0
    %3038 = vmatpush1.msra.mxu0 0.0
    %3039 = vmatprep.subr.mxu0 %v2929
    %3040 = vmatpush1.msra.mxu0 %v2928
    %3041 = vmatprep.subr.mxu0 %v2925
    %3042 = vmatpush1.msra.mxu0 %v2924
    %3043 = vmatprep.subr.mxu0 %v2921
    %3044 = vmatpush1.msra.mxu0 %v2920
    %3045 = vmatprep.subr.mxu0 0.0
    %3046 = vmatpush2.msra.mxu0 0.0
    %3047 = vmatprep.subr.mxu0 0.0
    %3048 = vmatpush2.msra.mxu0 0.0
    %3049 = vmatprep.subr.mxu0 0.0
    %3050 = vmatpush2.msra.mxu0 0.0
    %3051 = vmatprep.subr.mxu0 0.0
    %3052 = vmatpush2.msra.mxu0 0.0
    %3053 = vmatprep.subr.mxu0 0.0
    %3054 = vmatpush2.msra.mxu0 0.0
    %3055 = vmatprep.subr.mxu0 0.0
    %3056 = vmatpush2.msra.mxu0 0.0
    %3057 = vmatprep.subr.mxu0 0.0
    %3058 = vmatpush2.msra.mxu0 0.0
    %3059 = vmatprep.subr.mxu0 0.0
    %3060 = vmatpush2.msra.mxu0 0.0
    %3061 = vmatprep.subr.mxu0 0.0
    %3062 = vmatpush2.msra.mxu0 0.0
    %3063 = vmatprep.subr.mxu0 0.0
    %3064 = vmatpush2.msra.mxu0 0.0
    %3065 = vmatprep.subr.mxu0 0.0
    %3066 = vmatpush2.msra.mxu0 0.0
    %3067 = vmatprep.subr.mxu0 0.0
    %3068 = vmatpush2.msra.mxu0 0.0
    %3069 = vmatprep.subr.mxu0 0.0
    %3070 = vmatpush2.msra.mxu0 0.0
    %3071 = vmatprep.subr.mxu0 0.0
    %3072 = vmatpush2.msra.mxu0 0.0
    %3073 = vmatprep.subr.mxu0 0.0
    %3074 = vmatpush2.msra.mxu0 0.0
    %3075 = vmatprep.subr.mxu0 0.0
    %3076 = vmatpush2.msra.mxu0 0.0
    %3077 = vmatprep.mubr.f32.mxu0 0.0
    %3078 = vmatmul.mubr.f32.gmra.mxu0 %v292
    %v3079 = vpop.f32.mrf.mxu0
    %v3080 = vadd.f32 %v274, %v3079
    %v3081 = vpop.f32.mrf.mxu0
    %v3082 = vadd.f32 %v276, %v3081
    %3083 = vmatprep.mubr.f32.mxu0 0.0
    %3084 = vmatmul.mubr.f32.gmra.mxu0 %v295
    %v3085 = vpop.f32.mrf.mxu0
    %v3086 = vadd.f32 %v280, %v3085
    %v3087 = vpop.f32.mrf.mxu0
    %v3088 = vadd.f32 %v282, %v3087
    %3089 = vmatprep.mubr.f32.mxu0 0.0
    %3090 = vmatmul.mubr.f32.gmra.mxu0 %v298
    %v3091 = vpop.f32.mrf.mxu0
    %v3092 = vadd.f32 %v286, %v3091
    %v3093 = vpop.f32.mrf.mxu0
    %v3094 = vadd.f32 %v288, %v3093
    %3095 = vdwg.mxu0
    %v3096 = vmax.f32 %v466, %v2997
    %v3097 = vmax.f32 %v466, %v2999
    %v3098 = vmax.f32 %v466, %v3080
    %v3099 = vmax.f32 %v466, %v3082
    %v3100 = vmax.f32 %v466, %v3003
    %v3101 = vmax.f32 %v466, %v3005
    %v3102 = vmax.f32 %v466, %v3086
    %v3103 = vmax.f32 %v466, %v3088
    %v3104 = vmax.f32 %v466, %v3009
    %v3105 = vmax.f32 %v466, %v3011
    %v3106 = vmax.f32 %v466, %v3092
    %v3107 = vmax.f32 %v466, %v3094
    %v3108 = vmin.f32 %v479, %v3096
    %v3109 = vmin.f32 %v479, %v3097
    %v3110 = vmin.f32 %v479, %v3098
    %v3111 = vmin.f32 %v479, %v3099
    %v3112 = vmin.f32 %v479, %v3100
    %v3113 = vmin.f32 %v479, %v3101
    %v3114 = vmin.f32 %v479, %v3102
    %v3115 = vmin.f32 %v479, %v3103
    %v3116 = vmin.f32 %v479, %v3104
    %v3117 = vmin.f32 %v479, %v3105
    %v3118 = vmin.f32 %v479, %v3106
    %v3119 = vmin.f32 %v479, %v3107
    %v3120 = vsub.f32 %v2997, %v3108
    %v3121 = vsub.f32 %v2999, %v3109
    %v3122 = vsub.f32 %v3080, %v3110
    %v3123 = vsub.f32 %v3082, %v3111
    %v3124 = vsub.f32 %v3003, %v3112
    %v3125 = vsub.f32 %v3005, %v3113
    %v3126 = vsub.f32 %v3086, %v3114
    %v3127 = vsub.f32 %v3088, %v3115
    %v3128 = vsub.f32 %v3009, %v3116
    %v3129 = vsub.f32 %v3011, %v3117
    %v3130 = vsub.f32 %v3092, %v3118
    %v3131 = vsub.f32 %v3094, %v3119
    %s3132 = sld [smem:[#allocation3 + $0xb]]
    %v3133 = vsub.f32 %v3120, %v2880
    %v3134 = vsub.f32 %v3121, %v2881
    %v3135 = vsub.f32 %v3122, %v2882
    %v3136 = vsub.f32 %v3123, %v2883
    %v3137 = vsub.f32 %v3124, %v2884
    %v3138 = vsub.f32 %v3125, %v2885
    %v3139 = vsub.f32 %v3126, %v2886
    %v3140 = vsub.f32 %v3127, %v2887
    %v3141 = vsub.f32 %v3128, %v2888
    %v3142 = vsub.f32 %v3129, %v2889
    %v3143 = vsub.f32 %v3130, %v2890
    %v3144 = vsub.f32 %v3131, %v2891
    %v3145 = vstv %s3132
    %v3146 = vmul.f32 %v3145, %v3133
    %v3147 = vmul.f32 %v3145, %v3134
    %v3148 = vmul.f32 %v3145, %v3135
    %v3149 = vmul.f32 %v3145, %v3136
    %v3150 = vmul.f32 %v3145, %v3137
    %v3151 = vmul.f32 %v3145, %v3138
    %v3152 = vmul.f32 %v3145, %v3139
    %v3153 = vmul.f32 %v3145, %v3140
    %v3154 = vmul.f32 %v3145, %v3141
    %v3155 = vmul.f32 %v3145, %v3142
    %v3156 = vmul.f32 %v3145, %v3143
    %v3157 = vmul.f32 %v3145, %v3144
    %v3158 = vadd.f32 %v3120, %v3146
    %v3159 = vadd.f32 %v3121, %v3147
    %v3160 = vadd.f32 %v3122, %v3148
    %v3161 = vadd.f32 %v3123, %v3149
    %v3162 = vadd.f32 %v3124, %v3150
    %v3163 = vadd.f32 %v3125, %v3151
    %v3164 = vadd.f32 %v3126, %v3152
    %v3165 = vadd.f32 %v3127, %v3153
    %v3166 = vadd.f32 %v3128, %v3154
    %v3167 = vadd.f32 %v3129, %v3155
    %v3168 = vadd.f32 %v3130, %v3156
    %v3169 = vadd.f32 %v3131, %v3157
    %3170 = vmatprep.subr.mxu0 0.0
    %3171 = vmatpush1.msra.mxu0 0.0
    %3172 = vmatprep.subr.mxu0 0.0
    %3173 = vmatpush1.msra.mxu0 0.0
    %3174 = vmatprep.subr.mxu0 0.0
    %3175 = vmatpush1.msra.mxu0 0.0
    %3176 = vmatprep.subr.mxu0 0.0
    %3177 = vmatpush1.msra.mxu0 0.0
    %3178 = vmatprep.subr.mxu0 0.0
    %3179 = vmatpush1.msra.mxu0 0.0
    %3180 = vmatprep.subr.mxu0 0.0
    %3181 = vmatpush1.msra.mxu0 0.0
    %3182 = vmatprep.subr.mxu0 0.0
    %3183 = vmatpush1.msra.mxu0 0.0
    %3184 = vmatprep.subr.mxu0 0.0
    %3185 = vmatpush1.msra.mxu0 0.0
    %3186 = vmatprep.subr.mxu0 0.0
    %3187 = vmatpush1.msra.mxu0 0.0
    %3188 = vmatprep.subr.mxu0 0.0
    %3189 = vmatpush1.msra.mxu0 0.0
    %3190 = vmatprep.subr.mxu0 0.0
    %3191 = vmatpush1.msra.mxu0 0.0
    %3192 = vmatprep.subr.mxu0 0.0
    %3193 = vmatpush1.msra.mxu0 0.0
    %3194 = vmatprep.subr.mxu0 0.0
    %3195 = vmatpush1.msra.mxu0 0.0
    %3196 = vmatprep.subr.mxu0 %v3167
    %3197 = vmatpush1.msra.mxu0 %v3166
    %3198 = vmatprep.subr.mxu0 %v3163
    %3199 = vmatpush1.msra.mxu0 %v3162
    %3200 = vmatprep.subr.mxu0 %v3159
    %3201 = vmatpush1.msra.mxu0 %v3158
    %3202 = vmatprep.subr.mxu0 0.0
    %3203 = vmatpush2.msra.mxu0 0.0
    %3204 = vmatprep.subr.mxu0 0.0
    %3205 = vmatpush2.msra.mxu0 0.0
    %3206 = vmatprep.subr.mxu0 0.0
    %3207 = vmatpush2.msra.mxu0 0.0
    %3208 = vmatprep.subr.mxu0 0.0
    %3209 = vmatpush2.msra.mxu0 0.0
    %3210 = vmatprep.subr.mxu0 0.0
    %3211 = vmatpush2.msra.mxu0 0.0
    %3212 = vmatprep.subr.mxu0 0.0
    %3213 = vmatpush2.msra.mxu0 0.0
    %3214 = vmatprep.subr.mxu0 0.0
    %3215 = vmatpush2.msra.mxu0 0.0
    %3216 = vmatprep.subr.mxu0 0.0
    %3217 = vmatpush2.msra.mxu0 0.0
    %3218 = vmatprep.subr.mxu0 0.0
    %3219 = vmatpush2.msra.mxu0 0.0
    %3220 = vmatprep.subr.mxu0 0.0
    %3221 = vmatpush2.msra.mxu0 0.0
    %3222 = vmatprep.subr.mxu0 0.0
    %3223 = vmatpush2.msra.mxu0 0.0
    %3224 = vmatprep.subr.mxu0 0.0
    %3225 = vmatpush2.msra.mxu0 0.0
    %3226 = vmatprep.subr.mxu0 0.0
    %3227 = vmatpush2.msra.mxu0 0.0
    %3228 = vmatprep.subr.mxu0 0.0
    %3229 = vmatpush2.msra.mxu0 0.0
    %3230 = vmatprep.subr.mxu0 0.0
    %3231 = vmatpush2.msra.mxu0 0.0
    %3232 = vmatprep.subr.mxu0 0.0
    %3233 = vmatpush2.msra.mxu0 0.0
    %3234 = vmatprep.mubr.f32.mxu0 0.0
    %3235 = vmatmul.mubr.f32.gmra.mxu0 %v292
    %v3236 = vpop.f32.mrf.mxu0
    %v3237 = vadd.f32 %v191, %v3236
    %v3238 = vpop.f32.mrf.mxu0
    %v3239 = vadd.f32 %v193, %v3238
    %3240 = vmatprep.mubr.f32.mxu0 0.0
    %3241 = vmatmul.mubr.f32.gmra.mxu0 %v295
    %v3242 = vpop.f32.mrf.mxu0
    %v3243 = vadd.f32 %v197, %v3242
    %v3244 = vpop.f32.mrf.mxu0
    %v3245 = vadd.f32 %v199, %v3244
    %3246 = vmatprep.mubr.f32.mxu0 0.0
    %3247 = vmatmul.mubr.f32.gmra.mxu0 %v298
    %v3248 = vpop.f32.mrf.mxu0
    %v3249 = vadd.f32 %v203, %v3248
    %v3250 = vpop.f32.mrf.mxu0
    %v3251 = vadd.f32 %v205, %v3250
    %3252 = vdwg.mxu0
    %3253 = vmatprep.subr.mxu0 0.0
    %3254 = vmatpush1.msra.mxu0 0.0
    %3255 = vmatprep.subr.mxu0 0.0
    %3256 = vmatpush1.msra.mxu0 0.0
    %3257 = vmatprep.subr.mxu0 0.0
    %3258 = vmatpush1.msra.mxu0 0.0
    %3259 = vmatprep.subr.mxu0 0.0
    %3260 = vmatpush1.msra.mxu0 0.0
    %3261 = vmatprep.subr.mxu0 0.0
    %3262 = vmatpush1.msra.mxu0 0.0
    %3263 = vmatprep.subr.mxu0 0.0
    %3264 = vmatpush1.msra.mxu0 0.0
    %3265 = vmatprep.subr.mxu0 0.0
    %3266 = vmatpush1.msra.mxu0 0.0
    %3267 = vmatprep.subr.mxu0 0.0
    %3268 = vmatpush1.msra.mxu0 0.0
    %3269 = vmatprep.subr.mxu0 0.0
    %3270 = vmatpush1.msra.mxu0 0.0
    %3271 = vmatprep.subr.mxu0 0.0
    %3272 = vmatpush1.msra.mxu0 0.0
    %3273 = vmatprep.subr.mxu0 0.0
    %3274 = vmatpush1.msra.mxu0 0.0
    %3275 = vmatprep.subr.mxu0 0.0
    %3276 = vmatpush1.msra.mxu0 0.0
    %3277 = vmatprep.subr.mxu0 0.0
    %3278 = vmatpush1.msra.mxu0 0.0
    %3279 = vmatprep.subr.mxu0 %v3169
    %3280 = vmatpush1.msra.mxu0 %v3168
    %3281 = vmatprep.subr.mxu0 %v3165
    %3282 = vmatpush1.msra.mxu0 %v3164
    %3283 = vmatprep.subr.mxu0 %v3161
    %3284 = vmatpush1.msra.mxu0 %v3160
    %3285 = vmatprep.subr.mxu0 0.0
    %3286 = vmatpush2.msra.mxu0 0.0
    %3287 = vmatprep.subr.mxu0 0.0
    %3288 = vmatpush2.msra.mxu0 0.0
    %3289 = vmatprep.subr.mxu0 0.0
    %3290 = vmatpush2.msra.mxu0 0.0
    %3291 = vmatprep.subr.mxu0 0.0
    %3292 = vmatpush2.msra.mxu0 0.0
    %3293 = vmatprep.subr.mxu0 0.0
    %3294 = vmatpush2.msra.mxu0 0.0
    %3295 = vmatprep.subr.mxu0 0.0
    %3296 = vmatpush2.msra.mxu0 0.0
    %3297 = vmatprep.subr.mxu0 0.0
    %3298 = vmatpush2.msra.mxu0 0.0
    %3299 = vmatprep.subr.mxu0 0.0
    %3300 = vmatpush2.msra.mxu0 0.0
    %3301 = vmatprep.subr.mxu0 0.0
    %3302 = vmatpush2.msra.mxu0 0.0
    %3303 = vmatprep.subr.mxu0 0.0
    %3304 = vmatpush2.msra.mxu0 0.0
    %3305 = vmatprep.subr.mxu0 0.0
    %3306 = vmatpush2.msra.mxu0 0.0
    %3307 = vmatprep.subr.mxu0 0.0
    %3308 = vmatpush2.msra.mxu0 0.0
    %3309 = vmatprep.subr.mxu0 0.0
    %3310 = vmatpush2.msra.mxu0 0.0
    %3311 = vmatprep.subr.mxu0 0.0
    %3312 = vmatpush2.msra.mxu0 0.0
    %3313 = vmatprep.subr.mxu0 0.0
    %3314 = vmatpush2.msra.mxu0 0.0
    %3315 = vmatprep.subr.mxu0 0.0
    %3316 = vmatpush2.msra.mxu0 0.0
    %3317 = vmatprep.mubr.f32.mxu0 0.0
    %3318 = vmatmul.mubr.f32.gmra.mxu0 %v292
    %v3319 = vpop.f32.mrf.mxu0
    %v3320 = vadd.f32 %v274, %v3319
    %v3321 = vpop.f32.mrf.mxu0
    %v3322 = vadd.f32 %v276, %v3321
    %3323 = vmatprep.mubr.f32.mxu0 0.0
    %3324 = vmatmul.mubr.f32.gmra.mxu0 %v295
    %v3325 = vpop.f32.mrf.mxu0
    %v3326 = vadd.f32 %v280, %v3325
    %v3327 = vpop.f32.mrf.mxu0
    %v3328 = vadd.f32 %v282, %v3327
    %3329 = vmatprep.mubr.f32.mxu0 0.0
    %3330 = vmatmul.mubr.f32.gmra.mxu0 %v298
    %v3331 = vpop.f32.mrf.mxu0
    %v3332 = vadd.f32 %v286, %v3331
    %v3333 = vpop.f32.mrf.mxu0
    %v3334 = vadd.f32 %v288, %v3333
    %3335 = vdwg.mxu0
    %v3336 = vmax.f32 %v466, %v3237
    %v3337 = vmax.f32 %v466, %v3239
    %v3338 = vmax.f32 %v466, %v3320
    %v3339 = vmax.f32 %v466, %v3322
    %v3340 = vmax.f32 %v466, %v3243
    %v3341 = vmax.f32 %v466, %v3245
    %v3342 = vmax.f32 %v466, %v3326
    %v3343 = vmax.f32 %v466, %v3328
    %v3344 = vmax.f32 %v466, %v3249
    %v3345 = vmax.f32 %v466, %v3251
    %v3346 = vmax.f32 %v466, %v3332
    %v3347 = vmax.f32 %v466, %v3334
    %v3348 = vmin.f32 %v479, %v3336
    %v3349 = vmin.f32 %v479, %v3337
    %v3350 = vmin.f32 %v479, %v3338
    %v3351 = vmin.f32 %v479, %v3339
    %v3352 = vmin.f32 %v479, %v3340
    %v3353 = vmin.f32 %v479, %v3341
    %v3354 = vmin.f32 %v479, %v3342
    %v3355 = vmin.f32 %v479, %v3343
    %v3356 = vmin.f32 %v479, %v3344
    %v3357 = vmin.f32 %v479, %v3345
    %v3358 = vmin.f32 %v479, %v3346
    %v3359 = vmin.f32 %v479, %v3347
    %v3360 = vsub.f32 %v3237, %v3348
    %v3361 = vsub.f32 %v3239, %v3349
    %v3362 = vsub.f32 %v3320, %v3350
    %v3363 = vsub.f32 %v3322, %v3351
    %v3364 = vsub.f32 %v3243, %v3352
    %v3365 = vsub.f32 %v3245, %v3353
    %v3366 = vsub.f32 %v3326, %v3354
    %v3367 = vsub.f32 %v3328, %v3355
    %v3368 = vsub.f32 %v3249, %v3356
    %v3369 = vsub.f32 %v3251, %v3357
    %v3370 = vsub.f32 %v3332, %v3358
    %v3371 = vsub.f32 %v3334, %v3359
    %s3372 = sld [smem:[#allocation3 + $0xc]]
    %v3373 = vsub.f32 %v3360, %v3120
    %v3374 = vsub.f32 %v3361, %v3121
    %v3375 = vsub.f32 %v3362, %v3122
    %v3376 = vsub.f32 %v3363, %v3123
    %v3377 = vsub.f32 %v3364, %v3124
    %v3378 = vsub.f32 %v3365, %v3125
    %v3379 = vsub.f32 %v3366, %v3126
    %v3380 = vsub.f32 %v3367, %v3127
    %v3381 = vsub.f32 %v3368, %v3128
    %v3382 = vsub.f32 %v3369, %v3129
    %v3383 = vsub.f32 %v3370, %v3130
    %v3384 = vsub.f32 %v3371, %v3131
    %v3385 = vstv %s3372
    %v3386 = vmul.f32 %v3385, %v3373
    %v3387 = vmul.f32 %v3385, %v3374
    %v3388 = vmul.f32 %v3385, %v3375
    %v3389 = vmul.f32 %v3385, %v3376
    %v3390 = vmul.f32 %v3385, %v3377
    %v3391 = vmul.f32 %v3385, %v3378
    %v3392 = vmul.f32 %v3385, %v3379
    %v3393 = vmul.f32 %v3385, %v3380
    %v3394 = vmul.f32 %v3385, %v3381
    %v3395 = vmul.f32 %v3385, %v3382
    %v3396 = vmul.f32 %v3385, %v3383
    %v3397 = vmul.f32 %v3385, %v3384
    %v3398 = vadd.f32 %v3360, %v3386
    %v3399 = vadd.f32 %v3361, %v3387
    %v3400 = vadd.f32 %v3362, %v3388
    %v3401 = vadd.f32 %v3363, %v3389
    %v3402 = vadd.f32 %v3364, %v3390
    %v3403 = vadd.f32 %v3365, %v3391
    %v3404 = vadd.f32 %v3366, %v3392
    %v3405 = vadd.f32 %v3367, %v3393
    %v3406 = vadd.f32 %v3368, %v3394
    %v3407 = vadd.f32 %v3369, %v3395
    %v3408 = vadd.f32 %v3370, %v3396
    %v3409 = vadd.f32 %v3371, %v3397
    %3410 = vmatprep.subr.mxu0 0.0
    %3411 = vmatpush1.msra.mxu0 0.0
    %3412 = vmatprep.subr.mxu0 0.0
    %3413 = vmatpush1.msra.mxu0 0.0
    %3414 = vmatprep.subr.mxu0 0.0
    %3415 = vmatpush1.msra.mxu0 0.0
    %3416 = vmatprep.subr.mxu0 0.0
    %3417 = vmatpush1.msra.mxu0 0.0
    %3418 = vmatprep.subr.mxu0 0.0
    %3419 = vmatpush1.msra.mxu0 0.0
    %3420 = vmatprep.subr.mxu0 0.0
    %3421 = vmatpush1.msra.mxu0 0.0
    %3422 = vmatprep.subr.mxu0 0.0
    %3423 = vmatpush1.msra.mxu0 0.0
    %3424 = vmatprep.subr.mxu0 0.0
    %3425 = vmatpush1.msra.mxu0 0.0
    %3426 = vmatprep.subr.mxu0 0.0
    %3427 = vmatpush1.msra.mxu0 0.0
    %3428 = vmatprep.subr.mxu0 0.0
    %3429 = vmatpush1.msra.mxu0 0.0
    %3430 = vmatprep.subr.mxu0 0.0
    %3431 = vmatpush1.msra.mxu0 0.0
    %3432 = vmatprep.subr.mxu0 0.0
    %3433 = vmatpush1.msra.mxu0 0.0
    %3434 = vmatprep.subr.mxu0 0.0
    %3435 = vmatpush1.msra.mxu0 0.0
    %3436 = vmatprep.subr.mxu0 %v3407
    %3437 = vmatpush1.msra.mxu0 %v3406
    %3438 = vmatprep.subr.mxu0 %v3403
    %3439 = vmatpush1.msra.mxu0 %v3402
    %3440 = vmatprep.subr.mxu0 %v3399
    %3441 = vmatpush1.msra.mxu0 %v3398
    %3442 = vmatprep.subr.mxu0 0.0
    %3443 = vmatpush2.msra.mxu0 0.0
    %3444 = vmatprep.subr.mxu0 0.0
    %3445 = vmatpush2.msra.mxu0 0.0
    %3446 = vmatprep.subr.mxu0 0.0
    %3447 = vmatpush2.msra.mxu0 0.0
    %3448 = vmatprep.subr.mxu0 0.0
    %3449 = vmatpush2.msra.mxu0 0.0
    %3450 = vmatprep.subr.mxu0 0.0
    %3451 = vmatpush2.msra.mxu0 0.0
    %3452 = vmatprep.subr.mxu0 0.0
    %3453 = vmatpush2.msra.mxu0 0.0
    %3454 = vmatprep.subr.mxu0 0.0
    %3455 = vmatpush2.msra.mxu0 0.0
    %3456 = vmatprep.subr.mxu0 0.0
    %3457 = vmatpush2.msra.mxu0 0.0
    %3458 = vmatprep.subr.mxu0 0.0
    %3459 = vmatpush2.msra.mxu0 0.0
    %3460 = vmatprep.subr.mxu0 0.0
    %3461 = vmatpush2.msra.mxu0 0.0
    %3462 = vmatprep.subr.mxu0 0.0
    %3463 = vmatpush2.msra.mxu0 0.0
    %3464 = vmatprep.subr.mxu0 0.0
    %3465 = vmatpush2.msra.mxu0 0.0
    %3466 = vmatprep.subr.mxu0 0.0
    %3467 = vmatpush2.msra.mxu0 0.0
    %3468 = vmatprep.subr.mxu0 0.0
    %3469 = vmatpush2.msra.mxu0 0.0
    %3470 = vmatprep.subr.mxu0 0.0
    %3471 = vmatpush2.msra.mxu0 0.0
    %3472 = vmatprep.subr.mxu0 0.0
    %3473 = vmatpush2.msra.mxu0 0.0
    %3474 = vmatprep.mubr.f32.mxu0 0.0
    %3475 = vmatmul.mubr.f32.gmra.mxu0 %v292
    %v3476 = vpop.f32.mrf.mxu0
    %v3477 = vadd.f32 %v191, %v3476
    %v3478 = vpop.f32.mrf.mxu0
    %v3479 = vadd.f32 %v193, %v3478
    %3480 = vmatprep.mubr.f32.mxu0 0.0
    %3481 = vmatmul.mubr.f32.gmra.mxu0 %v295
    %v3482 = vpop.f32.mrf.mxu0
    %v3483 = vadd.f32 %v197, %v3482
    %v3484 = vpop.f32.mrf.mxu0
    %v3485 = vadd.f32 %v199, %v3484
    %3486 = vmatprep.mubr.f32.mxu0 0.0
    %3487 = vmatmul.mubr.f32.gmra.mxu0 %v298
    %v3488 = vpop.f32.mrf.mxu0
    %v3489 = vadd.f32 %v203, %v3488
    %v3490 = vpop.f32.mrf.mxu0
    %v3491 = vadd.f32 %v205, %v3490
    %3492 = vdwg.mxu0
    %3493 = vmatprep.subr.mxu0 0.0
    %3494 = vmatpush1.msra.mxu0 0.0
    %3495 = vmatprep.subr.mxu0 0.0
    %3496 = vmatpush1.msra.mxu0 0.0
    %3497 = vmatprep.subr.mxu0 0.0
    %3498 = vmatpush1.msra.mxu0 0.0
    %3499 = vmatprep.subr.mxu0 0.0
    %3500 = vmatpush1.msra.mxu0 0.0
    %3501 = vmatprep.subr.mxu0 0.0
    %3502 = vmatpush1.msra.mxu0 0.0
    %3503 = vmatprep.subr.mxu0 0.0
    %3504 = vmatpush1.msra.mxu0 0.0
    %3505 = vmatprep.subr.mxu0 0.0
    %3506 = vmatpush1.msra.mxu0 0.0
    %3507 = vmatprep.subr.mxu0 0.0
    %3508 = vmatpush1.msra.mxu0 0.0
    %3509 = vmatprep.subr.mxu0 0.0
    %3510 = vmatpush1.msra.mxu0 0.0
    %3511 = vmatprep.subr.mxu0 0.0
    %3512 = vmatpush1.msra.mxu0 0.0
    %3513 = vmatprep.subr.mxu0 0.0
    %3514 = vmatpush1.msra.mxu0 0.0
    %3515 = vmatprep.subr.mxu0 0.0
    %3516 = vmatpush1.msra.mxu0 0.0
    %3517 = vmatprep.subr.mxu0 0.0
    %3518 = vmatpush1.msra.mxu0 0.0
    %3519 = vmatprep.subr.mxu0 %v3409
    %3520 = vmatpush1.msra.mxu0 %v3408
    %3521 = vmatprep.subr.mxu0 %v3405
    %3522 = vmatpush1.msra.mxu0 %v3404
    %3523 = vmatprep.subr.mxu0 %v3401
    %3524 = vmatpush1.msra.mxu0 %v3400
    %3525 = vmatprep.subr.mxu0 0.0
    %3526 = vmatpush2.msra.mxu0 0.0
    %3527 = vmatprep.subr.mxu0 0.0
    %3528 = vmatpush2.msra.mxu0 0.0
    %3529 = vmatprep.subr.mxu0 0.0
    %3530 = vmatpush2.msra.mxu0 0.0
    %3531 = vmatprep.subr.mxu0 0.0
    %3532 = vmatpush2.msra.mxu0 0.0
    %3533 = vmatprep.subr.mxu0 0.0
    %3534 = vmatpush2.msra.mxu0 0.0
    %3535 = vmatprep.subr.mxu0 0.0
    %3536 = vmatpush2.msra.mxu0 0.0
    %3537 = vmatprep.subr.mxu0 0.0
    %3538 = vmatpush2.msra.mxu0 0.0
    %3539 = vmatprep.subr.mxu0 0.0
    %3540 = vmatpush2.msra.mxu0 0.0
    %3541 = vmatprep.subr.mxu0 0.0
    %3542 = vmatpush2.msra.mxu0 0.0
    %3543 = vmatprep.subr.mxu0 0.0
    %3544 = vmatpush2.msra.mxu0 0.0
    %3545 = vmatprep.subr.mxu0 0.0
    %3546 = vmatpush2.msra.mxu0 0.0
    %3547 = vmatprep.subr.mxu0 0.0
    %3548 = vmatpush2.msra.mxu0 0.0
    %3549 = vmatprep.subr.mxu0 0.0
    %3550 = vmatpush2.msra.mxu0 0.0
    %3551 = vmatprep.subr.mxu0 0.0
    %3552 = vmatpush2.msra.mxu0 0.0
    %3553 = vmatprep.subr.mxu0 0.0
    %3554 = vmatpush2.msra.mxu0 0.0
    %3555 = vmatprep.subr.mxu0 0.0
    %3556 = vmatpush2.msra.mxu0 0.0
    %3557 = vmatprep.mubr.f32.mxu0 0.0
    %3558 = vmatmul.mubr.f32.gmra.mxu0 %v292
    %v3559 = vpop.f32.mrf.mxu0
    %v3560 = vadd.f32 %v274, %v3559
    %v3561 = vpop.f32.mrf.mxu0
    %v3562 = vadd.f32 %v276, %v3561
    %3563 = vmatprep.mubr.f32.mxu0 0.0
    %3564 = vmatmul.mubr.f32.gmra.mxu0 %v295
    %v3565 = vpop.f32.mrf.mxu0
    %v3566 = vadd.f32 %v280, %v3565
    %v3567 = vpop.f32.mrf.mxu0
    %v3568 = vadd.f32 %v282, %v3567
    %3569 = vmatprep.mubr.f32.mxu0 0.0
    %3570 = vmatmul.mubr.f32.gmra.mxu0 %v298
    %v3571 = vpop.f32.mrf.mxu0
    %v3572 = vadd.f32 %v286, %v3571
    %v3573 = vpop.f32.mrf.mxu0
    %v3574 = vadd.f32 %v288, %v3573
    %3575 = vdwg.mxu0
    %v3576 = vmax.f32 %v466, %v3477
    %v3577 = vmax.f32 %v466, %v3479
    %v3578 = vmax.f32 %v466, %v3560
    %v3579 = vmax.f32 %v466, %v3562
    %v3580 = vmax.f32 %v466, %v3483
    %v3581 = vmax.f32 %v466, %v3485
    %v3582 = vmax.f32 %v466, %v3566
    %v3583 = vmax.f32 %v466, %v3568
    %v3584 = vmax.f32 %v466, %v3489
    %v3585 = vmax.f32 %v466, %v3491
    %v3586 = vmax.f32 %v466, %v3572
    %v3587 = vmax.f32 %v466, %v3574
    %v3588 = vmin.f32 %v479, %v3576
    %v3589 = vmin.f32 %v479, %v3577
    %v3590 = vmin.f32 %v479, %v3578
    %v3591 = vmin.f32 %v479, %v3579
    %v3592 = vmin.f32 %v479, %v3580
    %v3593 = vmin.f32 %v479, %v3581
    %v3594 = vmin.f32 %v479, %v3582
    %v3595 = vmin.f32 %v479, %v3583
    %v3596 = vmin.f32 %v479, %v3584
    %v3597 = vmin.f32 %v479, %v3585
    %v3598 = vmin.f32 %v479, %v3586
    %v3599 = vmin.f32 %v479, %v3587
    %v3600 = vsub.f32 %v3477, %v3588
    %v3601 = vsub.f32 %v3479, %v3589
    %v3602 = vsub.f32 %v3560, %v3590
    %v3603 = vsub.f32 %v3562, %v3591
    %v3604 = vsub.f32 %v3483, %v3592
    %v3605 = vsub.f32 %v3485, %v3593
    %v3606 = vsub.f32 %v3566, %v3594
    %v3607 = vsub.f32 %v3568, %v3595
    %v3608 = vsub.f32 %v3489, %v3596
    %v3609 = vsub.f32 %v3491, %v3597
    %v3610 = vsub.f32 %v3572, %v3598
    %v3611 = vsub.f32 %v3574, %v3599
    %s3612 = sld [smem:[#allocation3 + $0xd]]
    %v3613 = vsub.f32 %v3600, %v3360
    %v3614 = vsub.f32 %v3601, %v3361
    %v3615 = vsub.f32 %v3602, %v3362
    %v3616 = vsub.f32 %v3603, %v3363
    %v3617 = vsub.f32 %v3604, %v3364
    %v3618 = vsub.f32 %v3605, %v3365
    %v3619 = vsub.f32 %v3606, %v3366
    %v3620 = vsub.f32 %v3607, %v3367
    %v3621 = vsub.f32 %v3608, %v3368
    %v3622 = vsub.f32 %v3609, %v3369
    %v3623 = vsub.f32 %v3610, %v3370
    %v3624 = vsub.f32 %v3611, %v3371
    %v3625 = vstv %s3612
    %v3626 = vmul.f32 %v3625, %v3613
    %v3627 = vmul.f32 %v3625, %v3614
    %v3628 = vmul.f32 %v3625, %v3615
    %v3629 = vmul.f32 %v3625, %v3616
    %v3630 = vmul.f32 %v3625, %v3617
    %v3631 = vmul.f32 %v3625, %v3618
    %v3632 = vmul.f32 %v3625, %v3619
    %v3633 = vmul.f32 %v3625, %v3620
    %v3634 = vmul.f32 %v3625, %v3621
    %v3635 = vmul.f32 %v3625, %v3622
    %v3636 = vmul.f32 %v3625, %v3623
    %v3637 = vmul.f32 %v3625, %v3624
    %v3638 = vadd.f32 %v3600, %v3626
    %v3639 = vadd.f32 %v3601, %v3627
    %v3640 = vadd.f32 %v3602, %v3628
    %v3641 = vadd.f32 %v3603, %v3629
    %v3642 = vadd.f32 %v3604, %v3630
    %v3643 = vadd.f32 %v3605, %v3631
    %v3644 = vadd.f32 %v3606, %v3632
    %v3645 = vadd.f32 %v3607, %v3633
    %v3646 = vadd.f32 %v3608, %v3634
    %v3647 = vadd.f32 %v3609, %v3635
    %v3648 = vadd.f32 %v3610, %v3636
    %v3649 = vadd.f32 %v3611, %v3637
    %3650 = vmatprep.subr.mxu0 0.0
    %3651 = vmatpush1.msra.mxu0 0.0
    %3652 = vmatprep.subr.mxu0 0.0
    %3653 = vmatpush1.msra.mxu0 0.0
    %3654 = vmatprep.subr.mxu0 0.0
    %3655 = vmatpush1.msra.mxu0 0.0
    %3656 = vmatprep.subr.mxu0 0.0
    %3657 = vmatpush1.msra.mxu0 0.0
    %3658 = vmatprep.subr.mxu0 0.0
    %3659 = vmatpush1.msra.mxu0 0.0
    %3660 = vmatprep.subr.mxu0 0.0
    %3661 = vmatpush1.msra.mxu0 0.0
    %3662 = vmatprep.subr.mxu0 0.0
    %3663 = vmatpush1.msra.mxu0 0.0
    %3664 = vmatprep.subr.mxu0 0.0
    %3665 = vmatpush1.msra.mxu0 0.0
    %3666 = vmatprep.subr.mxu0 0.0
    %3667 = vmatpush1.msra.mxu0 0.0
    %3668 = vmatprep.subr.mxu0 0.0
    %3669 = vmatpush1.msra.mxu0 0.0
    %3670 = vmatprep.subr.mxu0 0.0
    %3671 = vmatpush1.msra.mxu0 0.0
    %3672 = vmatprep.subr.mxu0 0.0
    %3673 = vmatpush1.msra.mxu0 0.0
    %3674 = vmatprep.subr.mxu0 0.0
    %3675 = vmatpush1.msra.mxu0 0.0
    %3676 = vmatprep.subr.mxu0 %v3647
    %3677 = vmatpush1.msra.mxu0 %v3646
    %3678 = vmatprep.subr.mxu0 %v3643
    %3679 = vmatpush1.msra.mxu0 %v3642
    %3680 = vmatprep.subr.mxu0 %v3639
    %3681 = vmatpush1.msra.mxu0 %v3638
    %3682 = vmatprep.subr.mxu0 0.0
    %3683 = vmatpush2.msra.mxu0 0.0
    %3684 = vmatprep.subr.mxu0 0.0
    %3685 = vmatpush2.msra.mxu0 0.0
    %3686 = vmatprep.subr.mxu0 0.0
    %3687 = vmatpush2.msra.mxu0 0.0
    %3688 = vmatprep.subr.mxu0 0.0
    %3689 = vmatpush2.msra.mxu0 0.0
    %3690 = vmatprep.subr.mxu0 0.0
    %3691 = vmatpush2.msra.mxu0 0.0
    %3692 = vmatprep.subr.mxu0 0.0
    %3693 = vmatpush2.msra.mxu0 0.0
    %3694 = vmatprep.subr.mxu0 0.0
    %3695 = vmatpush2.msra.mxu0 0.0
    %3696 = vmatprep.subr.mxu0 0.0
    %3697 = vmatpush2.msra.mxu0 0.0
    %3698 = vmatprep.subr.mxu0 0.0
    %3699 = vmatpush2.msra.mxu0 0.0
    %3700 = vmatprep.subr.mxu0 0.0
    %3701 = vmatpush2.msra.mxu0 0.0
    %3702 = vmatprep.subr.mxu0 0.0
    %3703 = vmatpush2.msra.mxu0 0.0
    %3704 = vmatprep.subr.mxu0 0.0
    %3705 = vmatpush2.msra.mxu0 0.0
    %3706 = vmatprep.subr.mxu0 0.0
    %3707 = vmatpush2.msra.mxu0 0.0
    %3708 = vmatprep.subr.mxu0 0.0
    %3709 = vmatpush2.msra.mxu0 0.0
    %3710 = vmatprep.subr.mxu0 0.0
    %3711 = vmatpush2.msra.mxu0 0.0
    %3712 = vmatprep.subr.mxu0 0.0
    %3713 = vmatpush2.msra.mxu0 0.0
    %3714 = vmatprep.mubr.f32.mxu0 0.0
    %3715 = vmatmul.mubr.f32.gmra.mxu0 %v292
    %v3716 = vpop.f32.mrf.mxu0
    %v3717 = vadd.f32 %v191, %v3716
    %v3718 = vpop.f32.mrf.mxu0
    %v3719 = vadd.f32 %v193, %v3718
    %3720 = vmatprep.mubr.f32.mxu0 0.0
    %3721 = vmatmul.mubr.f32.gmra.mxu0 %v295
    %v3722 = vpop.f32.mrf.mxu0
    %v3723 = vadd.f32 %v197, %v3722
    %v3724 = vpop.f32.mrf.mxu0
    %v3725 = vadd.f32 %v199, %v3724
    %3726 = vmatprep.mubr.f32.mxu0 0.0
    %3727 = vmatmul.mubr.f32.gmra.mxu0 %v298
    %v3728 = vpop.f32.mrf.mxu0
    %v3729 = vadd.f32 %v203, %v3728
    %v3730 = vpop.f32.mrf.mxu0
    %v3731 = vadd.f32 %v205, %v3730
    %3732 = vdwg.mxu0
    %3733 = vmatprep.subr.mxu0 0.0
    %3734 = vmatpush1.msra.mxu0 0.0
    %3735 = vmatprep.subr.mxu0 0.0
    %3736 = vmatpush1.msra.mxu0 0.0
    %3737 = vmatprep.subr.mxu0 0.0
    %3738 = vmatpush1.msra.mxu0 0.0
    %3739 = vmatprep.subr.mxu0 0.0
    %3740 = vmatpush1.msra.mxu0 0.0
    %3741 = vmatprep.subr.mxu0 0.0
    %3742 = vmatpush1.msra.mxu0 0.0
    %3743 = vmatprep.subr.mxu0 0.0
    %3744 = vmatpush1.msra.mxu0 0.0
    %3745 = vmatprep.subr.mxu0 0.0
    %3746 = vmatpush1.msra.mxu0 0.0
    %3747 = vmatprep.subr.mxu0 0.0
    %3748 = vmatpush1.msra.mxu0 0.0
    %3749 = vmatprep.subr.mxu0 0.0
    %3750 = vmatpush1.msra.mxu0 0.0
    %3751 = vmatprep.subr.mxu0 0.0
    %3752 = vmatpush1.msra.mxu0 0.0
    %3753 = vmatprep.subr.mxu0 0.0
    %3754 = vmatpush1.msra.mxu0 0.0
    %3755 = vmatprep.subr.mxu0 0.0
    %3756 = vmatpush1.msra.mxu0 0.0
    %3757 = vmatprep.subr.mxu0 0.0
    %3758 = vmatpush1.msra.mxu0 0.0
    %3759 = vmatprep.subr.mxu0 %v3649
    %3760 = vmatpush1.msra.mxu0 %v3648
    %3761 = vmatprep.subr.mxu0 %v3645
    %3762 = vmatpush1.msra.mxu0 %v3644
    %3763 = vmatprep.subr.mxu0 %v3641
    %3764 = vmatpush1.msra.mxu0 %v3640
    %3765 = vmatprep.subr.mxu0 0.0
    %3766 = vmatpush2.msra.mxu0 0.0
    %3767 = vmatprep.subr.mxu0 0.0
    %3768 = vmatpush2.msra.mxu0 0.0
    %3769 = vmatprep.subr.mxu0 0.0
    %3770 = vmatpush2.msra.mxu0 0.0
    %3771 = vmatprep.subr.mxu0 0.0
    %3772 = vmatpush2.msra.mxu0 0.0
    %3773 = vmatprep.subr.mxu0 0.0
    %3774 = vmatpush2.msra.mxu0 0.0
    %3775 = vmatprep.subr.mxu0 0.0
    %3776 = vmatpush2.msra.mxu0 0.0
    %3777 = vmatprep.subr.mxu0 0.0
    %3778 = vmatpush2.msra.mxu0 0.0
    %3779 = vmatprep.subr.mxu0 0.0
    %3780 = vmatpush2.msra.mxu0 0.0
    %3781 = vmatprep.subr.mxu0 0.0
    %3782 = vmatpush2.msra.mxu0 0.0
    %3783 = vmatprep.subr.mxu0 0.0
    %3784 = vmatpush2.msra.mxu0 0.0
    %3785 = vmatprep.subr.mxu0 0.0
    %3786 = vmatpush2.msra.mxu0 0.0
    %3787 = vmatprep.subr.mxu0 0.0
    %3788 = vmatpush2.msra.mxu0 0.0
    %3789 = vmatprep.subr.mxu0 0.0
    %3790 = vmatpush2.msra.mxu0 0.0
    %3791 = vmatprep.subr.mxu0 0.0
    %3792 = vmatpush2.msra.mxu0 0.0
    %3793 = vmatprep.subr.mxu0 0.0
    %3794 = vmatpush2.msra.mxu0 0.0
    %3795 = vmatprep.subr.mxu0 0.0
    %3796 = vmatpush2.msra.mxu0 0.0
    %3797 = vmatprep.mubr.f32.mxu0 0.0
    %3798 = vmatmul.mubr.f32.gmra.mxu0 %v292
    %v3799 = vpop.f32.mrf.mxu0
    %v3800 = vadd.f32 %v274, %v3799
    %v3801 = vpop.f32.mrf.mxu0
    %v3802 = vadd.f32 %v276, %v3801
    %3803 = vmatprep.mubr.f32.mxu0 0.0
    %3804 = vmatmul.mubr.f32.gmra.mxu0 %v295
    %v3805 = vpop.f32.mrf.mxu0
    %v3806 = vadd.f32 %v280, %v3805
    %v3807 = vpop.f32.mrf.mxu0
    %v3808 = vadd.f32 %v282, %v3807
    %3809 = vmatprep.mubr.f32.mxu0 0.0
    %3810 = vmatmul.mubr.f32.gmra.mxu0 %v298
    %v3811 = vpop.f32.mrf.mxu0
    %v3812 = vadd.f32 %v286, %v3811
    %v3813 = vpop.f32.mrf.mxu0
    %v3814 = vadd.f32 %v288, %v3813
    %3815 = vdwg.mxu0
    %v3816 = vmax.f32 %v466, %v3717
    %v3817 = vmax.f32 %v466, %v3719
    %v3818 = vmax.f32 %v466, %v3800
    %v3819 = vmax.f32 %v466, %v3802
    %v3820 = vmax.f32 %v466, %v3723
    %v3821 = vmax.f32 %v466, %v3725
    %v3822 = vmax.f32 %v466, %v3806
    %v3823 = vmax.f32 %v466, %v3808
    %v3824 = vmax.f32 %v466, %v3729
    %v3825 = vmax.f32 %v466, %v3731
    %v3826 = vmax.f32 %v466, %v3812
    %v3827 = vmax.f32 %v466, %v3814
    %v3828 = vmin.f32 %v479, %v3816
    %v3829 = vmin.f32 %v479, %v3817
    %v3830 = vmin.f32 %v479, %v3818
    %v3831 = vmin.f32 %v479, %v3819
    %v3832 = vmin.f32 %v479, %v3820
    %v3833 = vmin.f32 %v479, %v3821
    %v3834 = vmin.f32 %v479, %v3822
    %v3835 = vmin.f32 %v479, %v3823
    %v3836 = vmin.f32 %v479, %v3824
    %v3837 = vmin.f32 %v479, %v3825
    %v3838 = vmin.f32 %v479, %v3826
    %v3839 = vmin.f32 %v479, %v3827
    %v3840 = vsub.f32 %v3717, %v3828
    %v3841 = vsub.f32 %v3719, %v3829
    %v3842 = vsub.f32 %v3800, %v3830
    %v3843 = vsub.f32 %v3802, %v3831
    %v3844 = vsub.f32 %v3723, %v3832
    %v3845 = vsub.f32 %v3725, %v3833
    %v3846 = vsub.f32 %v3806, %v3834
    %v3847 = vsub.f32 %v3808, %v3835
    %v3848 = vsub.f32 %v3729, %v3836
    %v3849 = vsub.f32 %v3731, %v3837
    %v3850 = vsub.f32 %v3812, %v3838
    %v3851 = vsub.f32 %v3814, %v3839
    %s3852 = sld [smem:[#allocation3 + $0xe]]
    %v3853 = vsub.f32 %v3840, %v3600
    %v3854 = vsub.f32 %v3841, %v3601
    %v3855 = vsub.f32 %v3842, %v3602
    %v3856 = vsub.f32 %v3843, %v3603
    %v3857 = vsub.f32 %v3844, %v3604
    %v3858 = vsub.f32 %v3845, %v3605
    %v3859 = vsub.f32 %v3846, %v3606
    %v3860 = vsub.f32 %v3847, %v3607
    %v3861 = vsub.f32 %v3848, %v3608
    %v3862 = vsub.f32 %v3849, %v3609
    %v3863 = vsub.f32 %v3850, %v3610
    %v3864 = vsub.f32 %v3851, %v3611
    %v3865 = vstv %s3852
    %v3866 = vmul.f32 %v3865, %v3853
    %v3867 = vmul.f32 %v3865, %v3854
    %v3868 = vmul.f32 %v3865, %v3855
    %v3869 = vmul.f32 %v3865, %v3856
    %v3870 = vmul.f32 %v3865, %v3857
    %v3871 = vmul.f32 %v3865, %v3858
    %v3872 = vmul.f32 %v3865, %v3859
    %v3873 = vmul.f32 %v3865, %v3860
    %v3874 = vmul.f32 %v3865, %v3861
    %v3875 = vmul.f32 %v3865, %v3862
    %v3876 = vmul.f32 %v3865, %v3863
    %v3877 = vmul.f32 %v3865, %v3864
    %v3878 = vadd.f32 %v3840, %v3866
    %v3879 = vadd.f32 %v3841, %v3867
    %v3880 = vadd.f32 %v3842, %v3868
    %v3881 = vadd.f32 %v3843, %v3869
    %v3882 = vadd.f32 %v3844, %v3870
    %v3883 = vadd.f32 %v3845, %v3871
    %v3884 = vadd.f32 %v3846, %v3872
    %v3885 = vadd.f32 %v3847, %v3873
    %v3886 = vadd.f32 %v3848, %v3874
    %v3887 = vadd.f32 %v3849, %v3875
    %v3888 = vadd.f32 %v3850, %v3876
    %v3889 = vadd.f32 %v3851, %v3877
    %3890 = vmatprep.subr.mxu0 0.0
    %3891 = vmatpush1.msra.mxu0 0.0
    %3892 = vmatprep.subr.mxu0 0.0
    %3893 = vmatpush1.msra.mxu0 0.0
    %3894 = vmatprep.subr.mxu0 0.0
    %3895 = vmatpush1.msra.mxu0 0.0
    %3896 = vmatprep.subr.mxu0 0.0
    %3897 = vmatpush1.msra.mxu0 0.0
    %3898 = vmatprep.subr.mxu0 0.0
    %3899 = vmatpush1.msra.mxu0 0.0
    %3900 = vmatprep.subr.mxu0 0.0
    %3901 = vmatpush1.msra.mxu0 0.0
    %3902 = vmatprep.subr.mxu0 0.0
    %3903 = vmatpush1.msra.mxu0 0.0
    %3904 = vmatprep.subr.mxu0 0.0
    %3905 = vmatpush1.msra.mxu0 0.0
    %3906 = vmatprep.subr.mxu0 0.0
    %3907 = vmatpush1.msra.mxu0 0.0
    %3908 = vmatprep.subr.mxu0 0.0
    %3909 = vmatpush1.msra.mxu0 0.0
    %3910 = vmatprep.subr.mxu0 0.0
    %3911 = vmatpush1.msra.mxu0 0.0
    %3912 = vmatprep.subr.mxu0 0.0
    %3913 = vmatpush1.msra.mxu0 0.0
    %3914 = vmatprep.subr.mxu0 0.0
    %3915 = vmatpush1.msra.mxu0 0.0
    %3916 = vmatprep.subr.mxu0 %v3887
    %3917 = vmatpush1.msra.mxu0 %v3886
    %3918 = vmatprep.subr.mxu0 %v3883
    %3919 = vmatpush1.msra.mxu0 %v3882
    %3920 = vmatprep.subr.mxu0 %v3879
    %3921 = vmatpush1.msra.mxu0 %v3878
    %3922 = vmatprep.subr.mxu0 0.0
    %3923 = vmatpush2.msra.mxu0 0.0
    %3924 = vmatprep.subr.mxu0 0.0
    %3925 = vmatpush2.msra.mxu0 0.0
    %3926 = vmatprep.subr.mxu0 0.0
    %3927 = vmatpush2.msra.mxu0 0.0
    %3928 = vmatprep.subr.mxu0 0.0
    %3929 = vmatpush2.msra.mxu0 0.0
    %3930 = vmatprep.subr.mxu0 0.0
    %3931 = vmatpush2.msra.mxu0 0.0
    %3932 = vmatprep.subr.mxu0 0.0
    %3933 = vmatpush2.msra.mxu0 0.0
    %3934 = vmatprep.subr.mxu0 0.0
    %3935 = vmatpush2.msra.mxu0 0.0
    %3936 = vmatprep.subr.mxu0 0.0
    %3937 = vmatpush2.msra.mxu0 0.0
    %3938 = vmatprep.subr.mxu0 0.0
    %3939 = vmatpush2.msra.mxu0 0.0
    %3940 = vmatprep.subr.mxu0 0.0
    %3941 = vmatpush2.msra.mxu0 0.0
    %3942 = vmatprep.subr.mxu0 0.0
    %3943 = vmatpush2.msra.mxu0 0.0
    %3944 = vmatprep.subr.mxu0 0.0
    %3945 = vmatpush2.msra.mxu0 0.0
    %3946 = vmatprep.subr.mxu0 0.0
    %3947 = vmatpush2.msra.mxu0 0.0
    %3948 = vmatprep.subr.mxu0 0.0
    %3949 = vmatpush2.msra.mxu0 0.0
    %3950 = vmatprep.subr.mxu0 0.0
    %3951 = vmatpush2.msra.mxu0 0.0
    %3952 = vmatprep.subr.mxu0 0.0
    %3953 = vmatpush2.msra.mxu0 0.0
    %3954 = vmatprep.mubr.f32.mxu0 0.0
    %3955 = vmatmul.mubr.f32.gmra.mxu0 %v292
    %v3956 = vpop.f32.mrf.mxu0
    %v3957 = vadd.f32 %v191, %v3956
    %v3958 = vpop.f32.mrf.mxu0
    %v3959 = vadd.f32 %v193, %v3958
    %3960 = vmatprep.mubr.f32.mxu0 0.0
    %3961 = vmatmul.mubr.f32.gmra.mxu0 %v295
    %v3962 = vpop.f32.mrf.mxu0
    %v3963 = vadd.f32 %v197, %v3962
    %v3964 = vpop.f32.mrf.mxu0
    %v3965 = vadd.f32 %v199, %v3964
    %3966 = vmatprep.mubr.f32.mxu0 0.0
    %3967 = vmatmul.mubr.f32.gmra.mxu0 %v298
    %v3968 = vpop.f32.mrf.mxu0
    %v3969 = vadd.f32 %v203, %v3968
    %v3970 = vpop.f32.mrf.mxu0
    %v3971 = vadd.f32 %v205, %v3970
    %3972 = vdwg.mxu0
    %3973 = vmatprep.subr.mxu0 0.0
    %3974 = vmatpush1.msra.mxu0 0.0
    %3975 = vmatprep.subr.mxu0 0.0
    %3976 = vmatpush1.msra.mxu0 0.0
    %3977 = vmatprep.subr.mxu0 0.0
    %3978 = vmatpush1.msra.mxu0 0.0
    %3979 = vmatprep.subr.mxu0 0.0
    %3980 = vmatpush1.msra.mxu0 0.0
    %3981 = vmatprep.subr.mxu0 0.0
    %3982 = vmatpush1.msra.mxu0 0.0
    %3983 = vmatprep.subr.mxu0 0.0
    %3984 = vmatpush1.msra.mxu0 0.0
    %3985 = vmatprep.subr.mxu0 0.0
    %3986 = vmatpush1.msra.mxu0 0.0
    %3987 = vmatprep.subr.mxu0 0.0
    %3988 = vmatpush1.msra.mxu0 0.0
    %3989 = vmatprep.subr.mxu0 0.0
    %3990 = vmatpush1.msra.mxu0 0.0
    %3991 = vmatprep.subr.mxu0 0.0
    %3992 = vmatpush1.msra.mxu0 0.0
    %3993 = vmatprep.subr.mxu0 0.0
    %3994 = vmatpush1.msra.mxu0 0.0
    %3995 = vmatprep.subr.mxu0 0.0
    %3996 = vmatpush1.msra.mxu0 0.0
    %3997 = vmatprep.subr.mxu0 0.0
    %3998 = vmatpush1.msra.mxu0 0.0
    %3999 = vmatprep.subr.mxu0 %v3889
    %4000 = vmatpush1.msra.mxu0 %v3888
    %4001 = vmatprep.subr.mxu0 %v3885
    %4002 = vmatpush1.msra.mxu0 %v3884
    %4003 = vmatprep.subr.mxu0 %v3881
    %4004 = vmatpush1.msra.mxu0 %v3880
    %4005 = vmatprep.subr.mxu0 0.0
    %4006 = vmatpush2.msra.mxu0 0.0
    %4007 = vmatprep.subr.mxu0 0.0
    %4008 = vmatpush2.msra.mxu0 0.0
    %4009 = vmatprep.subr.mxu0 0.0
    %4010 = vmatpush2.msra.mxu0 0.0
    %4011 = vmatprep.subr.mxu0 0.0
    %4012 = vmatpush2.msra.mxu0 0.0
    %4013 = vmatprep.subr.mxu0 0.0
    %4014 = vmatpush2.msra.mxu0 0.0
    %4015 = vmatprep.subr.mxu0 0.0
    %4016 = vmatpush2.msra.mxu0 0.0
    %4017 = vmatprep.subr.mxu0 0.0
    %4018 = vmatpush2.msra.mxu0 0.0
    %4019 = vmatprep.subr.mxu0 0.0
    %4020 = vmatpush2.msra.mxu0 0.0
    %4021 = vmatprep.subr.mxu0 0.0
    %4022 = vmatpush2.msra.mxu0 0.0
    %4023 = vmatprep.subr.mxu0 0.0
    %4024 = vmatpush2.msra.mxu0 0.0
    %4025 = vmatprep.subr.mxu0 0.0
    %4026 = vmatpush2.msra.mxu0 0.0
    %4027 = vmatprep.subr.mxu0 0.0
    %4028 = vmatpush2.msra.mxu0 0.0
    %4029 = vmatprep.subr.mxu0 0.0
    %4030 = vmatpush2.msra.mxu0 0.0
    %4031 = vmatprep.subr.mxu0 0.0
    %4032 = vmatpush2.msra.mxu0 0.0
    %4033 = vmatprep.subr.mxu0 0.0
    %4034 = vmatpush2.msra.mxu0 0.0
    %4035 = vmatprep.subr.mxu0 0.0
    %4036 = vmatpush2.msra.mxu0 0.0
    %4037 = vmatprep.mubr.f32.mxu0 0.0
    %4038 = vmatmul.mubr.f32.gmra.mxu0 %v292
    %v4039 = vpop.f32.mrf.mxu0
    %v4040 = vadd.f32 %v274, %v4039
    %v4041 = vpop.f32.mrf.mxu0
    %v4042 = vadd.f32 %v276, %v4041
    %4043 = vmatprep.mubr.f32.mxu0 0.0
    %4044 = vmatmul.mubr.f32.gmra.mxu0 %v295
    %v4045 = vpop.f32.mrf.mxu0
    %v4046 = vadd.f32 %v280, %v4045
    %v4047 = vpop.f32.mrf.mxu0
    %v4048 = vadd.f32 %v282, %v4047
    %4049 = vmatprep.mubr.f32.mxu0 0.0
    %4050 = vmatmul.mubr.f32.gmra.mxu0 %v298
    %v4051 = vpop.f32.mrf.mxu0
    %v4052 = vadd.f32 %v286, %v4051
    %v4053 = vpop.f32.mrf.mxu0
    %v4054 = vadd.f32 %v288, %v4053
    %4055 = vdwg.mxu0
    %v4056 = vmax.f32 %v466, %v3957
    %v4057 = vmax.f32 %v466, %v3959
    %v4058 = vmax.f32 %v466, %v4040
    %v4059 = vmax.f32 %v466, %v4042
    %v4060 = vmax.f32 %v466, %v3963
    %v4061 = vmax.f32 %v466, %v3965
    %v4062 = vmax.f32 %v466, %v4046
    %v4063 = vmax.f32 %v466, %v4048
    %v4064 = vmax.f32 %v466, %v3969
    %v4065 = vmax.f32 %v466, %v3971
    %v4066 = vmax.f32 %v466, %v4052
    %v4067 = vmax.f32 %v466, %v4054
    %v4068 = vmin.f32 %v479, %v4056
    %v4069 = vmin.f32 %v479, %v4057
    %v4070 = vmin.f32 %v479, %v4058
    %v4071 = vmin.f32 %v479, %v4059
    %v4072 = vmin.f32 %v479, %v4060
    %v4073 = vmin.f32 %v479, %v4061
    %v4074 = vmin.f32 %v479, %v4062
    %v4075 = vmin.f32 %v479, %v4063
    %v4076 = vmin.f32 %v479, %v4064
    %v4077 = vmin.f32 %v479, %v4065
    %v4078 = vmin.f32 %v479, %v4066
    %v4079 = vmin.f32 %v479, %v4067
    %v4080 = vsub.f32 %v3957, %v4068
    %v4081 = vsub.f32 %v3959, %v4069
    %v4082 = vsub.f32 %v4040, %v4070
    %v4083 = vsub.f32 %v4042, %v4071
    %v4084 = vsub.f32 %v3963, %v4072
    %v4085 = vsub.f32 %v3965, %v4073
    %v4086 = vsub.f32 %v4046, %v4074
    %v4087 = vsub.f32 %v4048, %v4075
    %v4088 = vsub.f32 %v3969, %v4076
    %v4089 = vsub.f32 %v3971, %v4077
    %v4090 = vsub.f32 %v4052, %v4078
    %v4091 = vsub.f32 %v4054, %v4079
    %s4092 = sld [smem:[#allocation3 + $0xf]]
    %v4093 = vsub.f32 %v4080, %v3840
    %v4094 = vsub.f32 %v4081, %v3841
    %v4095 = vsub.f32 %v4082, %v3842
    %v4096 = vsub.f32 %v4083, %v3843
    %v4097 = vsub.f32 %v4084, %v3844
    %v4098 = vsub.f32 %v4085, %v3845
    %v4099 = vsub.f32 %v4086, %v3846
    %v4100 = vsub.f32 %v4087, %v3847
    %v4101 = vsub.f32 %v4088, %v3848
    %v4102 = vsub.f32 %v4089, %v3849
    %v4103 = vsub.f32 %v4090, %v3850
    %v4104 = vsub.f32 %v4091, %v3851
    %v4105 = vstv %s4092
    %v4106 = vmul.f32 %v4105, %v4093
    %v4107 = vmul.f32 %v4105, %v4094
    %v4108 = vmul.f32 %v4105, %v4095
    %v4109 = vmul.f32 %v4105, %v4096
    %v4110 = vmul.f32 %v4105, %v4097
    %v4111 = vmul.f32 %v4105, %v4098
    %v4112 = vmul.f32 %v4105, %v4099
    %v4113 = vmul.f32 %v4105, %v4100
    %v4114 = vmul.f32 %v4105, %v4101
    %v4115 = vmul.f32 %v4105, %v4102
    %v4116 = vmul.f32 %v4105, %v4103
    %v4117 = vmul.f32 %v4105, %v4104
    %v4118 = vadd.f32 %v4080, %v4106
    %v4119 = vadd.f32 %v4081, %v4107
    %v4120 = vadd.f32 %v4082, %v4108
    %v4121 = vadd.f32 %v4083, %v4109
    %v4122 = vadd.f32 %v4084, %v4110
    %v4123 = vadd.f32 %v4085, %v4111
    %v4124 = vadd.f32 %v4086, %v4112
    %v4125 = vadd.f32 %v4087, %v4113
    %v4126 = vadd.f32 %v4088, %v4114
    %v4127 = vadd.f32 %v4089, %v4115
    %v4128 = vadd.f32 %v4090, %v4116
    %v4129 = vadd.f32 %v4091, %v4117
    %4130 = vmatprep.subr.mxu0 0.0
    %4131 = vmatpush1.msra.mxu0 0.0
    %4132 = vmatprep.subr.mxu0 0.0
    %4133 = vmatpush1.msra.mxu0 0.0
    %4134 = vmatprep.subr.mxu0 0.0
    %4135 = vmatpush1.msra.mxu0 0.0
    %4136 = vmatprep.subr.mxu0 0.0
    %4137 = vmatpush1.msra.mxu0 0.0
    %4138 = vmatprep.subr.mxu0 0.0
    %4139 = vmatpush1.msra.mxu0 0.0
    %4140 = vmatprep.subr.mxu0 0.0
    %4141 = vmatpush1.msra.mxu0 0.0
    %4142 = vmatprep.subr.mxu0 0.0
    %4143 = vmatpush1.msra.mxu0 0.0
    %4144 = vmatprep.subr.mxu0 0.0
    %4145 = vmatpush1.msra.mxu0 0.0
    %4146 = vmatprep.subr.mxu0 0.0
    %4147 = vmatpush1.msra.mxu0 0.0
    %4148 = vmatprep.subr.mxu0 0.0
    %4149 = vmatpush1.msra.mxu0 0.0
    %4150 = vmatprep.subr.mxu0 0.0
    %4151 = vmatpush1.msra.mxu0 0.0
    %4152 = vmatprep.subr.mxu0 0.0
    %4153 = vmatpush1.msra.mxu0 0.0
    %4154 = vmatprep.subr.mxu0 0.0
    %4155 = vmatpush1.msra.mxu0 0.0
    %4156 = vmatprep.subr.mxu0 %v4127
    %4157 = vmatpush1.msra.mxu0 %v4126
    %4158 = vmatprep.subr.mxu0 %v4123
    %4159 = vmatpush1.msra.mxu0 %v4122
    %4160 = vmatprep.subr.mxu0 %v4119
    %4161 = vmatpush1.msra.mxu0 %v4118
    %4162 = vmatprep.subr.mxu0 0.0
    %4163 = vmatpush2.msra.mxu0 0.0
    %4164 = vmatprep.subr.mxu0 0.0
    %4165 = vmatpush2.msra.mxu0 0.0
    %4166 = vmatprep.subr.mxu0 0.0
    %4167 = vmatpush2.msra.mxu0 0.0
    %4168 = vmatprep.subr.mxu0 0.0
    %4169 = vmatpush2.msra.mxu0 0.0
    %4170 = vmatprep.subr.mxu0 0.0
    %4171 = vmatpush2.msra.mxu0 0.0
    %4172 = vmatprep.subr.mxu0 0.0
    %4173 = vmatpush2.msra.mxu0 0.0
    %4174 = vmatprep.subr.mxu0 0.0
    %4175 = vmatpush2.msra.mxu0 0.0
    %4176 = vmatprep.subr.mxu0 0.0
    %4177 = vmatpush2.msra.mxu0 0.0
    %4178 = vmatprep.subr.mxu0 0.0
    %4179 = vmatpush2.msra.mxu0 0.0
    %4180 = vmatprep.subr.mxu0 0.0
    %4181 = vmatpush2.msra.mxu0 0.0
    %4182 = vmatprep.subr.mxu0 0.0
    %4183 = vmatpush2.msra.mxu0 0.0
    %4184 = vmatprep.subr.mxu0 0.0
    %4185 = vmatpush2.msra.mxu0 0.0
    %4186 = vmatprep.subr.mxu0 0.0
    %4187 = vmatpush2.msra.mxu0 0.0
    %4188 = vmatprep.subr.mxu0 0.0
    %4189 = vmatpush2.msra.mxu0 0.0
    %4190 = vmatprep.subr.mxu0 0.0
    %4191 = vmatpush2.msra.mxu0 0.0
    %4192 = vmatprep.subr.mxu0 0.0
    %4193 = vmatpush2.msra.mxu0 0.0
    %4194 = vmatprep.mubr.f32.mxu0 0.0
    %4195 = vmatmul.mubr.f32.gmra.mxu0 %v292
    %v4196 = vpop.f32.mrf.mxu0
    %v4197 = vadd.f32 %v191, %v4196
    %v4198 = vpop.f32.mrf.mxu0
    %v4199 = vadd.f32 %v193, %v4198
    %4200 = vmatprep.mubr.f32.mxu0 0.0
    %4201 = vmatmul.mubr.f32.gmra.mxu0 %v295
    %v4202 = vpop.f32.mrf.mxu0
    %v4203 = vadd.f32 %v197, %v4202
    %v4204 = vpop.f32.mrf.mxu0
    %v4205 = vadd.f32 %v199, %v4204
    %4206 = vmatprep.mubr.f32.mxu0 0.0
    %4207 = vmatmul.mubr.f32.gmra.mxu0 %v298
    %v4208 = vpop.f32.mrf.mxu0
    %v4209 = vadd.f32 %v203, %v4208
    %v4210 = vpop.f32.mrf.mxu0
    %v4211 = vadd.f32 %v205, %v4210
    %4212 = vdwg.mxu0
    %4213 = vmatprep.subr.mxu0 0.0
    %4214 = vmatpush1.msra.mxu0 0.0
    %4215 = vmatprep.subr.mxu0 0.0
    %4216 = vmatpush1.msra.mxu0 0.0
    %4217 = vmatprep.subr.mxu0 0.0
    %4218 = vmatpush1.msra.mxu0 0.0
    %4219 = vmatprep.subr.mxu0 0.0
    %4220 = vmatpush1.msra.mxu0 0.0
    %4221 = vmatprep.subr.mxu0 0.0
    %4222 = vmatpush1.msra.mxu0 0.0
    %4223 = vmatprep.subr.mxu0 0.0
    %4224 = vmatpush1.msra.mxu0 0.0
    %4225 = vmatprep.subr.mxu0 0.0
    %4226 = vmatpush1.msra.mxu0 0.0
    %4227 = vmatprep.subr.mxu0 0.0
    %4228 = vmatpush1.msra.mxu0 0.0
    %4229 = vmatprep.subr.mxu0 0.0
    %4230 = vmatpush1.msra.mxu0 0.0
    %4231 = vmatprep.subr.mxu0 0.0
    %4232 = vmatpush1.msra.mxu0 0.0
    %4233 = vmatprep.subr.mxu0 0.0
    %4234 = vmatpush1.msra.mxu0 0.0
    %4235 = vmatprep.subr.mxu0 0.0
    %4236 = vmatpush1.msra.mxu0 0.0
    %4237 = vmatprep.subr.mxu0 0.0
    %4238 = vmatpush1.msra.mxu0 0.0
    %4239 = vmatprep.subr.mxu0 %v4129
    %4240 = vmatpush1.msra.mxu0 %v4128
    %4241 = vmatprep.subr.mxu0 %v4125
    %4242 = vmatpush1.msra.mxu0 %v4124
    %4243 = vmatprep.subr.mxu0 %v4121
    %4244 = vmatpush1.msra.mxu0 %v4120
    %4245 = vmatprep.subr.mxu0 0.0
    %4246 = vmatpush2.msra.mxu0 0.0
    %4247 = vmatprep.subr.mxu0 0.0
    %4248 = vmatpush2.msra.mxu0 0.0
    %4249 = vmatprep.subr.mxu0 0.0
    %4250 = vmatpush2.msra.mxu0 0.0
    %4251 = vmatprep.subr.mxu0 0.0
    %4252 = vmatpush2.msra.mxu0 0.0
    %4253 = vmatprep.subr.mxu0 0.0
    %4254 = vmatpush2.msra.mxu0 0.0
    %4255 = vmatprep.subr.mxu0 0.0
    %4256 = vmatpush2.msra.mxu0 0.0
    %4257 = vmatprep.subr.mxu0 0.0
    %4258 = vmatpush2.msra.mxu0 0.0
    %4259 = vmatprep.subr.mxu0 0.0
    %4260 = vmatpush2.msra.mxu0 0.0
    %4261 = vmatprep.subr.mxu0 0.0
    %4262 = vmatpush2.msra.mxu0 0.0
    %4263 = vmatprep.subr.mxu0 0.0
    %4264 = vmatpush2.msra.mxu0 0.0
    %4265 = vmatprep.subr.mxu0 0.0
    %4266 = vmatpush2.msra.mxu0 0.0
    %4267 = vmatprep.subr.mxu0 0.0
    %4268 = vmatpush2.msra.mxu0 0.0
    %4269 = vmatprep.subr.mxu0 0.0
    %4270 = vmatpush2.msra.mxu0 0.0
    %4271 = vmatprep.subr.mxu0 0.0
    %4272 = vmatpush2.msra.mxu0 0.0
    %4273 = vmatprep.subr.mxu0 0.0
    %4274 = vmatpush2.msra.mxu0 0.0
    %4275 = vmatprep.subr.mxu0 0.0
    %4276 = vmatpush2.msra.mxu0 0.0
    %4277 = vmatprep.mubr.f32.mxu0 0.0
    %4278 = vmatmul.mubr.f32.gmra.mxu0 %v292
    %v4279 = vpop.f32.mrf.mxu0
    %v4280 = vadd.f32 %v274, %v4279
    %v4281 = vpop.f32.mrf.mxu0
    %v4282 = vadd.f32 %v276, %v4281
    %4283 = vmatprep.mubr.f32.mxu0 0.0
    %4284 = vmatmul.mubr.f32.gmra.mxu0 %v295
    %v4285 = vpop.f32.mrf.mxu0
    %v4286 = vadd.f32 %v280, %v4285
    %v4287 = vpop.f32.mrf.mxu0
    %v4288 = vadd.f32 %v282, %v4287
    %4289 = vmatprep.mubr.f32.mxu0 0.0
    %4290 = vmatmul.mubr.f32.gmra.mxu0 %v298
    %v4291 = vpop.f32.mrf.mxu0
    %v4292 = vadd.f32 %v286, %v4291
    %v4293 = vpop.f32.mrf.mxu0
    %v4294 = vadd.f32 %v288, %v4293
    %4295 = vdwg.mxu0
    %v4296 = vmax.f32 %v466, %v4197
    %v4297 = vmax.f32 %v466, %v4199
    %v4298 = vmax.f32 %v466, %v4280
    %v4299 = vmax.f32 %v466, %v4282
    %v4300 = vmax.f32 %v466, %v4203
    %v4301 = vmax.f32 %v466, %v4205
    %v4302 = vmax.f32 %v466, %v4286
    %v4303 = vmax.f32 %v466, %v4288
    %v4304 = vmax.f32 %v466, %v4209
    %v4305 = vmax.f32 %v466, %v4211
    %v4306 = vmax.f32 %v466, %v4292
    %v4307 = vmax.f32 %v466, %v4294
    %v4308 = vmin.f32 %v479, %v4296
    %v4309 = vmin.f32 %v479, %v4297
    %v4310 = vmin.f32 %v479, %v4298
    %v4311 = vmin.f32 %v479, %v4299
    %v4312 = vmin.f32 %v479, %v4300
    %v4313 = vmin.f32 %v479, %v4301
    %v4314 = vmin.f32 %v479, %v4302
    %v4315 = vmin.f32 %v479, %v4303
    %v4316 = vmin.f32 %v479, %v4304
    %v4317 = vmin.f32 %v479, %v4305
    %v4318 = vmin.f32 %v479, %v4306
    %v4319 = vmin.f32 %v479, %v4307
    %v4320 = vsub.f32 %v4197, %v4308
    %v4321 = vsub.f32 %v4199, %v4309
    %v4322 = vsub.f32 %v4280, %v4310
    %v4323 = vsub.f32 %v4282, %v4311
    %v4324 = vsub.f32 %v4203, %v4312
    %v4325 = vsub.f32 %v4205, %v4313
    %v4326 = vsub.f32 %v4286, %v4314
    %v4327 = vsub.f32 %v4288, %v4315
    %v4328 = vsub.f32 %v4209, %v4316
    %v4329 = vsub.f32 %v4211, %v4317
    %v4330 = vsub.f32 %v4292, %v4318
    %v4331 = vsub.f32 %v4294, %v4319
    %s4332 = sld [smem:[#allocation3 + $0x10]]
    %v4333 = vsub.f32 %v4320, %v4080
    %v4334 = vsub.f32 %v4321, %v4081
    %v4335 = vsub.f32 %v4322, %v4082
    %v4336 = vsub.f32 %v4323, %v4083
    %v4337 = vsub.f32 %v4324, %v4084
    %v4338 = vsub.f32 %v4325, %v4085
    %v4339 = vsub.f32 %v4326, %v4086
    %v4340 = vsub.f32 %v4327, %v4087
    %v4341 = vsub.f32 %v4328, %v4088
    %v4342 = vsub.f32 %v4329, %v4089
    %v4343 = vsub.f32 %v4330, %v4090
    %v4344 = vsub.f32 %v4331, %v4091
    %v4345 = vstv %s4332
    %v4346 = vmul.f32 %v4345, %v4333
    %v4347 = vmul.f32 %v4345, %v4334
    %v4348 = vmul.f32 %v4345, %v4335
    %v4349 = vmul.f32 %v4345, %v4336
    %v4350 = vmul.f32 %v4345, %v4337
    %v4351 = vmul.f32 %v4345, %v4338
    %v4352 = vmul.f32 %v4345, %v4339
    %v4353 = vmul.f32 %v4345, %v4340
    %v4354 = vmul.f32 %v4345, %v4341
    %v4355 = vmul.f32 %v4345, %v4342
    %v4356 = vmul.f32 %v4345, %v4343
    %v4357 = vmul.f32 %v4345, %v4344
    %v4358 = vadd.f32 %v4320, %v4346
    %v4359 = vadd.f32 %v4321, %v4347
    %v4360 = vadd.f32 %v4322, %v4348
    %v4361 = vadd.f32 %v4323, %v4349
    %v4362 = vadd.f32 %v4324, %v4350
    %v4363 = vadd.f32 %v4325, %v4351
    %v4364 = vadd.f32 %v4326, %v4352
    %v4365 = vadd.f32 %v4327, %v4353
    %v4366 = vadd.f32 %v4328, %v4354
    %v4367 = vadd.f32 %v4329, %v4355
    %v4368 = vadd.f32 %v4330, %v4356
    %v4369 = vadd.f32 %v4331, %v4357
    %4370 = vmatprep.subr.mxu0 0.0
    %4371 = vmatpush1.msra.mxu0 0.0
    %4372 = vmatprep.subr.mxu0 0.0
    %4373 = vmatpush1.msra.mxu0 0.0
    %4374 = vmatprep.subr.mxu0 0.0
    %4375 = vmatpush1.msra.mxu0 0.0
    %4376 = vmatprep.subr.mxu0 0.0
    %4377 = vmatpush1.msra.mxu0 0.0
    %4378 = vmatprep.subr.mxu0 0.0
    %4379 = vmatpush1.msra.mxu0 0.0
    %4380 = vmatprep.subr.mxu0 0.0
    %4381 = vmatpush1.msra.mxu0 0.0
    %4382 = vmatprep.subr.mxu0 0.0
    %4383 = vmatpush1.msra.mxu0 0.0
    %4384 = vmatprep.subr.mxu0 0.0
    %4385 = vmatpush1.msra.mxu0 0.0
    %4386 = vmatprep.subr.mxu0 0.0
    %4387 = vmatpush1.msra.mxu0 0.0
    %4388 = vmatprep.subr.mxu0 0.0
    %4389 = vmatpush1.msra.mxu0 0.0
    %4390 = vmatprep.subr.mxu0 0.0
    %4391 = vmatpush1.msra.mxu0 0.0
    %4392 = vmatprep.subr.mxu0 0.0
    %4393 = vmatpush1.msra.mxu0 0.0
    %4394 = vmatprep.subr.mxu0 0.0
    %4395 = vmatpush1.msra.mxu0 0.0
    %4396 = vmatprep.subr.mxu0 %v4367
    %4397 = vmatpush1.msra.mxu0 %v4366
    %4398 = vmatprep.subr.mxu0 %v4363
    %4399 = vmatpush1.msra.mxu0 %v4362
    %4400 = vmatprep.subr.mxu0 %v4359
    %4401 = vmatpush1.msra.mxu0 %v4358
    %4402 = vmatprep.subr.mxu0 0.0
    %4403 = vmatpush2.msra.mxu0 0.0
    %4404 = vmatprep.subr.mxu0 0.0
    %4405 = vmatpush2.msra.mxu0 0.0
    %4406 = vmatprep.subr.mxu0 0.0
    %4407 = vmatpush2.msra.mxu0 0.0
    %4408 = vmatprep.subr.mxu0 0.0
    %4409 = vmatpush2.msra.mxu0 0.0
    %4410 = vmatprep.subr.mxu0 0.0
    %4411 = vmatpush2.msra.mxu0 0.0
    %4412 = vmatprep.subr.mxu0 0.0
    %4413 = vmatpush2.msra.mxu0 0.0
    %4414 = vmatprep.subr.mxu0 0.0
    %4415 = vmatpush2.msra.mxu0 0.0
    %4416 = vmatprep.subr.mxu0 0.0
    %4417 = vmatpush2.msra.mxu0 0.0
    %4418 = vmatprep.subr.mxu0 0.0
    %4419 = vmatpush2.msra.mxu0 0.0
    %4420 = vmatprep.subr.mxu0 0.0
    %4421 = vmatpush2.msra.mxu0 0.0
    %4422 = vmatprep.subr.mxu0 0.0
    %4423 = vmatpush2.msra.mxu0 0.0
    %4424 = vmatprep.subr.mxu0 0.0
    %4425 = vmatpush2.msra.mxu0 0.0
    %4426 = vmatprep.subr.mxu0 0.0
    %4427 = vmatpush2.msra.mxu0 0.0
    %4428 = vmatprep.subr.mxu0 0.0
    %4429 = vmatpush2.msra.mxu0 0.0
    %4430 = vmatprep.subr.mxu0 0.0
    %4431 = vmatpush2.msra.mxu0 0.0
    %4432 = vmatprep.subr.mxu0 0.0
    %4433 = vmatpush2.msra.mxu0 0.0
    %4434 = vmatprep.mubr.f32.mxu0 0.0
    %4435 = vmatmul.mubr.f32.gmra.mxu0 %v292
    %v4436 = vpop.f32.mrf.mxu0
    %v4437 = vadd.f32 %v191, %v4436
    %v4438 = vpop.f32.mrf.mxu0
    %v4439 = vadd.f32 %v193, %v4438
    %4440 = vmatprep.mubr.f32.mxu0 0.0
    %4441 = vmatmul.mubr.f32.gmra.mxu0 %v295
    %v4442 = vpop.f32.mrf.mxu0
    %v4443 = vadd.f32 %v197, %v4442
    %v4444 = vpop.f32.mrf.mxu0
    %v4445 = vadd.f32 %v199, %v4444
    %4446 = vmatprep.mubr.f32.mxu0 0.0
    %4447 = vmatmul.mubr.f32.gmra.mxu0 %v298
    %v4448 = vpop.f32.mrf.mxu0
    %v4449 = vadd.f32 %v203, %v4448
    %v4450 = vpop.f32.mrf.mxu0
    %v4451 = vadd.f32 %v205, %v4450
    %4452 = vdwg.mxu0
    %4453 = vmatprep.subr.mxu0 0.0
    %4454 = vmatpush1.msra.mxu0 0.0
    %4455 = vmatprep.subr.mxu0 0.0
    %4456 = vmatpush1.msra.mxu0 0.0
    %4457 = vmatprep.subr.mxu0 0.0
    %4458 = vmatpush1.msra.mxu0 0.0
    %4459 = vmatprep.subr.mxu0 0.0
    %4460 = vmatpush1.msra.mxu0 0.0
    %4461 = vmatprep.subr.mxu0 0.0
    %4462 = vmatpush1.msra.mxu0 0.0
    %4463 = vmatprep.subr.mxu0 0.0
    %4464 = vmatpush1.msra.mxu0 0.0
    %4465 = vmatprep.subr.mxu0 0.0
    %4466 = vmatpush1.msra.mxu0 0.0
    %4467 = vmatprep.subr.mxu0 0.0
    %4468 = vmatpush1.msra.mxu0 0.0
    %4469 = vmatprep.subr.mxu0 0.0
    %4470 = vmatpush1.msra.mxu0 0.0
    %4471 = vmatprep.subr.mxu0 0.0
    %4472 = vmatpush1.msra.mxu0 0.0
    %4473 = vmatprep.subr.mxu0 0.0
    %4474 = vmatpush1.msra.mxu0 0.0
    %4475 = vmatprep.subr.mxu0 0.0
    %4476 = vmatpush1.msra.mxu0 0.0
    %4477 = vmatprep.subr.mxu0 0.0
    %4478 = vmatpush1.msra.mxu0 0.0
    %4479 = vmatprep.subr.mxu0 %v4369
    %4480 = vmatpush1.msra.mxu0 %v4368
    %4481 = vmatprep.subr.mxu0 %v4365
    %4482 = vmatpush1.msra.mxu0 %v4364
    %4483 = vmatprep.subr.mxu0 %v4361
    %4484 = vmatpush1.msra.mxu0 %v4360
    %4485 = vmatprep.subr.mxu0 0.0
    %4486 = vmatpush2.msra.mxu0 0.0
    %4487 = vmatprep.subr.mxu0 0.0
    %4488 = vmatpush2.msra.mxu0 0.0
    %4489 = vmatprep.subr.mxu0 0.0
    %4490 = vmatpush2.msra.mxu0 0.0
    %4491 = vmatprep.subr.mxu0 0.0
    %4492 = vmatpush2.msra.mxu0 0.0
    %4493 = vmatprep.subr.mxu0 0.0
    %4494 = vmatpush2.msra.mxu0 0.0
    %4495 = vmatprep.subr.mxu0 0.0
    %4496 = vmatpush2.msra.mxu0 0.0
    %4497 = vmatprep.subr.mxu0 0.0
    %4498 = vmatpush2.msra.mxu0 0.0
    %4499 = vmatprep.subr.mxu0 0.0
    %4500 = vmatpush2.msra.mxu0 0.0
    %4501 = vmatprep.subr.mxu0 0.0
    %4502 = vmatpush2.msra.mxu0 0.0
    %4503 = vmatprep.subr.mxu0 0.0
    %4504 = vmatpush2.msra.mxu0 0.0
    %4505 = vmatprep.subr.mxu0 0.0
    %4506 = vmatpush2.msra.mxu0 0.0
    %4507 = vmatprep.subr.mxu0 0.0
    %4508 = vmatpush2.msra.mxu0 0.0
    %4509 = vmatprep.subr.mxu0 0.0
    %4510 = vmatpush2.msra.mxu0 0.0
    %4511 = vmatprep.subr.mxu0 0.0
    %4512 = vmatpush2.msra.mxu0 0.0
    %4513 = vmatprep.subr.mxu0 0.0
    %4514 = vmatpush2.msra.mxu0 0.0
    %4515 = vmatprep.subr.mxu0 0.0
    %4516 = vmatpush2.msra.mxu0 0.0
    %4517 = vmatprep.mubr.f32.mxu0 0.0
    %4518 = vmatmul.mubr.f32.gmra.mxu0 %v292
    %v4519 = vpop.f32.mrf.mxu0
    %v4520 = vadd.f32 %v274, %v4519
    %v4521 = vpop.f32.mrf.mxu0
    %v4522 = vadd.f32 %v276, %v4521
    %4523 = vmatprep.mubr.f32.mxu0 0.0
    %4524 = vmatmul.mubr.f32.gmra.mxu0 %v295
    %v4525 = vpop.f32.mrf.mxu0
    %v4526 = vadd.f32 %v280, %v4525
    %v4527 = vpop.f32.mrf.mxu0
    %v4528 = vadd.f32 %v282, %v4527
    %4529 = vmatprep.mubr.f32.mxu0 0.0
    %4530 = vmatmul.mubr.f32.gmra.mxu0 %v298
    %v4531 = vpop.f32.mrf.mxu0
    %v4532 = vadd.f32 %v286, %v4531
    %v4533 = vpop.f32.mrf.mxu0
    %v4534 = vadd.f32 %v288, %v4533
    %4535 = vdwg.mxu0
    %v4536 = vmax.f32 %v466, %v4437
    %v4537 = vmax.f32 %v466, %v4439
    %v4538 = vmax.f32 %v466, %v4520
    %v4539 = vmax.f32 %v466, %v4522
    %v4540 = vmax.f32 %v466, %v4443
    %v4541 = vmax.f32 %v466, %v4445
    %v4542 = vmax.f32 %v466, %v4526
    %v4543 = vmax.f32 %v466, %v4528
    %v4544 = vmax.f32 %v466, %v4449
    %v4545 = vmax.f32 %v466, %v4451
    %v4546 = vmax.f32 %v466, %v4532
    %v4547 = vmax.f32 %v466, %v4534
    %v4548 = vmin.f32 %v479, %v4536
    %v4549 = vmin.f32 %v479, %v4537
    %v4550 = vmin.f32 %v479, %v4538
    %v4551 = vmin.f32 %v479, %v4539
    %v4552 = vmin.f32 %v479, %v4540
    %v4553 = vmin.f32 %v479, %v4541
    %v4554 = vmin.f32 %v479, %v4542
    %v4555 = vmin.f32 %v479, %v4543
    %v4556 = vmin.f32 %v479, %v4544
    %v4557 = vmin.f32 %v479, %v4545
    %v4558 = vmin.f32 %v479, %v4546
    %v4559 = vmin.f32 %v479, %v4547
    %v4560 = vsub.f32 %v4437, %v4548
    %v4561 = vsub.f32 %v4439, %v4549
    %v4562 = vsub.f32 %v4520, %v4550
    %v4563 = vsub.f32 %v4522, %v4551
    %v4564 = vsub.f32 %v4443, %v4552
    %v4565 = vsub.f32 %v4445, %v4553
    %v4566 = vsub.f32 %v4526, %v4554
    %v4567 = vsub.f32 %v4528, %v4555
    %v4568 = vsub.f32 %v4449, %v4556
    %v4569 = vsub.f32 %v4451, %v4557
    %v4570 = vsub.f32 %v4532, %v4558
    %v4571 = vsub.f32 %v4534, %v4559
    %s4572 = sld [smem:[#allocation3 + $0x11]]
    %v4573 = vsub.f32 %v4560, %v4320
    %v4574 = vsub.f32 %v4561, %v4321
    %v4575 = vsub.f32 %v4562, %v4322
    %v4576 = vsub.f32 %v4563, %v4323
    %v4577 = vsub.f32 %v4564, %v4324
    %v4578 = vsub.f32 %v4565, %v4325
    %v4579 = vsub.f32 %v4566, %v4326
    %v4580 = vsub.f32 %v4567, %v4327
    %v4581 = vsub.f32 %v4568, %v4328
    %v4582 = vsub.f32 %v4569, %v4329
    %v4583 = vsub.f32 %v4570, %v4330
    %v4584 = vsub.f32 %v4571, %v4331
    %v4585 = vstv %s4572
    %v4586 = vmul.f32 %v4585, %v4573
    %v4587 = vmul.f32 %v4585, %v4574
    %v4588 = vmul.f32 %v4585, %v4575
    %v4589 = vmul.f32 %v4585, %v4576
    %v4590 = vmul.f32 %v4585, %v4577
    %v4591 = vmul.f32 %v4585, %v4578
    %v4592 = vmul.f32 %v4585, %v4579
    %v4593 = vmul.f32 %v4585, %v4580
    %v4594 = vmul.f32 %v4585, %v4581
    %v4595 = vmul.f32 %v4585, %v4582
    %v4596 = vmul.f32 %v4585, %v4583
    %v4597 = vmul.f32 %v4585, %v4584
    %v4598 = vadd.f32 %v4560, %v4586
    %v4599 = vadd.f32 %v4561, %v4587
    %v4600 = vadd.f32 %v4562, %v4588
    %v4601 = vadd.f32 %v4563, %v4589
    %v4602 = vadd.f32 %v4564, %v4590
    %v4603 = vadd.f32 %v4565, %v4591
    %v4604 = vadd.f32 %v4566, %v4592
    %v4605 = vadd.f32 %v4567, %v4593
    %v4606 = vadd.f32 %v4568, %v4594
    %v4607 = vadd.f32 %v4569, %v4595
    %v4608 = vadd.f32 %v4570, %v4596
    %v4609 = vadd.f32 %v4571, %v4597
    %4610 = vmatprep.subr.mxu0 0.0
    %4611 = vmatpush1.msra.mxu0 0.0
    %4612 = vmatprep.subr.mxu0 0.0
    %4613 = vmatpush1.msra.mxu0 0.0
    %4614 = vmatprep.subr.mxu0 0.0
    %4615 = vmatpush1.msra.mxu0 0.0
    %4616 = vmatprep.subr.mxu0 0.0
    %4617 = vmatpush1.msra.mxu0 0.0
    %4618 = vmatprep.subr.mxu0 0.0
    %4619 = vmatpush1.msra.mxu0 0.0
    %4620 = vmatprep.subr.mxu0 0.0
    %4621 = vmatpush1.msra.mxu0 0.0
    %4622 = vmatprep.subr.mxu0 0.0
    %4623 = vmatpush1.msra.mxu0 0.0
    %4624 = vmatprep.subr.mxu0 0.0
    %4625 = vmatpush1.msra.mxu0 0.0
    %4626 = vmatprep.subr.mxu0 0.0
    %4627 = vmatpush1.msra.mxu0 0.0
    %4628 = vmatprep.subr.mxu0 0.0
    %4629 = vmatpush1.msra.mxu0 0.0
    %4630 = vmatprep.subr.mxu0 0.0
    %4631 = vmatpush1.msra.mxu0 0.0
    %4632 = vmatprep.subr.mxu0 0.0
    %4633 = vmatpush1.msra.mxu0 0.0
    %4634 = vmatprep.subr.mxu0 0.0
    %4635 = vmatpush1.msra.mxu0 0.0
    %4636 = vmatprep.subr.mxu0 %v4607
    %4637 = vmatpush1.msra.mxu0 %v4606
    %4638 = vmatprep.subr.mxu0 %v4603
    %4639 = vmatpush1.msra.mxu0 %v4602
    %4640 = vmatprep.subr.mxu0 %v4599
    %4641 = vmatpush1.msra.mxu0 %v4598
    %4642 = vmatprep.subr.mxu0 0.0
    %4643 = vmatpush2.msra.mxu0 0.0
    %4644 = vmatprep.subr.mxu0 0.0
    %4645 = vmatpush2.msra.mxu0 0.0
    %4646 = vmatprep.subr.mxu0 0.0
    %4647 = vmatpush2.msra.mxu0 0.0
    %4648 = vmatprep.subr.mxu0 0.0
    %4649 = vmatpush2.msra.mxu0 0.0
    %4650 = vmatprep.subr.mxu0 0.0
    %4651 = vmatpush2.msra.mxu0 0.0
    %4652 = vmatprep.subr.mxu0 0.0
    %4653 = vmatpush2.msra.mxu0 0.0
    %4654 = vmatprep.subr.mxu0 0.0
    %4655 = vmatpush2.msra.mxu0 0.0
    %4656 = vmatprep.subr.mxu0 0.0
    %4657 = vmatpush2.msra.mxu0 0.0
    %4658 = vmatprep.subr.mxu0 0.0
    %4659 = vmatpush2.msra.mxu0 0.0
    %4660 = vmatprep.subr.mxu0 0.0
    %4661 = vmatpush2.msra.mxu0 0.0
    %4662 = vmatprep.subr.mxu0 0.0
    %4663 = vmatpush2.msra.mxu0 0.0
    %4664 = vmatprep.subr.mxu0 0.0
    %4665 = vmatpush2.msra.mxu0 0.0
    %4666 = vmatprep.subr.mxu0 0.0
    %4667 = vmatpush2.msra.mxu0 0.0
    %4668 = vmatprep.subr.mxu0 0.0
    %4669 = vmatpush2.msra.mxu0 0.0
    %4670 = vmatprep.subr.mxu0 0.0
    %4671 = vmatpush2.msra.mxu0 0.0
    %4672 = vmatprep.subr.mxu0 0.0
    %4673 = vmatpush2.msra.mxu0 0.0
    %4674 = vmatprep.mubr.f32.mxu0 0.0
    %4675 = vmatmul.mubr.f32.gmra.mxu0 %v292
    %v4676 = vpop.f32.mrf.mxu0
    %v4677 = vadd.f32 %v191, %v4676
    %v4678 = vpop.f32.mrf.mxu0
    %v4679 = vadd.f32 %v193, %v4678
    %4680 = vmatprep.mubr.f32.mxu0 0.0
    %4681 = vmatmul.mubr.f32.gmra.mxu0 %v295
    %v4682 = vpop.f32.mrf.mxu0
    %v4683 = vadd.f32 %v197, %v4682
    %v4684 = vpop.f32.mrf.mxu0
    %v4685 = vadd.f32 %v199, %v4684
    %4686 = vmatprep.mubr.f32.mxu0 0.0
    %4687 = vmatmul.mubr.f32.gmra.mxu0 %v298
    %v4688 = vpop.f32.mrf.mxu0
    %v4689 = vadd.f32 %v203, %v4688
    %v4690 = vpop.f32.mrf.mxu0
    %v4691 = vadd.f32 %v205, %v4690
    %4692 = vdwg.mxu0
    %4693 = vmatprep.subr.mxu0 0.0
    %4694 = vmatpush1.msra.mxu0 0.0
    %4695 = vmatprep.subr.mxu0 0.0
    %4696 = vmatpush1.msra.mxu0 0.0
    %4697 = vmatprep.subr.mxu0 0.0
    %4698 = vmatpush1.msra.mxu0 0.0
    %4699 = vmatprep.subr.mxu0 0.0
    %4700 = vmatpush1.msra.mxu0 0.0
    %4701 = vmatprep.subr.mxu0 0.0
    %4702 = vmatpush1.msra.mxu0 0.0
    %4703 = vmatprep.subr.mxu0 0.0
    %4704 = vmatpush1.msra.mxu0 0.0
    %4705 = vmatprep.subr.mxu0 0.0
    %4706 = vmatpush1.msra.mxu0 0.0
    %4707 = vmatprep.subr.mxu0 0.0
    %4708 = vmatpush1.msra.mxu0 0.0
    %4709 = vmatprep.subr.mxu0 0.0
    %4710 = vmatpush1.msra.mxu0 0.0
    %4711 = vmatprep.subr.mxu0 0.0
    %4712 = vmatpush1.msra.mxu0 0.0
    %4713 = vmatprep.subr.mxu0 0.0
    %4714 = vmatpush1.msra.mxu0 0.0
    %4715 = vmatprep.subr.mxu0 0.0
    %4716 = vmatpush1.msra.mxu0 0.0
    %4717 = vmatprep.subr.mxu0 0.0
    %4718 = vmatpush1.msra.mxu0 0.0
    %4719 = vmatprep.subr.mxu0 %v4609
    %4720 = vmatpush1.msra.mxu0 %v4608
    %4721 = vmatprep.subr.mxu0 %v4605
    %4722 = vmatpush1.msra.mxu0 %v4604
    %4723 = vmatprep.subr.mxu0 %v4601
    %4724 = vmatpush1.msra.mxu0 %v4600
    %4725 = vmatprep.subr.mxu0 0.0
    %4726 = vmatpush2.msra.mxu0 0.0
    %4727 = vmatprep.subr.mxu0 0.0
    %4728 = vmatpush2.msra.mxu0 0.0
    %4729 = vmatprep.subr.mxu0 0.0
    %4730 = vmatpush2.msra.mxu0 0.0
    %4731 = vmatprep.subr.mxu0 0.0
    %4732 = vmatpush2.msra.mxu0 0.0
    %4733 = vmatprep.subr.mxu0 0.0
    %4734 = vmatpush2.msra.mxu0 0.0
    %4735 = vmatprep.subr.mxu0 0.0
    %4736 = vmatpush2.msra.mxu0 0.0
    %4737 = vmatprep.subr.mxu0 0.0
    %4738 = vmatpush2.msra.mxu0 0.0
    %4739 = vmatprep.subr.mxu0 0.0
    %4740 = vmatpush2.msra.mxu0 0.0
    %4741 = vmatprep.subr.mxu0 0.0
    %4742 = vmatpush2.msra.mxu0 0.0
    %4743 = vmatprep.subr.mxu0 0.0
    %4744 = vmatpush2.msra.mxu0 0.0
    %4745 = vmatprep.subr.mxu0 0.0
    %4746 = vmatpush2.msra.mxu0 0.0
    %4747 = vmatprep.subr.mxu0 0.0
    %4748 = vmatpush2.msra.mxu0 0.0
    %4749 = vmatprep.subr.mxu0 0.0
    %4750 = vmatpush2.msra.mxu0 0.0
    %4751 = vmatprep.subr.mxu0 0.0
    %4752 = vmatpush2.msra.mxu0 0.0
    %4753 = vmatprep.subr.mxu0 0.0
    %4754 = vmatpush2.msra.mxu0 0.0
    %4755 = vmatprep.subr.mxu0 0.0
    %4756 = vmatpush2.msra.mxu0 0.0
    %4757 = vmatprep.mubr.f32.mxu0 0.0
    %4758 = vmatmul.mubr.f32.gmra.mxu0 %v292
    %v4759 = vpop.f32.mrf.mxu0
    %v4760 = vadd.f32 %v274, %v4759
    %v4761 = vpop.f32.mrf.mxu0
    %v4762 = vadd.f32 %v276, %v4761
    %4763 = vmatprep.mubr.f32.mxu0 0.0
    %4764 = vmatmul.mubr.f32.gmra.mxu0 %v295
    %v4765 = vpop.f32.mrf.mxu0
    %v4766 = vadd.f32 %v280, %v4765
    %v4767 = vpop.f32.mrf.mxu0
    %v4768 = vadd.f32 %v282, %v4767
    %4769 = vmatprep.mubr.f32.mxu0 0.0
    %4770 = vmatmul.mubr.f32.gmra.mxu0 %v298
    %v4771 = vpop.f32.mrf.mxu0
    %v4772 = vadd.f32 %v286, %v4771
    %v4773 = vpop.f32.mrf.mxu0
    %v4774 = vadd.f32 %v288, %v4773
    %4775 = vdwg.mxu0
    %v4776 = vmax.f32 %v466, %v4677
    %v4777 = vmax.f32 %v466, %v4679
    %v4778 = vmax.f32 %v466, %v4760
    %v4779 = vmax.f32 %v466, %v4762
    %v4780 = vmax.f32 %v466, %v4683
    %v4781 = vmax.f32 %v466, %v4685
    %v4782 = vmax.f32 %v466, %v4766
    %v4783 = vmax.f32 %v466, %v4768
    %v4784 = vmax.f32 %v466, %v4689
    %v4785 = vmax.f32 %v466, %v4691
    %v4786 = vmax.f32 %v466, %v4772
    %v4787 = vmax.f32 %v466, %v4774
    %v4788 = vmin.f32 %v479, %v4776
    %v4789 = vmin.f32 %v479, %v4777
    %v4790 = vmin.f32 %v479, %v4778
    %v4791 = vmin.f32 %v479, %v4779
    %v4792 = vmin.f32 %v479, %v4780
    %v4793 = vmin.f32 %v479, %v4781
    %v4794 = vmin.f32 %v479, %v4782
    %v4795 = vmin.f32 %v479, %v4783
    %v4796 = vmin.f32 %v479, %v4784
    %v4797 = vmin.f32 %v479, %v4785
    %v4798 = vmin.f32 %v479, %v4786
    %v4799 = vmin.f32 %v479, %v4787
    %v4800 = vsub.f32 %v4677, %v4788
    %v4801 = vsub.f32 %v4679, %v4789
    %v4802 = vsub.f32 %v4760, %v4790
    %v4803 = vsub.f32 %v4762, %v4791
    %v4804 = vsub.f32 %v4683, %v4792
    %v4805 = vsub.f32 %v4685, %v4793
    %v4806 = vsub.f32 %v4766, %v4794
    %v4807 = vsub.f32 %v4768, %v4795
    %v4808 = vsub.f32 %v4689, %v4796
    %v4809 = vsub.f32 %v4691, %v4797
    %v4810 = vsub.f32 %v4772, %v4798
    %v4811 = vsub.f32 %v4774, %v4799
    %s4812 = sld [smem:[#allocation3 + $0x12]]
    %v4813 = vsub.f32 %v4800, %v4560
    %v4814 = vsub.f32 %v4801, %v4561
    %v4815 = vsub.f32 %v4802, %v4562
    %v4816 = vsub.f32 %v4803, %v4563
    %v4817 = vsub.f32 %v4804, %v4564
    %v4818 = vsub.f32 %v4805, %v4565
    %v4819 = vsub.f32 %v4806, %v4566
    %v4820 = vsub.f32 %v4807, %v4567
    %v4821 = vsub.f32 %v4808, %v4568
    %v4822 = vsub.f32 %v4809, %v4569
    %v4823 = vsub.f32 %v4810, %v4570
    %v4824 = vsub.f32 %v4811, %v4571
    %v4825 = vstv %s4812
    %v4826 = vmul.f32 %v4825, %v4813
    %v4827 = vmul.f32 %v4825, %v4814
    %v4828 = vmul.f32 %v4825, %v4815
    %v4829 = vmul.f32 %v4825, %v4816
    %v4830 = vmul.f32 %v4825, %v4817
    %v4831 = vmul.f32 %v4825, %v4818
    %v4832 = vmul.f32 %v4825, %v4819
    %v4833 = vmul.f32 %v4825, %v4820
    %v4834 = vmul.f32 %v4825, %v4821
    %v4835 = vmul.f32 %v4825, %v4822
    %v4836 = vmul.f32 %v4825, %v4823
    %v4837 = vmul.f32 %v4825, %v4824
    %v4838 = vadd.f32 %v4800, %v4826
    %v4839 = vadd.f32 %v4801, %v4827
    %v4840 = vadd.f32 %v4802, %v4828
    %v4841 = vadd.f32 %v4803, %v4829
    %v4842 = vadd.f32 %v4804, %v4830
    %v4843 = vadd.f32 %v4805, %v4831
    %v4844 = vadd.f32 %v4806, %v4832
    %v4845 = vadd.f32 %v4807, %v4833
    %v4846 = vadd.f32 %v4808, %v4834
    %v4847 = vadd.f32 %v4809, %v4835
    %v4848 = vadd.f32 %v4810, %v4836
    %v4849 = vadd.f32 %v4811, %v4837
    %4850 = vmatprep.subr.mxu0 0.0
    %4851 = vmatpush1.msra.mxu0 0.0
    %4852 = vmatprep.subr.mxu0 0.0
    %4853 = vmatpush1.msra.mxu0 0.0
    %4854 = vmatprep.subr.mxu0 0.0
    %4855 = vmatpush1.msra.mxu0 0.0
    %4856 = vmatprep.subr.mxu0 0.0
    %4857 = vmatpush1.msra.mxu0 0.0
    %4858 = vmatprep.subr.mxu0 0.0
    %4859 = vmatpush1.msra.mxu0 0.0
    %4860 = vmatprep.subr.mxu0 0.0
    %4861 = vmatpush1.msra.mxu0 0.0
    %4862 = vmatprep.subr.mxu0 0.0
    %4863 = vmatpush1.msra.mxu0 0.0
    %4864 = vmatprep.subr.mxu0 0.0
    %4865 = vmatpush1.msra.mxu0 0.0
    %4866 = vmatprep.subr.mxu0 0.0
    %4867 = vmatpush1.msra.mxu0 0.0
    %4868 = vmatprep.subr.mxu0 0.0
    %4869 = vmatpush1.msra.mxu0 0.0
    %4870 = vmatprep.subr.mxu0 0.0
    %4871 = vmatpush1.msra.mxu0 0.0
    %4872 = vmatprep.subr.mxu0 0.0
    %4873 = vmatpush1.msra.mxu0 0.0
    %4874 = vmatprep.subr.mxu0 0.0
    %4875 = vmatpush1.msra.mxu0 0.0
    %4876 = vmatprep.subr.mxu0 %v4847
    %4877 = vmatpush1.msra.mxu0 %v4846
    %4878 = vmatprep.subr.mxu0 %v4843
    %4879 = vmatpush1.msra.mxu0 %v4842
    %4880 = vmatprep.subr.mxu0 %v4839
    %4881 = vmatpush1.msra.mxu0 %v4838
    %4882 = vmatprep.subr.mxu0 0.0
    %4883 = vmatpush2.msra.mxu0 0.0
    %4884 = vmatprep.subr.mxu0 0.0
    %4885 = vmatpush2.msra.mxu0 0.0
    %4886 = vmatprep.subr.mxu0 0.0
    %4887 = vmatpush2.msra.mxu0 0.0
    %4888 = vmatprep.subr.mxu0 0.0
    %4889 = vmatpush2.msra.mxu0 0.0
    %4890 = vmatprep.subr.mxu0 0.0
    %4891 = vmatpush2.msra.mxu0 0.0
    %4892 = vmatprep.subr.mxu0 0.0
    %4893 = vmatpush2.msra.mxu0 0.0
    %4894 = vmatprep.subr.mxu0 0.0
    %4895 = vmatpush2.msra.mxu0 0.0
    %4896 = vmatprep.subr.mxu0 0.0
    %4897 = vmatpush2.msra.mxu0 0.0
    %4898 = vmatprep.subr.mxu0 0.0
    %4899 = vmatpush2.msra.mxu0 0.0
    %4900 = vmatprep.subr.mxu0 0.0
    %4901 = vmatpush2.msra.mxu0 0.0
    %4902 = vmatprep.subr.mxu0 0.0
    %4903 = vmatpush2.msra.mxu0 0.0
    %4904 = vmatprep.subr.mxu0 0.0
    %4905 = vmatpush2.msra.mxu0 0.0
    %4906 = vmatprep.subr.mxu0 0.0
    %4907 = vmatpush2.msra.mxu0 0.0
    %4908 = vmatprep.subr.mxu0 0.0
    %4909 = vmatpush2.msra.mxu0 0.0
    %4910 = vmatprep.subr.mxu0 0.0
    %4911 = vmatpush2.msra.mxu0 0.0
    %4912 = vmatprep.subr.mxu0 0.0
    %4913 = vmatpush2.msra.mxu0 0.0
    %4914 = vmatprep.mubr.f32.mxu0 0.0
    %4915 = vmatmul.mubr.f32.gmra.mxu0 %v292
    %v4916 = vpop.f32.mrf.mxu0
    %v4917 = vadd.f32 %v191, %v4916
    %v4918 = vpop.f32.mrf.mxu0
    %v4919 = vadd.f32 %v193, %v4918
    %4920 = vmatprep.mubr.f32.mxu0 0.0
    %4921 = vmatmul.mubr.f32.gmra.mxu0 %v295
    %v4922 = vpop.f32.mrf.mxu0
    %v4923 = vadd.f32 %v197, %v4922
    %v4924 = vpop.f32.mrf.mxu0
    %v4925 = vadd.f32 %v199, %v4924
    %4926 = vmatprep.mubr.f32.mxu0 0.0
    %4927 = vmatmul.mubr.f32.gmra.mxu0 %v298
    %v4928 = vpop.f32.mrf.mxu0
    %v4929 = vadd.f32 %v203, %v4928
    %v4930 = vpop.f32.mrf.mxu0
    %v4931 = vadd.f32 %v205, %v4930
    %4932 = vdwg.mxu0
    %4933 = vmatprep.subr.mxu0 0.0
    %4934 = vmatpush1.msra.mxu0 0.0
    %4935 = vmatprep.subr.mxu0 0.0
    %4936 = vmatpush1.msra.mxu0 0.0
    %4937 = vmatprep.subr.mxu0 0.0
    %4938 = vmatpush1.msra.mxu0 0.0
    %4939 = vmatprep.subr.mxu0 0.0
    %4940 = vmatpush1.msra.mxu0 0.0
    %4941 = vmatprep.subr.mxu0 0.0
    %4942 = vmatpush1.msra.mxu0 0.0
    %4943 = vmatprep.subr.mxu0 0.0
    %4944 = vmatpush1.msra.mxu0 0.0
    %4945 = vmatprep.subr.mxu0 0.0
    %4946 = vmatpush1.msra.mxu0 0.0
    %4947 = vmatprep.subr.mxu0 0.0
    %4948 = vmatpush1.msra.mxu0 0.0
    %4949 = vmatprep.subr.mxu0 0.0
    %4950 = vmatpush1.msra.mxu0 0.0
    %4951 = vmatprep.subr.mxu0 0.0
    %4952 = vmatpush1.msra.mxu0 0.0
    %4953 = vmatprep.subr.mxu0 0.0
    %4954 = vmatpush1.msra.mxu0 0.0
    %4955 = vmatprep.subr.mxu0 0.0
    %4956 = vmatpush1.msra.mxu0 0.0
    %4957 = vmatprep.subr.mxu0 0.0
    %4958 = vmatpush1.msra.mxu0 0.0
    %4959 = vmatprep.subr.mxu0 %v4849
    %4960 = vmatpush1.msra.mxu0 %v4848
    %4961 = vmatprep.subr.mxu0 %v4845
    %4962 = vmatpush1.msra.mxu0 %v4844
    %4963 = vmatprep.subr.mxu0 %v4841
    %4964 = vmatpush1.msra.mxu0 %v4840
    %4965 = vmatprep.subr.mxu0 0.0
    %4966 = vmatpush2.msra.mxu0 0.0
    %4967 = vmatprep.subr.mxu0 0.0
    %4968 = vmatpush2.msra.mxu0 0.0
    %4969 = vmatprep.subr.mxu0 0.0
    %4970 = vmatpush2.msra.mxu0 0.0
    %4971 = vmatprep.subr.mxu0 0.0
    %4972 = vmatpush2.msra.mxu0 0.0
    %4973 = vmatprep.subr.mxu0 0.0
    %4974 = vmatpush2.msra.mxu0 0.0
    %4975 = vmatprep.subr.mxu0 0.0
    %4976 = vmatpush2.msra.mxu0 0.0
    %4977 = vmatprep.subr.mxu0 0.0
    %4978 = vmatpush2.msra.mxu0 0.0
    %4979 = vmatprep.subr.mxu0 0.0
    %4980 = vmatpush2.msra.mxu0 0.0
    %4981 = vmatprep.subr.mxu0 0.0
    %4982 = vmatpush2.msra.mxu0 0.0
    %4983 = vmatprep.subr.mxu0 0.0
    %4984 = vmatpush2.msra.mxu0 0.0
    %4985 = vmatprep.subr.mxu0 0.0
    %4986 = vmatpush2.msra.mxu0 0.0
    %4987 = vmatprep.subr.mxu0 0.0
    %4988 = vmatpush2.msra.mxu0 0.0
    %4989 = vmatprep.subr.mxu0 0.0
    %4990 = vmatpush2.msra.mxu0 0.0
    %4991 = vmatprep.subr.mxu0 0.0
    %4992 = vmatpush2.msra.mxu0 0.0
    %4993 = vmatprep.subr.mxu0 0.0
    %4994 = vmatpush2.msra.mxu0 0.0
    %4995 = vmatprep.subr.mxu0 0.0
    %4996 = vmatpush2.msra.mxu0 0.0
    %4997 = vmatprep.mubr.f32.mxu0 0.0
    %4998 = vmatmul.mubr.f32.gmra.mxu0 %v292
    %v4999 = vpop.f32.mrf.mxu0
    %v5000 = vadd.f32 %v274, %v4999
    %v5001 = vpop.f32.mrf.mxu0
    %v5002 = vadd.f32 %v276, %v5001
    %5003 = vmatprep.mubr.f32.mxu0 0.0
    %5004 = vmatmul.mubr.f32.gmra.mxu0 %v295
    %v5005 = vpop.f32.mrf.mxu0
    %v5006 = vadd.f32 %v280, %v5005
    %v5007 = vpop.f32.mrf.mxu0
    %v5008 = vadd.f32 %v282, %v5007
    %5009 = vmatprep.mubr.f32.mxu0 0.0
    %5010 = vmatmul.mubr.f32.gmra.mxu0 %v298
    %v5011 = vpop.f32.mrf.mxu0
    %v5012 = vadd.f32 %v286, %v5011
    %v5013 = vpop.f32.mrf.mxu0
    %v5014 = vadd.f32 %v288, %v5013
    %5015 = vdwg.mxu0
    %v5016 = vmax.f32 %v466, %v4917
    %v5017 = vmax.f32 %v466, %v4919
    %v5018 = vmax.f32 %v466, %v5000
    %v5019 = vmax.f32 %v466, %v5002
    %v5020 = vmax.f32 %v466, %v4923
    %v5021 = vmax.f32 %v466, %v4925
    %v5022 = vmax.f32 %v466, %v5006
    %v5023 = vmax.f32 %v466, %v5008
    %v5024 = vmax.f32 %v466, %v4929
    %v5025 = vmax.f32 %v466, %v4931
    %v5026 = vmax.f32 %v466, %v5012
    %v5027 = vmax.f32 %v466, %v5014
    %v5028 = vmin.f32 %v479, %v5016
    %v5029 = vmin.f32 %v479, %v5017
    %v5030 = vmin.f32 %v479, %v5018
    %v5031 = vmin.f32 %v479, %v5019
    %v5032 = vmin.f32 %v479, %v5020
    %v5033 = vmin.f32 %v479, %v5021
    %v5034 = vmin.f32 %v479, %v5022
    %v5035 = vmin.f32 %v479, %v5023
    %v5036 = vmin.f32 %v479, %v5024
    %v5037 = vmin.f32 %v479, %v5025
    %v5038 = vmin.f32 %v479, %v5026
    %v5039 = vmin.f32 %v479, %v5027
    %v5040 = vsub.f32 %v4917, %v5028
    %v5041 = vsub.f32 %v4919, %v5029
    %v5042 = vsub.f32 %v5000, %v5030
    %v5043 = vsub.f32 %v5002, %v5031
    %v5044 = vsub.f32 %v4923, %v5032
    %v5045 = vsub.f32 %v4925, %v5033
    %v5046 = vsub.f32 %v5006, %v5034
    %v5047 = vsub.f32 %v5008, %v5035
    %v5048 = vsub.f32 %v4929, %v5036
    %v5049 = vsub.f32 %v4931, %v5037
    %v5050 = vsub.f32 %v5012, %v5038
    %v5051 = vsub.f32 %v5014, %v5039
    %s5052 = sld [smem:[#allocation3 + $0x13]]
    %v5053 = vsub.f32 %v5040, %v4800
    %v5054 = vsub.f32 %v5041, %v4801
    %v5055 = vsub.f32 %v5042, %v4802
    %v5056 = vsub.f32 %v5043, %v4803
    %v5057 = vsub.f32 %v5044, %v4804
    %v5058 = vsub.f32 %v5045, %v4805
    %v5059 = vsub.f32 %v5046, %v4806
    %v5060 = vsub.f32 %v5047, %v4807
    %v5061 = vsub.f32 %v5048, %v4808
    %v5062 = vsub.f32 %v5049, %v4809
    %v5063 = vsub.f32 %v5050, %v4810
    %v5064 = vsub.f32 %v5051, %v4811
    %v5065 = vstv %s5052
    %v5066 = vmul.f32 %v5065, %v5053
    %v5067 = vmul.f32 %v5065, %v5054
    %v5068 = vmul.f32 %v5065, %v5055
    %v5069 = vmul.f32 %v5065, %v5056
    %v5070 = vmul.f32 %v5065, %v5057
    %v5071 = vmul.f32 %v5065, %v5058
    %v5072 = vmul.f32 %v5065, %v5059
    %v5073 = vmul.f32 %v5065, %v5060
    %v5074 = vmul.f32 %v5065, %v5061
    %v5075 = vmul.f32 %v5065, %v5062
    %v5076 = vmul.f32 %v5065, %v5063
    %v5077 = vmul.f32 %v5065, %v5064
    %v5078 = vadd.f32 %v5040, %v5066
    %v5079 = vadd.f32 %v5041, %v5067
    %v5080 = vadd.f32 %v5042, %v5068
    %v5081 = vadd.f32 %v5043, %v5069
    %v5082 = vadd.f32 %v5044, %v5070
    %v5083 = vadd.f32 %v5045, %v5071
    %v5084 = vadd.f32 %v5046, %v5072
    %v5085 = vadd.f32 %v5047, %v5073
    %v5086 = vadd.f32 %v5048, %v5074
    %v5087 = vadd.f32 %v5049, %v5075
    %v5088 = vadd.f32 %v5050, %v5076
    %v5089 = vadd.f32 %v5051, %v5077
    %5090 = vmatprep.subr.mxu0 0.0
    %5091 = vmatpush1.msra.mxu0 0.0
    %5092 = vmatprep.subr.mxu0 0.0
    %5093 = vmatpush1.msra.mxu0 0.0
    %5094 = vmatprep.subr.mxu0 0.0
    %5095 = vmatpush1.msra.mxu0 0.0
    %5096 = vmatprep.subr.mxu0 0.0
    %5097 = vmatpush1.msra.mxu0 0.0
    %5098 = vmatprep.subr.mxu0 0.0
    %5099 = vmatpush1.msra.mxu0 0.0
    %5100 = vmatprep.subr.mxu0 0.0
    %5101 = vmatpush1.msra.mxu0 0.0
    %5102 = vmatprep.subr.mxu0 0.0
    %5103 = vmatpush1.msra.mxu0 0.0
    %5104 = vmatprep.subr.mxu0 0.0
    %5105 = vmatpush1.msra.mxu0 0.0
    %5106 = vmatprep.subr.mxu0 0.0
    %5107 = vmatpush1.msra.mxu0 0.0
    %5108 = vmatprep.subr.mxu0 0.0
    %5109 = vmatpush1.msra.mxu0 0.0
    %5110 = vmatprep.subr.mxu0 0.0
    %5111 = vmatpush1.msra.mxu0 0.0
    %5112 = vmatprep.subr.mxu0 0.0
    %5113 = vmatpush1.msra.mxu0 0.0
    %5114 = vmatprep.subr.mxu0 0.0
    %5115 = vmatpush1.msra.mxu0 0.0
    %5116 = vmatprep.subr.mxu0 %v5087
    %5117 = vmatpush1.msra.mxu0 %v5086
    %5118 = vmatprep.subr.mxu0 %v5083
    %5119 = vmatpush1.msra.mxu0 %v5082
    %5120 = vmatprep.subr.mxu0 %v5079
    %5121 = vmatpush1.msra.mxu0 %v5078
    %5122 = vmatprep.subr.mxu0 0.0
    %5123 = vmatpush2.msra.mxu0 0.0
    %5124 = vmatprep.subr.mxu0 0.0
    %5125 = vmatpush2.msra.mxu0 0.0
    %5126 = vmatprep.subr.mxu0 0.0
    %5127 = vmatpush2.msra.mxu0 0.0
    %5128 = vmatprep.subr.mxu0 0.0
    %5129 = vmatpush2.msra.mxu0 0.0
    %5130 = vmatprep.subr.mxu0 0.0
    %5131 = vmatpush2.msra.mxu0 0.0
    %5132 = vmatprep.subr.mxu0 0.0
    %5133 = vmatpush2.msra.mxu0 0.0
    %5134 = vmatprep.subr.mxu0 0.0
    %5135 = vmatpush2.msra.mxu0 0.0
    %5136 = vmatprep.subr.mxu0 0.0
    %5137 = vmatpush2.msra.mxu0 0.0
    %5138 = vmatprep.subr.mxu0 0.0
    %5139 = vmatpush2.msra.mxu0 0.0
    %5140 = vmatprep.subr.mxu0 0.0
    %5141 = vmatpush2.msra.mxu0 0.0
    %5142 = vmatprep.subr.mxu0 0.0
    %5143 = vmatpush2.msra.mxu0 0.0
    %5144 = vmatprep.subr.mxu0 0.0
    %5145 = vmatpush2.msra.mxu0 0.0
    %5146 = vmatprep.subr.mxu0 0.0
    %5147 = vmatpush2.msra.mxu0 0.0
    %5148 = vmatprep.subr.mxu0 0.0
    %5149 = vmatpush2.msra.mxu0 0.0
    %5150 = vmatprep.subr.mxu0 0.0
    %5151 = vmatpush2.msra.mxu0 0.0
    %5152 = vmatprep.subr.mxu0 0.0
    %5153 = vmatpush2.msra.mxu0 0.0
    %5154 = vmatprep.mubr.f32.mxu0 0.0
    %5155 = vmatmul.mubr.f32.gmra.mxu0 %v292
    %v5156 = vpop.f32.mrf.mxu0
    %v5157 = vadd.f32 %v191, %v5156
    %v5158 = vpop.f32.mrf.mxu0
    %v5159 = vadd.f32 %v193, %v5158
    %5160 = vmatprep.mubr.f32.mxu0 0.0
    %5161 = vmatmul.mubr.f32.gmra.mxu0 %v295
    %v5162 = vpop.f32.mrf.mxu0
    %v5163 = vadd.f32 %v197, %v5162
    %v5164 = vpop.f32.mrf.mxu0
    %v5165 = vadd.f32 %v199, %v5164
    %5166 = vmatprep.mubr.f32.mxu0 0.0
    %5167 = vmatmul.mubr.f32.gmra.mxu0 %v298
    %v5168 = vpop.f32.mrf.mxu0
    %v5169 = vadd.f32 %v203, %v5168
    %v5170 = vpop.f32.mrf.mxu0
    %v5171 = vadd.f32 %v205, %v5170
    %5172 = vdwg.mxu0
    %5173 = vmatprep.subr.mxu0 0.0
    %5174 = vmatpush1.msra.mxu0 0.0
    %5175 = vmatprep.subr.mxu0 0.0
    %5176 = vmatpush1.msra.mxu0 0.0
    %5177 = vmatprep.subr.mxu0 0.0
    %5178 = vmatpush1.msra.mxu0 0.0
    %5179 = vmatprep.subr.mxu0 0.0
    %5180 = vmatpush1.msra.mxu0 0.0
    %5181 = vmatprep.subr.mxu0 0.0
    %5182 = vmatpush1.msra.mxu0 0.0
    %5183 = vmatprep.subr.mxu0 0.0
    %5184 = vmatpush1.msra.mxu0 0.0
    %5185 = vmatprep.subr.mxu0 0.0
    %5186 = vmatpush1.msra.mxu0 0.0
    %5187 = vmatprep.subr.mxu0 0.0
    %5188 = vmatpush1.msra.mxu0 0.0
    %5189 = vmatprep.subr.mxu0 0.0
    %5190 = vmatpush1.msra.mxu0 0.0
    %5191 = vmatprep.subr.mxu0 0.0
    %5192 = vmatpush1.msra.mxu0 0.0
    %5193 = vmatprep.subr.mxu0 0.0
    %5194 = vmatpush1.msra.mxu0 0.0
    %5195 = vmatprep.subr.mxu0 0.0
    %5196 = vmatpush1.msra.mxu0 0.0
    %5197 = vmatprep.subr.mxu0 0.0
    %5198 = vmatpush1.msra.mxu0 0.0
    %5199 = vmatprep.subr.mxu0 %v5089
    %5200 = vmatpush1.msra.mxu0 %v5088
    %5201 = vmatprep.subr.mxu0 %v5085
    %5202 = vmatpush1.msra.mxu0 %v5084
    %5203 = vmatprep.subr.mxu0 %v5081
    %5204 = vmatpush1.msra.mxu0 %v5080
    %5205 = vmatprep.subr.mxu0 0.0
    %5206 = vmatpush2.msra.mxu0 0.0
    %5207 = vmatprep.subr.mxu0 0.0
    %5208 = vmatpush2.msra.mxu0 0.0
    %5209 = vmatprep.subr.mxu0 0.0
    %5210 = vmatpush2.msra.mxu0 0.0
    %5211 = vmatprep.subr.mxu0 0.0
    %5212 = vmatpush2.msra.mxu0 0.0
    %5213 = vmatprep.subr.mxu0 0.0
    %5214 = vmatpush2.msra.mxu0 0.0
    %5215 = vmatprep.subr.mxu0 0.0
    %5216 = vmatpush2.msra.mxu0 0.0
    %5217 = vmatprep.subr.mxu0 0.0
    %5218 = vmatpush2.msra.mxu0 0.0
    %5219 = vmatprep.subr.mxu0 0.0
    %5220 = vmatpush2.msra.mxu0 0.0
    %5221 = vmatprep.subr.mxu0 0.0
    %5222 = vmatpush2.msra.mxu0 0.0
    %5223 = vmatprep.subr.mxu0 0.0
    %5224 = vmatpush2.msra.mxu0 0.0
    %5225 = vmatprep.subr.mxu0 0.0
    %5226 = vmatpush2.msra.mxu0 0.0
    %5227 = vmatprep.subr.mxu0 0.0
    %5228 = vmatpush2.msra.mxu0 0.0
    %5229 = vmatprep.subr.mxu0 0.0
    %5230 = vmatpush2.msra.mxu0 0.0
    %5231 = vmatprep.subr.mxu0 0.0
    %5232 = vmatpush2.msra.mxu0 0.0
    %5233 = vmatprep.subr.mxu0 0.0
    %5234 = vmatpush2.msra.mxu0 0.0
    %5235 = vmatprep.subr.mxu0 0.0
    %5236 = vmatpush2.msra.mxu0 0.0
    %5237 = vmatprep.mubr.f32.mxu0 0.0
    %5238 = vmatmul.mubr.f32.gmra.mxu0 %v292
    %v5239 = vpop.f32.mrf.mxu0
    %v5240 = vadd.f32 %v274, %v5239
    %v5241 = vpop.f32.mrf.mxu0
    %v5242 = vadd.f32 %v276, %v5241
    %5243 = vmatprep.mubr.f32.mxu0 0.0
    %5244 = vmatmul.mubr.f32.gmra.mxu0 %v295
    %v5245 = vpop.f32.mrf.mxu0
    %v5246 = vadd.f32 %v280, %v5245
    %v5247 = vpop.f32.mrf.mxu0
    %v5248 = vadd.f32 %v282, %v5247
    %5249 = vmatprep.mubr.f32.mxu0 0.0
    %5250 = vmatmul.mubr.f32.gmra.mxu0 %v298
    %v5251 = vpop.f32.mrf.mxu0
    %v5252 = vadd.f32 %v286, %v5251
    %v5253 = vpop.f32.mrf.mxu0
    %v5254 = vadd.f32 %v288, %v5253
    %5255 = vdwg.mxu0
    %v5256 = vmax.f32 %v466, %v5157
    %v5257 = vmax.f32 %v466, %v5159
    %v5258 = vmax.f32 %v466, %v5240
    %v5259 = vmax.f32 %v466, %v5242
    %v5260 = vmax.f32 %v466, %v5163
    %v5261 = vmax.f32 %v466, %v5165
    %v5262 = vmax.f32 %v466, %v5246
    %v5263 = vmax.f32 %v466, %v5248
    %v5264 = vmax.f32 %v466, %v5169
    %v5265 = vmax.f32 %v466, %v5171
    %v5266 = vmax.f32 %v466, %v5252
    %v5267 = vmax.f32 %v466, %v5254
    %v5268 = vmin.f32 %v479, %v5256
    %v5269 = vmin.f32 %v479, %v5257
    %v5270 = vmin.f32 %v479, %v5258
    %v5271 = vmin.f32 %v479, %v5259
    %v5272 = vmin.f32 %v479, %v5260
    %v5273 = vmin.f32 %v479, %v5261
    %v5274 = vmin.f32 %v479, %v5262
    %v5275 = vmin.f32 %v479, %v5263
    %v5276 = vmin.f32 %v479, %v5264
    %v5277 = vmin.f32 %v479, %v5265
    %v5278 = vmin.f32 %v479, %v5266
    %v5279 = vmin.f32 %v479, %v5267
    %v5280 = vsub.f32 %v5157, %v5268
    %v5281 = vsub.f32 %v5159, %v5269
    %v5282 = vsub.f32 %v5240, %v5270
    %v5283 = vsub.f32 %v5242, %v5271
    %v5284 = vsub.f32 %v5163, %v5272
    %v5285 = vsub.f32 %v5165, %v5273
    %v5286 = vsub.f32 %v5246, %v5274
    %v5287 = vsub.f32 %v5248, %v5275
    %v5288 = vsub.f32 %v5169, %v5276
    %v5289 = vsub.f32 %v5171, %v5277
    %v5290 = vsub.f32 %v5252, %v5278
    %v5291 = vsub.f32 %v5254, %v5279
    %s5292 = sld [smem:[#allocation3 + $0x14]]
    %v5293 = vsub.f32 %v5280, %v5040
    %v5294 = vsub.f32 %v5281, %v5041
    %v5295 = vsub.f32 %v5282, %v5042
    %v5296 = vsub.f32 %v5283, %v5043
    %v5297 = vsub.f32 %v5284, %v5044
    %v5298 = vsub.f32 %v5285, %v5045
    %v5299 = vsub.f32 %v5286, %v5046
    %v5300 = vsub.f32 %v5287, %v5047
    %v5301 = vsub.f32 %v5288, %v5048
    %v5302 = vsub.f32 %v5289, %v5049
    %v5303 = vsub.f32 %v5290, %v5050
    %v5304 = vsub.f32 %v5291, %v5051
    %v5305 = vstv %s5292
    %v5306 = vmul.f32 %v5305, %v5293
    %v5307 = vmul.f32 %v5305, %v5294
    %v5308 = vmul.f32 %v5305, %v5295
    %v5309 = vmul.f32 %v5305, %v5296
    %v5310 = vmul.f32 %v5305, %v5297
    %v5311 = vmul.f32 %v5305, %v5298
    %v5312 = vmul.f32 %v5305, %v5299
    %v5313 = vmul.f32 %v5305, %v5300
    %v5314 = vmul.f32 %v5305, %v5301
    %v5315 = vmul.f32 %v5305, %v5302
    %v5316 = vmul.f32 %v5305, %v5303
    %v5317 = vmul.f32 %v5305, %v5304
    %v5318 = vadd.f32 %v5280, %v5306
    %v5319 = vadd.f32 %v5281, %v5307
    %v5320 = vadd.f32 %v5282, %v5308
    %v5321 = vadd.f32 %v5283, %v5309
    %v5322 = vadd.f32 %v5284, %v5310
    %v5323 = vadd.f32 %v5285, %v5311
    %v5324 = vadd.f32 %v5286, %v5312
    %v5325 = vadd.f32 %v5287, %v5313
    %v5326 = vadd.f32 %v5288, %v5314
    %v5327 = vadd.f32 %v5289, %v5315
    %v5328 = vadd.f32 %v5290, %v5316
    %v5329 = vadd.f32 %v5291, %v5317
    %5330 = vmatprep.subr.mxu0 0.0
    %5331 = vmatpush1.msra.mxu0 0.0
    %5332 = vmatprep.subr.mxu0 0.0
    %5333 = vmatpush1.msra.mxu0 0.0
    %5334 = vmatprep.subr.mxu0 0.0
    %5335 = vmatpush1.msra.mxu0 0.0
    %5336 = vmatprep.subr.mxu0 0.0
    %5337 = vmatpush1.msra.mxu0 0.0
    %5338 = vmatprep.subr.mxu0 0.0
    %5339 = vmatpush1.msra.mxu0 0.0
    %5340 = vmatprep.subr.mxu0 0.0
    %5341 = vmatpush1.msra.mxu0 0.0
    %5342 = vmatprep.subr.mxu0 0.0
    %5343 = vmatpush1.msra.mxu0 0.0
    %5344 = vmatprep.subr.mxu0 0.0
    %5345 = vmatpush1.msra.mxu0 0.0
    %5346 = vmatprep.subr.mxu0 0.0
    %5347 = vmatpush1.msra.mxu0 0.0
    %5348 = vmatprep.subr.mxu0 0.0
    %5349 = vmatpush1.msra.mxu0 0.0
    %5350 = vmatprep.subr.mxu0 0.0
    %5351 = vmatpush1.msra.mxu0 0.0
    %5352 = vmatprep.subr.mxu0 0.0
    %5353 = vmatpush1.msra.mxu0 0.0
    %5354 = vmatprep.subr.mxu0 0.0
    %5355 = vmatpush1.msra.mxu0 0.0
    %5356 = vmatprep.subr.mxu0 %v5327
    %5357 = vmatpush1.msra.mxu0 %v5326
    %5358 = vmatprep.subr.mxu0 %v5323
    %5359 = vmatpush1.msra.mxu0 %v5322
    %5360 = vmatprep.subr.mxu0 %v5319
    %5361 = vmatpush1.msra.mxu0 %v5318
    %5362 = vmatprep.subr.mxu0 0.0
    %5363 = vmatpush2.msra.mxu0 0.0
    %5364 = vmatprep.subr.mxu0 0.0
    %5365 = vmatpush2.msra.mxu0 0.0
    %5366 = vmatprep.subr.mxu0 0.0
    %5367 = vmatpush2.msra.mxu0 0.0
    %5368 = vmatprep.subr.mxu0 0.0
    %5369 = vmatpush2.msra.mxu0 0.0
    %5370 = vmatprep.subr.mxu0 0.0
    %5371 = vmatpush2.msra.mxu0 0.0
    %5372 = vmatprep.subr.mxu0 0.0
    %5373 = vmatpush2.msra.mxu0 0.0
    %5374 = vmatprep.subr.mxu0 0.0
    %5375 = vmatpush2.msra.mxu0 0.0
    %5376 = vmatprep.subr.mxu0 0.0
    %5377 = vmatpush2.msra.mxu0 0.0
    %5378 = vmatprep.subr.mxu0 0.0
    %5379 = vmatpush2.msra.mxu0 0.0
    %5380 = vmatprep.subr.mxu0 0.0
    %5381 = vmatpush2.msra.mxu0 0.0
    %5382 = vmatprep.subr.mxu0 0.0
    %5383 = vmatpush2.msra.mxu0 0.0
    %5384 = vmatprep.subr.mxu0 0.0
    %5385 = vmatpush2.msra.mxu0 0.0
    %5386 = vmatprep.subr.mxu0 0.0
    %5387 = vmatpush2.msra.mxu0 0.0
    %5388 = vmatprep.subr.mxu0 0.0
    %5389 = vmatpush2.msra.mxu0 0.0
    %5390 = vmatprep.subr.mxu0 0.0
    %5391 = vmatpush2.msra.mxu0 0.0
    %5392 = vmatprep.subr.mxu0 0.0
    %5393 = vmatpush2.msra.mxu0 0.0
    %5394 = vmatprep.mubr.f32.mxu0 0.0
    %5395 = vmatmul.mubr.f32.gmra.mxu0 %v292
    %v5396 = vpop.f32.mrf.mxu0
    %v5397 = vadd.f32 %v191, %v5396
    %v5398 = vpop.f32.mrf.mxu0
    %v5399 = vadd.f32 %v193, %v5398
    %5400 = vmatprep.mubr.f32.mxu0 0.0
    %5401 = vmatmul.mubr.f32.gmra.mxu0 %v295
    %v5402 = vpop.f32.mrf.mxu0
    %v5403 = vadd.f32 %v197, %v5402
    %v5404 = vpop.f32.mrf.mxu0
    %v5405 = vadd.f32 %v199, %v5404
    %5406 = vmatprep.mubr.f32.mxu0 0.0
    %5407 = vmatmul.mubr.f32.gmra.mxu0 %v298
    %v5408 = vpop.f32.mrf.mxu0
    %v5409 = vadd.f32 %v203, %v5408
    %v5410 = vpop.f32.mrf.mxu0
    %v5411 = vadd.f32 %v205, %v5410
    %5412 = vdwg.mxu0
    %5413 = vmatprep.subr.mxu0 0.0
    %5414 = vmatpush1.msra.mxu0 0.0
    %5415 = vmatprep.subr.mxu0 0.0
    %5416 = vmatpush1.msra.mxu0 0.0
    %5417 = vmatprep.subr.mxu0 0.0
    %5418 = vmatpush1.msra.mxu0 0.0
    %5419 = vmatprep.subr.mxu0 0.0
    %5420 = vmatpush1.msra.mxu0 0.0
    %5421 = vmatprep.subr.mxu0 0.0
    %5422 = vmatpush1.msra.mxu0 0.0
    %5423 = vmatprep.subr.mxu0 0.0
    %5424 = vmatpush1.msra.mxu0 0.0
    %5425 = vmatprep.subr.mxu0 0.0
    %5426 = vmatpush1.msra.mxu0 0.0
    %5427 = vmatprep.subr.mxu0 0.0
    %5428 = vmatpush1.msra.mxu0 0.0
    %5429 = vmatprep.subr.mxu0 0.0
    %5430 = vmatpush1.msra.mxu0 0.0
    %5431 = vmatprep.subr.mxu0 0.0
    %5432 = vmatpush1.msra.mxu0 0.0
    %5433 = vmatprep.subr.mxu0 0.0
    %5434 = vmatpush1.msra.mxu0 0.0
    %5435 = vmatprep.subr.mxu0 0.0
    %5436 = vmatpush1.msra.mxu0 0.0
    %5437 = vmatprep.subr.mxu0 0.0
    %5438 = vmatpush1.msra.mxu0 0.0
    %5439 = vmatprep.subr.mxu0 %v5329
    %5440 = vmatpush1.msra.mxu0 %v5328
    %5441 = vmatprep.subr.mxu0 %v5325
    %5442 = vmatpush1.msra.mxu0 %v5324
    %5443 = vmatprep.subr.mxu0 %v5321
    %5444 = vmatpush1.msra.mxu0 %v5320
    %5445 = vmatprep.subr.mxu0 0.0
    %5446 = vmatpush2.msra.mxu0 0.0
    %5447 = vmatprep.subr.mxu0 0.0
    %5448 = vmatpush2.msra.mxu0 0.0
    %5449 = vmatprep.subr.mxu0 0.0
    %5450 = vmatpush2.msra.mxu0 0.0
    %5451 = vmatprep.subr.mxu0 0.0
    %5452 = vmatpush2.msra.mxu0 0.0
    %5453 = vmatprep.subr.mxu0 0.0
    %5454 = vmatpush2.msra.mxu0 0.0
    %5455 = vmatprep.subr.mxu0 0.0
    %5456 = vmatpush2.msra.mxu0 0.0
    %5457 = vmatprep.subr.mxu0 0.0
    %5458 = vmatpush2.msra.mxu0 0.0
    %5459 = vmatprep.subr.mxu0 0.0
    %5460 = vmatpush2.msra.mxu0 0.0
    %5461 = vmatprep.subr.mxu0 0.0
    %5462 = vmatpush2.msra.mxu0 0.0
    %5463 = vmatprep.subr.mxu0 0.0
    %5464 = vmatpush2.msra.mxu0 0.0
    %5465 = vmatprep.subr.mxu0 0.0
    %5466 = vmatpush2.msra.mxu0 0.0
    %5467 = vmatprep.subr.mxu0 0.0
    %5468 = vmatpush2.msra.mxu0 0.0
    %5469 = vmatprep.subr.mxu0 0.0
    %5470 = vmatpush2.msra.mxu0 0.0
    %5471 = vmatprep.subr.mxu0 0.0
    %5472 = vmatpush2.msra.mxu0 0.0
    %5473 = vmatprep.subr.mxu0 0.0
    %5474 = vmatpush2.msra.mxu0 0.0
    %5475 = vmatprep.subr.mxu0 0.0
    %5476 = vmatpush2.msra.mxu0 0.0
    %5477 = vmatprep.mubr.f32.mxu0 0.0
    %5478 = vmatmul.mubr.f32.gmra.mxu0 %v292
    %v5479 = vpop.f32.mrf.mxu0
    %v5480 = vadd.f32 %v274, %v5479
    %v5481 = vpop.f32.mrf.mxu0
    %v5482 = vadd.f32 %v276, %v5481
    %5483 = vmatprep.mubr.f32.mxu0 0.0
    %5484 = vmatmul.mubr.f32.gmra.mxu0 %v295
    %v5485 = vpop.f32.mrf.mxu0
    %v5486 = vadd.f32 %v280, %v5485
    %v5487 = vpop.f32.mrf.mxu0
    %v5488 = vadd.f32 %v282, %v5487
    %5489 = vmatprep.mubr.f32.mxu0 0.0
    %5490 = vmatmul.mubr.f32.gmra.mxu0 %v298
    %v5491 = vpop.f32.mrf.mxu0
    %v5492 = vadd.f32 %v286, %v5491
    %v5493 = vpop.f32.mrf.mxu0
    %v5494 = vadd.f32 %v288, %v5493
    %5495 = vdwg.mxu0
    %v5496 = vmax.f32 %v466, %v5397
    %v5497 = vmax.f32 %v466, %v5399
    %v5498 = vmax.f32 %v466, %v5480
    %v5499 = vmax.f32 %v466, %v5482
    %v5500 = vmax.f32 %v466, %v5403
    %v5501 = vmax.f32 %v466, %v5405
    %v5502 = vmax.f32 %v466, %v5486
    %v5503 = vmax.f32 %v466, %v5488
    %v5504 = vmax.f32 %v466, %v5409
    %v5505 = vmax.f32 %v466, %v5411
    %v5506 = vmax.f32 %v466, %v5492
    %v5507 = vmax.f32 %v466, %v5494
    %v5508 = vmin.f32 %v479, %v5496
    %v5509 = vmin.f32 %v479, %v5497
    %v5510 = vmin.f32 %v479, %v5498
    %v5511 = vmin.f32 %v479, %v5499
    %v5512 = vmin.f32 %v479, %v5500
    %v5513 = vmin.f32 %v479, %v5501
    %v5514 = vmin.f32 %v479, %v5502
    %v5515 = vmin.f32 %v479, %v5503
    %v5516 = vmin.f32 %v479, %v5504
    %v5517 = vmin.f32 %v479, %v5505
    %v5518 = vmin.f32 %v479, %v5506
    %v5519 = vmin.f32 %v479, %v5507
    %v5520 = vsub.f32 %v5397, %v5508
    %v5521 = vsub.f32 %v5399, %v5509
    %v5522 = vsub.f32 %v5480, %v5510
    %v5523 = vsub.f32 %v5482, %v5511
    %v5524 = vsub.f32 %v5403, %v5512
    %v5525 = vsub.f32 %v5405, %v5513
    %v5526 = vsub.f32 %v5486, %v5514
    %v5527 = vsub.f32 %v5488, %v5515
    %v5528 = vsub.f32 %v5409, %v5516
    %v5529 = vsub.f32 %v5411, %v5517
    %v5530 = vsub.f32 %v5492, %v5518
    %v5531 = vsub.f32 %v5494, %v5519
    %s5532 = sld [smem:[#allocation3 + $0x15]]
    %v5533 = vsub.f32 %v5520, %v5280
    %v5534 = vsub.f32 %v5521, %v5281
    %v5535 = vsub.f32 %v5522, %v5282
    %v5536 = vsub.f32 %v5523, %v5283
    %v5537 = vsub.f32 %v5524, %v5284
    %v5538 = vsub.f32 %v5525, %v5285
    %v5539 = vsub.f32 %v5526, %v5286
    %v5540 = vsub.f32 %v5527, %v5287
    %v5541 = vsub.f32 %v5528, %v5288
    %v5542 = vsub.f32 %v5529, %v5289
    %v5543 = vsub.f32 %v5530, %v5290
    %v5544 = vsub.f32 %v5531, %v5291
    %v5545 = vstv %s5532
    %v5546 = vmul.f32 %v5545, %v5533
    %v5547 = vmul.f32 %v5545, %v5534
    %v5548 = vmul.f32 %v5545, %v5535
    %v5549 = vmul.f32 %v5545, %v5536
    %v5550 = vmul.f32 %v5545, %v5537
    %v5551 = vmul.f32 %v5545, %v5538
    %v5552 = vmul.f32 %v5545, %v5539
    %v5553 = vmul.f32 %v5545, %v5540
    %v5554 = vmul.f32 %v5545, %v5541
    %v5555 = vmul.f32 %v5545, %v5542
    %v5556 = vmul.f32 %v5545, %v5543
    %v5557 = vmul.f32 %v5545, %v5544
    %v5558 = vadd.f32 %v5520, %v5546
    %v5559 = vadd.f32 %v5521, %v5547
    %v5560 = vadd.f32 %v5522, %v5548
    %v5561 = vadd.f32 %v5523, %v5549
    %v5562 = vadd.f32 %v5524, %v5550
    %v5563 = vadd.f32 %v5525, %v5551
    %v5564 = vadd.f32 %v5526, %v5552
    %v5565 = vadd.f32 %v5527, %v5553
    %v5566 = vadd.f32 %v5528, %v5554
    %v5567 = vadd.f32 %v5529, %v5555
    %v5568 = vadd.f32 %v5530, %v5556
    %v5569 = vadd.f32 %v5531, %v5557
    %5570 = vmatprep.subr.mxu0 0.0
    %5571 = vmatpush1.msra.mxu0 0.0
    %5572 = vmatprep.subr.mxu0 0.0
    %5573 = vmatpush1.msra.mxu0 0.0
    %5574 = vmatprep.subr.mxu0 0.0
    %5575 = vmatpush1.msra.mxu0 0.0
    %5576 = vmatprep.subr.mxu0 0.0
    %5577 = vmatpush1.msra.mxu0 0.0
    %5578 = vmatprep.subr.mxu0 0.0
    %5579 = vmatpush1.msra.mxu0 0.0
    %5580 = vmatprep.subr.mxu0 0.0
    %5581 = vmatpush1.msra.mxu0 0.0
    %5582 = vmatprep.subr.mxu0 0.0
    %5583 = vmatpush1.msra.mxu0 0.0
    %5584 = vmatprep.subr.mxu0 0.0
    %5585 = vmatpush1.msra.mxu0 0.0
    %5586 = vmatprep.subr.mxu0 0.0
    %5587 = vmatpush1.msra.mxu0 0.0
    %5588 = vmatprep.subr.mxu0 0.0
    %5589 = vmatpush1.msra.mxu0 0.0
    %5590 = vmatprep.subr.mxu0 0.0
    %5591 = vmatpush1.msra.mxu0 0.0
    %5592 = vmatprep.subr.mxu0 0.0
    %5593 = vmatpush1.msra.mxu0 0.0
    %5594 = vmatprep.subr.mxu0 0.0
    %5595 = vmatpush1.msra.mxu0 0.0
    %5596 = vmatprep.subr.mxu0 %v5567
    %5597 = vmatpush1.msra.mxu0 %v5566
    %5598 = vmatprep.subr.mxu0 %v5563
    %5599 = vmatpush1.msra.mxu0 %v5562
    %5600 = vmatprep.subr.mxu0 %v5559
    %5601 = vmatpush1.msra.mxu0 %v5558
    %5602 = vmatprep.subr.mxu0 0.0
    %5603 = vmatpush2.msra.mxu0 0.0
    %5604 = vmatprep.subr.mxu0 0.0
    %5605 = vmatpush2.msra.mxu0 0.0
    %5606 = vmatprep.subr.mxu0 0.0
    %5607 = vmatpush2.msra.mxu0 0.0
    %5608 = vmatprep.subr.mxu0 0.0
    %5609 = vmatpush2.msra.mxu0 0.0
    %5610 = vmatprep.subr.mxu0 0.0
    %5611 = vmatpush2.msra.mxu0 0.0
    %5612 = vmatprep.subr.mxu0 0.0
    %5613 = vmatpush2.msra.mxu0 0.0
    %5614 = vmatprep.subr.mxu0 0.0
    %5615 = vmatpush2.msra.mxu0 0.0
    %5616 = vmatprep.subr.mxu0 0.0
    %5617 = vmatpush2.msra.mxu0 0.0
    %5618 = vmatprep.subr.mxu0 0.0
    %5619 = vmatpush2.msra.mxu0 0.0
    %5620 = vmatprep.subr.mxu0 0.0
    %5621 = vmatpush2.msra.mxu0 0.0
    %5622 = vmatprep.subr.mxu0 0.0
    %5623 = vmatpush2.msra.mxu0 0.0
    %5624 = vmatprep.subr.mxu0 0.0
    %5625 = vmatpush2.msra.mxu0 0.0
    %5626 = vmatprep.subr.mxu0 0.0
    %5627 = vmatpush2.msra.mxu0 0.0
    %5628 = vmatprep.subr.mxu0 0.0
    %5629 = vmatpush2.msra.mxu0 0.0
    %5630 = vmatprep.subr.mxu0 0.0
    %5631 = vmatpush2.msra.mxu0 0.0
    %5632 = vmatprep.subr.mxu0 0.0
    %5633 = vmatpush2.msra.mxu0 0.0
    %5634 = vmatprep.mubr.f32.mxu0 0.0
    %5635 = vmatmul.mubr.f32.gmra.mxu0 %v292
    %v5636 = vpop.f32.mrf.mxu0
    %v5637 = vadd.f32 %v191, %v5636
    %v5638 = vpop.f32.mrf.mxu0
    %v5639 = vadd.f32 %v193, %v5638
    %5640 = vmatprep.mubr.f32.mxu0 0.0
    %5641 = vmatmul.mubr.f32.gmra.mxu0 %v295
    %v5642 = vpop.f32.mrf.mxu0
    %v5643 = vadd.f32 %v197, %v5642
    %v5644 = vpop.f32.mrf.mxu0
    %v5645 = vadd.f32 %v199, %v5644
    %5646 = vmatprep.mubr.f32.mxu0 0.0
    %5647 = vmatmul.mubr.f32.gmra.mxu0 %v298
    %v5648 = vpop.f32.mrf.mxu0
    %v5649 = vadd.f32 %v203, %v5648
    %v5650 = vpop.f32.mrf.mxu0
    %v5651 = vadd.f32 %v205, %v5650
    %5652 = vdwg.mxu0
    %5653 = vmatprep.subr.mxu0 0.0
    %5654 = vmatpush1.msra.mxu0 0.0
    %5655 = vmatprep.subr.mxu0 0.0
    %5656 = vmatpush1.msra.mxu0 0.0
    %5657 = vmatprep.subr.mxu0 0.0
    %5658 = vmatpush1.msra.mxu0 0.0
    %5659 = vmatprep.subr.mxu0 0.0
    %5660 = vmatpush1.msra.mxu0 0.0
    %5661 = vmatprep.subr.mxu0 0.0
    %5662 = vmatpush1.msra.mxu0 0.0
    %5663 = vmatprep.subr.mxu0 0.0
    %5664 = vmatpush1.msra.mxu0 0.0
    %5665 = vmatprep.subr.mxu0 0.0
    %5666 = vmatpush1.msra.mxu0 0.0
    %5667 = vmatprep.subr.mxu0 0.0
    %5668 = vmatpush1.msra.mxu0 0.0
    %5669 = vmatprep.subr.mxu0 0.0
    %5670 = vmatpush1.msra.mxu0 0.0
    %5671 = vmatprep.subr.mxu0 0.0
    %5672 = vmatpush1.msra.mxu0 0.0
    %5673 = vmatprep.subr.mxu0 0.0
    %5674 = vmatpush1.msra.mxu0 0.0
    %5675 = vmatprep.subr.mxu0 0.0
    %5676 = vmatpush1.msra.mxu0 0.0
    %5677 = vmatprep.subr.mxu0 0.0
    %5678 = vmatpush1.msra.mxu0 0.0
    %5679 = vmatprep.subr.mxu0 %v5569
    %5680 = vmatpush1.msra.mxu0 %v5568
    %5681 = vmatprep.subr.mxu0 %v5565
    %5682 = vmatpush1.msra.mxu0 %v5564
    %5683 = vmatprep.subr.mxu0 %v5561
    %5684 = vmatpush1.msra.mxu0 %v5560
    %5685 = vmatprep.subr.mxu0 0.0
    %5686 = vmatpush2.msra.mxu0 0.0
    %5687 = vmatprep.subr.mxu0 0.0
    %5688 = vmatpush2.msra.mxu0 0.0
    %5689 = vmatprep.subr.mxu0 0.0
    %5690 = vmatpush2.msra.mxu0 0.0
    %5691 = vmatprep.subr.mxu0 0.0
    %5692 = vmatpush2.msra.mxu0 0.0
    %5693 = vmatprep.subr.mxu0 0.0
    %5694 = vmatpush2.msra.mxu0 0.0
    %5695 = vmatprep.subr.mxu0 0.0
    %5696 = vmatpush2.msra.mxu0 0.0
    %5697 = vmatprep.subr.mxu0 0.0
    %5698 = vmatpush2.msra.mxu0 0.0
    %5699 = vmatprep.subr.mxu0 0.0
    %5700 = vmatpush2.msra.mxu0 0.0
    %5701 = vmatprep.subr.mxu0 0.0
    %5702 = vmatpush2.msra.mxu0 0.0
    %5703 = vmatprep.subr.mxu0 0.0
    %5704 = vmatpush2.msra.mxu0 0.0
    %5705 = vmatprep.subr.mxu0 0.0
    %5706 = vmatpush2.msra.mxu0 0.0
    %5707 = vmatprep.subr.mxu0 0.0
    %5708 = vmatpush2.msra.mxu0 0.0
    %5709 = vmatprep.subr.mxu0 0.0
    %5710 = vmatpush2.msra.mxu0 0.0
    %5711 = vmatprep.subr.mxu0 0.0
    %5712 = vmatpush2.msra.mxu0 0.0
    %5713 = vmatprep.subr.mxu0 0.0
    %5714 = vmatpush2.msra.mxu0 0.0
    %5715 = vmatprep.subr.mxu0 0.0
    %5716 = vmatpush2.msra.mxu0 0.0
    %5717 = vmatprep.mubr.f32.mxu0 0.0
    %5718 = vmatmul.mubr.f32.gmra.mxu0 %v292
    %v5719 = vpop.f32.mrf.mxu0
    %v5720 = vadd.f32 %v274, %v5719
    %v5721 = vpop.f32.mrf.mxu0
    %v5722 = vadd.f32 %v276, %v5721
    %5723 = vmatprep.mubr.f32.mxu0 0.0
    %5724 = vmatmul.mubr.f32.gmra.mxu0 %v295
    %v5725 = vpop.f32.mrf.mxu0
    %v5726 = vadd.f32 %v280, %v5725
    %v5727 = vpop.f32.mrf.mxu0
    %v5728 = vadd.f32 %v282, %v5727
    %5729 = vmatprep.mubr.f32.mxu0 0.0
    %5730 = vmatmul.mubr.f32.gmra.mxu0 %v298
    %v5731 = vpop.f32.mrf.mxu0
    %v5732 = vadd.f32 %v286, %v5731
    %v5733 = vpop.f32.mrf.mxu0
    %v5734 = vadd.f32 %v288, %v5733
    %5735 = vdwg.mxu0
    %v5736 = vmax.f32 %v466, %v5637
    %v5737 = vmax.f32 %v466, %v5639
    %v5738 = vmax.f32 %v466, %v5720
    %v5739 = vmax.f32 %v466, %v5722
    %v5740 = vmax.f32 %v466, %v5643
    %v5741 = vmax.f32 %v466, %v5645
    %v5742 = vmax.f32 %v466, %v5726
    %v5743 = vmax.f32 %v466, %v5728
    %v5744 = vmax.f32 %v466, %v5649
    %v5745 = vmax.f32 %v466, %v5651
    %v5746 = vmax.f32 %v466, %v5732
    %v5747 = vmax.f32 %v466, %v5734
    %v5748 = vmin.f32 %v479, %v5736
    %v5749 = vmin.f32 %v479, %v5737
    %v5750 = vmin.f32 %v479, %v5738
    %v5751 = vmin.f32 %v479, %v5739
    %v5752 = vmin.f32 %v479, %v5740
    %v5753 = vmin.f32 %v479, %v5741
    %v5754 = vmin.f32 %v479, %v5742
    %v5755 = vmin.f32 %v479, %v5743
    %v5756 = vmin.f32 %v479, %v5744
    %v5757 = vmin.f32 %v479, %v5745
    %v5758 = vmin.f32 %v479, %v5746
    %v5759 = vmin.f32 %v479, %v5747
    %v5760 = vsub.f32 %v5637, %v5748
    %v5761 = vsub.f32 %v5639, %v5749
    %v5762 = vsub.f32 %v5720, %v5750
    %v5763 = vsub.f32 %v5722, %v5751
    %v5764 = vsub.f32 %v5643, %v5752
    %v5765 = vsub.f32 %v5645, %v5753
    %v5766 = vsub.f32 %v5726, %v5754
    %v5767 = vsub.f32 %v5728, %v5755
    %v5768 = vsub.f32 %v5649, %v5756
    %v5769 = vsub.f32 %v5651, %v5757
    %v5770 = vsub.f32 %v5732, %v5758
    %v5771 = vsub.f32 %v5734, %v5759
    %s5772 = sld [smem:[#allocation3 + $0x16]]
    %v5773 = vsub.f32 %v5760, %v5520
    %v5774 = vsub.f32 %v5761, %v5521
    %v5775 = vsub.f32 %v5762, %v5522
    %v5776 = vsub.f32 %v5763, %v5523
    %v5777 = vsub.f32 %v5764, %v5524
    %v5778 = vsub.f32 %v5765, %v5525
    %v5779 = vsub.f32 %v5766, %v5526
    %v5780 = vsub.f32 %v5767, %v5527
    %v5781 = vsub.f32 %v5768, %v5528
    %v5782 = vsub.f32 %v5769, %v5529
    %v5783 = vsub.f32 %v5770, %v5530
    %v5784 = vsub.f32 %v5771, %v5531
    %v5785 = vstv %s5772
    %v5786 = vmul.f32 %v5785, %v5773
    %v5787 = vmul.f32 %v5785, %v5774
    %v5788 = vmul.f32 %v5785, %v5775
    %v5789 = vmul.f32 %v5785, %v5776
    %v5790 = vmul.f32 %v5785, %v5777
    %v5791 = vmul.f32 %v5785, %v5778
    %v5792 = vmul.f32 %v5785, %v5779
    %v5793 = vmul.f32 %v5785, %v5780
    %v5794 = vmul.f32 %v5785, %v5781
    %v5795 = vmul.f32 %v5785, %v5782
    %v5796 = vmul.f32 %v5785, %v5783
    %v5797 = vmul.f32 %v5785, %v5784
    %v5798 = vadd.f32 %v5760, %v5786
    %v5799 = vadd.f32 %v5761, %v5787
    %v5800 = vadd.f32 %v5762, %v5788
    %v5801 = vadd.f32 %v5763, %v5789
    %v5802 = vadd.f32 %v5764, %v5790
    %v5803 = vadd.f32 %v5765, %v5791
    %v5804 = vadd.f32 %v5766, %v5792
    %v5805 = vadd.f32 %v5767, %v5793
    %v5806 = vadd.f32 %v5768, %v5794
    %v5807 = vadd.f32 %v5769, %v5795
    %v5808 = vadd.f32 %v5770, %v5796
    %v5809 = vadd.f32 %v5771, %v5797
    %5810 = vmatprep.subr.mxu0 0.0
    %5811 = vmatpush1.msra.mxu0 0.0
    %5812 = vmatprep.subr.mxu0 0.0
    %5813 = vmatpush1.msra.mxu0 0.0
    %5814 = vmatprep.subr.mxu0 0.0
    %5815 = vmatpush1.msra.mxu0 0.0
    %5816 = vmatprep.subr.mxu0 0.0
    %5817 = vmatpush1.msra.mxu0 0.0
    %5818 = vmatprep.subr.mxu0 0.0
    %5819 = vmatpush1.msra.mxu0 0.0
    %5820 = vmatprep.subr.mxu0 0.0
    %5821 = vmatpush1.msra.mxu0 0.0
    %5822 = vmatprep.subr.mxu0 0.0
    %5823 = vmatpush1.msra.mxu0 0.0
    %5824 = vmatprep.subr.mxu0 0.0
    %5825 = vmatpush1.msra.mxu0 0.0
    %5826 = vmatprep.subr.mxu0 0.0
    %5827 = vmatpush1.msra.mxu0 0.0
    %5828 = vmatprep.subr.mxu0 0.0
    %5829 = vmatpush1.msra.mxu0 0.0
    %5830 = vmatprep.subr.mxu0 0.0
    %5831 = vmatpush1.msra.mxu0 0.0
    %5832 = vmatprep.subr.mxu0 0.0
    %5833 = vmatpush1.msra.mxu0 0.0
    %5834 = vmatprep.subr.mxu0 0.0
    %5835 = vmatpush1.msra.mxu0 0.0
    %5836 = vmatprep.subr.mxu0 %v5807
    %5837 = vmatpush1.msra.mxu0 %v5806
    %5838 = vmatprep.subr.mxu0 %v5803
    %5839 = vmatpush1.msra.mxu0 %v5802
    %5840 = vmatprep.subr.mxu0 %v5799
    %5841 = vmatpush1.msra.mxu0 %v5798
    %5842 = vmatprep.subr.mxu0 0.0
    %5843 = vmatpush2.msra.mxu0 0.0
    %5844 = vmatprep.subr.mxu0 0.0
    %5845 = vmatpush2.msra.mxu0 0.0
    %5846 = vmatprep.subr.mxu0 0.0
    %5847 = vmatpush2.msra.mxu0 0.0
    %5848 = vmatprep.subr.mxu0 0.0
    %5849 = vmatpush2.msra.mxu0 0.0
    %5850 = vmatprep.subr.mxu0 0.0
    %5851 = vmatpush2.msra.mxu0 0.0
    %5852 = vmatprep.subr.mxu0 0.0
    %5853 = vmatpush2.msra.mxu0 0.0
    %5854 = vmatprep.subr.mxu0 0.0
    %5855 = vmatpush2.msra.mxu0 0.0
    %5856 = vmatprep.subr.mxu0 0.0
    %5857 = vmatpush2.msra.mxu0 0.0
    %5858 = vmatprep.subr.mxu0 0.0
    %5859 = vmatpush2.msra.mxu0 0.0
    %5860 = vmatprep.subr.mxu0 0.0
    %5861 = vmatpush2.msra.mxu0 0.0
    %5862 = vmatprep.subr.mxu0 0.0
    %5863 = vmatpush2.msra.mxu0 0.0
    %5864 = vmatprep.subr.mxu0 0.0
    %5865 = vmatpush2.msra.mxu0 0.0
    %5866 = vmatprep.subr.mxu0 0.0
    %5867 = vmatpush2.msra.mxu0 0.0
    %5868 = vmatprep.subr.mxu0 0.0
    %5869 = vmatpush2.msra.mxu0 0.0
    %5870 = vmatprep.subr.mxu0 0.0
    %5871 = vmatpush2.msra.mxu0 0.0
    %5872 = vmatprep.subr.mxu0 0.0
    %5873 = vmatpush2.msra.mxu0 0.0
    %5874 = vmatprep.mubr.f32.mxu0 0.0
    %5875 = vmatmul.mubr.f32.gmra.mxu0 %v292
    %v5876 = vpop.f32.mrf.mxu0
    %v5877 = vadd.f32 %v191, %v5876
    %v5878 = vpop.f32.mrf.mxu0
    %v5879 = vadd.f32 %v193, %v5878
    %5880 = vmatprep.mubr.f32.mxu0 0.0
    %5881 = vmatmul.mubr.f32.gmra.mxu0 %v295
    %v5882 = vpop.f32.mrf.mxu0
    %v5883 = vadd.f32 %v197, %v5882
    %v5884 = vpop.f32.mrf.mxu0
    %v5885 = vadd.f32 %v199, %v5884
    %5886 = vmatprep.mubr.f32.mxu0 0.0
    %5887 = vmatmul.mubr.f32.gmra.mxu0 %v298
    %v5888 = vpop.f32.mrf.mxu0
    %v5889 = vadd.f32 %v203, %v5888
    %v5890 = vpop.f32.mrf.mxu0
    %v5891 = vadd.f32 %v205, %v5890
    %5892 = vdwg.mxu0
    %5893 = vmatprep.subr.mxu0 0.0
    %5894 = vmatpush1.msra.mxu0 0.0
    %5895 = vmatprep.subr.mxu0 0.0
    %5896 = vmatpush1.msra.mxu0 0.0
    %5897 = vmatprep.subr.mxu0 0.0
    %5898 = vmatpush1.msra.mxu0 0.0
    %5899 = vmatprep.subr.mxu0 0.0
    %5900 = vmatpush1.msra.mxu0 0.0
    %5901 = vmatprep.subr.mxu0 0.0
    %5902 = vmatpush1.msra.mxu0 0.0
    %5903 = vmatprep.subr.mxu0 0.0
    %5904 = vmatpush1.msra.mxu0 0.0
    %5905 = vmatprep.subr.mxu0 0.0
    %5906 = vmatpush1.msra.mxu0 0.0
    %5907 = vmatprep.subr.mxu0 0.0
    %5908 = vmatpush1.msra.mxu0 0.0
    %5909 = vmatprep.subr.mxu0 0.0
    %5910 = vmatpush1.msra.mxu0 0.0
    %5911 = vmatprep.subr.mxu0 0.0
    %5912 = vmatpush1.msra.mxu0 0.0
    %5913 = vmatprep.subr.mxu0 0.0
    %5914 = vmatpush1.msra.mxu0 0.0
    %5915 = vmatprep.subr.mxu0 0.0
    %5916 = vmatpush1.msra.mxu0 0.0
    %5917 = vmatprep.subr.mxu0 0.0
    %5918 = vmatpush1.msra.mxu0 0.0
    %5919 = vmatprep.subr.mxu0 %v5809
    %5920 = vmatpush1.msra.mxu0 %v5808
    %5921 = vmatprep.subr.mxu0 %v5805
    %5922 = vmatpush1.msra.mxu0 %v5804
    %5923 = vmatprep.subr.mxu0 %v5801
    %5924 = vmatpush1.msra.mxu0 %v5800
    %5925 = vmatprep.subr.mxu0 0.0
    %5926 = vmatpush2.msra.mxu0 0.0
    %5927 = vmatprep.subr.mxu0 0.0
    %5928 = vmatpush2.msra.mxu0 0.0
    %5929 = vmatprep.subr.mxu0 0.0
    %5930 = vmatpush2.msra.mxu0 0.0
    %5931 = vmatprep.subr.mxu0 0.0
    %5932 = vmatpush2.msra.mxu0 0.0
    %5933 = vmatprep.subr.mxu0 0.0
    %5934 = vmatpush2.msra.mxu0 0.0
    %5935 = vmatprep.subr.mxu0 0.0
    %5936 = vmatpush2.msra.mxu0 0.0
    %5937 = vmatprep.subr.mxu0 0.0
    %5938 = vmatpush2.msra.mxu0 0.0
    %5939 = vmatprep.subr.mxu0 0.0
    %5940 = vmatpush2.msra.mxu0 0.0
    %5941 = vmatprep.subr.mxu0 0.0
    %5942 = vmatpush2.msra.mxu0 0.0
    %5943 = vmatprep.subr.mxu0 0.0
    %5944 = vmatpush2.msra.mxu0 0.0
    %5945 = vmatprep.subr.mxu0 0.0
    %5946 = vmatpush2.msra.mxu0 0.0
    %5947 = vmatprep.subr.mxu0 0.0
    %5948 = vmatpush2.msra.mxu0 0.0
    %5949 = vmatprep.subr.mxu0 0.0
    %5950 = vmatpush2.msra.mxu0 0.0
    %5951 = vmatprep.subr.mxu0 0.0
    %5952 = vmatpush2.msra.mxu0 0.0
    %5953 = vmatprep.subr.mxu0 0.0
    %5954 = vmatpush2.msra.mxu0 0.0
    %5955 = vmatprep.subr.mxu0 0.0
    %5956 = vmatpush2.msra.mxu0 0.0
    %5957 = vmatprep.mubr.f32.mxu0 0.0
    %5958 = vmatmul.mubr.f32.gmra.mxu0 %v292
    %v5959 = vpop.f32.mrf.mxu0
    %v5960 = vadd.f32 %v274, %v5959
    %v5961 = vpop.f32.mrf.mxu0
    %v5962 = vadd.f32 %v276, %v5961
    %5963 = vmatprep.mubr.f32.mxu0 0.0
    %5964 = vmatmul.mubr.f32.gmra.mxu0 %v295
    %v5965 = vpop.f32.mrf.mxu0
    %v5966 = vadd.f32 %v280, %v5965
    %v5967 = vpop.f32.mrf.mxu0
    %v5968 = vadd.f32 %v282, %v5967
    %5969 = vmatprep.mubr.f32.mxu0 0.0
    %5970 = vmatmul.mubr.f32.gmra.mxu0 %v298
    %v5971 = vpop.f32.mrf.mxu0
    %v5972 = vadd.f32 %v286, %v5971
    %v5973 = vpop.f32.mrf.mxu0
    %v5974 = vadd.f32 %v288, %v5973
    %5975 = vdwg.mxu0
    %v5976 = vmax.f32 %v466, %v5877
    %v5977 = vmax.f32 %v466, %v5879
    %v5978 = vmax.f32 %v466, %v5960
    %v5979 = vmax.f32 %v466, %v5962
    %v5980 = vmax.f32 %v466, %v5883
    %v5981 = vmax.f32 %v466, %v5885
    %v5982 = vmax.f32 %v466, %v5966
    %v5983 = vmax.f32 %v466, %v5968
    %v5984 = vmax.f32 %v466, %v5889
    %v5985 = vmax.f32 %v466, %v5891
    %v5986 = vmax.f32 %v466, %v5972
    %v5987 = vmax.f32 %v466, %v5974
    %v5988 = vmin.f32 %v479, %v5976
    %v5989 = vmin.f32 %v479, %v5977
    %v5990 = vmin.f32 %v479, %v5978
    %v5991 = vmin.f32 %v479, %v5979
    %v5992 = vmin.f32 %v479, %v5980
    %v5993 = vmin.f32 %v479, %v5981
    %v5994 = vmin.f32 %v479, %v5982
    %v5995 = vmin.f32 %v479, %v5983
    %v5996 = vmin.f32 %v479, %v5984
    %v5997 = vmin.f32 %v479, %v5985
    %v5998 = vmin.f32 %v479, %v5986
    %v5999 = vmin.f32 %v479, %v5987
    %v6000 = vsub.f32 %v5877, %v5988
    %v6001 = vsub.f32 %v5879, %v5989
    %v6002 = vsub.f32 %v5960, %v5990
    %v6003 = vsub.f32 %v5962, %v5991
    %v6004 = vsub.f32 %v5883, %v5992
    %v6005 = vsub.f32 %v5885, %v5993
    %v6006 = vsub.f32 %v5966, %v5994
    %v6007 = vsub.f32 %v5968, %v5995
    %v6008 = vsub.f32 %v5889, %v5996
    %v6009 = vsub.f32 %v5891, %v5997
    %v6010 = vsub.f32 %v5972, %v5998
    %v6011 = vsub.f32 %v5974, %v5999
    %s6012 = sld [smem:[#allocation3 + $0x17]]
    %v6013 = vsub.f32 %v6000, %v5760
    %v6014 = vsub.f32 %v6001, %v5761
    %v6015 = vsub.f32 %v6002, %v5762
    %v6016 = vsub.f32 %v6003, %v5763
    %v6017 = vsub.f32 %v6004, %v5764
    %v6018 = vsub.f32 %v6005, %v5765
    %v6019 = vsub.f32 %v6006, %v5766
    %v6020 = vsub.f32 %v6007, %v5767
    %v6021 = vsub.f32 %v6008, %v5768
    %v6022 = vsub.f32 %v6009, %v5769
    %v6023 = vsub.f32 %v6010, %v5770
    %v6024 = vsub.f32 %v6011, %v5771
    %v6025 = vstv %s6012
    %v6026 = vmul.f32 %v6025, %v6013
    %v6027 = vmul.f32 %v6025, %v6014
    %v6028 = vmul.f32 %v6025, %v6015
    %v6029 = vmul.f32 %v6025, %v6016
    %v6030 = vmul.f32 %v6025, %v6017
    %v6031 = vmul.f32 %v6025, %v6018
    %v6032 = vmul.f32 %v6025, %v6019
    %v6033 = vmul.f32 %v6025, %v6020
    %v6034 = vmul.f32 %v6025, %v6021
    %v6035 = vmul.f32 %v6025, %v6022
    %v6036 = vmul.f32 %v6025, %v6023
    %v6037 = vmul.f32 %v6025, %v6024
    %v6038 = vadd.f32 %v6000, %v6026
    %v6039 = vadd.f32 %v6001, %v6027
    %v6040 = vadd.f32 %v6002, %v6028
    %v6041 = vadd.f32 %v6003, %v6029
    %v6042 = vadd.f32 %v6004, %v6030
    %v6043 = vadd.f32 %v6005, %v6031
    %v6044 = vadd.f32 %v6006, %v6032
    %v6045 = vadd.f32 %v6007, %v6033
    %v6046 = vadd.f32 %v6008, %v6034
    %v6047 = vadd.f32 %v6009, %v6035
    %v6048 = vadd.f32 %v6010, %v6036
    %v6049 = vadd.f32 %v6011, %v6037
    %6050 = vmatprep.subr.mxu0 0.0
    %6051 = vmatpush1.msra.mxu0 0.0
    %6052 = vmatprep.subr.mxu0 0.0
    %6053 = vmatpush1.msra.mxu0 0.0
    %6054 = vmatprep.subr.mxu0 0.0
    %6055 = vmatpush1.msra.mxu0 0.0
    %6056 = vmatprep.subr.mxu0 0.0
    %6057 = vmatpush1.msra.mxu0 0.0
    %6058 = vmatprep.subr.mxu0 0.0
    %6059 = vmatpush1.msra.mxu0 0.0
    %6060 = vmatprep.subr.mxu0 0.0
    %6061 = vmatpush1.msra.mxu0 0.0
    %6062 = vmatprep.subr.mxu0 0.0
    %6063 = vmatpush1.msra.mxu0 0.0
    %6064 = vmatprep.subr.mxu0 0.0
    %6065 = vmatpush1.msra.mxu0 0.0
    %6066 = vmatprep.subr.mxu0 0.0
    %6067 = vmatpush1.msra.mxu0 0.0
    %6068 = vmatprep.subr.mxu0 0.0
    %6069 = vmatpush1.msra.mxu0 0.0
    %6070 = vmatprep.subr.mxu0 0.0
    %6071 = vmatpush1.msra.mxu0 0.0
    %6072 = vmatprep.subr.mxu0 0.0
    %6073 = vmatpush1.msra.mxu0 0.0
    %6074 = vmatprep.subr.mxu0 0.0
    %6075 = vmatpush1.msra.mxu0 0.0
    %6076 = vmatprep.subr.mxu0 %v6047
    %6077 = vmatpush1.msra.mxu0 %v6046
    %6078 = vmatprep.subr.mxu0 %v6043
    %6079 = vmatpush1.msra.mxu0 %v6042
    %6080 = vmatprep.subr.mxu0 %v6039
    %6081 = vmatpush1.msra.mxu0 %v6038
    %6082 = vmatprep.subr.mxu0 0.0
    %6083 = vmatpush2.msra.mxu0 0.0
    %6084 = vmatprep.subr.mxu0 0.0
    %6085 = vmatpush2.msra.mxu0 0.0
    %6086 = vmatprep.subr.mxu0 0.0
    %6087 = vmatpush2.msra.mxu0 0.0
    %6088 = vmatprep.subr.mxu0 0.0
    %6089 = vmatpush2.msra.mxu0 0.0
    %6090 = vmatprep.subr.mxu0 0.0
    %6091 = vmatpush2.msra.mxu0 0.0
    %6092 = vmatprep.subr.mxu0 0.0
    %6093 = vmatpush2.msra.mxu0 0.0
    %6094 = vmatprep.subr.mxu0 0.0
    %6095 = vmatpush2.msra.mxu0 0.0
    %6096 = vmatprep.subr.mxu0 0.0
    %6097 = vmatpush2.msra.mxu0 0.0
    %6098 = vmatprep.subr.mxu0 0.0
    %6099 = vmatpush2.msra.mxu0 0.0
    %6100 = vmatprep.subr.mxu0 0.0
    %6101 = vmatpush2.msra.mxu0 0.0
    %6102 = vmatprep.subr.mxu0 0.0
    %6103 = vmatpush2.msra.mxu0 0.0
    %6104 = vmatprep.subr.mxu0 0.0
    %6105 = vmatpush2.msra.mxu0 0.0
    %6106 = vmatprep.subr.mxu0 0.0
    %6107 = vmatpush2.msra.mxu0 0.0
    %6108 = vmatprep.subr.mxu0 0.0
    %6109 = vmatpush2.msra.mxu0 0.0
    %6110 = vmatprep.subr.mxu0 0.0
    %6111 = vmatpush2.msra.mxu0 0.0
    %6112 = vmatprep.subr.mxu0 0.0
    %6113 = vmatpush2.msra.mxu0 0.0
    %6114 = vmatprep.mubr.f32.mxu0 0.0
    %6115 = vmatmul.mubr.f32.gmra.mxu0 %v292
    %v6116 = vpop.f32.mrf.mxu0
    %v6117 = vadd.f32 %v191, %v6116
    %v6118 = vpop.f32.mrf.mxu0
    %v6119 = vadd.f32 %v193, %v6118
    %6120 = vmatprep.mubr.f32.mxu0 0.0
    %6121 = vmatmul.mubr.f32.gmra.mxu0 %v295
    %v6122 = vpop.f32.mrf.mxu0
    %v6123 = vadd.f32 %v197, %v6122
    %v6124 = vpop.f32.mrf.mxu0
    %v6125 = vadd.f32 %v199, %v6124
    %6126 = vmatprep.mubr.f32.mxu0 0.0
    %6127 = vmatmul.mubr.f32.gmra.mxu0 %v298
    %v6128 = vpop.f32.mrf.mxu0
    %v6129 = vadd.f32 %v203, %v6128
    %v6130 = vpop.f32.mrf.mxu0
    %v6131 = vadd.f32 %v205, %v6130
    %6132 = vdwg.mxu0
    %6133 = vmatprep.subr.mxu0 0.0
    %6134 = vmatpush1.msra.mxu0 0.0
    %6135 = vmatprep.subr.mxu0 0.0
    %6136 = vmatpush1.msra.mxu0 0.0
    %6137 = vmatprep.subr.mxu0 0.0
    %6138 = vmatpush1.msra.mxu0 0.0
    %6139 = vmatprep.subr.mxu0 0.0
    %6140 = vmatpush1.msra.mxu0 0.0
    %6141 = vmatprep.subr.mxu0 0.0
    %6142 = vmatpush1.msra.mxu0 0.0
    %6143 = vmatprep.subr.mxu0 0.0
    %6144 = vmatpush1.msra.mxu0 0.0
    %6145 = vmatprep.subr.mxu0 0.0
    %6146 = vmatpush1.msra.mxu0 0.0
    %6147 = vmatprep.subr.mxu0 0.0
    %6148 = vmatpush1.msra.mxu0 0.0
    %6149 = vmatprep.subr.mxu0 0.0
    %6150 = vmatpush1.msra.mxu0 0.0
    %6151 = vmatprep.subr.mxu0 0.0
    %6152 = vmatpush1.msra.mxu0 0.0
    %6153 = vmatprep.subr.mxu0 0.0
    %6154 = vmatpush1.msra.mxu0 0.0
    %6155 = vmatprep.subr.mxu0 0.0
    %6156 = vmatpush1.msra.mxu0 0.0
    %6157 = vmatprep.subr.mxu0 0.0
    %6158 = vmatpush1.msra.mxu0 0.0
    %6159 = vmatprep.subr.mxu0 %v6049
    %6160 = vmatpush1.msra.mxu0 %v6048
    %6161 = vmatprep.subr.mxu0 %v6045
    %6162 = vmatpush1.msra.mxu0 %v6044
    %6163 = vmatprep.subr.mxu0 %v6041
    %6164 = vmatpush1.msra.mxu0 %v6040
    %6165 = vmatprep.subr.mxu0 0.0
    %6166 = vmatpush2.msra.mxu0 0.0
    %6167 = vmatprep.subr.mxu0 0.0
    %6168 = vmatpush2.msra.mxu0 0.0
    %6169 = vmatprep.subr.mxu0 0.0
    %6170 = vmatpush2.msra.mxu0 0.0
    %6171 = vmatprep.subr.mxu0 0.0
    %6172 = vmatpush2.msra.mxu0 0.0
    %6173 = vmatprep.subr.mxu0 0.0
    %6174 = vmatpush2.msra.mxu0 0.0
    %6175 = vmatprep.subr.mxu0 0.0
    %6176 = vmatpush2.msra.mxu0 0.0
    %6177 = vmatprep.subr.mxu0 0.0
    %6178 = vmatpush2.msra.mxu0 0.0
    %6179 = vmatprep.subr.mxu0 0.0
    %6180 = vmatpush2.msra.mxu0 0.0
    %6181 = vmatprep.subr.mxu0 0.0
    %6182 = vmatpush2.msra.mxu0 0.0
    %6183 = vmatprep.subr.mxu0 0.0
    %6184 = vmatpush2.msra.mxu0 0.0
    %6185 = vmatprep.subr.mxu0 0.0
    %6186 = vmatpush2.msra.mxu0 0.0
    %6187 = vmatprep.subr.mxu0 0.0
    %6188 = vmatpush2.msra.mxu0 0.0
    %6189 = vmatprep.subr.mxu0 0.0
    %6190 = vmatpush2.msra.mxu0 0.0
    %6191 = vmatprep.subr.mxu0 0.0
    %6192 = vmatpush2.msra.mxu0 0.0
    %6193 = vmatprep.subr.mxu0 0.0
    %6194 = vmatpush2.msra.mxu0 0.0
    %6195 = vmatprep.subr.mxu0 0.0
    %6196 = vmatpush2.msra.mxu0 0.0
    %6197 = vmatprep.mubr.f32.mxu0 0.0
    %6198 = vmatmul.mubr.f32.gmra.mxu0 %v292
    %v6199 = vpop.f32.mrf.mxu0
    %v6200 = vadd.f32 %v274, %v6199
    %v6201 = vpop.f32.mrf.mxu0
    %v6202 = vadd.f32 %v276, %v6201
    %6203 = vmatprep.mubr.f32.mxu0 0.0
    %6204 = vmatmul.mubr.f32.gmra.mxu0 %v295
    %v6205 = vpop.f32.mrf.mxu0
    %v6206 = vadd.f32 %v280, %v6205
    %v6207 = vpop.f32.mrf.mxu0
    %v6208 = vadd.f32 %v282, %v6207
    %6209 = vmatprep.mubr.f32.mxu0 0.0
    %6210 = vmatmul.mubr.f32.gmra.mxu0 %v298
    %v6211 = vpop.f32.mrf.mxu0
    %v6212 = vadd.f32 %v286, %v6211
    %v6213 = vpop.f32.mrf.mxu0
    %v6214 = vadd.f32 %v288, %v6213
    %6215 = vdwg.mxu0
    %v6216 = vmax.f32 %v466, %v6117
    %v6217 = vmax.f32 %v466, %v6119
    %v6218 = vmax.f32 %v466, %v6200
    %v6219 = vmax.f32 %v466, %v6202
    %v6220 = vmax.f32 %v466, %v6123
    %v6221 = vmax.f32 %v466, %v6125
    %v6222 = vmax.f32 %v466, %v6206
    %v6223 = vmax.f32 %v466, %v6208
    %v6224 = vmax.f32 %v466, %v6129
    %v6225 = vmax.f32 %v466, %v6131
    %v6226 = vmax.f32 %v466, %v6212
    %v6227 = vmax.f32 %v466, %v6214
    %v6228 = vmin.f32 %v479, %v6216
    %v6229 = vmin.f32 %v479, %v6217
    %v6230 = vmin.f32 %v479, %v6218
    %v6231 = vmin.f32 %v479, %v6219
    %v6232 = vmin.f32 %v479, %v6220
    %v6233 = vmin.f32 %v479, %v6221
    %v6234 = vmin.f32 %v479, %v6222
    %v6235 = vmin.f32 %v479, %v6223
    %v6236 = vmin.f32 %v479, %v6224
    %v6237 = vmin.f32 %v479, %v6225
    %v6238 = vmin.f32 %v479, %v6226
    %v6239 = vmin.f32 %v479, %v6227
    %v6240 = vsub.f32 %v6117, %v6228
    %v6241 = vsub.f32 %v6119, %v6229
    %v6242 = vsub.f32 %v6200, %v6230
    %v6243 = vsub.f32 %v6202, %v6231
    %v6244 = vsub.f32 %v6123, %v6232
    %v6245 = vsub.f32 %v6125, %v6233
    %v6246 = vsub.f32 %v6206, %v6234
    %v6247 = vsub.f32 %v6208, %v6235
    %v6248 = vsub.f32 %v6129, %v6236
    %v6249 = vsub.f32 %v6131, %v6237
    %v6250 = vsub.f32 %v6212, %v6238
    %v6251 = vsub.f32 %v6214, %v6239
    %s6252 = sld [smem:[#allocation3 + $0x18]]
    %v6253 = vsub.f32 %v6240, %v6000
    %v6254 = vsub.f32 %v6241, %v6001
    %v6255 = vsub.f32 %v6242, %v6002
    %v6256 = vsub.f32 %v6243, %v6003
    %v6257 = vsub.f32 %v6244, %v6004
    %v6258 = vsub.f32 %v6245, %v6005
    %v6259 = vsub.f32 %v6246, %v6006
    %v6260 = vsub.f32 %v6247, %v6007
    %v6261 = vsub.f32 %v6248, %v6008
    %v6262 = vsub.f32 %v6249, %v6009
    %v6263 = vsub.f32 %v6250, %v6010
    %v6264 = vsub.f32 %v6251, %v6011
    %v6265 = vstv %s6252
    %v6266 = vmul.f32 %v6265, %v6253
    %v6267 = vmul.f32 %v6265, %v6254
    %v6268 = vmul.f32 %v6265, %v6255
    %v6269 = vmul.f32 %v6265, %v6256
    %v6270 = vmul.f32 %v6265, %v6257
    %v6271 = vmul.f32 %v6265, %v6258
    %v6272 = vmul.f32 %v6265, %v6259
    %v6273 = vmul.f32 %v6265, %v6260
    %v6274 = vmul.f32 %v6265, %v6261
    %v6275 = vmul.f32 %v6265, %v6262
    %v6276 = vmul.f32 %v6265, %v6263
    %v6277 = vmul.f32 %v6265, %v6264
    %v6278 = vadd.f32 %v6240, %v6266
    %v6279 = vadd.f32 %v6241, %v6267
    %v6280 = vadd.f32 %v6242, %v6268
    %v6281 = vadd.f32 %v6243, %v6269
    %v6282 = vadd.f32 %v6244, %v6270
    %v6283 = vadd.f32 %v6245, %v6271
    %v6284 = vadd.f32 %v6246, %v6272
    %v6285 = vadd.f32 %v6247, %v6273
    %v6286 = vadd.f32 %v6248, %v6274
    %v6287 = vadd.f32 %v6249, %v6275
    %v6288 = vadd.f32 %v6250, %v6276
    %v6289 = vadd.f32 %v6251, %v6277
    %6290 = vmatprep.subr.mxu0 0.0
    %6291 = vmatpush1.msra.mxu0 0.0
    %6292 = vmatprep.subr.mxu0 0.0
    %6293 = vmatpush1.msra.mxu0 0.0
    %6294 = vmatprep.subr.mxu0 0.0
    %6295 = vmatpush1.msra.mxu0 0.0
    %6296 = vmatprep.subr.mxu0 0.0
    %6297 = vmatpush1.msra.mxu0 0.0
    %6298 = vmatprep.subr.mxu0 0.0
    %6299 = vmatpush1.msra.mxu0 0.0
    %6300 = vmatprep.subr.mxu0 0.0
    %6301 = vmatpush1.msra.mxu0 0.0
    %6302 = vmatprep.subr.mxu0 0.0
    %6303 = vmatpush1.msra.mxu0 0.0
    %6304 = vmatprep.subr.mxu0 0.0
    %6305 = vmatpush1.msra.mxu0 0.0
    %6306 = vmatprep.subr.mxu0 0.0
    %6307 = vmatpush1.msra.mxu0 0.0
    %6308 = vmatprep.subr.mxu0 0.0
    %6309 = vmatpush1.msra.mxu0 0.0
    %6310 = vmatprep.subr.mxu0 0.0
    %6311 = vmatpush1.msra.mxu0 0.0
    %6312 = vmatprep.subr.mxu0 0.0
    %6313 = vmatpush1.msra.mxu0 0.0
    %6314 = vmatprep.subr.mxu0 0.0
    %6315 = vmatpush1.msra.mxu0 0.0
    %6316 = vmatprep.subr.mxu0 %v6287
    %6317 = vmatpush1.msra.mxu0 %v6286
    %6318 = vmatprep.subr.mxu0 %v6283
    %6319 = vmatpush1.msra.mxu0 %v6282
    %6320 = vmatprep.subr.mxu0 %v6279
    %6321 = vmatpush1.msra.mxu0 %v6278
    %6322 = vmatprep.subr.mxu0 0.0
    %6323 = vmatpush2.msra.mxu0 0.0
    %6324 = vmatprep.subr.mxu0 0.0
    %6325 = vmatpush2.msra.mxu0 0.0
    %6326 = vmatprep.subr.mxu0 0.0
    %6327 = vmatpush2.msra.mxu0 0.0
    %6328 = vmatprep.subr.mxu0 0.0
    %6329 = vmatpush2.msra.mxu0 0.0
    %6330 = vmatprep.subr.mxu0 0.0
    %6331 = vmatpush2.msra.mxu0 0.0
    %6332 = vmatprep.subr.mxu0 0.0
    %6333 = vmatpush2.msra.mxu0 0.0
    %6334 = vmatprep.subr.mxu0 0.0
    %6335 = vmatpush2.msra.mxu0 0.0
    %6336 = vmatprep.subr.mxu0 0.0
    %6337 = vmatpush2.msra.mxu0 0.0
    %6338 = vmatprep.subr.mxu0 0.0
    %6339 = vmatpush2.msra.mxu0 0.0
    %6340 = vmatprep.subr.mxu0 0.0
    %6341 = vmatpush2.msra.mxu0 0.0
    %6342 = vmatprep.subr.mxu0 0.0
    %6343 = vmatpush2.msra.mxu0 0.0
    %6344 = vmatprep.subr.mxu0 0.0
    %6345 = vmatpush2.msra.mxu0 0.0
    %6346 = vmatprep.subr.mxu0 0.0
    %6347 = vmatpush2.msra.mxu0 0.0
    %6348 = vmatprep.subr.mxu0 0.0
    %6349 = vmatpush2.msra.mxu0 0.0
    %6350 = vmatprep.subr.mxu0 0.0
    %6351 = vmatpush2.msra.mxu0 0.0
    %6352 = vmatprep.subr.mxu0 0.0
    %6353 = vmatpush2.msra.mxu0 0.0
    %6354 = vmatprep.mubr.f32.mxu0 0.0
    %6355 = vmatmul.mubr.f32.gmra.mxu0 %v292
    %v6356 = vpop.f32.mrf.mxu0
    %v6357 = vadd.f32 %v191, %v6356
    %v6358 = vpop.f32.mrf.mxu0
    %v6359 = vadd.f32 %v193, %v6358
    %6360 = vmatprep.mubr.f32.mxu0 0.0
    %6361 = vmatmul.mubr.f32.gmra.mxu0 %v295
    %v6362 = vpop.f32.mrf.mxu0
    %v6363 = vadd.f32 %v197, %v6362
    %v6364 = vpop.f32.mrf.mxu0
    %v6365 = vadd.f32 %v199, %v6364
    %6366 = vmatprep.mubr.f32.mxu0 0.0
    %6367 = vmatmul.mubr.f32.gmra.mxu0 %v298
    %v6368 = vpop.f32.mrf.mxu0
    %v6369 = vadd.f32 %v203, %v6368
    %v6370 = vpop.f32.mrf.mxu0
    %v6371 = vadd.f32 %v205, %v6370
    %6372 = vdwg.mxu0
    %6373 = vmatprep.subr.mxu0 0.0
    %6374 = vmatpush1.msra.mxu0 0.0
    %6375 = vmatprep.subr.mxu0 0.0
    %6376 = vmatpush1.msra.mxu0 0.0
    %6377 = vmatprep.subr.mxu0 0.0
    %6378 = vmatpush1.msra.mxu0 0.0
    %6379 = vmatprep.subr.mxu0 0.0
    %6380 = vmatpush1.msra.mxu0 0.0
    %6381 = vmatprep.subr.mxu0 0.0
    %6382 = vmatpush1.msra.mxu0 0.0
    %6383 = vmatprep.subr.mxu0 0.0
    %6384 = vmatpush1.msra.mxu0 0.0
    %6385 = vmatprep.subr.mxu0 0.0
    %6386 = vmatpush1.msra.mxu0 0.0
    %6387 = vmatprep.subr.mxu0 0.0
    %6388 = vmatpush1.msra.mxu0 0.0
    %6389 = vmatprep.subr.mxu0 0.0
    %6390 = vmatpush1.msra.mxu0 0.0
    %6391 = vmatprep.subr.mxu0 0.0
    %6392 = vmatpush1.msra.mxu0 0.0
    %6393 = vmatprep.subr.mxu0 0.0
    %6394 = vmatpush1.msra.mxu0 0.0
    %6395 = vmatprep.subr.mxu0 0.0
    %6396 = vmatpush1.msra.mxu0 0.0
    %6397 = vmatprep.subr.mxu0 0.0
    %6398 = vmatpush1.msra.mxu0 0.0
    %6399 = vmatprep.subr.mxu0 %v6289
    %6400 = vmatpush1.msra.mxu0 %v6288
    %6401 = vmatprep.subr.mxu0 %v6285
    %6402 = vmatpush1.msra.mxu0 %v6284
    %6403 = vmatprep.subr.mxu0 %v6281
    %6404 = vmatpush1.msra.mxu0 %v6280
    %6405 = vmatprep.subr.mxu0 0.0
    %6406 = vmatpush2.msra.mxu0 0.0
    %6407 = vmatprep.subr.mxu0 0.0
    %6408 = vmatpush2.msra.mxu0 0.0
    %6409 = vmatprep.subr.mxu0 0.0
    %6410 = vmatpush2.msra.mxu0 0.0
    %6411 = vmatprep.subr.mxu0 0.0
    %6412 = vmatpush2.msra.mxu0 0.0
    %6413 = vmatprep.subr.mxu0 0.0
    %6414 = vmatpush2.msra.mxu0 0.0
    %6415 = vmatprep.subr.mxu0 0.0
    %6416 = vmatpush2.msra.mxu0 0.0
    %6417 = vmatprep.subr.mxu0 0.0
    %6418 = vmatpush2.msra.mxu0 0.0
    %6419 = vmatprep.subr.mxu0 0.0
    %6420 = vmatpush2.msra.mxu0 0.0
    %6421 = vmatprep.subr.mxu0 0.0
    %6422 = vmatpush2.msra.mxu0 0.0
    %6423 = vmatprep.subr.mxu0 0.0
    %6424 = vmatpush2.msra.mxu0 0.0
    %6425 = vmatprep.subr.mxu0 0.0
    %6426 = vmatpush2.msra.mxu0 0.0
    %6427 = vmatprep.subr.mxu0 0.0
    %6428 = vmatpush2.msra.mxu0 0.0
    %6429 = vmatprep.subr.mxu0 0.0
    %6430 = vmatpush2.msra.mxu0 0.0
    %6431 = vmatprep.subr.mxu0 0.0
    %6432 = vmatpush2.msra.mxu0 0.0
    %6433 = vmatprep.subr.mxu0 0.0
    %6434 = vmatpush2.msra.mxu0 0.0
    %6435 = vmatprep.subr.mxu0 0.0
    %6436 = vmatpush2.msra.mxu0 0.0
    %6437 = vmatprep.mubr.f32.mxu0 0.0
    %6438 = vmatmul.mubr.f32.gmra.mxu0 %v292
    %v6439 = vpop.f32.mrf.mxu0
    %v6440 = vadd.f32 %v274, %v6439
    %v6441 = vpop.f32.mrf.mxu0
    %v6442 = vadd.f32 %v276, %v6441
    %6443 = vmatprep.mubr.f32.mxu0 0.0
    %6444 = vmatmul.mubr.f32.gmra.mxu0 %v295
    %v6445 = vpop.f32.mrf.mxu0
    %v6446 = vadd.f32 %v280, %v6445
    %v6447 = vpop.f32.mrf.mxu0
    %v6448 = vadd.f32 %v282, %v6447
    %6449 = vmatprep.mubr.f32.mxu0 0.0
    %6450 = vmatmul.mubr.f32.gmra.mxu0 %v298
    %v6451 = vpop.f32.mrf.mxu0
    %v6452 = vadd.f32 %v286, %v6451
    %v6453 = vpop.f32.mrf.mxu0
    %v6454 = vadd.f32 %v288, %v6453
    %6455 = vdwg.mxu0
    %v6456 = vmax.f32 %v466, %v6357
    %v6457 = vmax.f32 %v466, %v6359
    %v6458 = vmax.f32 %v466, %v6440
    %v6459 = vmax.f32 %v466, %v6442
    %v6460 = vmax.f32 %v466, %v6363
    %v6461 = vmax.f32 %v466, %v6365
    %v6462 = vmax.f32 %v466, %v6446
    %v6463 = vmax.f32 %v466, %v6448
    %v6464 = vmax.f32 %v466, %v6369
    %v6465 = vmax.f32 %v466, %v6371
    %v6466 = vmax.f32 %v466, %v6452
    %v6467 = vmax.f32 %v466, %v6454
    %v6468 = vmin.f32 %v479, %v6456
    %v6469 = vmin.f32 %v479, %v6457
    %v6470 = vmin.f32 %v479, %v6458
    %v6471 = vmin.f32 %v479, %v6459
    %v6472 = vmin.f32 %v479, %v6460
    %v6473 = vmin.f32 %v479, %v6461
    %v6474 = vmin.f32 %v479, %v6462
    %v6475 = vmin.f32 %v479, %v6463
    %v6476 = vmin.f32 %v479, %v6464
    %v6477 = vmin.f32 %v479, %v6465
    %v6478 = vmin.f32 %v479, %v6466
    %v6479 = vmin.f32 %v479, %v6467
    %v6480 = vsub.f32 %v6357, %v6468
    %v6481 = vsub.f32 %v6359, %v6469
    %v6482 = vsub.f32 %v6440, %v6470
    %v6483 = vsub.f32 %v6442, %v6471
    %v6484 = vsub.f32 %v6363, %v6472
    %v6485 = vsub.f32 %v6365, %v6473
    %v6486 = vsub.f32 %v6446, %v6474
    %v6487 = vsub.f32 %v6448, %v6475
    %v6488 = vsub.f32 %v6369, %v6476
    %v6489 = vsub.f32 %v6371, %v6477
    %v6490 = vsub.f32 %v6452, %v6478
    %v6491 = vsub.f32 %v6454, %v6479
    %s6492 = sld [smem:[#allocation3 + $0x19]]
    %v6493 = vsub.f32 %v6480, %v6240
    %v6494 = vsub.f32 %v6481, %v6241
    %v6495 = vsub.f32 %v6482, %v6242
    %v6496 = vsub.f32 %v6483, %v6243
    %v6497 = vsub.f32 %v6484, %v6244
    %v6498 = vsub.f32 %v6485, %v6245
    %v6499 = vsub.f32 %v6486, %v6246
    %v6500 = vsub.f32 %v6487, %v6247
    %v6501 = vsub.f32 %v6488, %v6248
    %v6502 = vsub.f32 %v6489, %v6249
    %v6503 = vsub.f32 %v6490, %v6250
    %v6504 = vsub.f32 %v6491, %v6251
    %v6505 = vstv %s6492
    %v6506 = vmul.f32 %v6505, %v6493
    %v6507 = vmul.f32 %v6505, %v6494
    %v6508 = vmul.f32 %v6505, %v6495
    %v6509 = vmul.f32 %v6505, %v6496
    %v6510 = vmul.f32 %v6505, %v6497
    %v6511 = vmul.f32 %v6505, %v6498
    %v6512 = vmul.f32 %v6505, %v6499
    %v6513 = vmul.f32 %v6505, %v6500
    %v6514 = vmul.f32 %v6505, %v6501
    %v6515 = vmul.f32 %v6505, %v6502
    %v6516 = vmul.f32 %v6505, %v6503
    %v6517 = vmul.f32 %v6505, %v6504
    %v6518 = vadd.f32 %v6480, %v6506
    %v6519 = vadd.f32 %v6481, %v6507
    %v6520 = vadd.f32 %v6482, %v6508
    %v6521 = vadd.f32 %v6483, %v6509
    %v6522 = vadd.f32 %v6484, %v6510
    %v6523 = vadd.f32 %v6485, %v6511
    %v6524 = vadd.f32 %v6486, %v6512
    %v6525 = vadd.f32 %v6487, %v6513
    %v6526 = vadd.f32 %v6488, %v6514
    %v6527 = vadd.f32 %v6489, %v6515
    %v6528 = vadd.f32 %v6490, %v6516
    %v6529 = vadd.f32 %v6491, %v6517
    %6530 = vmatprep.subr.mxu0 0.0
    %6531 = vmatpush1.msra.mxu0 0.0
    %6532 = vmatprep.subr.mxu0 0.0
    %6533 = vmatpush1.msra.mxu0 0.0
    %6534 = vmatprep.subr.mxu0 0.0
    %6535 = vmatpush1.msra.mxu0 0.0
    %6536 = vmatprep.subr.mxu0 0.0
    %6537 = vmatpush1.msra.mxu0 0.0
    %6538 = vmatprep.subr.mxu0 0.0
    %6539 = vmatpush1.msra.mxu0 0.0
    %6540 = vmatprep.subr.mxu0 0.0
    %6541 = vmatpush1.msra.mxu0 0.0
    %6542 = vmatprep.subr.mxu0 0.0
    %6543 = vmatpush1.msra.mxu0 0.0
    %6544 = vmatprep.subr.mxu0 0.0
    %6545 = vmatpush1.msra.mxu0 0.0
    %6546 = vmatprep.subr.mxu0 0.0
    %6547 = vmatpush1.msra.mxu0 0.0
    %6548 = vmatprep.subr.mxu0 0.0
    %6549 = vmatpush1.msra.mxu0 0.0
    %6550 = vmatprep.subr.mxu0 0.0
    %6551 = vmatpush1.msra.mxu0 0.0
    %6552 = vmatprep.subr.mxu0 0.0
    %6553 = vmatpush1.msra.mxu0 0.0
    %6554 = vmatprep.subr.mxu0 0.0
    %6555 = vmatpush1.msra.mxu0 0.0
    %6556 = vmatprep.subr.mxu0 %v6527
    %6557 = vmatpush1.msra.mxu0 %v6526
    %6558 = vmatprep.subr.mxu0 %v6523
    %6559 = vmatpush1.msra.mxu0 %v6522
    %6560 = vmatprep.subr.mxu0 %v6519
    %6561 = vmatpush1.msra.mxu0 %v6518
    %6562 = vmatprep.subr.mxu0 0.0
    %6563 = vmatpush2.msra.mxu0 0.0
    %6564 = vmatprep.subr.mxu0 0.0
    %6565 = vmatpush2.msra.mxu0 0.0
    %6566 = vmatprep.subr.mxu0 0.0
    %6567 = vmatpush2.msra.mxu0 0.0
    %6568 = vmatprep.subr.mxu0 0.0
    %6569 = vmatpush2.msra.mxu0 0.0
    %6570 = vmatprep.subr.mxu0 0.0
    %6571 = vmatpush2.msra.mxu0 0.0
    %6572 = vmatprep.subr.mxu0 0.0
    %6573 = vmatpush2.msra.mxu0 0.0
    %6574 = vmatprep.subr.mxu0 0.0
    %6575 = vmatpush2.msra.mxu0 0.0
    %6576 = vmatprep.subr.mxu0 0.0
    %6577 = vmatpush2.msra.mxu0 0.0
    %6578 = vmatprep.subr.mxu0 0.0
    %6579 = vmatpush2.msra.mxu0 0.0
    %6580 = vmatprep.subr.mxu0 0.0
    %6581 = vmatpush2.msra.mxu0 0.0
    %6582 = vmatprep.subr.mxu0 0.0
    %6583 = vmatpush2.msra.mxu0 0.0
    %6584 = vmatprep.subr.mxu0 0.0
    %6585 = vmatpush2.msra.mxu0 0.0
    %6586 = vmatprep.subr.mxu0 0.0
    %6587 = vmatpush2.msra.mxu0 0.0
    %6588 = vmatprep.subr.mxu0 0.0
    %6589 = vmatpush2.msra.mxu0 0.0
    %6590 = vmatprep.subr.mxu0 0.0
    %6591 = vmatpush2.msra.mxu0 0.0
    %6592 = vmatprep.subr.mxu0 0.0
    %6593 = vmatpush2.msra.mxu0 0.0
    %6594 = vmatprep.mubr.f32.mxu0 0.0
    %6595 = vmatmul.mubr.f32.gmra.mxu0 %v292
    %v6596 = vpop.f32.mrf.mxu0
    %v6597 = vadd.f32 %v191, %v6596
    %v6598 = vpop.f32.mrf.mxu0
    %v6599 = vadd.f32 %v193, %v6598
    %6600 = vmatprep.mubr.f32.mxu0 0.0
    %6601 = vmatmul.mubr.f32.gmra.mxu0 %v295
    %v6602 = vpop.f32.mrf.mxu0
    %v6603 = vadd.f32 %v197, %v6602
    %v6604 = vpop.f32.mrf.mxu0
    %v6605 = vadd.f32 %v199, %v6604
    %6606 = vmatprep.mubr.f32.mxu0 0.0
    %6607 = vmatmul.mubr.f32.gmra.mxu0 %v298
    %v6608 = vpop.f32.mrf.mxu0
    %v6609 = vadd.f32 %v203, %v6608
    %v6610 = vpop.f32.mrf.mxu0
    %v6611 = vadd.f32 %v205, %v6610
    %6612 = vdwg.mxu0
    %6613 = vmatprep.subr.mxu0 0.0
    %6614 = vmatpush1.msra.mxu0 0.0
    %6615 = vmatprep.subr.mxu0 0.0
    %6616 = vmatpush1.msra.mxu0 0.0
    %6617 = vmatprep.subr.mxu0 0.0
    %6618 = vmatpush1.msra.mxu0 0.0
    %6619 = vmatprep.subr.mxu0 0.0
    %6620 = vmatpush1.msra.mxu0 0.0
    %6621 = vmatprep.subr.mxu0 0.0
    %6622 = vmatpush1.msra.mxu0 0.0
    %6623 = vmatprep.subr.mxu0 0.0
    %6624 = vmatpush1.msra.mxu0 0.0
    %6625 = vmatprep.subr.mxu0 0.0
    %6626 = vmatpush1.msra.mxu0 0.0
    %6627 = vmatprep.subr.mxu0 0.0
    %6628 = vmatpush1.msra.mxu0 0.0
    %6629 = vmatprep.subr.mxu0 0.0
    %6630 = vmatpush1.msra.mxu0 0.0
    %6631 = vmatprep.subr.mxu0 0.0
    %6632 = vmatpush1.msra.mxu0 0.0
    %6633 = vmatprep.subr.mxu0 0.0
    %6634 = vmatpush1.msra.mxu0 0.0
    %6635 = vmatprep.subr.mxu0 0.0
    %6636 = vmatpush1.msra.mxu0 0.0
    %6637 = vmatprep.subr.mxu0 0.0
    %6638 = vmatpush1.msra.mxu0 0.0
    %6639 = vmatprep.subr.mxu0 %v6529
    %6640 = vmatpush1.msra.mxu0 %v6528
    %6641 = vmatprep.subr.mxu0 %v6525
    %6642 = vmatpush1.msra.mxu0 %v6524
    %6643 = vmatprep.subr.mxu0 %v6521
    %6644 = vmatpush1.msra.mxu0 %v6520
    %6645 = vmatprep.subr.mxu0 0.0
    %6646 = vmatpush2.msra.mxu0 0.0
    %6647 = vmatprep.subr.mxu0 0.0
    %6648 = vmatpush2.msra.mxu0 0.0
    %6649 = vmatprep.subr.mxu0 0.0
    %6650 = vmatpush2.msra.mxu0 0.0
    %6651 = vmatprep.subr.mxu0 0.0
    %6652 = vmatpush2.msra.mxu0 0.0
    %6653 = vmatprep.subr.mxu0 0.0
    %6654 = vmatpush2.msra.mxu0 0.0
    %6655 = vmatprep.subr.mxu0 0.0
    %6656 = vmatpush2.msra.mxu0 0.0
    %6657 = vmatprep.subr.mxu0 0.0
    %6658 = vmatpush2.msra.mxu0 0.0
    %6659 = vmatprep.subr.mxu0 0.0
    %6660 = vmatpush2.msra.mxu0 0.0
    %6661 = vmatprep.subr.mxu0 0.0
    %6662 = vmatpush2.msra.mxu0 0.0
    %6663 = vmatprep.subr.mxu0 0.0
    %6664 = vmatpush2.msra.mxu0 0.0
    %6665 = vmatprep.subr.mxu0 0.0
    %6666 = vmatpush2.msra.mxu0 0.0
    %6667 = vmatprep.subr.mxu0 0.0
    %6668 = vmatpush2.msra.mxu0 0.0
    %6669 = vmatprep.subr.mxu0 0.0
    %6670 = vmatpush2.msra.mxu0 0.0
    %6671 = vmatprep.subr.mxu0 0.0
    %6672 = vmatpush2.msra.mxu0 0.0
    %6673 = vmatprep.subr.mxu0 0.0
    %6674 = vmatpush2.msra.mxu0 0.0
    %6675 = vmatprep.subr.mxu0 0.0
    %6676 = vmatpush2.msra.mxu0 0.0
    %6677 = vmatprep.mubr.f32.mxu0 0.0
    %6678 = vmatmul.mubr.f32.gmra.mxu0 %v292
    %v6679 = vpop.f32.mrf.mxu0
    %v6680 = vadd.f32 %v274, %v6679
    %v6681 = vpop.f32.mrf.mxu0
    %v6682 = vadd.f32 %v276, %v6681
    %6683 = vmatprep.mubr.f32.mxu0 0.0
    %6684 = vmatmul.mubr.f32.gmra.mxu0 %v295
    %v6685 = vpop.f32.mrf.mxu0
    %v6686 = vadd.f32 %v280, %v6685
    %v6687 = vpop.f32.mrf.mxu0
    %v6688 = vadd.f32 %v282, %v6687
    %6689 = vmatprep.mubr.f32.mxu0 0.0
    %6690 = vmatmul.mubr.f32.gmra.mxu0 %v298
    %v6691 = vpop.f32.mrf.mxu0
    %v6692 = vadd.f32 %v286, %v6691
    %v6693 = vpop.f32.mrf.mxu0
    %v6694 = vadd.f32 %v288, %v6693
    %6695 = vdwg.mxu0
    %v6696 = vmax.f32 %v466, %v6597
    %v6697 = vmax.f32 %v466, %v6599
    %v6698 = vmax.f32 %v466, %v6680
    %v6699 = vmax.f32 %v466, %v6682
    %v6700 = vmax.f32 %v466, %v6603
    %v6701 = vmax.f32 %v466, %v6605
    %v6702 = vmax.f32 %v466, %v6686
    %v6703 = vmax.f32 %v466, %v6688
    %v6704 = vmax.f32 %v466, %v6609
    %v6705 = vmax.f32 %v466, %v6611
    %v6706 = vmax.f32 %v466, %v6692
    %v6707 = vmax.f32 %v466, %v6694
    %v6708 = vmin.f32 %v479, %v6696
    %v6709 = vmin.f32 %v479, %v6697
    %v6710 = vmin.f32 %v479, %v6698
    %v6711 = vmin.f32 %v479, %v6699
    %v6712 = vmin.f32 %v479, %v6700
    %v6713 = vmin.f32 %v479, %v6701
    %v6714 = vmin.f32 %v479, %v6702
    %v6715 = vmin.f32 %v479, %v6703
    %v6716 = vmin.f32 %v479, %v6704
    %v6717 = vmin.f32 %v479, %v6705
    %v6718 = vmin.f32 %v479, %v6706
    %v6719 = vmin.f32 %v479, %v6707
    %v6720 = vsub.f32 %v6597, %v6708
    %v6721 = vsub.f32 %v6599, %v6709
    %v6722 = vsub.f32 %v6680, %v6710
    %v6723 = vsub.f32 %v6682, %v6711
    %v6724 = vsub.f32 %v6603, %v6712
    %v6725 = vsub.f32 %v6605, %v6713
    %v6726 = vsub.f32 %v6686, %v6714
    %v6727 = vsub.f32 %v6688, %v6715
    %v6728 = vsub.f32 %v6609, %v6716
    %v6729 = vsub.f32 %v6611, %v6717
    %v6730 = vsub.f32 %v6692, %v6718
    %v6731 = vsub.f32 %v6694, %v6719
    %s6732 = sld [smem:[#allocation3 + $0x1a]]
    %v6733 = vsub.f32 %v6720, %v6480
    %v6734 = vsub.f32 %v6721, %v6481
    %v6735 = vsub.f32 %v6722, %v6482
    %v6736 = vsub.f32 %v6723, %v6483
    %v6737 = vsub.f32 %v6724, %v6484
    %v6738 = vsub.f32 %v6725, %v6485
    %v6739 = vsub.f32 %v6726, %v6486
    %v6740 = vsub.f32 %v6727, %v6487
    %v6741 = vsub.f32 %v6728, %v6488
    %v6742 = vsub.f32 %v6729, %v6489
    %v6743 = vsub.f32 %v6730, %v6490
    %v6744 = vsub.f32 %v6731, %v6491
    %v6745 = vstv %s6732
    %v6746 = vmul.f32 %v6745, %v6733
    %v6747 = vmul.f32 %v6745, %v6734
    %v6748 = vmul.f32 %v6745, %v6735
    %v6749 = vmul.f32 %v6745, %v6736
    %v6750 = vmul.f32 %v6745, %v6737
    %v6751 = vmul.f32 %v6745, %v6738
    %v6752 = vmul.f32 %v6745, %v6739
    %v6753 = vmul.f32 %v6745, %v6740
    %v6754 = vmul.f32 %v6745, %v6741
    %v6755 = vmul.f32 %v6745, %v6742
    %v6756 = vmul.f32 %v6745, %v6743
    %v6757 = vmul.f32 %v6745, %v6744
    %v6758 = vadd.f32 %v6720, %v6746
    %v6759 = vadd.f32 %v6721, %v6747
    %v6760 = vadd.f32 %v6722, %v6748
    %v6761 = vadd.f32 %v6723, %v6749
    %v6762 = vadd.f32 %v6724, %v6750
    %v6763 = vadd.f32 %v6725, %v6751
    %v6764 = vadd.f32 %v6726, %v6752
    %v6765 = vadd.f32 %v6727, %v6753
    %v6766 = vadd.f32 %v6728, %v6754
    %v6767 = vadd.f32 %v6729, %v6755
    %v6768 = vadd.f32 %v6730, %v6756
    %v6769 = vadd.f32 %v6731, %v6757
    %6770 = vmatprep.subr.mxu0 0.0
    %6771 = vmatpush1.msra.mxu0 0.0
    %6772 = vmatprep.subr.mxu0 0.0
    %6773 = vmatpush1.msra.mxu0 0.0
    %6774 = vmatprep.subr.mxu0 0.0
    %6775 = vmatpush1.msra.mxu0 0.0
    %6776 = vmatprep.subr.mxu0 0.0
    %6777 = vmatpush1.msra.mxu0 0.0
    %6778 = vmatprep.subr.mxu0 0.0
    %6779 = vmatpush1.msra.mxu0 0.0
    %6780 = vmatprep.subr.mxu0 0.0
    %6781 = vmatpush1.msra.mxu0 0.0
    %6782 = vmatprep.subr.mxu0 0.0
    %6783 = vmatpush1.msra.mxu0 0.0
    %6784 = vmatprep.subr.mxu0 0.0
    %6785 = vmatpush1.msra.mxu0 0.0
    %6786 = vmatprep.subr.mxu0 0.0
    %6787 = vmatpush1.msra.mxu0 0.0
    %6788 = vmatprep.subr.mxu0 0.0
    %6789 = vmatpush1.msra.mxu0 0.0
    %6790 = vmatprep.subr.mxu0 0.0
    %6791 = vmatpush1.msra.mxu0 0.0
    %6792 = vmatprep.subr.mxu0 0.0
    %6793 = vmatpush1.msra.mxu0 0.0
    %6794 = vmatprep.subr.mxu0 0.0
    %6795 = vmatpush1.msra.mxu0 0.0
    %6796 = vmatprep.subr.mxu0 %v6767
    %6797 = vmatpush1.msra.mxu0 %v6766
    %6798 = vmatprep.subr.mxu0 %v6763
    %6799 = vmatpush1.msra.mxu0 %v6762
    %6800 = vmatprep.subr.mxu0 %v6759
    %6801 = vmatpush1.msra.mxu0 %v6758
    %6802 = vmatprep.subr.mxu0 0.0
    %6803 = vmatpush2.msra.mxu0 0.0
    %6804 = vmatprep.subr.mxu0 0.0
    %6805 = vmatpush2.msra.mxu0 0.0
    %6806 = vmatprep.subr.mxu0 0.0
    %6807 = vmatpush2.msra.mxu0 0.0
    %6808 = vmatprep.subr.mxu0 0.0
    %6809 = vmatpush2.msra.mxu0 0.0
    %6810 = vmatprep.subr.mxu0 0.0
    %6811 = vmatpush2.msra.mxu0 0.0
    %6812 = vmatprep.subr.mxu0 0.0
    %6813 = vmatpush2.msra.mxu0 0.0
    %6814 = vmatprep.subr.mxu0 0.0
    %6815 = vmatpush2.msra.mxu0 0.0
    %6816 = vmatprep.subr.mxu0 0.0
    %6817 = vmatpush2.msra.mxu0 0.0
    %6818 = vmatprep.subr.mxu0 0.0
    %6819 = vmatpush2.msra.mxu0 0.0
    %6820 = vmatprep.subr.mxu0 0.0
    %6821 = vmatpush2.msra.mxu0 0.0
    %6822 = vmatprep.subr.mxu0 0.0
    %6823 = vmatpush2.msra.mxu0 0.0
    %6824 = vmatprep.subr.mxu0 0.0
    %6825 = vmatpush2.msra.mxu0 0.0
    %6826 = vmatprep.subr.mxu0 0.0
    %6827 = vmatpush2.msra.mxu0 0.0
    %6828 = vmatprep.subr.mxu0 0.0
    %6829 = vmatpush2.msra.mxu0 0.0
    %6830 = vmatprep.subr.mxu0 0.0
    %6831 = vmatpush2.msra.mxu0 0.0
    %6832 = vmatprep.subr.mxu0 0.0
    %6833 = vmatpush2.msra.mxu0 0.0
    %6834 = vmatprep.mubr.f32.mxu0 0.0
    %6835 = vmatmul.mubr.f32.gmra.mxu0 %v292
    %v6836 = vpop.f32.mrf.mxu0
    %v6837 = vadd.f32 %v191, %v6836
    %v6838 = vpop.f32.mrf.mxu0
    %v6839 = vadd.f32 %v193, %v6838
    %6840 = vmatprep.mubr.f32.mxu0 0.0
    %6841 = vmatmul.mubr.f32.gmra.mxu0 %v295
    %v6842 = vpop.f32.mrf.mxu0
    %v6843 = vadd.f32 %v197, %v6842
    %v6844 = vpop.f32.mrf.mxu0
    %v6845 = vadd.f32 %v199, %v6844
    %6846 = vmatprep.mubr.f32.mxu0 0.0
    %6847 = vmatmul.mubr.f32.gmra.mxu0 %v298
    %v6848 = vpop.f32.mrf.mxu0
    %v6849 = vadd.f32 %v203, %v6848
    %v6850 = vpop.f32.mrf.mxu0
    %v6851 = vadd.f32 %v205, %v6850
    %6852 = vdwg.mxu0
    %6853 = vmatprep.subr.mxu0 0.0
    %6854 = vmatpush1.msra.mxu0 0.0
    %6855 = vmatprep.subr.mxu0 0.0
    %6856 = vmatpush1.msra.mxu0 0.0
    %6857 = vmatprep.subr.mxu0 0.0
    %6858 = vmatpush1.msra.mxu0 0.0
    %6859 = vmatprep.subr.mxu0 0.0
    %6860 = vmatpush1.msra.mxu0 0.0
    %6861 = vmatprep.subr.mxu0 0.0
    %6862 = vmatpush1.msra.mxu0 0.0
    %6863 = vmatprep.subr.mxu0 0.0
    %6864 = vmatpush1.msra.mxu0 0.0
    %6865 = vmatprep.subr.mxu0 0.0
    %6866 = vmatpush1.msra.mxu0 0.0
    %6867 = vmatprep.subr.mxu0 0.0
    %6868 = vmatpush1.msra.mxu0 0.0
    %6869 = vmatprep.subr.mxu0 0.0
    %6870 = vmatpush1.msra.mxu0 0.0
    %6871 = vmatprep.subr.mxu0 0.0
    %6872 = vmatpush1.msra.mxu0 0.0
    %6873 = vmatprep.subr.mxu0 0.0
    %6874 = vmatpush1.msra.mxu0 0.0
    %6875 = vmatprep.subr.mxu0 0.0
    %6876 = vmatpush1.msra.mxu0 0.0
    %6877 = vmatprep.subr.mxu0 0.0
    %6878 = vmatpush1.msra.mxu0 0.0
    %6879 = vmatprep.subr.mxu0 %v6769
    %6880 = vmatpush1.msra.mxu0 %v6768
    %6881 = vmatprep.subr.mxu0 %v6765
    %6882 = vmatpush1.msra.mxu0 %v6764
    %6883 = vmatprep.subr.mxu0 %v6761
    %6884 = vmatpush1.msra.mxu0 %v6760
    %6885 = vmatprep.subr.mxu0 0.0
    %6886 = vmatpush2.msra.mxu0 0.0
    %6887 = vmatprep.subr.mxu0 0.0
    %6888 = vmatpush2.msra.mxu0 0.0
    %6889 = vmatprep.subr.mxu0 0.0
    %6890 = vmatpush2.msra.mxu0 0.0
    %6891 = vmatprep.subr.mxu0 0.0
    %6892 = vmatpush2.msra.mxu0 0.0
    %6893 = vmatprep.subr.mxu0 0.0
    %6894 = vmatpush2.msra.mxu0 0.0
    %6895 = vmatprep.subr.mxu0 0.0
    %6896 = vmatpush2.msra.mxu0 0.0
    %6897 = vmatprep.subr.mxu0 0.0
    %6898 = vmatpush2.msra.mxu0 0.0
    %6899 = vmatprep.subr.mxu0 0.0
    %6900 = vmatpush2.msra.mxu0 0.0
    %6901 = vmatprep.subr.mxu0 0.0
    %6902 = vmatpush2.msra.mxu0 0.0
    %6903 = vmatprep.subr.mxu0 0.0
    %6904 = vmatpush2.msra.mxu0 0.0
    %6905 = vmatprep.subr.mxu0 0.0
    %6906 = vmatpush2.msra.mxu0 0.0
    %6907 = vmatprep.subr.mxu0 0.0
    %6908 = vmatpush2.msra.mxu0 0.0
    %6909 = vmatprep.subr.mxu0 0.0
    %6910 = vmatpush2.msra.mxu0 0.0
    %6911 = vmatprep.subr.mxu0 0.0
    %6912 = vmatpush2.msra.mxu0 0.0
    %6913 = vmatprep.subr.mxu0 0.0
    %6914 = vmatpush2.msra.mxu0 0.0
    %6915 = vmatprep.subr.mxu0 0.0
    %6916 = vmatpush2.msra.mxu0 0.0
    %6917 = vmatprep.mubr.f32.mxu0 0.0
    %6918 = vmatmul.mubr.f32.gmra.mxu0 %v292
    %v6919 = vpop.f32.mrf.mxu0
    %v6920 = vadd.f32 %v274, %v6919
    %v6921 = vpop.f32.mrf.mxu0
    %v6922 = vadd.f32 %v276, %v6921
    %6923 = vmatprep.mubr.f32.mxu0 0.0
    %6924 = vmatmul.mubr.f32.gmra.mxu0 %v295
    %v6925 = vpop.f32.mrf.mxu0
    %v6926 = vadd.f32 %v280, %v6925
    %v6927 = vpop.f32.mrf.mxu0
    %v6928 = vadd.f32 %v282, %v6927
    %6929 = vmatprep.mubr.f32.mxu0 0.0
    %6930 = vmatmul.mubr.f32.gmra.mxu0 %v298
    %v6931 = vpop.f32.mrf.mxu0
    %v6932 = vadd.f32 %v286, %v6931
    %v6933 = vpop.f32.mrf.mxu0
    %v6934 = vadd.f32 %v288, %v6933
    %6935 = vdwg.mxu0
    %v6936 = vmax.f32 %v466, %v6837
    %v6937 = vmax.f32 %v466, %v6839
    %v6938 = vmax.f32 %v466, %v6920
    %v6939 = vmax.f32 %v466, %v6922
    %v6940 = vmax.f32 %v466, %v6843
    %v6941 = vmax.f32 %v466, %v6845
    %v6942 = vmax.f32 %v466, %v6926
    %v6943 = vmax.f32 %v466, %v6928
    %v6944 = vmax.f32 %v466, %v6849
    %v6945 = vmax.f32 %v466, %v6851
    %v6946 = vmax.f32 %v466, %v6932
    %v6947 = vmax.f32 %v466, %v6934
    %v6948 = vmin.f32 %v479, %v6936
    %v6949 = vmin.f32 %v479, %v6937
    %v6950 = vmin.f32 %v479, %v6938
    %v6951 = vmin.f32 %v479, %v6939
    %v6952 = vmin.f32 %v479, %v6940
    %v6953 = vmin.f32 %v479, %v6941
    %v6954 = vmin.f32 %v479, %v6942
    %v6955 = vmin.f32 %v479, %v6943
    %v6956 = vmin.f32 %v479, %v6944
    %v6957 = vmin.f32 %v479, %v6945
    %v6958 = vmin.f32 %v479, %v6946
    %v6959 = vmin.f32 %v479, %v6947
    %v6960 = vsub.f32 %v6837, %v6948
    %v6961 = vsub.f32 %v6839, %v6949
    %v6962 = vsub.f32 %v6920, %v6950
    %v6963 = vsub.f32 %v6922, %v6951
    %v6964 = vsub.f32 %v6843, %v6952
    %v6965 = vsub.f32 %v6845, %v6953
    %v6966 = vsub.f32 %v6926, %v6954
    %v6967 = vsub.f32 %v6928, %v6955
    %v6968 = vsub.f32 %v6849, %v6956
    %v6969 = vsub.f32 %v6851, %v6957
    %v6970 = vsub.f32 %v6932, %v6958
    %v6971 = vsub.f32 %v6934, %v6959
    %s6972 = sld [smem:[#allocation3 + $0x1b]]
    %v6973 = vsub.f32 %v6960, %v6720
    %v6974 = vsub.f32 %v6961, %v6721
    %v6975 = vsub.f32 %v6962, %v6722
    %v6976 = vsub.f32 %v6963, %v6723
    %v6977 = vsub.f32 %v6964, %v6724
    %v6978 = vsub.f32 %v6965, %v6725
    %v6979 = vsub.f32 %v6966, %v6726
    %v6980 = vsub.f32 %v6967, %v6727
    %v6981 = vsub.f32 %v6968, %v6728
    %v6982 = vsub.f32 %v6969, %v6729
    %v6983 = vsub.f32 %v6970, %v6730
    %v6984 = vsub.f32 %v6971, %v6731
    %v6985 = vstv %s6972
    %v6986 = vmul.f32 %v6985, %v6973
    %v6987 = vmul.f32 %v6985, %v6974
    %v6988 = vmul.f32 %v6985, %v6975
    %v6989 = vmul.f32 %v6985, %v6976
    %v6990 = vmul.f32 %v6985, %v6977
    %v6991 = vmul.f32 %v6985, %v6978
    %v6992 = vmul.f32 %v6985, %v6979
    %v6993 = vmul.f32 %v6985, %v6980
    %v6994 = vmul.f32 %v6985, %v6981
    %v6995 = vmul.f32 %v6985, %v6982
    %v6996 = vmul.f32 %v6985, %v6983
    %v6997 = vmul.f32 %v6985, %v6984
    %v6998 = vadd.f32 %v6960, %v6986
    %v6999 = vadd.f32 %v6961, %v6987
    %v7000 = vadd.f32 %v6962, %v6988
    %v7001 = vadd.f32 %v6963, %v6989
    %v7002 = vadd.f32 %v6964, %v6990
    %v7003 = vadd.f32 %v6965, %v6991
    %v7004 = vadd.f32 %v6966, %v6992
    %v7005 = vadd.f32 %v6967, %v6993
    %v7006 = vadd.f32 %v6968, %v6994
    %v7007 = vadd.f32 %v6969, %v6995
    %v7008 = vadd.f32 %v6970, %v6996
    %v7009 = vadd.f32 %v6971, %v6997
    %7010 = vmatprep.subr.mxu0 0.0
    %7011 = vmatpush1.msra.mxu0 0.0
    %7012 = vmatprep.subr.mxu0 0.0
    %7013 = vmatpush1.msra.mxu0 0.0
    %7014 = vmatprep.subr.mxu0 0.0
    %7015 = vmatpush1.msra.mxu0 0.0
    %7016 = vmatprep.subr.mxu0 0.0
    %7017 = vmatpush1.msra.mxu0 0.0
    %7018 = vmatprep.subr.mxu0 0.0
    %7019 = vmatpush1.msra.mxu0 0.0
    %7020 = vmatprep.subr.mxu0 0.0
    %7021 = vmatpush1.msra.mxu0 0.0
    %7022 = vmatprep.subr.mxu0 0.0
    %7023 = vmatpush1.msra.mxu0 0.0
    %7024 = vmatprep.subr.mxu0 0.0
    %7025 = vmatpush1.msra.mxu0 0.0
    %7026 = vmatprep.subr.mxu0 0.0
    %7027 = vmatpush1.msra.mxu0 0.0
    %7028 = vmatprep.subr.mxu0 0.0
    %7029 = vmatpush1.msra.mxu0 0.0
    %7030 = vmatprep.subr.mxu0 0.0
    %7031 = vmatpush1.msra.mxu0 0.0
    %7032 = vmatprep.subr.mxu0 0.0
    %7033 = vmatpush1.msra.mxu0 0.0
    %7034 = vmatprep.subr.mxu0 0.0
    %7035 = vmatpush1.msra.mxu0 0.0
    %7036 = vmatprep.subr.mxu0 %v7007
    %7037 = vmatpush1.msra.mxu0 %v7006
    %7038 = vmatprep.subr.mxu0 %v7003
    %7039 = vmatpush1.msra.mxu0 %v7002
    %7040 = vmatprep.subr.mxu0 %v6999
    %7041 = vmatpush1.msra.mxu0 %v6998
    %7042 = vmatprep.subr.mxu0 0.0
    %7043 = vmatpush2.msra.mxu0 0.0
    %7044 = vmatprep.subr.mxu0 0.0
    %7045 = vmatpush2.msra.mxu0 0.0
    %7046 = vmatprep.subr.mxu0 0.0
    %7047 = vmatpush2.msra.mxu0 0.0
    %7048 = vmatprep.subr.mxu0 0.0
    %7049 = vmatpush2.msra.mxu0 0.0
    %7050 = vmatprep.subr.mxu0 0.0
    %7051 = vmatpush2.msra.mxu0 0.0
    %7052 = vmatprep.subr.mxu0 0.0
    %7053 = vmatpush2.msra.mxu0 0.0
    %7054 = vmatprep.subr.mxu0 0.0
    %7055 = vmatpush2.msra.mxu0 0.0
    %7056 = vmatprep.subr.mxu0 0.0
    %7057 = vmatpush2.msra.mxu0 0.0
    %7058 = vmatprep.subr.mxu0 0.0
    %7059 = vmatpush2.msra.mxu0 0.0
    %7060 = vmatprep.subr.mxu0 0.0
    %7061 = vmatpush2.msra.mxu0 0.0
    %7062 = vmatprep.subr.mxu0 0.0
    %7063 = vmatpush2.msra.mxu0 0.0
    %7064 = vmatprep.subr.mxu0 0.0
    %7065 = vmatpush2.msra.mxu0 0.0
    %7066 = vmatprep.subr.mxu0 0.0
    %7067 = vmatpush2.msra.mxu0 0.0
    %7068 = vmatprep.subr.mxu0 0.0
    %7069 = vmatpush2.msra.mxu0 0.0
    %7070 = vmatprep.subr.mxu0 0.0
    %7071 = vmatpush2.msra.mxu0 0.0
    %7072 = vmatprep.subr.mxu0 0.0
    %7073 = vmatpush2.msra.mxu0 0.0
    %7074 = vmatprep.mubr.f32.mxu0 0.0
    %7075 = vmatmul.mubr.f32.gmra.mxu0 %v292
    %v7076 = vpop.f32.mrf.mxu0
    %v7077 = vadd.f32 %v191, %v7076
    %v7078 = vpop.f32.mrf.mxu0
    %v7079 = vadd.f32 %v193, %v7078
    %7080 = vmatprep.mubr.f32.mxu0 0.0
    %7081 = vmatmul.mubr.f32.gmra.mxu0 %v295
    %v7082 = vpop.f32.mrf.mxu0
    %v7083 = vadd.f32 %v197, %v7082
    %v7084 = vpop.f32.mrf.mxu0
    %v7085 = vadd.f32 %v199, %v7084
    %7086 = vmatprep.mubr.f32.mxu0 0.0
    %7087 = vmatmul.mubr.f32.gmra.mxu0 %v298
    %v7088 = vpop.f32.mrf.mxu0
    %v7089 = vadd.f32 %v203, %v7088
    %v7090 = vpop.f32.mrf.mxu0
    %v7091 = vadd.f32 %v205, %v7090
    %7092 = vdwg.mxu0
    %7093 = vmatprep.subr.mxu0 0.0
    %7094 = vmatpush1.msra.mxu0 0.0
    %7095 = vmatprep.subr.mxu0 0.0
    %7096 = vmatpush1.msra.mxu0 0.0
    %7097 = vmatprep.subr.mxu0 0.0
    %7098 = vmatpush1.msra.mxu0 0.0
    %7099 = vmatprep.subr.mxu0 0.0
    %7100 = vmatpush1.msra.mxu0 0.0
    %7101 = vmatprep.subr.mxu0 0.0
    %7102 = vmatpush1.msra.mxu0 0.0
    %7103 = vmatprep.subr.mxu0 0.0
    %7104 = vmatpush1.msra.mxu0 0.0
    %7105 = vmatprep.subr.mxu0 0.0
    %7106 = vmatpush1.msra.mxu0 0.0
    %7107 = vmatprep.subr.mxu0 0.0
    %7108 = vmatpush1.msra.mxu0 0.0
    %7109 = vmatprep.subr.mxu0 0.0
    %7110 = vmatpush1.msra.mxu0 0.0
    %7111 = vmatprep.subr.mxu0 0.0
    %7112 = vmatpush1.msra.mxu0 0.0
    %7113 = vmatprep.subr.mxu0 0.0
    %7114 = vmatpush1.msra.mxu0 0.0
    %7115 = vmatprep.subr.mxu0 0.0
    %7116 = vmatpush1.msra.mxu0 0.0
    %7117 = vmatprep.subr.mxu0 0.0
    %7118 = vmatpush1.msra.mxu0 0.0
    %7119 = vmatprep.subr.mxu0 %v7009
    %7120 = vmatpush1.msra.mxu0 %v7008
    %7121 = vmatprep.subr.mxu0 %v7005
    %7122 = vmatpush1.msra.mxu0 %v7004
    %7123 = vmatprep.subr.mxu0 %v7001
    %7124 = vmatpush1.msra.mxu0 %v7000
    %7125 = vmatprep.subr.mxu0 0.0
    %7126 = vmatpush2.msra.mxu0 0.0
    %7127 = vmatprep.subr.mxu0 0.0
    %7128 = vmatpush2.msra.mxu0 0.0
    %7129 = vmatprep.subr.mxu0 0.0
    %7130 = vmatpush2.msra.mxu0 0.0
    %7131 = vmatprep.subr.mxu0 0.0
    %7132 = vmatpush2.msra.mxu0 0.0
    %7133 = vmatprep.subr.mxu0 0.0
    %7134 = vmatpush2.msra.mxu0 0.0
    %7135 = vmatprep.subr.mxu0 0.0
    %7136 = vmatpush2.msra.mxu0 0.0
    %7137 = vmatprep.subr.mxu0 0.0
    %7138 = vmatpush2.msra.mxu0 0.0
    %7139 = vmatprep.subr.mxu0 0.0
    %7140 = vmatpush2.msra.mxu0 0.0
    %7141 = vmatprep.subr.mxu0 0.0
    %7142 = vmatpush2.msra.mxu0 0.0
    %7143 = vmatprep.subr.mxu0 0.0
    %7144 = vmatpush2.msra.mxu0 0.0
    %7145 = vmatprep.subr.mxu0 0.0
    %7146 = vmatpush2.msra.mxu0 0.0
    %7147 = vmatprep.subr.mxu0 0.0
    %7148 = vmatpush2.msra.mxu0 0.0
    %7149 = vmatprep.subr.mxu0 0.0
    %7150 = vmatpush2.msra.mxu0 0.0
    %7151 = vmatprep.subr.mxu0 0.0
    %7152 = vmatpush2.msra.mxu0 0.0
    %7153 = vmatprep.subr.mxu0 0.0
    %7154 = vmatpush2.msra.mxu0 0.0
    %7155 = vmatprep.subr.mxu0 0.0
    %7156 = vmatpush2.msra.mxu0 0.0
    %7157 = vmatprep.mubr.f32.mxu0 0.0
    %7158 = vmatmul.mubr.f32.gmra.mxu0 %v292
    %v7159 = vpop.f32.mrf.mxu0
    %v7160 = vadd.f32 %v274, %v7159
    %v7161 = vpop.f32.mrf.mxu0
    %v7162 = vadd.f32 %v276, %v7161
    %7163 = vmatprep.mubr.f32.mxu0 0.0
    %7164 = vmatmul.mubr.f32.gmra.mxu0 %v295
    %v7165 = vpop.f32.mrf.mxu0
    %v7166 = vadd.f32 %v280, %v7165
    %v7167 = vpop.f32.mrf.mxu0
    %v7168 = vadd.f32 %v282, %v7167
    %7169 = vmatprep.mubr.f32.mxu0 0.0
    %7170 = vmatmul.mubr.f32.gmra.mxu0 %v298
    %v7171 = vpop.f32.mrf.mxu0
    %v7172 = vadd.f32 %v286, %v7171
    %v7173 = vpop.f32.mrf.mxu0
    %v7174 = vadd.f32 %v288, %v7173
    %7175 = vdwg.mxu0
    %v7176 = vmax.f32 %v466, %v7077
    %v7177 = vmax.f32 %v466, %v7079
    %v7178 = vmax.f32 %v466, %v7160
    %v7179 = vmax.f32 %v466, %v7162
    %v7180 = vmax.f32 %v466, %v7083
    %v7181 = vmax.f32 %v466, %v7085
    %v7182 = vmax.f32 %v466, %v7166
    %v7183 = vmax.f32 %v466, %v7168
    %v7184 = vmax.f32 %v466, %v7089
    %v7185 = vmax.f32 %v466, %v7091
    %v7186 = vmax.f32 %v466, %v7172
    %v7187 = vmax.f32 %v466, %v7174
    %v7188 = vmin.f32 %v479, %v7176
    %v7189 = vmin.f32 %v479, %v7177
    %v7190 = vmin.f32 %v479, %v7178
    %v7191 = vmin.f32 %v479, %v7179
    %v7192 = vmin.f32 %v479, %v7180
    %v7193 = vmin.f32 %v479, %v7181
    %v7194 = vmin.f32 %v479, %v7182
    %v7195 = vmin.f32 %v479, %v7183
    %v7196 = vmin.f32 %v479, %v7184
    %v7197 = vmin.f32 %v479, %v7185
    %v7198 = vmin.f32 %v479, %v7186
    %v7199 = vmin.f32 %v479, %v7187
    %v7200 = vsub.f32 %v7077, %v7188
    %v7201 = vsub.f32 %v7079, %v7189
    %v7202 = vsub.f32 %v7160, %v7190
    %v7203 = vsub.f32 %v7162, %v7191
    %v7204 = vsub.f32 %v7083, %v7192
    %v7205 = vsub.f32 %v7085, %v7193
    %v7206 = vsub.f32 %v7166, %v7194
    %v7207 = vsub.f32 %v7168, %v7195
    %v7208 = vsub.f32 %v7089, %v7196
    %v7209 = vsub.f32 %v7091, %v7197
    %v7210 = vsub.f32 %v7172, %v7198
    %v7211 = vsub.f32 %v7174, %v7199
    %s7212 = sld [smem:[#allocation3 + $0x1c]]
    %v7213 = vsub.f32 %v7200, %v6960
    %v7214 = vsub.f32 %v7201, %v6961
    %v7215 = vsub.f32 %v7202, %v6962
    %v7216 = vsub.f32 %v7203, %v6963
    %v7217 = vsub.f32 %v7204, %v6964
    %v7218 = vsub.f32 %v7205, %v6965
    %v7219 = vsub.f32 %v7206, %v6966
    %v7220 = vsub.f32 %v7207, %v6967
    %v7221 = vsub.f32 %v7208, %v6968
    %v7222 = vsub.f32 %v7209, %v6969
    %v7223 = vsub.f32 %v7210, %v6970
    %v7224 = vsub.f32 %v7211, %v6971
    %v7225 = vstv %s7212
    %v7226 = vmul.f32 %v7225, %v7213
    %v7227 = vmul.f32 %v7225, %v7214
    %v7228 = vmul.f32 %v7225, %v7215
    %v7229 = vmul.f32 %v7225, %v7216
    %v7230 = vmul.f32 %v7225, %v7217
    %v7231 = vmul.f32 %v7225, %v7218
    %v7232 = vmul.f32 %v7225, %v7219
    %v7233 = vmul.f32 %v7225, %v7220
    %v7234 = vmul.f32 %v7225, %v7221
    %v7235 = vmul.f32 %v7225, %v7222
    %v7236 = vmul.f32 %v7225, %v7223
    %v7237 = vmul.f32 %v7225, %v7224
    %v7238 = vadd.f32 %v7200, %v7226
    %v7239 = vadd.f32 %v7201, %v7227
    %v7240 = vadd.f32 %v7202, %v7228
    %v7241 = vadd.f32 %v7203, %v7229
    %v7242 = vadd.f32 %v7204, %v7230
    %v7243 = vadd.f32 %v7205, %v7231
    %v7244 = vadd.f32 %v7206, %v7232
    %v7245 = vadd.f32 %v7207, %v7233
    %v7246 = vadd.f32 %v7208, %v7234
    %v7247 = vadd.f32 %v7209, %v7235
    %v7248 = vadd.f32 %v7210, %v7236
    %v7249 = vadd.f32 %v7211, %v7237
    %7250 = vmatprep.subr.mxu0 0.0
    %7251 = vmatpush1.msra.mxu0 0.0
    %7252 = vmatprep.subr.mxu0 0.0
    %7253 = vmatpush1.msra.mxu0 0.0
    %7254 = vmatprep.subr.mxu0 0.0
    %7255 = vmatpush1.msra.mxu0 0.0
    %7256 = vmatprep.subr.mxu0 0.0
    %7257 = vmatpush1.msra.mxu0 0.0
    %7258 = vmatprep.subr.mxu0 0.0
    %7259 = vmatpush1.msra.mxu0 0.0
    %7260 = vmatprep.subr.mxu0 0.0
    %7261 = vmatpush1.msra.mxu0 0.0
    %7262 = vmatprep.subr.mxu0 0.0
    %7263 = vmatpush1.msra.mxu0 0.0
    %7264 = vmatprep.subr.mxu0 0.0
    %7265 = vmatpush1.msra.mxu0 0.0
    %7266 = vmatprep.subr.mxu0 0.0
    %7267 = vmatpush1.msra.mxu0 0.0
    %7268 = vmatprep.subr.mxu0 0.0
    %7269 = vmatpush1.msra.mxu0 0.0
    %7270 = vmatprep.subr.mxu0 0.0
    %7271 = vmatpush1.msra.mxu0 0.0
    %7272 = vmatprep.subr.mxu0 0.0
    %7273 = vmatpush1.msra.mxu0 0.0
    %7274 = vmatprep.subr.mxu0 0.0
    %7275 = vmatpush1.msra.mxu0 0.0
    %7276 = vmatprep.subr.mxu0 %v7247
    %7277 = vmatpush1.msra.mxu0 %v7246
    %7278 = vmatprep.subr.mxu0 %v7243
    %7279 = vmatpush1.msra.mxu0 %v7242
    %7280 = vmatprep.subr.mxu0 %v7239
    %7281 = vmatpush1.msra.mxu0 %v7238
    %7282 = vmatprep.subr.mxu0 0.0
    %7283 = vmatpush2.msra.mxu0 0.0
    %7284 = vmatprep.subr.mxu0 0.0
    %7285 = vmatpush2.msra.mxu0 0.0
    %7286 = vmatprep.subr.mxu0 0.0
    %7287 = vmatpush2.msra.mxu0 0.0
    %7288 = vmatprep.subr.mxu0 0.0
    %7289 = vmatpush2.msra.mxu0 0.0
    %7290 = vmatprep.subr.mxu0 0.0
    %7291 = vmatpush2.msra.mxu0 0.0
    %7292 = vmatprep.subr.mxu0 0.0
    %7293 = vmatpush2.msra.mxu0 0.0
    %7294 = vmatprep.subr.mxu0 0.0
    %7295 = vmatpush2.msra.mxu0 0.0
    %7296 = vmatprep.subr.mxu0 0.0
    %7297 = vmatpush2.msra.mxu0 0.0
    %7298 = vmatprep.subr.mxu0 0.0
    %7299 = vmatpush2.msra.mxu0 0.0
    %7300 = vmatprep.subr.mxu0 0.0
    %7301 = vmatpush2.msra.mxu0 0.0
    %7302 = vmatprep.subr.mxu0 0.0
    %7303 = vmatpush2.msra.mxu0 0.0
    %7304 = vmatprep.subr.mxu0 0.0
    %7305 = vmatpush2.msra.mxu0 0.0
    %7306 = vmatprep.subr.mxu0 0.0
    %7307 = vmatpush2.msra.mxu0 0.0
    %7308 = vmatprep.subr.mxu0 0.0
    %7309 = vmatpush2.msra.mxu0 0.0
    %7310 = vmatprep.subr.mxu0 0.0
    %7311 = vmatpush2.msra.mxu0 0.0
    %7312 = vmatprep.subr.mxu0 0.0
    %7313 = vmatpush2.msra.mxu0 0.0
    %7314 = vmatprep.mubr.f32.mxu0 0.0
    %7315 = vmatmul.mubr.f32.gmra.mxu0 %v292
    %v7316 = vpop.f32.mrf.mxu0
    %v7317 = vadd.f32 %v191, %v7316
    %v7318 = vpop.f32.mrf.mxu0
    %v7319 = vadd.f32 %v193, %v7318
    %7320 = vmatprep.mubr.f32.mxu0 0.0
    %7321 = vmatmul.mubr.f32.gmra.mxu0 %v295
    %v7322 = vpop.f32.mrf.mxu0
    %v7323 = vadd.f32 %v197, %v7322
    %v7324 = vpop.f32.mrf.mxu0
    %v7325 = vadd.f32 %v199, %v7324
    %7326 = vmatprep.mubr.f32.mxu0 0.0
    %7327 = vmatmul.mubr.f32.gmra.mxu0 %v298
    %v7328 = vpop.f32.mrf.mxu0
    %v7329 = vadd.f32 %v203, %v7328
    %v7330 = vpop.f32.mrf.mxu0
    %v7331 = vadd.f32 %v205, %v7330
    %7332 = vdwg.mxu0
    %7333 = vmatprep.subr.mxu0 0.0
    %7334 = vmatpush1.msra.mxu0 0.0
    %7335 = vmatprep.subr.mxu0 0.0
    %7336 = vmatpush1.msra.mxu0 0.0
    %7337 = vmatprep.subr.mxu0 0.0
    %7338 = vmatpush1.msra.mxu0 0.0
    %7339 = vmatprep.subr.mxu0 0.0
    %7340 = vmatpush1.msra.mxu0 0.0
    %7341 = vmatprep.subr.mxu0 0.0
    %7342 = vmatpush1.msra.mxu0 0.0
    %7343 = vmatprep.subr.mxu0 0.0
    %7344 = vmatpush1.msra.mxu0 0.0
    %7345 = vmatprep.subr.mxu0 0.0
    %7346 = vmatpush1.msra.mxu0 0.0
    %7347 = vmatprep.subr.mxu0 0.0
    %7348 = vmatpush1.msra.mxu0 0.0
    %7349 = vmatprep.subr.mxu0 0.0
    %7350 = vmatpush1.msra.mxu0 0.0
    %7351 = vmatprep.subr.mxu0 0.0
    %7352 = vmatpush1.msra.mxu0 0.0
    %7353 = vmatprep.subr.mxu0 0.0
    %7354 = vmatpush1.msra.mxu0 0.0
    %7355 = vmatprep.subr.mxu0 0.0
    %7356 = vmatpush1.msra.mxu0 0.0
    %7357 = vmatprep.subr.mxu0 0.0
    %7358 = vmatpush1.msra.mxu0 0.0
    %7359 = vmatprep.subr.mxu0 %v7249
    %7360 = vmatpush1.msra.mxu0 %v7248
    %7361 = vmatprep.subr.mxu0 %v7245
    %7362 = vmatpush1.msra.mxu0 %v7244
    %7363 = vmatprep.subr.mxu0 %v7241
    %7364 = vmatpush1.msra.mxu0 %v7240
    %7365 = vmatprep.subr.mxu0 0.0
    %7366 = vmatpush2.msra.mxu0 0.0
    %7367 = vmatprep.subr.mxu0 0.0
    %7368 = vmatpush2.msra.mxu0 0.0
    %7369 = vmatprep.subr.mxu0 0.0
    %7370 = vmatpush2.msra.mxu0 0.0
    %7371 = vmatprep.subr.mxu0 0.0
    %7372 = vmatpush2.msra.mxu0 0.0
    %7373 = vmatprep.subr.mxu0 0.0
    %7374 = vmatpush2.msra.mxu0 0.0
    %7375 = vmatprep.subr.mxu0 0.0
    %7376 = vmatpush2.msra.mxu0 0.0
    %7377 = vmatprep.subr.mxu0 0.0
    %7378 = vmatpush2.msra.mxu0 0.0
    %7379 = vmatprep.subr.mxu0 0.0
    %7380 = vmatpush2.msra.mxu0 0.0
    %7381 = vmatprep.subr.mxu0 0.0
    %7382 = vmatpush2.msra.mxu0 0.0
    %7383 = vmatprep.subr.mxu0 0.0
    %7384 = vmatpush2.msra.mxu0 0.0
    %7385 = vmatprep.subr.mxu0 0.0
    %7386 = vmatpush2.msra.mxu0 0.0
    %7387 = vmatprep.subr.mxu0 0.0
    %7388 = vmatpush2.msra.mxu0 0.0
    %7389 = vmatprep.subr.mxu0 0.0
    %7390 = vmatpush2.msra.mxu0 0.0
    %7391 = vmatprep.subr.mxu0 0.0
    %7392 = vmatpush2.msra.mxu0 0.0
    %7393 = vmatprep.subr.mxu0 0.0
    %7394 = vmatpush2.msra.mxu0 0.0
    %7395 = vmatprep.subr.mxu0 0.0
    %7396 = vmatpush2.msra.mxu0 0.0
    %7397 = vmatprep.mubr.f32.mxu0 0.0
    %7398 = vmatmul.mubr.f32.gmra.mxu0 %v292
    %v7399 = vpop.f32.mrf.mxu0
    %v7400 = vadd.f32 %v274, %v7399
    %v7401 = vpop.f32.mrf.mxu0
    %v7402 = vadd.f32 %v276, %v7401
    %7403 = vmatprep.mubr.f32.mxu0 0.0
    %7404 = vmatmul.mubr.f32.gmra.mxu0 %v295
    %v7405 = vpop.f32.mrf.mxu0
    %v7406 = vadd.f32 %v280, %v7405
    %v7407 = vpop.f32.mrf.mxu0
    %v7408 = vadd.f32 %v282, %v7407
    %7409 = vmatprep.mubr.f32.mxu0 0.0
    %7410 = vmatmul.mubr.f32.gmra.mxu0 %v298
    %v7411 = vpop.f32.mrf.mxu0
    %v7412 = vadd.f32 %v286, %v7411
    %v7413 = vpop.f32.mrf.mxu0
    %v7414 = vadd.f32 %v288, %v7413
    %7415 = vdwg.mxu0
    %v7416 = vmax.f32 %v466, %v7317
    %v7417 = vmax.f32 %v466, %v7319
    %v7418 = vmax.f32 %v466, %v7400
    %v7419 = vmax.f32 %v466, %v7402
    %v7420 = vmax.f32 %v466, %v7323
    %v7421 = vmax.f32 %v466, %v7325
    %v7422 = vmax.f32 %v466, %v7406
    %v7423 = vmax.f32 %v466, %v7408
    %v7424 = vmax.f32 %v466, %v7329
    %v7425 = vmax.f32 %v466, %v7331
    %v7426 = vmax.f32 %v466, %v7412
    %v7427 = vmax.f32 %v466, %v7414
    %v7428 = vmin.f32 %v479, %v7416
    %v7429 = vmin.f32 %v479, %v7417
    %v7430 = vmin.f32 %v479, %v7418
    %v7431 = vmin.f32 %v479, %v7419
    %v7432 = vmin.f32 %v479, %v7420
    %v7433 = vmin.f32 %v479, %v7421
    %v7434 = vmin.f32 %v479, %v7422
    %v7435 = vmin.f32 %v479, %v7423
    %v7436 = vmin.f32 %v479, %v7424
    %v7437 = vmin.f32 %v479, %v7425
    %v7438 = vmin.f32 %v479, %v7426
    %v7439 = vmin.f32 %v479, %v7427
    %v7440 = vsub.f32 %v7317, %v7428
    %v7441 = vsub.f32 %v7319, %v7429
    %v7442 = vsub.f32 %v7400, %v7430
    %v7443 = vsub.f32 %v7402, %v7431
    %v7444 = vsub.f32 %v7323, %v7432
    %v7445 = vsub.f32 %v7325, %v7433
    %v7446 = vsub.f32 %v7406, %v7434
    %v7447 = vsub.f32 %v7408, %v7435
    %v7448 = vsub.f32 %v7329, %v7436
    %v7449 = vsub.f32 %v7331, %v7437
    %v7450 = vsub.f32 %v7412, %v7438
    %v7451 = vsub.f32 %v7414, %v7439
    %s7452 = sld [smem:[#allocation3 + $0x1d]]
    %v7453 = vsub.f32 %v7440, %v7200
    %v7454 = vsub.f32 %v7441, %v7201
    %v7455 = vsub.f32 %v7442, %v7202
    %v7456 = vsub.f32 %v7443, %v7203
    %v7457 = vsub.f32 %v7444, %v7204
    %v7458 = vsub.f32 %v7445, %v7205
    %v7459 = vsub.f32 %v7446, %v7206
    %v7460 = vsub.f32 %v7447, %v7207
    %v7461 = vsub.f32 %v7448, %v7208
    %v7462 = vsub.f32 %v7449, %v7209
    %v7463 = vsub.f32 %v7450, %v7210
    %v7464 = vsub.f32 %v7451, %v7211
    %v7465 = vstv %s7452
    %v7466 = vmul.f32 %v7465, %v7453
    %v7467 = vmul.f32 %v7465, %v7454
    %v7468 = vmul.f32 %v7465, %v7455
    %v7469 = vmul.f32 %v7465, %v7456
    %v7470 = vmul.f32 %v7465, %v7457
    %v7471 = vmul.f32 %v7465, %v7458
    %v7472 = vmul.f32 %v7465, %v7459
    %v7473 = vmul.f32 %v7465, %v7460
    %v7474 = vmul.f32 %v7465, %v7461
    %v7475 = vmul.f32 %v7465, %v7462
    %v7476 = vmul.f32 %v7465, %v7463
    %v7477 = vmul.f32 %v7465, %v7464
    %v7478 = vadd.f32 %v7440, %v7466
    %v7479 = vadd.f32 %v7441, %v7467
    %v7480 = vadd.f32 %v7442, %v7468
    %v7481 = vadd.f32 %v7443, %v7469
    %v7482 = vadd.f32 %v7444, %v7470
    %v7483 = vadd.f32 %v7445, %v7471
    %v7484 = vadd.f32 %v7446, %v7472
    %v7485 = vadd.f32 %v7447, %v7473
    %v7486 = vadd.f32 %v7448, %v7474
    %v7487 = vadd.f32 %v7449, %v7475
    %v7488 = vadd.f32 %v7450, %v7476
    %v7489 = vadd.f32 %v7451, %v7477
    %7490 = vmatprep.subr.mxu0 0.0
    %7491 = vmatpush1.msra.mxu0 0.0
    %7492 = vmatprep.subr.mxu0 0.0
    %7493 = vmatpush1.msra.mxu0 0.0
    %7494 = vmatprep.subr.mxu0 0.0
    %7495 = vmatpush1.msra.mxu0 0.0
    %7496 = vmatprep.subr.mxu0 0.0
    %7497 = vmatpush1.msra.mxu0 0.0
    %7498 = vmatprep.subr.mxu0 0.0
    %7499 = vmatpush1.msra.mxu0 0.0
    %7500 = vmatprep.subr.mxu0 0.0
    %7501 = vmatpush1.msra.mxu0 0.0
    %7502 = vmatprep.subr.mxu0 0.0
    %7503 = vmatpush1.msra.mxu0 0.0
    %7504 = vmatprep.subr.mxu0 0.0
    %7505 = vmatpush1.msra.mxu0 0.0
    %7506 = vmatprep.subr.mxu0 0.0
    %7507 = vmatpush1.msra.mxu0 0.0
    %7508 = vmatprep.subr.mxu0 0.0
    %7509 = vmatpush1.msra.mxu0 0.0
    %7510 = vmatprep.subr.mxu0 0.0
    %7511 = vmatpush1.msra.mxu0 0.0
    %7512 = vmatprep.subr.mxu0 0.0
    %7513 = vmatpush1.msra.mxu0 0.0
    %7514 = vmatprep.subr.mxu0 0.0
    %7515 = vmatpush1.msra.mxu0 0.0
    %7516 = vmatprep.subr.mxu0 %v7487
    %7517 = vmatpush1.msra.mxu0 %v7486
    %7518 = vmatprep.subr.mxu0 %v7483
    %7519 = vmatpush1.msra.mxu0 %v7482
    %7520 = vmatprep.subr.mxu0 %v7479
    %7521 = vmatpush1.msra.mxu0 %v7478
    %7522 = vmatprep.subr.mxu0 0.0
    %7523 = vmatpush2.msra.mxu0 0.0
    %7524 = vmatprep.subr.mxu0 0.0
    %7525 = vmatpush2.msra.mxu0 0.0
    %7526 = vmatprep.subr.mxu0 0.0
    %7527 = vmatpush2.msra.mxu0 0.0
    %7528 = vmatprep.subr.mxu0 0.0
    %7529 = vmatpush2.msra.mxu0 0.0
    %7530 = vmatprep.subr.mxu0 0.0
    %7531 = vmatpush2.msra.mxu0 0.0
    %7532 = vmatprep.subr.mxu0 0.0
    %7533 = vmatpush2.msra.mxu0 0.0
    %7534 = vmatprep.subr.mxu0 0.0
    %7535 = vmatpush2.msra.mxu0 0.0
    %7536 = vmatprep.subr.mxu0 0.0
    %7537 = vmatpush2.msra.mxu0 0.0
    %7538 = vmatprep.subr.mxu0 0.0
    %7539 = vmatpush2.msra.mxu0 0.0
    %7540 = vmatprep.subr.mxu0 0.0
    %7541 = vmatpush2.msra.mxu0 0.0
    %7542 = vmatprep.subr.mxu0 0.0
    %7543 = vmatpush2.msra.mxu0 0.0
    %7544 = vmatprep.subr.mxu0 0.0
    %7545 = vmatpush2.msra.mxu0 0.0
    %7546 = vmatprep.subr.mxu0 0.0
    %7547 = vmatpush2.msra.mxu0 0.0
    %7548 = vmatprep.subr.mxu0 0.0
    %7549 = vmatpush2.msra.mxu0 0.0
    %7550 = vmatprep.subr.mxu0 0.0
    %7551 = vmatpush2.msra.mxu0 0.0
    %7552 = vmatprep.subr.mxu0 0.0
    %7553 = vmatpush2.msra.mxu0 0.0
    %7554 = vmatprep.mubr.f32.mxu0 0.0
    %7555 = vmatmul.mubr.f32.gmra.mxu0 %v292
    %v7556 = vpop.f32.mrf.mxu0
    %v7557 = vadd.f32 %v191, %v7556
    %v7558 = vpop.f32.mrf.mxu0
    %v7559 = vadd.f32 %v193, %v7558
    %7560 = vmatprep.mubr.f32.mxu0 0.0
    %7561 = vmatmul.mubr.f32.gmra.mxu0 %v295
    %v7562 = vpop.f32.mrf.mxu0
    %v7563 = vadd.f32 %v197, %v7562
    %v7564 = vpop.f32.mrf.mxu0
    %v7565 = vadd.f32 %v199, %v7564
    %7566 = vmatprep.mubr.f32.mxu0 0.0
    %7567 = vmatmul.mubr.f32.gmra.mxu0 %v298
    %v7568 = vpop.f32.mrf.mxu0
    %v7569 = vadd.f32 %v203, %v7568
    %v7570 = vpop.f32.mrf.mxu0
    %v7571 = vadd.f32 %v205, %v7570
    %7572 = vdwg.mxu0
    %7573 = vmatprep.subr.mxu0 0.0
    %7574 = vmatpush1.msra.mxu0 0.0
    %7575 = vmatprep.subr.mxu0 0.0
    %7576 = vmatpush1.msra.mxu0 0.0
    %7577 = vmatprep.subr.mxu0 0.0
    %7578 = vmatpush1.msra.mxu0 0.0
    %7579 = vmatprep.subr.mxu0 0.0
    %7580 = vmatpush1.msra.mxu0 0.0
    %7581 = vmatprep.subr.mxu0 0.0
    %7582 = vmatpush1.msra.mxu0 0.0
    %7583 = vmatprep.subr.mxu0 0.0
    %7584 = vmatpush1.msra.mxu0 0.0
    %7585 = vmatprep.subr.mxu0 0.0
    %7586 = vmatpush1.msra.mxu0 0.0
    %7587 = vmatprep.subr.mxu0 0.0
    %7588 = vmatpush1.msra.mxu0 0.0
    %7589 = vmatprep.subr.mxu0 0.0
    %7590 = vmatpush1.msra.mxu0 0.0
    %7591 = vmatprep.subr.mxu0 0.0
    %7592 = vmatpush1.msra.mxu0 0.0
    %7593 = vmatprep.subr.mxu0 0.0
    %7594 = vmatpush1.msra.mxu0 0.0
    %7595 = vmatprep.subr.mxu0 0.0
    %7596 = vmatpush1.msra.mxu0 0.0
    %7597 = vmatprep.subr.mxu0 0.0
    %7598 = vmatpush1.msra.mxu0 0.0
    %7599 = vmatprep.subr.mxu0 %v7489
    %7600 = vmatpush1.msra.mxu0 %v7488
    %7601 = vmatprep.subr.mxu0 %v7485
    %7602 = vmatpush1.msra.mxu0 %v7484
    %7603 = vmatprep.subr.mxu0 %v7481
    %7604 = vmatpush1.msra.mxu0 %v7480
    %7605 = vmatprep.subr.mxu0 0.0
    %7606 = vmatpush2.msra.mxu0 0.0
    %7607 = vmatprep.subr.mxu0 0.0
    %7608 = vmatpush2.msra.mxu0 0.0
    %7609 = vmatprep.subr.mxu0 0.0
    %7610 = vmatpush2.msra.mxu0 0.0
    %7611 = vmatprep.subr.mxu0 0.0
    %7612 = vmatpush2.msra.mxu0 0.0
    %7613 = vmatprep.subr.mxu0 0.0
    %7614 = vmatpush2.msra.mxu0 0.0
    %7615 = vmatprep.subr.mxu0 0.0
    %7616 = vmatpush2.msra.mxu0 0.0
    %7617 = vmatprep.subr.mxu0 0.0
    %7618 = vmatpush2.msra.mxu0 0.0
    %7619 = vmatprep.subr.mxu0 0.0
    %7620 = vmatpush2.msra.mxu0 0.0
    %7621 = vmatprep.subr.mxu0 0.0
    %7622 = vmatpush2.msra.mxu0 0.0
    %7623 = vmatprep.subr.mxu0 0.0
    %7624 = vmatpush2.msra.mxu0 0.0
    %7625 = vmatprep.subr.mxu0 0.0
    %7626 = vmatpush2.msra.mxu0 0.0
    %7627 = vmatprep.subr.mxu0 0.0
    %7628 = vmatpush2.msra.mxu0 0.0
    %7629 = vmatprep.subr.mxu0 0.0
    %7630 = vmatpush2.msra.mxu0 0.0
    %7631 = vmatprep.subr.mxu0 0.0
    %7632 = vmatpush2.msra.mxu0 0.0
    %7633 = vmatprep.subr.mxu0 0.0
    %7634 = vmatpush2.msra.mxu0 0.0
    %7635 = vmatprep.subr.mxu0 0.0
    %7636 = vmatpush2.msra.mxu0 0.0
    %7637 = vmatprep.mubr.f32.mxu0 0.0
    %7638 = vmatmul.mubr.f32.gmra.mxu0 %v292
    %v7639 = vpop.f32.mrf.mxu0
    %v7640 = vadd.f32 %v274, %v7639
    %v7641 = vpop.f32.mrf.mxu0
    %v7642 = vadd.f32 %v276, %v7641
    %7643 = vmatprep.mubr.f32.mxu0 0.0
    %7644 = vmatmul.mubr.f32.gmra.mxu0 %v295
    %v7645 = vpop.f32.mrf.mxu0
    %v7646 = vadd.f32 %v280, %v7645
    %v7647 = vpop.f32.mrf.mxu0
    %v7648 = vadd.f32 %v282, %v7647
    %7649 = vmatprep.mubr.f32.mxu0 0.0
    %7650 = vmatmul.mubr.f32.gmra.mxu0 %v298
    %v7651 = vpop.f32.mrf.mxu0
    %v7652 = vadd.f32 %v286, %v7651
    %v7653 = vpop.f32.mrf.mxu0
    %v7654 = vadd.f32 %v288, %v7653
    %7655 = vdwg.mxu0
    %v7656 = vmax.f32 %v466, %v7557
    %v7657 = vmax.f32 %v466, %v7559
    %v7658 = vmax.f32 %v466, %v7640
    %v7659 = vmax.f32 %v466, %v7642
    %v7660 = vmax.f32 %v466, %v7563
    %v7661 = vmax.f32 %v466, %v7565
    %v7662 = vmax.f32 %v466, %v7646
    %v7663 = vmax.f32 %v466, %v7648
    %v7664 = vmax.f32 %v466, %v7569
    %v7665 = vmax.f32 %v466, %v7571
    %v7666 = vmax.f32 %v466, %v7652
    %v7667 = vmax.f32 %v466, %v7654
    %v7668 = vmin.f32 %v479, %v7656
    %v7669 = vmin.f32 %v479, %v7657
    %v7670 = vmin.f32 %v479, %v7658
    %v7671 = vmin.f32 %v479, %v7659
    %v7672 = vmin.f32 %v479, %v7660
    %v7673 = vmin.f32 %v479, %v7661
    %v7674 = vmin.f32 %v479, %v7662
    %v7675 = vmin.f32 %v479, %v7663
    %v7676 = vmin.f32 %v479, %v7664
    %v7677 = vmin.f32 %v479, %v7665
    %v7678 = vmin.f32 %v479, %v7666
    %v7679 = vmin.f32 %v479, %v7667
    %v7680 = vsub.f32 %v7557, %v7668
    %v7681 = vsub.f32 %v7559, %v7669
    %v7682 = vsub.f32 %v7640, %v7670
    %v7683 = vsub.f32 %v7642, %v7671
    %v7684 = vsub.f32 %v7563, %v7672
    %v7685 = vsub.f32 %v7565, %v7673
    %v7686 = vsub.f32 %v7646, %v7674
    %v7687 = vsub.f32 %v7648, %v7675
    %v7688 = vsub.f32 %v7569, %v7676
    %v7689 = vsub.f32 %v7571, %v7677
    %v7690 = vsub.f32 %v7652, %v7678
    %v7691 = vsub.f32 %v7654, %v7679
    %s7692 = sld [smem:[#allocation3 + $0x1e]]
    %v7693 = vsub.f32 %v7680, %v7440
    %v7694 = vsub.f32 %v7681, %v7441
    %v7695 = vsub.f32 %v7682, %v7442
    %v7696 = vsub.f32 %v7683, %v7443
    %v7697 = vsub.f32 %v7684, %v7444
    %v7698 = vsub.f32 %v7685, %v7445
    %v7699 = vsub.f32 %v7686, %v7446
    %v7700 = vsub.f32 %v7687, %v7447
    %v7701 = vsub.f32 %v7688, %v7448
    %v7702 = vsub.f32 %v7689, %v7449
    %v7703 = vsub.f32 %v7690, %v7450
    %v7704 = vsub.f32 %v7691, %v7451
    %v7705 = vstv %s7692
    %v7706 = vmul.f32 %v7705, %v7693
    %v7707 = vmul.f32 %v7705, %v7694
    %v7708 = vmul.f32 %v7705, %v7695
    %v7709 = vmul.f32 %v7705, %v7696
    %v7710 = vmul.f32 %v7705, %v7697
    %v7711 = vmul.f32 %v7705, %v7698
    %v7712 = vmul.f32 %v7705, %v7699
    %v7713 = vmul.f32 %v7705, %v7700
    %v7714 = vmul.f32 %v7705, %v7701
    %v7715 = vmul.f32 %v7705, %v7702
    %v7716 = vmul.f32 %v7705, %v7703
    %v7717 = vmul.f32 %v7705, %v7704
    %v7718 = vadd.f32 %v7680, %v7706
    %v7719 = vadd.f32 %v7681, %v7707
    %v7720 = vadd.f32 %v7682, %v7708
    %v7721 = vadd.f32 %v7683, %v7709
    %v7722 = vadd.f32 %v7684, %v7710
    %v7723 = vadd.f32 %v7685, %v7711
    %v7724 = vadd.f32 %v7686, %v7712
    %v7725 = vadd.f32 %v7687, %v7713
    %v7726 = vadd.f32 %v7688, %v7714
    %v7727 = vadd.f32 %v7689, %v7715
    %v7728 = vadd.f32 %v7690, %v7716
    %v7729 = vadd.f32 %v7691, %v7717
    %7730 = vmatprep.subr.mxu0 0.0
    %7731 = vmatpush1.msra.mxu0 0.0
    %7732 = vmatprep.subr.mxu0 0.0
    %7733 = vmatpush1.msra.mxu0 0.0
    %7734 = vmatprep.subr.mxu0 0.0
    %7735 = vmatpush1.msra.mxu0 0.0
    %7736 = vmatprep.subr.mxu0 0.0
    %7737 = vmatpush1.msra.mxu0 0.0
    %7738 = vmatprep.subr.mxu0 0.0
    %7739 = vmatpush1.msra.mxu0 0.0
    %7740 = vmatprep.subr.mxu0 0.0
    %7741 = vmatpush1.msra.mxu0 0.0
    %7742 = vmatprep.subr.mxu0 0.0
    %7743 = vmatpush1.msra.mxu0 0.0
    %7744 = vmatprep.subr.mxu0 0.0
    %7745 = vmatpush1.msra.mxu0 0.0
    %7746 = vmatprep.subr.mxu0 0.0
    %7747 = vmatpush1.msra.mxu0 0.0
    %7748 = vmatprep.subr.mxu0 0.0
    %7749 = vmatpush1.msra.mxu0 0.0
    %7750 = vmatprep.subr.mxu0 0.0
    %7751 = vmatpush1.msra.mxu0 0.0
    %7752 = vmatprep.subr.mxu0 0.0
    %7753 = vmatpush1.msra.mxu0 0.0
    %7754 = vmatprep.subr.mxu0 0.0
    %7755 = vmatpush1.msra.mxu0 0.0
    %7756 = vmatprep.subr.mxu0 %v7727
    %7757 = vmatpush1.msra.mxu0 %v7726
    %7758 = vmatprep.subr.mxu0 %v7723
    %7759 = vmatpush1.msra.mxu0 %v7722
    %7760 = vmatprep.subr.mxu0 %v7719
    %7761 = vmatpush1.msra.mxu0 %v7718
    %7762 = vmatprep.subr.mxu0 0.0
    %7763 = vmatpush2.msra.mxu0 0.0
    %7764 = vmatprep.subr.mxu0 0.0
    %7765 = vmatpush2.msra.mxu0 0.0
    %7766 = vmatprep.subr.mxu0 0.0
    %7767 = vmatpush2.msra.mxu0 0.0
    %7768 = vmatprep.subr.mxu0 0.0
    %7769 = vmatpush2.msra.mxu0 0.0
    %7770 = vmatprep.subr.mxu0 0.0
    %7771 = vmatpush2.msra.mxu0 0.0
    %7772 = vmatprep.subr.mxu0 0.0
    %7773 = vmatpush2.msra.mxu0 0.0
    %7774 = vmatprep.subr.mxu0 0.0
    %7775 = vmatpush2.msra.mxu0 0.0
    %7776 = vmatprep.subr.mxu0 0.0
    %7777 = vmatpush2.msra.mxu0 0.0
    %7778 = vmatprep.subr.mxu0 0.0
    %7779 = vmatpush2.msra.mxu0 0.0
    %7780 = vmatprep.subr.mxu0 0.0
    %7781 = vmatpush2.msra.mxu0 0.0
    %7782 = vmatprep.subr.mxu0 0.0
    %7783 = vmatpush2.msra.mxu0 0.0
    %7784 = vmatprep.subr.mxu0 0.0
    %7785 = vmatpush2.msra.mxu0 0.0
    %7786 = vmatprep.subr.mxu0 0.0
    %7787 = vmatpush2.msra.mxu0 0.0
    %7788 = vmatprep.subr.mxu0 0.0
    %7789 = vmatpush2.msra.mxu0 0.0
    %7790 = vmatprep.subr.mxu0 0.0
    %7791 = vmatpush2.msra.mxu0 0.0
    %7792 = vmatprep.subr.mxu0 0.0
    %7793 = vmatpush2.msra.mxu0 0.0
    %7794 = vmatprep.mubr.f32.mxu0 0.0
    %7795 = vmatmul.mubr.f32.gmra.mxu0 %v292
    %v7796 = vpop.f32.mrf.mxu0
    %v7797 = vadd.f32 %v191, %v7796
    %v7798 = vpop.f32.mrf.mxu0
    %v7799 = vadd.f32 %v193, %v7798
    %7800 = vmatprep.mubr.f32.mxu0 0.0
    %7801 = vmatmul.mubr.f32.gmra.mxu0 %v295
    %v7802 = vpop.f32.mrf.mxu0
    %v7803 = vadd.f32 %v197, %v7802
    %v7804 = vpop.f32.mrf.mxu0
    %v7805 = vadd.f32 %v199, %v7804
    %7806 = vmatprep.mubr.f32.mxu0 0.0
    %7807 = vmatmul.mubr.f32.gmra.mxu0 %v298
    %v7808 = vpop.f32.mrf.mxu0
    %v7809 = vadd.f32 %v203, %v7808
    %v7810 = vpop.f32.mrf.mxu0
    %v7811 = vadd.f32 %v205, %v7810
    %7812 = vdwg.mxu0
    %7813 = vmatprep.subr.mxu0 0.0
    %7814 = vmatpush1.msra.mxu0 0.0
    %7815 = vmatprep.subr.mxu0 0.0
    %7816 = vmatpush1.msra.mxu0 0.0
    %7817 = vmatprep.subr.mxu0 0.0
    %7818 = vmatpush1.msra.mxu0 0.0
    %7819 = vmatprep.subr.mxu0 0.0
    %7820 = vmatpush1.msra.mxu0 0.0
    %7821 = vmatprep.subr.mxu0 0.0
    %7822 = vmatpush1.msra.mxu0 0.0
    %7823 = vmatprep.subr.mxu0 0.0
    %7824 = vmatpush1.msra.mxu0 0.0
    %7825 = vmatprep.subr.mxu0 0.0
    %7826 = vmatpush1.msra.mxu0 0.0
    %7827 = vmatprep.subr.mxu0 0.0
    %7828 = vmatpush1.msra.mxu0 0.0
    %7829 = vmatprep.subr.mxu0 0.0
    %7830 = vmatpush1.msra.mxu0 0.0
    %7831 = vmatprep.subr.mxu0 0.0
    %7832 = vmatpush1.msra.mxu0 0.0
    %7833 = vmatprep.subr.mxu0 0.0
    %7834 = vmatpush1.msra.mxu0 0.0
    %7835 = vmatprep.subr.mxu0 0.0
    %7836 = vmatpush1.msra.mxu0 0.0
    %7837 = vmatprep.subr.mxu0 0.0
    %7838 = vmatpush1.msra.mxu0 0.0
    %7839 = vmatprep.subr.mxu0 %v7729
    %7840 = vmatpush1.msra.mxu0 %v7728
    %7841 = vmatprep.subr.mxu0 %v7725
    %7842 = vmatpush1.msra.mxu0 %v7724
    %7843 = vmatprep.subr.mxu0 %v7721
    %7844 = vmatpush1.msra.mxu0 %v7720
    %7845 = vmatprep.subr.mxu0 0.0
    %7846 = vmatpush2.msra.mxu0 0.0
    %7847 = vmatprep.subr.mxu0 0.0
    %7848 = vmatpush2.msra.mxu0 0.0
    %7849 = vmatprep.subr.mxu0 0.0
    %7850 = vmatpush2.msra.mxu0 0.0
    %7851 = vmatprep.subr.mxu0 0.0
    %7852 = vmatpush2.msra.mxu0 0.0
    %7853 = vmatprep.subr.mxu0 0.0
    %7854 = vmatpush2.msra.mxu0 0.0
    %7855 = vmatprep.subr.mxu0 0.0
    %7856 = vmatpush2.msra.mxu0 0.0
    %7857 = vmatprep.subr.mxu0 0.0
    %7858 = vmatpush2.msra.mxu0 0.0
    %7859 = vmatprep.subr.mxu0 0.0
    %7860 = vmatpush2.msra.mxu0 0.0
    %7861 = vmatprep.subr.mxu0 0.0
    %7862 = vmatpush2.msra.mxu0 0.0
    %7863 = vmatprep.subr.mxu0 0.0
    %7864 = vmatpush2.msra.mxu0 0.0
    %7865 = vmatprep.subr.mxu0 0.0
    %7866 = vmatpush2.msra.mxu0 0.0
    %7867 = vmatprep.subr.mxu0 0.0
    %7868 = vmatpush2.msra.mxu0 0.0
    %7869 = vmatprep.subr.mxu0 0.0
    %7870 = vmatpush2.msra.mxu0 0.0
    %7871 = vmatprep.subr.mxu0 0.0
    %7872 = vmatpush2.msra.mxu0 0.0
    %7873 = vmatprep.subr.mxu0 0.0
    %7874 = vmatpush2.msra.mxu0 0.0
    %7875 = vmatprep.subr.mxu0 0.0
    %7876 = vmatpush2.msra.mxu0 0.0
    %7877 = vmatprep.mubr.f32.mxu0 0.0
    %7878 = vmatmul.mubr.f32.gmra.mxu0 %v292
    %v7879 = vpop.f32.mrf.mxu0
    %v7880 = vadd.f32 %v274, %v7879
    %v7881 = vpop.f32.mrf.mxu0
    %v7882 = vadd.f32 %v276, %v7881
    %7883 = vmatprep.mubr.f32.mxu0 0.0
    %7884 = vmatmul.mubr.f32.gmra.mxu0 %v295
    %v7885 = vpop.f32.mrf.mxu0
    %v7886 = vadd.f32 %v280, %v7885
    %v7887 = vpop.f32.mrf.mxu0
    %v7888 = vadd.f32 %v282, %v7887
    %7889 = vmatprep.mubr.f32.mxu0 0.0
    %7890 = vmatmul.mubr.f32.gmra.mxu0 %v298
    %v7891 = vpop.f32.mrf.mxu0
    %v7892 = vadd.f32 %v286, %v7891
    %v7893 = vpop.f32.mrf.mxu0
    %v7894 = vadd.f32 %v288, %v7893
    %7895 = vdwg.mxu0
    %v7896 = vmax.f32 %v466, %v7797
    %v7897 = vmax.f32 %v466, %v7799
    %v7898 = vmax.f32 %v466, %v7880
    %v7899 = vmax.f32 %v466, %v7882
    %v7900 = vmax.f32 %v466, %v7803
    %v7901 = vmax.f32 %v466, %v7805
    %v7902 = vmax.f32 %v466, %v7886
    %v7903 = vmax.f32 %v466, %v7888
    %v7904 = vmax.f32 %v466, %v7809
    %v7905 = vmax.f32 %v466, %v7811
    %v7906 = vmax.f32 %v466, %v7892
    %v7907 = vmax.f32 %v466, %v7894
    %v7908 = vmin.f32 %v479, %v7896
    %v7909 = vmin.f32 %v479, %v7897
    %v7910 = vmin.f32 %v479, %v7898
    %v7911 = vmin.f32 %v479, %v7899
    %v7912 = vmin.f32 %v479, %v7900
    %v7913 = vmin.f32 %v479, %v7901
    %v7914 = vmin.f32 %v479, %v7902
    %v7915 = vmin.f32 %v479, %v7903
    %v7916 = vmin.f32 %v479, %v7904
    %v7917 = vmin.f32 %v479, %v7905
    %v7918 = vmin.f32 %v479, %v7906
    %v7919 = vmin.f32 %v479, %v7907
    %v7920 = vsub.f32 %v7797, %v7908
    %v7921 = vsub.f32 %v7799, %v7909
    %v7922 = vsub.f32 %v7880, %v7910
    %v7923 = vsub.f32 %v7882, %v7911
    %v7924 = vsub.f32 %v7803, %v7912
    %v7925 = vsub.f32 %v7805, %v7913
    %v7926 = vsub.f32 %v7886, %v7914
    %v7927 = vsub.f32 %v7888, %v7915
    %v7928 = vsub.f32 %v7809, %v7916
    %v7929 = vsub.f32 %v7811, %v7917
    %v7930 = vsub.f32 %v7892, %v7918
    %v7931 = vsub.f32 %v7894, %v7919
    %s7932 = sld [smem:[#allocation3 + $0x1f]]
    %v7933 = vsub.f32 %v7920, %v7680
    %v7934 = vsub.f32 %v7921, %v7681
    %v7935 = vsub.f32 %v7922, %v7682
    %v7936 = vsub.f32 %v7923, %v7683
    %v7937 = vsub.f32 %v7924, %v7684
    %v7938 = vsub.f32 %v7925, %v7685
    %v7939 = vsub.f32 %v7926, %v7686
    %v7940 = vsub.f32 %v7927, %v7687
    %v7941 = vsub.f32 %v7928, %v7688
    %v7942 = vsub.f32 %v7929, %v7689
    %v7943 = vsub.f32 %v7930, %v7690
    %v7944 = vsub.f32 %v7931, %v7691
    %v7945 = vstv %s7932
    %v7946 = vmul.f32 %v7945, %v7933
    %v7947 = vmul.f32 %v7945, %v7934
    %v7948 = vmul.f32 %v7945, %v7935
    %v7949 = vmul.f32 %v7945, %v7936
    %v7950 = vmul.f32 %v7945, %v7937
    %v7951 = vmul.f32 %v7945, %v7938
    %v7952 = vmul.f32 %v7945, %v7939
    %v7953 = vmul.f32 %v7945, %v7940
    %v7954 = vmul.f32 %v7945, %v7941
    %v7955 = vmul.f32 %v7945, %v7942
    %v7956 = vmul.f32 %v7945, %v7943
    %v7957 = vmul.f32 %v7945, %v7944
    %v7958 = vadd.f32 %v7920, %v7946
    %v7959 = vadd.f32 %v7921, %v7947
    %v7960 = vadd.f32 %v7922, %v7948
    %v7961 = vadd.f32 %v7923, %v7949
    %v7962 = vadd.f32 %v7924, %v7950
    %v7963 = vadd.f32 %v7925, %v7951
    %v7964 = vadd.f32 %v7926, %v7952
    %v7965 = vadd.f32 %v7927, %v7953
    %v7966 = vadd.f32 %v7928, %v7954
    %v7967 = vadd.f32 %v7929, %v7955
    %v7968 = vadd.f32 %v7930, %v7956
    %v7969 = vadd.f32 %v7931, %v7957
    %7970 = vmatprep.subr.mxu0 0.0
    %7971 = vmatpush1.msra.mxu0 0.0
    %7972 = vmatprep.subr.mxu0 0.0
    %7973 = vmatpush1.msra.mxu0 0.0
    %7974 = vmatprep.subr.mxu0 0.0
    %7975 = vmatpush1.msra.mxu0 0.0
    %7976 = vmatprep.subr.mxu0 0.0
    %7977 = vmatpush1.msra.mxu0 0.0
    %7978 = vmatprep.subr.mxu0 0.0
    %7979 = vmatpush1.msra.mxu0 0.0
    %7980 = vmatprep.subr.mxu0 0.0
    %7981 = vmatpush1.msra.mxu0 0.0
    %7982 = vmatprep.subr.mxu0 0.0
    %7983 = vmatpush1.msra.mxu0 0.0
    %7984 = vmatprep.subr.mxu0 0.0
    %7985 = vmatpush1.msra.mxu0 0.0
    %7986 = vmatprep.subr.mxu0 0.0
    %7987 = vmatpush1.msra.mxu0 0.0
    %7988 = vmatprep.subr.mxu0 0.0
    %7989 = vmatpush1.msra.mxu0 0.0
    %7990 = vmatprep.subr.mxu0 0.0
    %7991 = vmatpush1.msra.mxu0 0.0
    %7992 = vmatprep.subr.mxu0 0.0
    %7993 = vmatpush1.msra.mxu0 0.0
    %7994 = vmatprep.subr.mxu0 0.0
    %7995 = vmatpush1.msra.mxu0 0.0
    %7996 = vmatprep.subr.mxu0 %v7967
    %7997 = vmatpush1.msra.mxu0 %v7966
    %7998 = vmatprep.subr.mxu0 %v7963
    %7999 = vmatpush1.msra.mxu0 %v7962
    %8000 = vmatprep.subr.mxu0 %v7959
    %8001 = vmatpush1.msra.mxu0 %v7958
    %8002 = vmatprep.subr.mxu0 0.0
    %8003 = vmatpush2.msra.mxu0 0.0
    %8004 = vmatprep.subr.mxu0 0.0
    %8005 = vmatpush2.msra.mxu0 0.0
    %8006 = vmatprep.subr.mxu0 0.0
    %8007 = vmatpush2.msra.mxu0 0.0
    %8008 = vmatprep.subr.mxu0 0.0
    %8009 = vmatpush2.msra.mxu0 0.0
    %8010 = vmatprep.subr.mxu0 0.0
    %8011 = vmatpush2.msra.mxu0 0.0
    %8012 = vmatprep.subr.mxu0 0.0
    %8013 = vmatpush2.msra.mxu0 0.0
    %8014 = vmatprep.subr.mxu0 0.0
    %8015 = vmatpush2.msra.mxu0 0.0
    %8016 = vmatprep.subr.mxu0 0.0
    %8017 = vmatpush2.msra.mxu0 0.0
    %8018 = vmatprep.subr.mxu0 0.0
    %8019 = vmatpush2.msra.mxu0 0.0
    %8020 = vmatprep.subr.mxu0 0.0
    %8021 = vmatpush2.msra.mxu0 0.0
    %8022 = vmatprep.subr.mxu0 0.0
    %8023 = vmatpush2.msra.mxu0 0.0
    %8024 = vmatprep.subr.mxu0 0.0
    %8025 = vmatpush2.msra.mxu0 0.0
    %8026 = vmatprep.subr.mxu0 0.0
    %8027 = vmatpush2.msra.mxu0 0.0
    %8028 = vmatprep.subr.mxu0 0.0
    %8029 = vmatpush2.msra.mxu0 0.0
    %8030 = vmatprep.subr.mxu0 0.0
    %8031 = vmatpush2.msra.mxu0 0.0
    %8032 = vmatprep.subr.mxu0 0.0
    %8033 = vmatpush2.msra.mxu0 0.0
    %8034 = vmatprep.mubr.f32.mxu0 0.0
    %8035 = vmatmul.mubr.f32.gmra.mxu0 %v292
    %v8036 = vpop.f32.mrf.mxu0
    %v8037 = vadd.f32 %v191, %v8036
    %v8038 = vpop.f32.mrf.mxu0
    %v8039 = vadd.f32 %v193, %v8038
    %8040 = vmatprep.mubr.f32.mxu0 0.0
    %8041 = vmatmul.mubr.f32.gmra.mxu0 %v295
    %v8042 = vpop.f32.mrf.mxu0
    %v8043 = vadd.f32 %v197, %v8042
    %v8044 = vpop.f32.mrf.mxu0
    %v8045 = vadd.f32 %v199, %v8044
    %8046 = vmatprep.mubr.f32.mxu0 0.0
    %8047 = vmatmul.mubr.f32.gmra.mxu0 %v298
    %v8048 = vpop.f32.mrf.mxu0
    %v8049 = vadd.f32 %v203, %v8048
    %v8050 = vpop.f32.mrf.mxu0
    %v8051 = vadd.f32 %v205, %v8050
    %8052 = vdwg.mxu0
    %8053 = vmatprep.subr.mxu0 0.0
    %8054 = vmatpush1.msra.mxu0 0.0
    %8055 = vmatprep.subr.mxu0 0.0
    %8056 = vmatpush1.msra.mxu0 0.0
    %8057 = vmatprep.subr.mxu0 0.0
    %8058 = vmatpush1.msra.mxu0 0.0
    %8059 = vmatprep.subr.mxu0 0.0
    %8060 = vmatpush1.msra.mxu0 0.0
    %8061 = vmatprep.subr.mxu0 0.0
    %8062 = vmatpush1.msra.mxu0 0.0
    %8063 = vmatprep.subr.mxu0 0.0
    %8064 = vmatpush1.msra.mxu0 0.0
    %8065 = vmatprep.subr.mxu0 0.0
    %8066 = vmatpush1.msra.mxu0 0.0
    %8067 = vmatprep.subr.mxu0 0.0
    %8068 = vmatpush1.msra.mxu0 0.0
    %8069 = vmatprep.subr.mxu0 0.0
    %8070 = vmatpush1.msra.mxu0 0.0
    %8071 = vmatprep.subr.mxu0 0.0
    %8072 = vmatpush1.msra.mxu0 0.0
    %8073 = vmatprep.subr.mxu0 0.0
    %8074 = vmatpush1.msra.mxu0 0.0
    %8075 = vmatprep.subr.mxu0 0.0
    %8076 = vmatpush1.msra.mxu0 0.0
    %8077 = vmatprep.subr.mxu0 0.0
    %8078 = vmatpush1.msra.mxu0 0.0
    %8079 = vmatprep.subr.mxu0 %v7969
    %8080 = vmatpush1.msra.mxu0 %v7968
    %8081 = vmatprep.subr.mxu0 %v7965
    %8082 = vmatpush1.msra.mxu0 %v7964
    %8083 = vmatprep.subr.mxu0 %v7961
    %8084 = vmatpush1.msra.mxu0 %v7960
    %8085 = vmatprep.subr.mxu0 0.0
    %8086 = vmatpush2.msra.mxu0 0.0
    %8087 = vmatprep.subr.mxu0 0.0
    %8088 = vmatpush2.msra.mxu0 0.0
    %8089 = vmatprep.subr.mxu0 0.0
    %8090 = vmatpush2.msra.mxu0 0.0
    %8091 = vmatprep.subr.mxu0 0.0
    %8092 = vmatpush2.msra.mxu0 0.0
    %8093 = vmatprep.subr.mxu0 0.0
    %8094 = vmatpush2.msra.mxu0 0.0
    %8095 = vmatprep.subr.mxu0 0.0
    %8096 = vmatpush2.msra.mxu0 0.0
    %8097 = vmatprep.subr.mxu0 0.0
    %8098 = vmatpush2.msra.mxu0 0.0
    %8099 = vmatprep.subr.mxu0 0.0
    %8100 = vmatpush2.msra.mxu0 0.0
    %8101 = vmatprep.subr.mxu0 0.0
    %8102 = vmatpush2.msra.mxu0 0.0
    %8103 = vmatprep.subr.mxu0 0.0
    %8104 = vmatpush2.msra.mxu0 0.0
    %8105 = vmatprep.subr.mxu0 0.0
    %8106 = vmatpush2.msra.mxu0 0.0
    %8107 = vmatprep.subr.mxu0 0.0
    %8108 = vmatpush2.msra.mxu0 0.0
    %8109 = vmatprep.subr.mxu0 0.0
    %8110 = vmatpush2.msra.mxu0 0.0
    %8111 = vmatprep.subr.mxu0 0.0
    %8112 = vmatpush2.msra.mxu0 0.0
    %8113 = vmatprep.subr.mxu0 0.0
    %8114 = vmatpush2.msra.mxu0 0.0
    %8115 = vmatprep.subr.mxu0 0.0
    %8116 = vmatpush2.msra.mxu0 0.0
    %8117 = vmatprep.mubr.f32.mxu0 0.0
    %8118 = vmatmul.mubr.f32.gmra.mxu0 %v292
    %v8119 = vpop.f32.mrf.mxu0
    %v8120 = vadd.f32 %v274, %v8119
    %v8121 = vpop.f32.mrf.mxu0
    %v8122 = vadd.f32 %v276, %v8121
    %8123 = vmatprep.mubr.f32.mxu0 0.0
    %8124 = vmatmul.mubr.f32.gmra.mxu0 %v295
    %v8125 = vpop.f32.mrf.mxu0
    %v8126 = vadd.f32 %v280, %v8125
    %v8127 = vpop.f32.mrf.mxu0
    %v8128 = vadd.f32 %v282, %v8127
    %8129 = vmatprep.mubr.f32.mxu0 0.0
    %8130 = vmatmul.mubr.f32.gmra.mxu0 %v298
    %v8131 = vpop.f32.mrf.mxu0
    %v8132 = vadd.f32 %v286, %v8131
    %v8133 = vpop.f32.mrf.mxu0
    %v8134 = vadd.f32 %v288, %v8133
    %8135 = vdwg.mxu0
    %v8136 = vmax.f32 %v466, %v8037
    %v8137 = vmax.f32 %v466, %v8039
    %v8138 = vmax.f32 %v466, %v8120
    %v8139 = vmax.f32 %v466, %v8122
    %v8140 = vmax.f32 %v466, %v8043
    %v8141 = vmax.f32 %v466, %v8045
    %v8142 = vmax.f32 %v466, %v8126
    %v8143 = vmax.f32 %v466, %v8128
    %v8144 = vmax.f32 %v466, %v8049
    %v8145 = vmax.f32 %v466, %v8051
    %v8146 = vmax.f32 %v466, %v8132
    %v8147 = vmax.f32 %v466, %v8134
    %v8148 = vmin.f32 %v479, %v8136
    %v8149 = vmin.f32 %v479, %v8137
    %v8150 = vmin.f32 %v479, %v8138
    %v8151 = vmin.f32 %v479, %v8139
    %v8152 = vmin.f32 %v479, %v8140
    %v8153 = vmin.f32 %v479, %v8141
    %v8154 = vmin.f32 %v479, %v8142
    %v8155 = vmin.f32 %v479, %v8143
    %v8156 = vmin.f32 %v479, %v8144
    %v8157 = vmin.f32 %v479, %v8145
    %v8158 = vmin.f32 %v479, %v8146
    %v8159 = vmin.f32 %v479, %v8147
    %v8160 = vsub.f32 %v8037, %v8148
    %v8161 = vsub.f32 %v8039, %v8149
    %v8162 = vsub.f32 %v8120, %v8150
    %v8163 = vsub.f32 %v8122, %v8151
    %v8164 = vsub.f32 %v8043, %v8152
    %v8165 = vsub.f32 %v8045, %v8153
    %v8166 = vsub.f32 %v8126, %v8154
    %v8167 = vsub.f32 %v8128, %v8155
    %v8168 = vsub.f32 %v8049, %v8156
    %v8169 = vsub.f32 %v8051, %v8157
    %v8170 = vsub.f32 %v8132, %v8158
    %v8171 = vsub.f32 %v8134, %v8159
    %s8172 = sld [smem:[#allocation3 + $0x20]]
    %v8173 = vsub.f32 %v8160, %v7920
    %v8174 = vsub.f32 %v8161, %v7921
    %v8175 = vsub.f32 %v8162, %v7922
    %v8176 = vsub.f32 %v8163, %v7923
    %v8177 = vsub.f32 %v8164, %v7924
    %v8178 = vsub.f32 %v8165, %v7925
    %v8179 = vsub.f32 %v8166, %v7926
    %v8180 = vsub.f32 %v8167, %v7927
    %v8181 = vsub.f32 %v8168, %v7928
    %v8182 = vsub.f32 %v8169, %v7929
    %v8183 = vsub.f32 %v8170, %v7930
    %v8184 = vsub.f32 %v8171, %v7931
    %v8185 = vstv %s8172
    %v8186 = vmul.f32 %v8185, %v8173
    %v8187 = vmul.f32 %v8185, %v8174
    %v8188 = vmul.f32 %v8185, %v8175
    %v8189 = vmul.f32 %v8185, %v8176
    %v8190 = vmul.f32 %v8185, %v8177
    %v8191 = vmul.f32 %v8185, %v8178
    %v8192 = vmul.f32 %v8185, %v8179
    %v8193 = vmul.f32 %v8185, %v8180
    %v8194 = vmul.f32 %v8185, %v8181
    %v8195 = vmul.f32 %v8185, %v8182
    %v8196 = vmul.f32 %v8185, %v8183
    %v8197 = vmul.f32 %v8185, %v8184
    %v8198 = vadd.f32 %v8160, %v8186
    %v8199 = vadd.f32 %v8161, %v8187
    %v8200 = vadd.f32 %v8162, %v8188
    %v8201 = vadd.f32 %v8163, %v8189
    %v8202 = vadd.f32 %v8164, %v8190
    %v8203 = vadd.f32 %v8165, %v8191
    %v8204 = vadd.f32 %v8166, %v8192
    %v8205 = vadd.f32 %v8167, %v8193
    %v8206 = vadd.f32 %v8168, %v8194
    %v8207 = vadd.f32 %v8169, %v8195
    %v8208 = vadd.f32 %v8170, %v8196
    %v8209 = vadd.f32 %v8171, %v8197
    %8210 = vmatprep.subr.mxu0 0.0
    %8211 = vmatpush1.msra.mxu0 0.0
    %8212 = vmatprep.subr.mxu0 0.0
    %8213 = vmatpush1.msra.mxu0 0.0
    %8214 = vmatprep.subr.mxu0 0.0
    %8215 = vmatpush1.msra.mxu0 0.0
    %8216 = vmatprep.subr.mxu0 0.0
    %8217 = vmatpush1.msra.mxu0 0.0
    %8218 = vmatprep.subr.mxu0 0.0
    %8219 = vmatpush1.msra.mxu0 0.0
    %8220 = vmatprep.subr.mxu0 0.0
    %8221 = vmatpush1.msra.mxu0 0.0
    %8222 = vmatprep.subr.mxu0 0.0
    %8223 = vmatpush1.msra.mxu0 0.0
    %8224 = vmatprep.subr.mxu0 0.0
    %8225 = vmatpush1.msra.mxu0 0.0
    %8226 = vmatprep.subr.mxu0 0.0
    %8227 = vmatpush1.msra.mxu0 0.0
    %8228 = vmatprep.subr.mxu0 0.0
    %8229 = vmatpush1.msra.mxu0 0.0
    %8230 = vmatprep.subr.mxu0 0.0
    %8231 = vmatpush1.msra.mxu0 0.0
    %8232 = vmatprep.subr.mxu0 0.0
    %8233 = vmatpush1.msra.mxu0 0.0
    %8234 = vmatprep.subr.mxu0 0.0
    %8235 = vmatpush1.msra.mxu0 0.0
    %8236 = vmatprep.subr.mxu0 %v8207
    %8237 = vmatpush1.msra.mxu0 %v8206
    %8238 = vmatprep.subr.mxu0 %v8203
    %8239 = vmatpush1.msra.mxu0 %v8202
    %8240 = vmatprep.subr.mxu0 %v8199
    %8241 = vmatpush1.msra.mxu0 %v8198
    %8242 = vmatprep.subr.mxu0 0.0
    %8243 = vmatpush2.msra.mxu0 0.0
    %8244 = vmatprep.subr.mxu0 0.0
    %8245 = vmatpush2.msra.mxu0 0.0
    %8246 = vmatprep.subr.mxu0 0.0
    %8247 = vmatpush2.msra.mxu0 0.0
    %8248 = vmatprep.subr.mxu0 0.0
    %8249 = vmatpush2.msra.mxu0 0.0
    %8250 = vmatprep.subr.mxu0 0.0
    %8251 = vmatpush2.msra.mxu0 0.0
    %8252 = vmatprep.subr.mxu0 0.0
    %8253 = vmatpush2.msra.mxu0 0.0
    %8254 = vmatprep.subr.mxu0 0.0
    %8255 = vmatpush2.msra.mxu0 0.0
    %8256 = vmatprep.subr.mxu0 0.0
    %8257 = vmatpush2.msra.mxu0 0.0
    %8258 = vmatprep.subr.mxu0 0.0
    %8259 = vmatpush2.msra.mxu0 0.0
    %8260 = vmatprep.subr.mxu0 0.0
    %8261 = vmatpush2.msra.mxu0 0.0
    %8262 = vmatprep.subr.mxu0 0.0
    %8263 = vmatpush2.msra.mxu0 0.0
    %8264 = vmatprep.subr.mxu0 0.0
    %8265 = vmatpush2.msra.mxu0 0.0
    %8266 = vmatprep.subr.mxu0 0.0
    %8267 = vmatpush2.msra.mxu0 0.0
    %8268 = vmatprep.subr.mxu0 0.0
    %8269 = vmatpush2.msra.mxu0 0.0
    %8270 = vmatprep.subr.mxu0 0.0
    %8271 = vmatpush2.msra.mxu0 0.0
    %8272 = vmatprep.subr.mxu0 0.0
    %8273 = vmatpush2.msra.mxu0 0.0
    %8274 = vmatprep.mubr.f32.mxu0 0.0
    %8275 = vmatmul.mubr.f32.gmra.mxu0 %v292
    %v8276 = vpop.f32.mrf.mxu0
    %v8277 = vadd.f32 %v191, %v8276
    %v8278 = vpop.f32.mrf.mxu0
    %v8279 = vadd.f32 %v193, %v8278
    %8280 = vmatprep.mubr.f32.mxu0 0.0
    %8281 = vmatmul.mubr.f32.gmra.mxu0 %v295
    %v8282 = vpop.f32.mrf.mxu0
    %v8283 = vadd.f32 %v197, %v8282
    %v8284 = vpop.f32.mrf.mxu0
    %v8285 = vadd.f32 %v199, %v8284
    %8286 = vmatprep.mubr.f32.mxu0 0.0
    %8287 = vmatmul.mubr.f32.gmra.mxu0 %v298
    %v8288 = vpop.f32.mrf.mxu0
    %v8289 = vadd.f32 %v203, %v8288
    %v8290 = vpop.f32.mrf.mxu0
    %v8291 = vadd.f32 %v205, %v8290
    %8292 = vdwg.mxu0
    %8293 = vmatprep.subr.mxu0 0.0
    %8294 = vmatpush1.msra.mxu0 0.0
    %8295 = vmatprep.subr.mxu0 0.0
    %8296 = vmatpush1.msra.mxu0 0.0
    %8297 = vmatprep.subr.mxu0 0.0
    %8298 = vmatpush1.msra.mxu0 0.0
    %8299 = vmatprep.subr.mxu0 0.0
    %8300 = vmatpush1.msra.mxu0 0.0
    %8301 = vmatprep.subr.mxu0 0.0
    %8302 = vmatpush1.msra.mxu0 0.0
    %8303 = vmatprep.subr.mxu0 0.0
    %8304 = vmatpush1.msra.mxu0 0.0
    %8305 = vmatprep.subr.mxu0 0.0
    %8306 = vmatpush1.msra.mxu0 0.0
    %8307 = vmatprep.subr.mxu0 0.0
    %8308 = vmatpush1.msra.mxu0 0.0
    %8309 = vmatprep.subr.mxu0 0.0
    %8310 = vmatpush1.msra.mxu0 0.0
    %8311 = vmatprep.subr.mxu0 0.0
    %8312 = vmatpush1.msra.mxu0 0.0
    %8313 = vmatprep.subr.mxu0 0.0
    %8314 = vmatpush1.msra.mxu0 0.0
    %8315 = vmatprep.subr.mxu0 0.0
    %8316 = vmatpush1.msra.mxu0 0.0
    %8317 = vmatprep.subr.mxu0 0.0
    %8318 = vmatpush1.msra.mxu0 0.0
    %8319 = vmatprep.subr.mxu0 %v8209
    %8320 = vmatpush1.msra.mxu0 %v8208
    %8321 = vmatprep.subr.mxu0 %v8205
    %8322 = vmatpush1.msra.mxu0 %v8204
    %8323 = vmatprep.subr.mxu0 %v8201
    %8324 = vmatpush1.msra.mxu0 %v8200
    %8325 = vmatprep.subr.mxu0 0.0
    %8326 = vmatpush2.msra.mxu0 0.0
    %8327 = vmatprep.subr.mxu0 0.0
    %8328 = vmatpush2.msra.mxu0 0.0
    %8329 = vmatprep.subr.mxu0 0.0
    %8330 = vmatpush2.msra.mxu0 0.0
    %8331 = vmatprep.subr.mxu0 0.0
    %8332 = vmatpush2.msra.mxu0 0.0
    %8333 = vmatprep.subr.mxu0 0.0
    %8334 = vmatpush2.msra.mxu0 0.0
    %8335 = vmatprep.subr.mxu0 0.0
    %8336 = vmatpush2.msra.mxu0 0.0
    %8337 = vmatprep.subr.mxu0 0.0
    %8338 = vmatpush2.msra.mxu0 0.0
    %8339 = vmatprep.subr.mxu0 0.0
    %8340 = vmatpush2.msra.mxu0 0.0
    %8341 = vmatprep.subr.mxu0 0.0
    %8342 = vmatpush2.msra.mxu0 0.0
    %8343 = vmatprep.subr.mxu0 0.0
    %8344 = vmatpush2.msra.mxu0 0.0
    %8345 = vmatprep.subr.mxu0 0.0
    %8346 = vmatpush2.msra.mxu0 0.0
    %8347 = vmatprep.subr.mxu0 0.0
    %8348 = vmatpush2.msra.mxu0 0.0
    %8349 = vmatprep.subr.mxu0 0.0
    %8350 = vmatpush2.msra.mxu0 0.0
    %8351 = vmatprep.subr.mxu0 0.0
    %8352 = vmatpush2.msra.mxu0 0.0
    %8353 = vmatprep.subr.mxu0 0.0
    %8354 = vmatpush2.msra.mxu0 0.0
    %8355 = vmatprep.subr.mxu0 0.0
    %8356 = vmatpush2.msra.mxu0 0.0
    %8357 = vmatprep.mubr.f32.mxu0 0.0
    %8358 = vmatmul.mubr.f32.gmra.mxu0 %v292
    %v8359 = vpop.f32.mrf.mxu0
    %v8360 = vadd.f32 %v274, %v8359
    %v8361 = vpop.f32.mrf.mxu0
    %v8362 = vadd.f32 %v276, %v8361
    %8363 = vmatprep.mubr.f32.mxu0 0.0
    %8364 = vmatmul.mubr.f32.gmra.mxu0 %v295
    %v8365 = vpop.f32.mrf.mxu0
    %v8366 = vadd.f32 %v280, %v8365
    %v8367 = vpop.f32.mrf.mxu0
    %v8368 = vadd.f32 %v282, %v8367
    %8369 = vmatprep.mubr.f32.mxu0 0.0
    %8370 = vmatmul.mubr.f32.gmra.mxu0 %v298
    %v8371 = vpop.f32.mrf.mxu0
    %v8372 = vadd.f32 %v286, %v8371
    %v8373 = vpop.f32.mrf.mxu0
    %v8374 = vadd.f32 %v288, %v8373
    %8375 = vdwg.mxu0
    %v8376 = vmax.f32 %v466, %v8277
    %v8377 = vmax.f32 %v466, %v8279
    %v8378 = vmax.f32 %v466, %v8360
    %v8379 = vmax.f32 %v466, %v8362
    %v8380 = vmax.f32 %v466, %v8283
    %v8381 = vmax.f32 %v466, %v8285
    %v8382 = vmax.f32 %v466, %v8366
    %v8383 = vmax.f32 %v466, %v8368
    %v8384 = vmax.f32 %v466, %v8289
    %v8385 = vmax.f32 %v466, %v8291
    %v8386 = vmax.f32 %v466, %v8372
    %v8387 = vmax.f32 %v466, %v8374
    %v8388 = vmin.f32 %v479, %v8376
    %v8389 = vmin.f32 %v479, %v8377
    %v8390 = vmin.f32 %v479, %v8378
    %v8391 = vmin.f32 %v479, %v8379
    %v8392 = vmin.f32 %v479, %v8380
    %v8393 = vmin.f32 %v479, %v8381
    %v8394 = vmin.f32 %v479, %v8382
    %v8395 = vmin.f32 %v479, %v8383
    %v8396 = vmin.f32 %v479, %v8384
    %v8397 = vmin.f32 %v479, %v8385
    %v8398 = vmin.f32 %v479, %v8386
    %v8399 = vmin.f32 %v479, %v8387
    %v8400 = vsub.f32 %v8277, %v8388
    %v8401 = vsub.f32 %v8279, %v8389
    %v8402 = vsub.f32 %v8360, %v8390
    %v8403 = vsub.f32 %v8362, %v8391
    %v8404 = vsub.f32 %v8283, %v8392
    %v8405 = vsub.f32 %v8285, %v8393
    %v8406 = vsub.f32 %v8366, %v8394
    %v8407 = vsub.f32 %v8368, %v8395
    %v8408 = vsub.f32 %v8289, %v8396
    %v8409 = vsub.f32 %v8291, %v8397
    %v8410 = vsub.f32 %v8372, %v8398
    %v8411 = vsub.f32 %v8374, %v8399
    %s8412 = sld [smem:[#allocation3 + $0x21]]
    %v8413 = vsub.f32 %v8400, %v8160
    %v8414 = vsub.f32 %v8401, %v8161
    %v8415 = vsub.f32 %v8402, %v8162
    %v8416 = vsub.f32 %v8403, %v8163
    %v8417 = vsub.f32 %v8404, %v8164
    %v8418 = vsub.f32 %v8405, %v8165
    %v8419 = vsub.f32 %v8406, %v8166
    %v8420 = vsub.f32 %v8407, %v8167
    %v8421 = vsub.f32 %v8408, %v8168
    %v8422 = vsub.f32 %v8409, %v8169
    %v8423 = vsub.f32 %v8410, %v8170
    %v8424 = vsub.f32 %v8411, %v8171
    %v8425 = vstv %s8412
    %v8426 = vmul.f32 %v8425, %v8413
    %v8427 = vmul.f32 %v8425, %v8414
    %v8428 = vmul.f32 %v8425, %v8415
    %v8429 = vmul.f32 %v8425, %v8416
    %v8430 = vmul.f32 %v8425, %v8417
    %v8431 = vmul.f32 %v8425, %v8418
    %v8432 = vmul.f32 %v8425, %v8419
    %v8433 = vmul.f32 %v8425, %v8420
    %v8434 = vmul.f32 %v8425, %v8421
    %v8435 = vmul.f32 %v8425, %v8422
    %v8436 = vmul.f32 %v8425, %v8423
    %v8437 = vmul.f32 %v8425, %v8424
    %v8438 = vadd.f32 %v8400, %v8426
    %v8439 = vadd.f32 %v8401, %v8427
    %v8440 = vadd.f32 %v8402, %v8428
    %v8441 = vadd.f32 %v8403, %v8429
    %v8442 = vadd.f32 %v8404, %v8430
    %v8443 = vadd.f32 %v8405, %v8431
    %v8444 = vadd.f32 %v8406, %v8432
    %v8445 = vadd.f32 %v8407, %v8433
    %v8446 = vadd.f32 %v8408, %v8434
    %v8447 = vadd.f32 %v8409, %v8435
    %v8448 = vadd.f32 %v8410, %v8436
    %v8449 = vadd.f32 %v8411, %v8437
    %8450 = vmatprep.subr.mxu0 0.0
    %8451 = vmatpush1.msra.mxu0 0.0
    %8452 = vmatprep.subr.mxu0 0.0
    %8453 = vmatpush1.msra.mxu0 0.0
    %8454 = vmatprep.subr.mxu0 0.0
    %8455 = vmatpush1.msra.mxu0 0.0
    %8456 = vmatprep.subr.mxu0 0.0
    %8457 = vmatpush1.msra.mxu0 0.0
    %8458 = vmatprep.subr.mxu0 0.0
    %8459 = vmatpush1.msra.mxu0 0.0
    %8460 = vmatprep.subr.mxu0 0.0
    %8461 = vmatpush1.msra.mxu0 0.0
    %8462 = vmatprep.subr.mxu0 0.0
    %8463 = vmatpush1.msra.mxu0 0.0
    %8464 = vmatprep.subr.mxu0 0.0
    %8465 = vmatpush1.msra.mxu0 0.0
    %8466 = vmatprep.subr.mxu0 0.0
    %8467 = vmatpush1.msra.mxu0 0.0
    %8468 = vmatprep.subr.mxu0 0.0
    %8469 = vmatpush1.msra.mxu0 0.0
    %8470 = vmatprep.subr.mxu0 0.0
    %8471 = vmatpush1.msra.mxu0 0.0
    %8472 = vmatprep.subr.mxu0 0.0
    %8473 = vmatpush1.msra.mxu0 0.0
    %8474 = vmatprep.subr.mxu0 0.0
    %8475 = vmatpush1.msra.mxu0 0.0
    %8476 = vmatprep.subr.mxu0 %v8447
    %8477 = vmatpush1.msra.mxu0 %v8446
    %8478 = vmatprep.subr.mxu0 %v8443
    %8479 = vmatpush1.msra.mxu0 %v8442
    %8480 = vmatprep.subr.mxu0 %v8439
    %8481 = vmatpush1.msra.mxu0 %v8438
    %8482 = vmatprep.subr.mxu0 0.0
    %8483 = vmatpush2.msra.mxu0 0.0
    %8484 = vmatprep.subr.mxu0 0.0
    %8485 = vmatpush2.msra.mxu0 0.0
    %8486 = vmatprep.subr.mxu0 0.0
    %8487 = vmatpush2.msra.mxu0 0.0
    %8488 = vmatprep.subr.mxu0 0.0
    %8489 = vmatpush2.msra.mxu0 0.0
    %8490 = vmatprep.subr.mxu0 0.0
    %8491 = vmatpush2.msra.mxu0 0.0
    %8492 = vmatprep.subr.mxu0 0.0
    %8493 = vmatpush2.msra.mxu0 0.0
    %8494 = vmatprep.subr.mxu0 0.0
    %8495 = vmatpush2.msra.mxu0 0.0
    %8496 = vmatprep.subr.mxu0 0.0
    %8497 = vmatpush2.msra.mxu0 0.0
    %8498 = vmatprep.subr.mxu0 0.0
    %8499 = vmatpush2.msra.mxu0 0.0
    %8500 = vmatprep.subr.mxu0 0.0
    %8501 = vmatpush2.msra.mxu0 0.0
    %8502 = vmatprep.subr.mxu0 0.0
    %8503 = vmatpush2.msra.mxu0 0.0
    %8504 = vmatprep.subr.mxu0 0.0
    %8505 = vmatpush2.msra.mxu0 0.0
    %8506 = vmatprep.subr.mxu0 0.0
    %8507 = vmatpush2.msra.mxu0 0.0
    %8508 = vmatprep.subr.mxu0 0.0
    %8509 = vmatpush2.msra.mxu0 0.0
    %8510 = vmatprep.subr.mxu0 0.0
    %8511 = vmatpush2.msra.mxu0 0.0
    %8512 = vmatprep.subr.mxu0 0.0
    %8513 = vmatpush2.msra.mxu0 0.0
    %8514 = vmatprep.mubr.f32.mxu0 0.0
    %8515 = vmatmul.mubr.f32.gmra.mxu0 %v292
    %v8516 = vpop.f32.mrf.mxu0
    %v8517 = vadd.f32 %v191, %v8516
    %v8518 = vpop.f32.mrf.mxu0
    %v8519 = vadd.f32 %v193, %v8518
    %8520 = vmatprep.mubr.f32.mxu0 0.0
    %8521 = vmatmul.mubr.f32.gmra.mxu0 %v295
    %v8522 = vpop.f32.mrf.mxu0
    %v8523 = vadd.f32 %v197, %v8522
    %v8524 = vpop.f32.mrf.mxu0
    %v8525 = vadd.f32 %v199, %v8524
    %8526 = vmatprep.mubr.f32.mxu0 0.0
    %8527 = vmatmul.mubr.f32.gmra.mxu0 %v298
    %v8528 = vpop.f32.mrf.mxu0
    %v8529 = vadd.f32 %v203, %v8528
    %v8530 = vpop.f32.mrf.mxu0
    %v8531 = vadd.f32 %v205, %v8530
    %8532 = vdwg.mxu0
    %8533 = vmatprep.subr.mxu0 0.0
    %8534 = vmatpush1.msra.mxu0 0.0
    %8535 = vmatprep.subr.mxu0 0.0
    %8536 = vmatpush1.msra.mxu0 0.0
    %8537 = vmatprep.subr.mxu0 0.0
    %8538 = vmatpush1.msra.mxu0 0.0
    %8539 = vmatprep.subr.mxu0 0.0
    %8540 = vmatpush1.msra.mxu0 0.0
    %8541 = vmatprep.subr.mxu0 0.0
    %8542 = vmatpush1.msra.mxu0 0.0
    %8543 = vmatprep.subr.mxu0 0.0
    %8544 = vmatpush1.msra.mxu0 0.0
    %8545 = vmatprep.subr.mxu0 0.0
    %8546 = vmatpush1.msra.mxu0 0.0
    %8547 = vmatprep.subr.mxu0 0.0
    %8548 = vmatpush1.msra.mxu0 0.0
    %8549 = vmatprep.subr.mxu0 0.0
    %8550 = vmatpush1.msra.mxu0 0.0
    %8551 = vmatprep.subr.mxu0 0.0
    %8552 = vmatpush1.msra.mxu0 0.0
    %8553 = vmatprep.subr.mxu0 0.0
    %8554 = vmatpush1.msra.mxu0 0.0
    %8555 = vmatprep.subr.mxu0 0.0
    %8556 = vmatpush1.msra.mxu0 0.0
    %8557 = vmatprep.subr.mxu0 0.0
    %8558 = vmatpush1.msra.mxu0 0.0
    %8559 = vmatprep.subr.mxu0 %v8449
    %8560 = vmatpush1.msra.mxu0 %v8448
    %8561 = vmatprep.subr.mxu0 %v8445
    %8562 = vmatpush1.msra.mxu0 %v8444
    %8563 = vmatprep.subr.mxu0 %v8441
    %8564 = vmatpush1.msra.mxu0 %v8440
    %8565 = vmatprep.subr.mxu0 0.0
    %8566 = vmatpush2.msra.mxu0 0.0
    %8567 = vmatprep.subr.mxu0 0.0
    %8568 = vmatpush2.msra.mxu0 0.0
    %8569 = vmatprep.subr.mxu0 0.0
    %8570 = vmatpush2.msra.mxu0 0.0
    %8571 = vmatprep.subr.mxu0 0.0
    %8572 = vmatpush2.msra.mxu0 0.0
    %8573 = vmatprep.subr.mxu0 0.0
    %8574 = vmatpush2.msra.mxu0 0.0
    %8575 = vmatprep.subr.mxu0 0.0
    %8576 = vmatpush2.msra.mxu0 0.0
    %8577 = vmatprep.subr.mxu0 0.0
    %8578 = vmatpush2.msra.mxu0 0.0
    %8579 = vmatprep.subr.mxu0 0.0
    %8580 = vmatpush2.msra.mxu0 0.0
    %8581 = vmatprep.subr.mxu0 0.0
    %8582 = vmatpush2.msra.mxu0 0.0
    %8583 = vmatprep.subr.mxu0 0.0
    %8584 = vmatpush2.msra.mxu0 0.0
    %8585 = vmatprep.subr.mxu0 0.0
    %8586 = vmatpush2.msra.mxu0 0.0
    %8587 = vmatprep.subr.mxu0 0.0
    %8588 = vmatpush2.msra.mxu0 0.0
    %8589 = vmatprep.subr.mxu0 0.0
    %8590 = vmatpush2.msra.mxu0 0.0
    %8591 = vmatprep.subr.mxu0 0.0
    %8592 = vmatpush2.msra.mxu0 0.0
    %8593 = vmatprep.subr.mxu0 0.0
    %8594 = vmatpush2.msra.mxu0 0.0
    %8595 = vmatprep.subr.mxu0 0.0
    %8596 = vmatpush2.msra.mxu0 0.0
    %8597 = vmatprep.mubr.f32.mxu0 0.0
    %8598 = vmatmul.mubr.f32.gmra.mxu0 %v292
    %v8599 = vpop.f32.mrf.mxu0
    %v8600 = vadd.f32 %v274, %v8599
    %v8601 = vpop.f32.mrf.mxu0
    %v8602 = vadd.f32 %v276, %v8601
    %8603 = vmatprep.mubr.f32.mxu0 0.0
    %8604 = vmatmul.mubr.f32.gmra.mxu0 %v295
    %v8605 = vpop.f32.mrf.mxu0
    %v8606 = vadd.f32 %v280, %v8605
    %v8607 = vpop.f32.mrf.mxu0
    %v8608 = vadd.f32 %v282, %v8607
    %8609 = vmatprep.mubr.f32.mxu0 0.0
    %8610 = vmatmul.mubr.f32.gmra.mxu0 %v298
    %v8611 = vpop.f32.mrf.mxu0
    %v8612 = vadd.f32 %v286, %v8611
    %v8613 = vpop.f32.mrf.mxu0
    %v8614 = vadd.f32 %v288, %v8613
    %8615 = vdwg.mxu0
    %v8616 = vmax.f32 %v466, %v8517
    %v8617 = vmax.f32 %v466, %v8519
    %v8618 = vmax.f32 %v466, %v8600
    %v8619 = vmax.f32 %v466, %v8602
    %v8620 = vmax.f32 %v466, %v8523
    %v8621 = vmax.f32 %v466, %v8525
    %v8622 = vmax.f32 %v466, %v8606
    %v8623 = vmax.f32 %v466, %v8608
    %v8624 = vmax.f32 %v466, %v8529
    %v8625 = vmax.f32 %v466, %v8531
    %v8626 = vmax.f32 %v466, %v8612
    %v8627 = vmax.f32 %v466, %v8614
    %v8628 = vmin.f32 %v479, %v8616
    %v8629 = vmin.f32 %v479, %v8617
    %v8630 = vmin.f32 %v479, %v8618
    %v8631 = vmin.f32 %v479, %v8619
    %v8632 = vmin.f32 %v479, %v8620
    %v8633 = vmin.f32 %v479, %v8621
    %v8634 = vmin.f32 %v479, %v8622
    %v8635 = vmin.f32 %v479, %v8623
    %v8636 = vmin.f32 %v479, %v8624
    %v8637 = vmin.f32 %v479, %v8625
    %v8638 = vmin.f32 %v479, %v8626
    %v8639 = vmin.f32 %v479, %v8627
    %v8640 = vsub.f32 %v8517, %v8628
    %v8641 = vsub.f32 %v8519, %v8629
    %v8642 = vsub.f32 %v8600, %v8630
    %v8643 = vsub.f32 %v8602, %v8631
    %v8644 = vsub.f32 %v8523, %v8632
    %v8645 = vsub.f32 %v8525, %v8633
    %v8646 = vsub.f32 %v8606, %v8634
    %v8647 = vsub.f32 %v8608, %v8635
    %v8648 = vsub.f32 %v8529, %v8636
    %v8649 = vsub.f32 %v8531, %v8637
    %v8650 = vsub.f32 %v8612, %v8638
    %v8651 = vsub.f32 %v8614, %v8639
    %s8652 = sld [smem:[#allocation3 + $0x22]]
    %v8653 = vsub.f32 %v8640, %v8400
    %v8654 = vsub.f32 %v8641, %v8401
    %v8655 = vsub.f32 %v8642, %v8402
    %v8656 = vsub.f32 %v8643, %v8403
    %v8657 = vsub.f32 %v8644, %v8404
    %v8658 = vsub.f32 %v8645, %v8405
    %v8659 = vsub.f32 %v8646, %v8406
    %v8660 = vsub.f32 %v8647, %v8407
    %v8661 = vsub.f32 %v8648, %v8408
    %v8662 = vsub.f32 %v8649, %v8409
    %v8663 = vsub.f32 %v8650, %v8410
    %v8664 = vsub.f32 %v8651, %v8411
    %v8665 = vstv %s8652
    %v8666 = vmul.f32 %v8665, %v8653
    %v8667 = vmul.f32 %v8665, %v8654
    %v8668 = vmul.f32 %v8665, %v8655
    %v8669 = vmul.f32 %v8665, %v8656
    %v8670 = vmul.f32 %v8665, %v8657
    %v8671 = vmul.f32 %v8665, %v8658
    %v8672 = vmul.f32 %v8665, %v8659
    %v8673 = vmul.f32 %v8665, %v8660
    %v8674 = vmul.f32 %v8665, %v8661
    %v8675 = vmul.f32 %v8665, %v8662
    %v8676 = vmul.f32 %v8665, %v8663
    %v8677 = vmul.f32 %v8665, %v8664
    %v8678 = vadd.f32 %v8640, %v8666
    %v8679 = vadd.f32 %v8641, %v8667
    %v8680 = vadd.f32 %v8642, %v8668
    %v8681 = vadd.f32 %v8643, %v8669
    %v8682 = vadd.f32 %v8644, %v8670
    %v8683 = vadd.f32 %v8645, %v8671
    %v8684 = vadd.f32 %v8646, %v8672
    %v8685 = vadd.f32 %v8647, %v8673
    %v8686 = vadd.f32 %v8648, %v8674
    %v8687 = vadd.f32 %v8649, %v8675
    %v8688 = vadd.f32 %v8650, %v8676
    %v8689 = vadd.f32 %v8651, %v8677
    %8690 = vmatprep.subr.mxu0 0.0
    %8691 = vmatpush1.msra.mxu0 0.0
    %8692 = vmatprep.subr.mxu0 0.0
    %8693 = vmatpush1.msra.mxu0 0.0
    %8694 = vmatprep.subr.mxu0 0.0
    %8695 = vmatpush1.msra.mxu0 0.0
    %8696 = vmatprep.subr.mxu0 0.0
    %8697 = vmatpush1.msra.mxu0 0.0
    %8698 = vmatprep.subr.mxu0 0.0
    %8699 = vmatpush1.msra.mxu0 0.0
    %8700 = vmatprep.subr.mxu0 0.0
    %8701 = vmatpush1.msra.mxu0 0.0
    %8702 = vmatprep.subr.mxu0 0.0
    %8703 = vmatpush1.msra.mxu0 0.0
    %8704 = vmatprep.subr.mxu0 0.0
    %8705 = vmatpush1.msra.mxu0 0.0
    %8706 = vmatprep.subr.mxu0 0.0
    %8707 = vmatpush1.msra.mxu0 0.0
    %8708 = vmatprep.subr.mxu0 0.0
    %8709 = vmatpush1.msra.mxu0 0.0
    %8710 = vmatprep.subr.mxu0 0.0
    %8711 = vmatpush1.msra.mxu0 0.0
    %8712 = vmatprep.subr.mxu0 0.0
    %8713 = vmatpush1.msra.mxu0 0.0
    %8714 = vmatprep.subr.mxu0 0.0
    %8715 = vmatpush1.msra.mxu0 0.0
    %8716 = vmatprep.subr.mxu0 %v8687
    %8717 = vmatpush1.msra.mxu0 %v8686
    %8718 = vmatprep.subr.mxu0 %v8683
    %8719 = vmatpush1.msra.mxu0 %v8682
    %8720 = vmatprep.subr.mxu0 %v8679
    %8721 = vmatpush1.msra.mxu0 %v8678
    %8722 = vmatprep.subr.mxu0 0.0
    %8723 = vmatpush2.msra.mxu0 0.0
    %8724 = vmatprep.subr.mxu0 0.0
    %8725 = vmatpush2.msra.mxu0 0.0
    %8726 = vmatprep.subr.mxu0 0.0
    %8727 = vmatpush2.msra.mxu0 0.0
    %8728 = vmatprep.subr.mxu0 0.0
    %8729 = vmatpush2.msra.mxu0 0.0
    %8730 = vmatprep.subr.mxu0 0.0
    %8731 = vmatpush2.msra.mxu0 0.0
    %8732 = vmatprep.subr.mxu0 0.0
    %8733 = vmatpush2.msra.mxu0 0.0
    %8734 = vmatprep.subr.mxu0 0.0
    %8735 = vmatpush2.msra.mxu0 0.0
    %8736 = vmatprep.subr.mxu0 0.0
    %8737 = vmatpush2.msra.mxu0 0.0
    %8738 = vmatprep.subr.mxu0 0.0
    %8739 = vmatpush2.msra.mxu0 0.0
    %8740 = vmatprep.subr.mxu0 0.0
    %8741 = vmatpush2.msra.mxu0 0.0
    %8742 = vmatprep.subr.mxu0 0.0
    %8743 = vmatpush2.msra.mxu0 0.0
    %8744 = vmatprep.subr.mxu0 0.0
    %8745 = vmatpush2.msra.mxu0 0.0
    %8746 = vmatprep.subr.mxu0 0.0
    %8747 = vmatpush2.msra.mxu0 0.0
    %8748 = vmatprep.subr.mxu0 0.0
    %8749 = vmatpush2.msra.mxu0 0.0
    %8750 = vmatprep.subr.mxu0 0.0
    %8751 = vmatpush2.msra.mxu0 0.0
    %8752 = vmatprep.subr.mxu0 0.0
    %8753 = vmatpush2.msra.mxu0 0.0
    %8754 = vmatprep.mubr.f32.mxu0 0.0
    %8755 = vmatmul.mubr.f32.gmra.mxu0 %v292
    %v8756 = vpop.f32.mrf.mxu0
    %v8757 = vadd.f32 %v191, %v8756
    %v8758 = vpop.f32.mrf.mxu0
    %v8759 = vadd.f32 %v193, %v8758
    %8760 = vmatprep.mubr.f32.mxu0 0.0
    %8761 = vmatmul.mubr.f32.gmra.mxu0 %v295
    %v8762 = vpop.f32.mrf.mxu0
    %v8763 = vadd.f32 %v197, %v8762
    %v8764 = vpop.f32.mrf.mxu0
    %v8765 = vadd.f32 %v199, %v8764
    %8766 = vmatprep.mubr.f32.mxu0 0.0
    %8767 = vmatmul.mubr.f32.gmra.mxu0 %v298
    %v8768 = vpop.f32.mrf.mxu0
    %v8769 = vadd.f32 %v203, %v8768
    %v8770 = vpop.f32.mrf.mxu0
    %v8771 = vadd.f32 %v205, %v8770
    %8772 = vdwg.mxu0
    %8773 = vmatprep.subr.mxu0 0.0
    %8774 = vmatpush1.msra.mxu0 0.0
    %8775 = vmatprep.subr.mxu0 0.0
    %8776 = vmatpush1.msra.mxu0 0.0
    %8777 = vmatprep.subr.mxu0 0.0
    %8778 = vmatpush1.msra.mxu0 0.0
    %8779 = vmatprep.subr.mxu0 0.0
    %8780 = vmatpush1.msra.mxu0 0.0
    %8781 = vmatprep.subr.mxu0 0.0
    %8782 = vmatpush1.msra.mxu0 0.0
    %8783 = vmatprep.subr.mxu0 0.0
    %8784 = vmatpush1.msra.mxu0 0.0
    %8785 = vmatprep.subr.mxu0 0.0
    %8786 = vmatpush1.msra.mxu0 0.0
    %8787 = vmatprep.subr.mxu0 0.0
    %8788 = vmatpush1.msra.mxu0 0.0
    %8789 = vmatprep.subr.mxu0 0.0
    %8790 = vmatpush1.msra.mxu0 0.0
    %8791 = vmatprep.subr.mxu0 0.0
    %8792 = vmatpush1.msra.mxu0 0.0
    %8793 = vmatprep.subr.mxu0 0.0
    %8794 = vmatpush1.msra.mxu0 0.0
    %8795 = vmatprep.subr.mxu0 0.0
    %8796 = vmatpush1.msra.mxu0 0.0
    %8797 = vmatprep.subr.mxu0 0.0
    %8798 = vmatpush1.msra.mxu0 0.0
    %8799 = vmatprep.subr.mxu0 %v8689
    %8800 = vmatpush1.msra.mxu0 %v8688
    %8801 = vmatprep.subr.mxu0 %v8685
    %8802 = vmatpush1.msra.mxu0 %v8684
    %8803 = vmatprep.subr.mxu0 %v8681
    %8804 = vmatpush1.msra.mxu0 %v8680
    %8805 = vmatprep.subr.mxu0 0.0
    %8806 = vmatpush2.msra.mxu0 0.0
    %8807 = vmatprep.subr.mxu0 0.0
    %8808 = vmatpush2.msra.mxu0 0.0
    %8809 = vmatprep.subr.mxu0 0.0
    %8810 = vmatpush2.msra.mxu0 0.0
    %8811 = vmatprep.subr.mxu0 0.0
    %8812 = vmatpush2.msra.mxu0 0.0
    %8813 = vmatprep.subr.mxu0 0.0
    %8814 = vmatpush2.msra.mxu0 0.0
    %8815 = vmatprep.subr.mxu0 0.0
    %8816 = vmatpush2.msra.mxu0 0.0
    %8817 = vmatprep.subr.mxu0 0.0
    %8818 = vmatpush2.msra.mxu0 0.0
    %8819 = vmatprep.subr.mxu0 0.0
    %8820 = vmatpush2.msra.mxu0 0.0
    %8821 = vmatprep.subr.mxu0 0.0
    %8822 = vmatpush2.msra.mxu0 0.0
    %8823 = vmatprep.subr.mxu0 0.0
    %8824 = vmatpush2.msra.mxu0 0.0
    %8825 = vmatprep.subr.mxu0 0.0
    %8826 = vmatpush2.msra.mxu0 0.0
    %8827 = vmatprep.subr.mxu0 0.0
    %8828 = vmatpush2.msra.mxu0 0.0
    %8829 = vmatprep.subr.mxu0 0.0
    %8830 = vmatpush2.msra.mxu0 0.0
    %8831 = vmatprep.subr.mxu0 0.0
    %8832 = vmatpush2.msra.mxu0 0.0
    %8833 = vmatprep.subr.mxu0 0.0
    %8834 = vmatpush2.msra.mxu0 0.0
    %8835 = vmatprep.subr.mxu0 0.0
    %8836 = vmatpush2.msra.mxu0 0.0
    %8837 = vmatprep.mubr.f32.mxu0 0.0
    %8838 = vmatmul.mubr.f32.gmra.mxu0 %v292
    %v8839 = vpop.f32.mrf.mxu0
    %v8840 = vadd.f32 %v274, %v8839
    %v8841 = vpop.f32.mrf.mxu0
    %v8842 = vadd.f32 %v276, %v8841
    %8843 = vmatprep.mubr.f32.mxu0 0.0
    %8844 = vmatmul.mubr.f32.gmra.mxu0 %v295
    %v8845 = vpop.f32.mrf.mxu0
    %v8846 = vadd.f32 %v280, %v8845
    %v8847 = vpop.f32.mrf.mxu0
    %v8848 = vadd.f32 %v282, %v8847
    %8849 = vmatprep.mubr.f32.mxu0 0.0
    %8850 = vmatmul.mubr.f32.gmra.mxu0 %v298
    %v8851 = vpop.f32.mrf.mxu0
    %v8852 = vadd.f32 %v286, %v8851
    %v8853 = vpop.f32.mrf.mxu0
    %v8854 = vadd.f32 %v288, %v8853
    %8855 = vdwg.mxu0
    %v8856 = vmax.f32 %v466, %v8757
    %v8857 = vmax.f32 %v466, %v8759
    %v8858 = vmax.f32 %v466, %v8840
    %v8859 = vmax.f32 %v466, %v8842
    %v8860 = vmax.f32 %v466, %v8763
    %v8861 = vmax.f32 %v466, %v8765
    %v8862 = vmax.f32 %v466, %v8846
    %v8863 = vmax.f32 %v466, %v8848
    %v8864 = vmax.f32 %v466, %v8769
    %v8865 = vmax.f32 %v466, %v8771
    %v8866 = vmax.f32 %v466, %v8852
    %v8867 = vmax.f32 %v466, %v8854
    %v8868 = vmin.f32 %v479, %v8856
    %v8869 = vmin.f32 %v479, %v8857
    %v8870 = vmin.f32 %v479, %v8858
    %v8871 = vmin.f32 %v479, %v8859
    %v8872 = vmin.f32 %v479, %v8860
    %v8873 = vmin.f32 %v479, %v8861
    %v8874 = vmin.f32 %v479, %v8862
    %v8875 = vmin.f32 %v479, %v8863
    %v8876 = vmin.f32 %v479, %v8864
    %v8877 = vmin.f32 %v479, %v8865
    %v8878 = vmin.f32 %v479, %v8866
    %v8879 = vmin.f32 %v479, %v8867
    %v8880 = vsub.f32 %v8757, %v8868
    %v8881 = vsub.f32 %v8759, %v8869
    %v8882 = vsub.f32 %v8840, %v8870
    %v8883 = vsub.f32 %v8842, %v8871
    %v8884 = vsub.f32 %v8763, %v8872
    %v8885 = vsub.f32 %v8765, %v8873
    %v8886 = vsub.f32 %v8846, %v8874
    %v8887 = vsub.f32 %v8848, %v8875
    %v8888 = vsub.f32 %v8769, %v8876
    %v8889 = vsub.f32 %v8771, %v8877
    %v8890 = vsub.f32 %v8852, %v8878
    %v8891 = vsub.f32 %v8854, %v8879
    %s8892 = sld [smem:[#allocation3 + $0x23]]
    %v8893 = vsub.f32 %v8880, %v8640
    %v8894 = vsub.f32 %v8881, %v8641
    %v8895 = vsub.f32 %v8882, %v8642
    %v8896 = vsub.f32 %v8883, %v8643
    %v8897 = vsub.f32 %v8884, %v8644
    %v8898 = vsub.f32 %v8885, %v8645
    %v8899 = vsub.f32 %v8886, %v8646
    %v8900 = vsub.f32 %v8887, %v8647
    %v8901 = vsub.f32 %v8888, %v8648
    %v8902 = vsub.f32 %v8889, %v8649
    %v8903 = vsub.f32 %v8890, %v8650
    %v8904 = vsub.f32 %v8891, %v8651
    %v8905 = vstv %s8892
    %v8906 = vmul.f32 %v8905, %v8893
    %v8907 = vmul.f32 %v8905, %v8894
    %v8908 = vmul.f32 %v8905, %v8895
    %v8909 = vmul.f32 %v8905, %v8896
    %v8910 = vmul.f32 %v8905, %v8897
    %v8911 = vmul.f32 %v8905, %v8898
    %v8912 = vmul.f32 %v8905, %v8899
    %v8913 = vmul.f32 %v8905, %v8900
    %v8914 = vmul.f32 %v8905, %v8901
    %v8915 = vmul.f32 %v8905, %v8902
    %v8916 = vmul.f32 %v8905, %v8903
    %v8917 = vmul.f32 %v8905, %v8904
    %v8918 = vadd.f32 %v8880, %v8906
    %v8919 = vadd.f32 %v8881, %v8907
    %v8920 = vadd.f32 %v8882, %v8908
    %v8921 = vadd.f32 %v8883, %v8909
    %v8922 = vadd.f32 %v8884, %v8910
    %v8923 = vadd.f32 %v8885, %v8911
    %v8924 = vadd.f32 %v8886, %v8912
    %v8925 = vadd.f32 %v8887, %v8913
    %v8926 = vadd.f32 %v8888, %v8914
    %v8927 = vadd.f32 %v8889, %v8915
    %v8928 = vadd.f32 %v8890, %v8916
    %v8929 = vadd.f32 %v8891, %v8917
    %8930 = vmatprep.subr.mxu0 0.0
    %8931 = vmatpush1.msra.mxu0 0.0
    %8932 = vmatprep.subr.mxu0 0.0
    %8933 = vmatpush1.msra.mxu0 0.0
    %8934 = vmatprep.subr.mxu0 0.0
    %8935 = vmatpush1.msra.mxu0 0.0
    %8936 = vmatprep.subr.mxu0 0.0
    %8937 = vmatpush1.msra.mxu0 0.0
    %8938 = vmatprep.subr.mxu0 0.0
    %8939 = vmatpush1.msra.mxu0 0.0
    %8940 = vmatprep.subr.mxu0 0.0
    %8941 = vmatpush1.msra.mxu0 0.0
    %8942 = vmatprep.subr.mxu0 0.0
    %8943 = vmatpush1.msra.mxu0 0.0
    %8944 = vmatprep.subr.mxu0 0.0
    %8945 = vmatpush1.msra.mxu0 0.0
    %8946 = vmatprep.subr.mxu0 0.0
    %8947 = vmatpush1.msra.mxu0 0.0
    %8948 = vmatprep.subr.mxu0 0.0
    %8949 = vmatpush1.msra.mxu0 0.0
    %8950 = vmatprep.subr.mxu0 0.0
    %8951 = vmatpush1.msra.mxu0 0.0
    %8952 = vmatprep.subr.mxu0 0.0
    %8953 = vmatpush1.msra.mxu0 0.0
    %8954 = vmatprep.subr.mxu0 0.0
    %8955 = vmatpush1.msra.mxu0 0.0
    %8956 = vmatprep.subr.mxu0 %v8927
    %8957 = vmatpush1.msra.mxu0 %v8926
    %8958 = vmatprep.subr.mxu0 %v8923
    %8959 = vmatpush1.msra.mxu0 %v8922
    %8960 = vmatprep.subr.mxu0 %v8919
    %8961 = vmatpush1.msra.mxu0 %v8918
    %8962 = vmatprep.subr.mxu0 0.0
    %8963 = vmatpush2.msra.mxu0 0.0
    %8964 = vmatprep.subr.mxu0 0.0
    %8965 = vmatpush2.msra.mxu0 0.0
    %8966 = vmatprep.subr.mxu0 0.0
    %8967 = vmatpush2.msra.mxu0 0.0
    %8968 = vmatprep.subr.mxu0 0.0
    %8969 = vmatpush2.msra.mxu0 0.0
    %8970 = vmatprep.subr.mxu0 0.0
    %8971 = vmatpush2.msra.mxu0 0.0
    %8972 = vmatprep.subr.mxu0 0.0
    %8973 = vmatpush2.msra.mxu0 0.0
    %8974 = vmatprep.subr.mxu0 0.0
    %8975 = vmatpush2.msra.mxu0 0.0
    %8976 = vmatprep.subr.mxu0 0.0
    %8977 = vmatpush2.msra.mxu0 0.0
    %8978 = vmatprep.subr.mxu0 0.0
    %8979 = vmatpush2.msra.mxu0 0.0
    %8980 = vmatprep.subr.mxu0 0.0
    %8981 = vmatpush2.msra.mxu0 0.0
    %8982 = vmatprep.subr.mxu0 0.0
    %8983 = vmatpush2.msra.mxu0 0.0
    %8984 = vmatprep.subr.mxu0 0.0
    %8985 = vmatpush2.msra.mxu0 0.0
    %8986 = vmatprep.subr.mxu0 0.0
    %8987 = vmatpush2.msra.mxu0 0.0
    %8988 = vmatprep.subr.mxu0 0.0
    %8989 = vmatpush2.msra.mxu0 0.0
    %8990 = vmatprep.subr.mxu0 0.0
    %8991 = vmatpush2.msra.mxu0 0.0
    %8992 = vmatprep.subr.mxu0 0.0
    %8993 = vmatpush2.msra.mxu0 0.0
    %8994 = vmatprep.mubr.f32.mxu0 0.0
    %8995 = vmatmul.mubr.f32.gmra.mxu0 %v292
    %v8996 = vpop.f32.mrf.mxu0
    %v8997 = vadd.f32 %v191, %v8996
    %v8998 = vpop.f32.mrf.mxu0
    %v8999 = vadd.f32 %v193, %v8998
    %9000 = vmatprep.mubr.f32.mxu0 0.0
    %9001 = vmatmul.mubr.f32.gmra.mxu0 %v295
    %v9002 = vpop.f32.mrf.mxu0
    %v9003 = vadd.f32 %v197, %v9002
    %v9004 = vpop.f32.mrf.mxu0
    %v9005 = vadd.f32 %v199, %v9004
    %9006 = vmatprep.mubr.f32.mxu0 0.0
    %9007 = vmatmul.mubr.f32.gmra.mxu0 %v298
    %v9008 = vpop.f32.mrf.mxu0
    %v9009 = vadd.f32 %v203, %v9008
    %v9010 = vpop.f32.mrf.mxu0
    %v9011 = vadd.f32 %v205, %v9010
    %9012 = vdwg.mxu0
    %9013 = vmatprep.subr.mxu0 0.0
    %9014 = vmatpush1.msra.mxu0 0.0
    %9015 = vmatprep.subr.mxu0 0.0
    %9016 = vmatpush1.msra.mxu0 0.0
    %9017 = vmatprep.subr.mxu0 0.0
    %9018 = vmatpush1.msra.mxu0 0.0
    %9019 = vmatprep.subr.mxu0 0.0
    %9020 = vmatpush1.msra.mxu0 0.0
    %9021 = vmatprep.subr.mxu0 0.0
    %9022 = vmatpush1.msra.mxu0 0.0
    %9023 = vmatprep.subr.mxu0 0.0
    %9024 = vmatpush1.msra.mxu0 0.0
    %9025 = vmatprep.subr.mxu0 0.0
    %9026 = vmatpush1.msra.mxu0 0.0
    %9027 = vmatprep.subr.mxu0 0.0
    %9028 = vmatpush1.msra.mxu0 0.0
    %9029 = vmatprep.subr.mxu0 0.0
    %9030 = vmatpush1.msra.mxu0 0.0
    %9031 = vmatprep.subr.mxu0 0.0
    %9032 = vmatpush1.msra.mxu0 0.0
    %9033 = vmatprep.subr.mxu0 0.0
    %9034 = vmatpush1.msra.mxu0 0.0
    %9035 = vmatprep.subr.mxu0 0.0
    %9036 = vmatpush1.msra.mxu0 0.0
    %9037 = vmatprep.subr.mxu0 0.0
    %9038 = vmatpush1.msra.mxu0 0.0
    %9039 = vmatprep.subr.mxu0 %v8929
    %9040 = vmatpush1.msra.mxu0 %v8928
    %9041 = vmatprep.subr.mxu0 %v8925
    %9042 = vmatpush1.msra.mxu0 %v8924
    %9043 = vmatprep.subr.mxu0 %v8921
    %9044 = vmatpush1.msra.mxu0 %v8920
    %9045 = vmatprep.subr.mxu0 0.0
    %9046 = vmatpush2.msra.mxu0 0.0
    %9047 = vmatprep.subr.mxu0 0.0
    %9048 = vmatpush2.msra.mxu0 0.0
    %9049 = vmatprep.subr.mxu0 0.0
    %9050 = vmatpush2.msra.mxu0 0.0
    %9051 = vmatprep.subr.mxu0 0.0
    %9052 = vmatpush2.msra.mxu0 0.0
    %9053 = vmatprep.subr.mxu0 0.0
    %9054 = vmatpush2.msra.mxu0 0.0
    %9055 = vmatprep.subr.mxu0 0.0
    %9056 = vmatpush2.msra.mxu0 0.0
    %9057 = vmatprep.subr.mxu0 0.0
    %9058 = vmatpush2.msra.mxu0 0.0
    %9059 = vmatprep.subr.mxu0 0.0
    %9060 = vmatpush2.msra.mxu0 0.0
    %9061 = vmatprep.subr.mxu0 0.0
    %9062 = vmatpush2.msra.mxu0 0.0
    %9063 = vmatprep.subr.mxu0 0.0
    %9064 = vmatpush2.msra.mxu0 0.0
    %9065 = vmatprep.subr.mxu0 0.0
    %9066 = vmatpush2.msra.mxu0 0.0
    %9067 = vmatprep.subr.mxu0 0.0
    %9068 = vmatpush2.msra.mxu0 0.0
    %9069 = vmatprep.subr.mxu0 0.0
    %9070 = vmatpush2.msra.mxu0 0.0
    %9071 = vmatprep.subr.mxu0 0.0
    %9072 = vmatpush2.msra.mxu0 0.0
    %9073 = vmatprep.subr.mxu0 0.0
    %9074 = vmatpush2.msra.mxu0 0.0
    %9075 = vmatprep.subr.mxu0 0.0
    %9076 = vmatpush2.msra.mxu0 0.0
    %9077 = vmatprep.mubr.f32.mxu0 0.0
    %9078 = vmatmul.mubr.f32.gmra.mxu0 %v292
    %v9079 = vpop.f32.mrf.mxu0
    %v9080 = vadd.f32 %v274, %v9079
    %v9081 = vpop.f32.mrf.mxu0
    %v9082 = vadd.f32 %v276, %v9081
    %9083 = vmatprep.mubr.f32.mxu0 0.0
    %9084 = vmatmul.mubr.f32.gmra.mxu0 %v295
    %v9085 = vpop.f32.mrf.mxu0
    %v9086 = vadd.f32 %v280, %v9085
    %v9087 = vpop.f32.mrf.mxu0
    %v9088 = vadd.f32 %v282, %v9087
    %9089 = vmatprep.mubr.f32.mxu0 0.0
    %9090 = vmatmul.mubr.f32.gmra.mxu0 %v298
    %v9091 = vpop.f32.mrf.mxu0
    %v9092 = vadd.f32 %v286, %v9091
    %v9093 = vpop.f32.mrf.mxu0
    %v9094 = vadd.f32 %v288, %v9093
    %9095 = vdwg.mxu0
    %v9096 = vmax.f32 %v466, %v8997
    %v9097 = vmax.f32 %v466, %v8999
    %v9098 = vmax.f32 %v466, %v9080
    %v9099 = vmax.f32 %v466, %v9082
    %v9100 = vmax.f32 %v466, %v9003
    %v9101 = vmax.f32 %v466, %v9005
    %v9102 = vmax.f32 %v466, %v9086
    %v9103 = vmax.f32 %v466, %v9088
    %v9104 = vmax.f32 %v466, %v9009
    %v9105 = vmax.f32 %v466, %v9011
    %v9106 = vmax.f32 %v466, %v9092
    %v9107 = vmax.f32 %v466, %v9094
    %v9108 = vmin.f32 %v479, %v9096
    %v9109 = vmin.f32 %v479, %v9097
    %v9110 = vmin.f32 %v479, %v9098
    %v9111 = vmin.f32 %v479, %v9099
    %v9112 = vmin.f32 %v479, %v9100
    %v9113 = vmin.f32 %v479, %v9101
    %v9114 = vmin.f32 %v479, %v9102
    %v9115 = vmin.f32 %v479, %v9103
    %v9116 = vmin.f32 %v479, %v9104
    %v9117 = vmin.f32 %v479, %v9105
    %v9118 = vmin.f32 %v479, %v9106
    %v9119 = vmin.f32 %v479, %v9107
    %v9120 = vsub.f32 %v8997, %v9108
    %v9121 = vsub.f32 %v8999, %v9109
    %v9122 = vsub.f32 %v9080, %v9110
    %v9123 = vsub.f32 %v9082, %v9111
    %v9124 = vsub.f32 %v9003, %v9112
    %v9125 = vsub.f32 %v9005, %v9113
    %v9126 = vsub.f32 %v9086, %v9114
    %v9127 = vsub.f32 %v9088, %v9115
    %v9128 = vsub.f32 %v9009, %v9116
    %v9129 = vsub.f32 %v9011, %v9117
    %v9130 = vsub.f32 %v9092, %v9118
    %v9131 = vsub.f32 %v9094, %v9119
    %s9132 = sld [smem:[#allocation3 + $0x24]]
    %v9133 = vsub.f32 %v9120, %v8880
    %v9134 = vsub.f32 %v9121, %v8881
    %v9135 = vsub.f32 %v9122, %v8882
    %v9136 = vsub.f32 %v9123, %v8883
    %v9137 = vsub.f32 %v9124, %v8884
    %v9138 = vsub.f32 %v9125, %v8885
    %v9139 = vsub.f32 %v9126, %v8886
    %v9140 = vsub.f32 %v9127, %v8887
    %v9141 = vsub.f32 %v9128, %v8888
    %v9142 = vsub.f32 %v9129, %v8889
    %v9143 = vsub.f32 %v9130, %v8890
    %v9144 = vsub.f32 %v9131, %v8891
    %v9145 = vstv %s9132
    %v9146 = vmul.f32 %v9145, %v9133
    %v9147 = vmul.f32 %v9145, %v9134
    %v9148 = vmul.f32 %v9145, %v9135
    %v9149 = vmul.f32 %v9145, %v9136
    %v9150 = vmul.f32 %v9145, %v9137
    %v9151 = vmul.f32 %v9145, %v9138
    %v9152 = vmul.f32 %v9145, %v9139
    %v9153 = vmul.f32 %v9145, %v9140
    %v9154 = vmul.f32 %v9145, %v9141
    %v9155 = vmul.f32 %v9145, %v9142
    %v9156 = vmul.f32 %v9145, %v9143
    %v9157 = vmul.f32 %v9145, %v9144
    %v9158 = vadd.f32 %v9120, %v9146
    %v9159 = vadd.f32 %v9121, %v9147
    %v9160 = vadd.f32 %v9122, %v9148
    %v9161 = vadd.f32 %v9123, %v9149
    %v9162 = vadd.f32 %v9124, %v9150
    %v9163 = vadd.f32 %v9125, %v9151
    %v9164 = vadd.f32 %v9126, %v9152
    %v9165 = vadd.f32 %v9127, %v9153
    %v9166 = vadd.f32 %v9128, %v9154
    %v9167 = vadd.f32 %v9129, %v9155
    %v9168 = vadd.f32 %v9130, %v9156
    %v9169 = vadd.f32 %v9131, %v9157
    %9170 = vmatprep.subr.mxu0 0.0
    %9171 = vmatpush1.msra.mxu0 0.0
    %9172 = vmatprep.subr.mxu0 0.0
    %9173 = vmatpush1.msra.mxu0 0.0
    %9174 = vmatprep.subr.mxu0 0.0
    %9175 = vmatpush1.msra.mxu0 0.0
    %9176 = vmatprep.subr.mxu0 0.0
    %9177 = vmatpush1.msra.mxu0 0.0
    %9178 = vmatprep.subr.mxu0 0.0
    %9179 = vmatpush1.msra.mxu0 0.0
    %9180 = vmatprep.subr.mxu0 0.0
    %9181 = vmatpush1.msra.mxu0 0.0
    %9182 = vmatprep.subr.mxu0 0.0
    %9183 = vmatpush1.msra.mxu0 0.0
    %9184 = vmatprep.subr.mxu0 0.0
    %9185 = vmatpush1.msra.mxu0 0.0
    %9186 = vmatprep.subr.mxu0 0.0
    %9187 = vmatpush1.msra.mxu0 0.0
    %9188 = vmatprep.subr.mxu0 0.0
    %9189 = vmatpush1.msra.mxu0 0.0
    %9190 = vmatprep.subr.mxu0 0.0
    %9191 = vmatpush1.msra.mxu0 0.0
    %9192 = vmatprep.subr.mxu0 0.0
    %9193 = vmatpush1.msra.mxu0 0.0
    %9194 = vmatprep.subr.mxu0 0.0
    %9195 = vmatpush1.msra.mxu0 0.0
    %9196 = vmatprep.subr.mxu0 %v9167
    %9197 = vmatpush1.msra.mxu0 %v9166
    %9198 = vmatprep.subr.mxu0 %v9163
    %9199 = vmatpush1.msra.mxu0 %v9162
    %9200 = vmatprep.subr.mxu0 %v9159
    %9201 = vmatpush1.msra.mxu0 %v9158
    %9202 = vmatprep.subr.mxu0 0.0
    %9203 = vmatpush2.msra.mxu0 0.0
    %9204 = vmatprep.subr.mxu0 0.0
    %9205 = vmatpush2.msra.mxu0 0.0
    %9206 = vmatprep.subr.mxu0 0.0
    %9207 = vmatpush2.msra.mxu0 0.0
    %9208 = vmatprep.subr.mxu0 0.0
    %9209 = vmatpush2.msra.mxu0 0.0
    %9210 = vmatprep.subr.mxu0 0.0
    %9211 = vmatpush2.msra.mxu0 0.0
    %9212 = vmatprep.subr.mxu0 0.0
    %9213 = vmatpush2.msra.mxu0 0.0
    %9214 = vmatprep.subr.mxu0 0.0
    %9215 = vmatpush2.msra.mxu0 0.0
    %9216 = vmatprep.subr.mxu0 0.0
    %9217 = vmatpush2.msra.mxu0 0.0
    %9218 = vmatprep.subr.mxu0 0.0
    %9219 = vmatpush2.msra.mxu0 0.0
    %9220 = vmatprep.subr.mxu0 0.0
    %9221 = vmatpush2.msra.mxu0 0.0
    %9222 = vmatprep.subr.mxu0 0.0
    %9223 = vmatpush2.msra.mxu0 0.0
    %9224 = vmatprep.subr.mxu0 0.0
    %9225 = vmatpush2.msra.mxu0 0.0
    %9226 = vmatprep.subr.mxu0 0.0
    %9227 = vmatpush2.msra.mxu0 0.0
    %9228 = vmatprep.subr.mxu0 0.0
    %9229 = vmatpush2.msra.mxu0 0.0
    %9230 = vmatprep.subr.mxu0 0.0
    %9231 = vmatpush2.msra.mxu0 0.0
    %9232 = vmatprep.subr.mxu0 0.0
    %9233 = vmatpush2.msra.mxu0 0.0
    %9234 = vmatprep.mubr.f32.mxu0 0.0
    %9235 = vmatmul.mubr.f32.gmra.mxu0 %v292
    %v9236 = vpop.f32.mrf.mxu0
    %v9237 = vadd.f32 %v191, %v9236
    %v9238 = vpop.f32.mrf.mxu0
    %v9239 = vadd.f32 %v193, %v9238
    %9240 = vmatprep.mubr.f32.mxu0 0.0
    %9241 = vmatmul.mubr.f32.gmra.mxu0 %v295
    %v9242 = vpop.f32.mrf.mxu0
    %v9243 = vadd.f32 %v197, %v9242
    %v9244 = vpop.f32.mrf.mxu0
    %v9245 = vadd.f32 %v199, %v9244
    %9246 = vmatprep.mubr.f32.mxu0 0.0
    %9247 = vmatmul.mubr.f32.gmra.mxu0 %v298
    %v9248 = vpop.f32.mrf.mxu0
    %v9249 = vadd.f32 %v203, %v9248
    %v9250 = vpop.f32.mrf.mxu0
    %v9251 = vadd.f32 %v205, %v9250
    %9252 = vdwg.mxu0
    %9253 = vmatprep.subr.mxu0 0.0
    %9254 = vmatpush1.msra.mxu0 0.0
    %9255 = vmatprep.subr.mxu0 0.0
    %9256 = vmatpush1.msra.mxu0 0.0
    %9257 = vmatprep.subr.mxu0 0.0
    %9258 = vmatpush1.msra.mxu0 0.0
    %9259 = vmatprep.subr.mxu0 0.0
    %9260 = vmatpush1.msra.mxu0 0.0
    %9261 = vmatprep.subr.mxu0 0.0
    %9262 = vmatpush1.msra.mxu0 0.0
    %9263 = vmatprep.subr.mxu0 0.0
    %9264 = vmatpush1.msra.mxu0 0.0
    %9265 = vmatprep.subr.mxu0 0.0
    %9266 = vmatpush1.msra.mxu0 0.0
    %9267 = vmatprep.subr.mxu0 0.0
    %9268 = vmatpush1.msra.mxu0 0.0
    %9269 = vmatprep.subr.mxu0 0.0
    %9270 = vmatpush1.msra.mxu0 0.0
    %9271 = vmatprep.subr.mxu0 0.0
    %9272 = vmatpush1.msra.mxu0 0.0
    %9273 = vmatprep.subr.mxu0 0.0
    %9274 = vmatpush1.msra.mxu0 0.0
    %9275 = vmatprep.subr.mxu0 0.0
    %9276 = vmatpush1.msra.mxu0 0.0
    %9277 = vmatprep.subr.mxu0 0.0
    %9278 = vmatpush1.msra.mxu0 0.0
    %9279 = vmatprep.subr.mxu0 %v9169
    %9280 = vmatpush1.msra.mxu0 %v9168
    %9281 = vmatprep.subr.mxu0 %v9165
    %9282 = vmatpush1.msra.mxu0 %v9164
    %9283 = vmatprep.subr.mxu0 %v9161
    %9284 = vmatpush1.msra.mxu0 %v9160
    %9285 = vmatprep.subr.mxu0 0.0
    %9286 = vmatpush2.msra.mxu0 0.0
    %9287 = vmatprep.subr.mxu0 0.0
    %9288 = vmatpush2.msra.mxu0 0.0
    %9289 = vmatprep.subr.mxu0 0.0
    %9290 = vmatpush2.msra.mxu0 0.0
    %9291 = vmatprep.subr.mxu0 0.0
    %9292 = vmatpush2.msra.mxu0 0.0
    %9293 = vmatprep.subr.mxu0 0.0
    %9294 = vmatpush2.msra.mxu0 0.0
    %9295 = vmatprep.subr.mxu0 0.0
    %9296 = vmatpush2.msra.mxu0 0.0
    %9297 = vmatprep.subr.mxu0 0.0
    %9298 = vmatpush2.msra.mxu0 0.0
    %9299 = vmatprep.subr.mxu0 0.0
    %9300 = vmatpush2.msra.mxu0 0.0
    %9301 = vmatprep.subr.mxu0 0.0
    %9302 = vmatpush2.msra.mxu0 0.0
    %9303 = vmatprep.subr.mxu0 0.0
    %9304 = vmatpush2.msra.mxu0 0.0
    %9305 = vmatprep.subr.mxu0 0.0
    %9306 = vmatpush2.msra.mxu0 0.0
    %9307 = vmatprep.subr.mxu0 0.0
    %9308 = vmatpush2.msra.mxu0 0.0
    %9309 = vmatprep.subr.mxu0 0.0
    %9310 = vmatpush2.msra.mxu0 0.0
    %9311 = vmatprep.subr.mxu0 0.0
    %9312 = vmatpush2.msra.mxu0 0.0
    %9313 = vmatprep.subr.mxu0 0.0
    %9314 = vmatpush2.msra.mxu0 0.0
    %9315 = vmatprep.subr.mxu0 0.0
    %9316 = vmatpush2.msra.mxu0 0.0
    %9317 = vmatprep.mubr.f32.mxu0 0.0
    %9318 = vmatmul.mubr.f32.gmra.mxu0 %v292
    %v9319 = vpop.f32.mrf.mxu0
    %v9320 = vadd.f32 %v274, %v9319
    %v9321 = vpop.f32.mrf.mxu0
    %v9322 = vadd.f32 %v276, %v9321
    %9323 = vmatprep.mubr.f32.mxu0 0.0
    %9324 = vmatmul.mubr.f32.gmra.mxu0 %v295
    %v9325 = vpop.f32.mrf.mxu0
    %v9326 = vadd.f32 %v280, %v9325
    %v9327 = vpop.f32.mrf.mxu0
    %v9328 = vadd.f32 %v282, %v9327
    %9329 = vmatprep.mubr.f32.mxu0 0.0
    %9330 = vmatmul.mubr.f32.gmra.mxu0 %v298
    %v9331 = vpop.f32.mrf.mxu0
    %v9332 = vadd.f32 %v286, %v9331
    %v9333 = vpop.f32.mrf.mxu0
    %v9334 = vadd.f32 %v288, %v9333
    %9335 = vdwg.mxu0
    %v9336 = vmax.f32 %v466, %v9237
    %v9337 = vmax.f32 %v466, %v9239
    %v9338 = vmax.f32 %v466, %v9320
    %v9339 = vmax.f32 %v466, %v9322
    %v9340 = vmax.f32 %v466, %v9243
    %v9341 = vmax.f32 %v466, %v9245
    %v9342 = vmax.f32 %v466, %v9326
    %v9343 = vmax.f32 %v466, %v9328
    %v9344 = vmax.f32 %v466, %v9249
    %v9345 = vmax.f32 %v466, %v9251
    %v9346 = vmax.f32 %v466, %v9332
    %v9347 = vmax.f32 %v466, %v9334
    %v9348 = vmin.f32 %v479, %v9336
    %v9349 = vmin.f32 %v479, %v9337
    %v9350 = vmin.f32 %v479, %v9338
    %v9351 = vmin.f32 %v479, %v9339
    %v9352 = vmin.f32 %v479, %v9340
    %v9353 = vmin.f32 %v479, %v9341
    %v9354 = vmin.f32 %v479, %v9342
    %v9355 = vmin.f32 %v479, %v9343
    %v9356 = vmin.f32 %v479, %v9344
    %v9357 = vmin.f32 %v479, %v9345
    %v9358 = vmin.f32 %v479, %v9346
    %v9359 = vmin.f32 %v479, %v9347
    %v9360 = vsub.f32 %v9237, %v9348
    %v9361 = vsub.f32 %v9239, %v9349
    %v9362 = vsub.f32 %v9320, %v9350
    %v9363 = vsub.f32 %v9322, %v9351
    %v9364 = vsub.f32 %v9243, %v9352
    %v9365 = vsub.f32 %v9245, %v9353
    %v9366 = vsub.f32 %v9326, %v9354
    %v9367 = vsub.f32 %v9328, %v9355
    %v9368 = vsub.f32 %v9249, %v9356
    %v9369 = vsub.f32 %v9251, %v9357
    %v9370 = vsub.f32 %v9332, %v9358
    %v9371 = vsub.f32 %v9334, %v9359
    %s9372 = sld [smem:[#allocation3 + $0x25]]
    %v9373 = vsub.f32 %v9360, %v9120
    %v9374 = vsub.f32 %v9361, %v9121
    %v9375 = vsub.f32 %v9362, %v9122
    %v9376 = vsub.f32 %v9363, %v9123
    %v9377 = vsub.f32 %v9364, %v9124
    %v9378 = vsub.f32 %v9365, %v9125
    %v9379 = vsub.f32 %v9366, %v9126
    %v9380 = vsub.f32 %v9367, %v9127
    %v9381 = vsub.f32 %v9368, %v9128
    %v9382 = vsub.f32 %v9369, %v9129
    %v9383 = vsub.f32 %v9370, %v9130
    %v9384 = vsub.f32 %v9371, %v9131
    %v9385 = vstv %s9372
    %v9386 = vmul.f32 %v9385, %v9373
    %v9387 = vmul.f32 %v9385, %v9374
    %v9388 = vmul.f32 %v9385, %v9375
    %v9389 = vmul.f32 %v9385, %v9376
    %v9390 = vmul.f32 %v9385, %v9377
    %v9391 = vmul.f32 %v9385, %v9378
    %v9392 = vmul.f32 %v9385, %v9379
    %v9393 = vmul.f32 %v9385, %v9380
    %v9394 = vmul.f32 %v9385, %v9381
    %v9395 = vmul.f32 %v9385, %v9382
    %v9396 = vmul.f32 %v9385, %v9383
    %v9397 = vmul.f32 %v9385, %v9384
    %v9398 = vadd.f32 %v9360, %v9386
    %v9399 = vadd.f32 %v9361, %v9387
    %v9400 = vadd.f32 %v9362, %v9388
    %v9401 = vadd.f32 %v9363, %v9389
    %v9402 = vadd.f32 %v9364, %v9390
    %v9403 = vadd.f32 %v9365, %v9391
    %v9404 = vadd.f32 %v9366, %v9392
    %v9405 = vadd.f32 %v9367, %v9393
    %v9406 = vadd.f32 %v9368, %v9394
    %v9407 = vadd.f32 %v9369, %v9395
    %v9408 = vadd.f32 %v9370, %v9396
    %v9409 = vadd.f32 %v9371, %v9397
    %9410 = vmatprep.subr.mxu0 0.0
    %9411 = vmatpush1.msra.mxu0 0.0
    %9412 = vmatprep.subr.mxu0 0.0
    %9413 = vmatpush1.msra.mxu0 0.0
    %9414 = vmatprep.subr.mxu0 0.0
    %9415 = vmatpush1.msra.mxu0 0.0
    %9416 = vmatprep.subr.mxu0 0.0
    %9417 = vmatpush1.msra.mxu0 0.0
    %9418 = vmatprep.subr.mxu0 0.0
    %9419 = vmatpush1.msra.mxu0 0.0
    %9420 = vmatprep.subr.mxu0 0.0
    %9421 = vmatpush1.msra.mxu0 0.0
    %9422 = vmatprep.subr.mxu0 0.0
    %9423 = vmatpush1.msra.mxu0 0.0
    %9424 = vmatprep.subr.mxu0 0.0
    %9425 = vmatpush1.msra.mxu0 0.0
    %9426 = vmatprep.subr.mxu0 0.0
    %9427 = vmatpush1.msra.mxu0 0.0
    %9428 = vmatprep.subr.mxu0 0.0
    %9429 = vmatpush1.msra.mxu0 0.0
    %9430 = vmatprep.subr.mxu0 0.0
    %9431 = vmatpush1.msra.mxu0 0.0
    %9432 = vmatprep.subr.mxu0 0.0
    %9433 = vmatpush1.msra.mxu0 0.0
    %9434 = vmatprep.subr.mxu0 0.0
    %9435 = vmatpush1.msra.mxu0 0.0
    %9436 = vmatprep.subr.mxu0 %v9407
    %9437 = vmatpush1.msra.mxu0 %v9406
    %9438 = vmatprep.subr.mxu0 %v9403
    %9439 = vmatpush1.msra.mxu0 %v9402
    %9440 = vmatprep.subr.mxu0 %v9399
    %9441 = vmatpush1.msra.mxu0 %v9398
    %9442 = vmatprep.subr.mxu0 0.0
    %9443 = vmatpush2.msra.mxu0 0.0
    %9444 = vmatprep.subr.mxu0 0.0
    %9445 = vmatpush2.msra.mxu0 0.0
    %9446 = vmatprep.subr.mxu0 0.0
    %9447 = vmatpush2.msra.mxu0 0.0
    %9448 = vmatprep.subr.mxu0 0.0
    %9449 = vmatpush2.msra.mxu0 0.0
    %9450 = vmatprep.subr.mxu0 0.0
    %9451 = vmatpush2.msra.mxu0 0.0
    %9452 = vmatprep.subr.mxu0 0.0
    %9453 = vmatpush2.msra.mxu0 0.0
    %9454 = vmatprep.subr.mxu0 0.0
    %9455 = vmatpush2.msra.mxu0 0.0
    %9456 = vmatprep.subr.mxu0 0.0
    %9457 = vmatpush2.msra.mxu0 0.0
    %9458 = vmatprep.subr.mxu0 0.0
    %9459 = vmatpush2.msra.mxu0 0.0
    %9460 = vmatprep.subr.mxu0 0.0
    %9461 = vmatpush2.msra.mxu0 0.0
    %9462 = vmatprep.subr.mxu0 0.0
    %9463 = vmatpush2.msra.mxu0 0.0
    %9464 = vmatprep.subr.mxu0 0.0
    %9465 = vmatpush2.msra.mxu0 0.0
    %9466 = vmatprep.subr.mxu0 0.0
    %9467 = vmatpush2.msra.mxu0 0.0
    %9468 = vmatprep.subr.mxu0 0.0
    %9469 = vmatpush2.msra.mxu0 0.0
    %9470 = vmatprep.subr.mxu0 0.0
    %9471 = vmatpush2.msra.mxu0 0.0
    %9472 = vmatprep.subr.mxu0 0.0
    %9473 = vmatpush2.msra.mxu0 0.0
    %9474 = vmatprep.mubr.f32.mxu0 0.0
    %9475 = vmatmul.mubr.f32.gmra.mxu0 %v292
    %v9476 = vpop.f32.mrf.mxu0
    %v9477 = vadd.f32 %v191, %v9476
    %v9478 = vpop.f32.mrf.mxu0
    %v9479 = vadd.f32 %v193, %v9478
    %9480 = vmatprep.mubr.f32.mxu0 0.0
    %9481 = vmatmul.mubr.f32.gmra.mxu0 %v295
    %v9482 = vpop.f32.mrf.mxu0
    %v9483 = vadd.f32 %v197, %v9482
    %v9484 = vpop.f32.mrf.mxu0
    %v9485 = vadd.f32 %v199, %v9484
    %9486 = vmatprep.mubr.f32.mxu0 0.0
    %9487 = vmatmul.mubr.f32.gmra.mxu0 %v298
    %v9488 = vpop.f32.mrf.mxu0
    %v9489 = vadd.f32 %v203, %v9488
    %v9490 = vpop.f32.mrf.mxu0
    %v9491 = vadd.f32 %v205, %v9490
    %9492 = vdwg.mxu0
    %9493 = vmatprep.subr.mxu0 0.0
    %9494 = vmatpush1.msra.mxu0 0.0
    %9495 = vmatprep.subr.mxu0 0.0
    %9496 = vmatpush1.msra.mxu0 0.0
    %9497 = vmatprep.subr.mxu0 0.0
    %9498 = vmatpush1.msra.mxu0 0.0
    %9499 = vmatprep.subr.mxu0 0.0
    %9500 = vmatpush1.msra.mxu0 0.0
    %9501 = vmatprep.subr.mxu0 0.0
    %9502 = vmatpush1.msra.mxu0 0.0
    %9503 = vmatprep.subr.mxu0 0.0
    %9504 = vmatpush1.msra.mxu0 0.0
    %9505 = vmatprep.subr.mxu0 0.0
    %9506 = vmatpush1.msra.mxu0 0.0
    %9507 = vmatprep.subr.mxu0 0.0
    %9508 = vmatpush1.msra.mxu0 0.0
    %9509 = vmatprep.subr.mxu0 0.0
    %9510 = vmatpush1.msra.mxu0 0.0
    %9511 = vmatprep.subr.mxu0 0.0
    %9512 = vmatpush1.msra.mxu0 0.0
    %9513 = vmatprep.subr.mxu0 0.0
    %9514 = vmatpush1.msra.mxu0 0.0
    %9515 = vmatprep.subr.mxu0 0.0
    %9516 = vmatpush1.msra.mxu0 0.0
    %9517 = vmatprep.subr.mxu0 0.0
    %9518 = vmatpush1.msra.mxu0 0.0
    %9519 = vmatprep.subr.mxu0 %v9409
    %9520 = vmatpush1.msra.mxu0 %v9408
    %9521 = vmatprep.subr.mxu0 %v9405
    %9522 = vmatpush1.msra.mxu0 %v9404
    %9523 = vmatprep.subr.mxu0 %v9401
    %9524 = vmatpush1.msra.mxu0 %v9400
    %9525 = vmatprep.subr.mxu0 0.0
    %9526 = vmatpush2.msra.mxu0 0.0
    %9527 = vmatprep.subr.mxu0 0.0
    %9528 = vmatpush2.msra.mxu0 0.0
    %9529 = vmatprep.subr.mxu0 0.0
    %9530 = vmatpush2.msra.mxu0 0.0
    %9531 = vmatprep.subr.mxu0 0.0
    %9532 = vmatpush2.msra.mxu0 0.0
    %9533 = vmatprep.subr.mxu0 0.0
    %9534 = vmatpush2.msra.mxu0 0.0
    %9535 = vmatprep.subr.mxu0 0.0
    %9536 = vmatpush2.msra.mxu0 0.0
    %9537 = vmatprep.subr.mxu0 0.0
    %9538 = vmatpush2.msra.mxu0 0.0
    %9539 = vmatprep.subr.mxu0 0.0
    %9540 = vmatpush2.msra.mxu0 0.0
    %9541 = vmatprep.subr.mxu0 0.0
    %9542 = vmatpush2.msra.mxu0 0.0
    %9543 = vmatprep.subr.mxu0 0.0
    %9544 = vmatpush2.msra.mxu0 0.0
    %9545 = vmatprep.subr.mxu0 0.0
    %9546 = vmatpush2.msra.mxu0 0.0
    %9547 = vmatprep.subr.mxu0 0.0
    %9548 = vmatpush2.msra.mxu0 0.0
    %9549 = vmatprep.subr.mxu0 0.0
    %9550 = vmatpush2.msra.mxu0 0.0
    %9551 = vmatprep.subr.mxu0 0.0
    %9552 = vmatpush2.msra.mxu0 0.0
    %9553 = vmatprep.subr.mxu0 0.0
    %9554 = vmatpush2.msra.mxu0 0.0
    %9555 = vmatprep.subr.mxu0 0.0
    %9556 = vmatpush2.msra.mxu0 0.0
    %9557 = vmatprep.mubr.f32.mxu0 0.0
    %9558 = vmatmul.mubr.f32.gmra.mxu0 %v292
    %v9559 = vpop.f32.mrf.mxu0
    %v9560 = vadd.f32 %v274, %v9559
    %v9561 = vpop.f32.mrf.mxu0
    %v9562 = vadd.f32 %v276, %v9561
    %9563 = vmatprep.mubr.f32.mxu0 0.0
    %9564 = vmatmul.mubr.f32.gmra.mxu0 %v295
    %v9565 = vpop.f32.mrf.mxu0
    %v9566 = vadd.f32 %v280, %v9565
    %v9567 = vpop.f32.mrf.mxu0
    %v9568 = vadd.f32 %v282, %v9567
    %9569 = vmatprep.mubr.f32.mxu0 0.0
    %9570 = vmatmul.mubr.f32.gmra.mxu0 %v298
    %v9571 = vpop.f32.mrf.mxu0
    %v9572 = vadd.f32 %v286, %v9571
    %v9573 = vpop.f32.mrf.mxu0
    %v9574 = vadd.f32 %v288, %v9573
    %9575 = vdwg.mxu0
    %v9576 = vmax.f32 %v466, %v9477
    %v9577 = vmax.f32 %v466, %v9479
    %v9578 = vmax.f32 %v466, %v9560
    %v9579 = vmax.f32 %v466, %v9562
    %v9580 = vmax.f32 %v466, %v9483
    %v9581 = vmax.f32 %v466, %v9485
    %v9582 = vmax.f32 %v466, %v9566
    %v9583 = vmax.f32 %v466, %v9568
    %v9584 = vmax.f32 %v466, %v9489
    %v9585 = vmax.f32 %v466, %v9491
    %v9586 = vmax.f32 %v466, %v9572
    %v9587 = vmax.f32 %v466, %v9574
    %v9588 = vmin.f32 %v479, %v9576
    %v9589 = vmin.f32 %v479, %v9577
    %v9590 = vmin.f32 %v479, %v9578
    %v9591 = vmin.f32 %v479, %v9579
    %v9592 = vmin.f32 %v479, %v9580
    %v9593 = vmin.f32 %v479, %v9581
    %v9594 = vmin.f32 %v479, %v9582
    %v9595 = vmin.f32 %v479, %v9583
    %v9596 = vmin.f32 %v479, %v9584
    %v9597 = vmin.f32 %v479, %v9585
    %v9598 = vmin.f32 %v479, %v9586
    %v9599 = vmin.f32 %v479, %v9587
    %v9600 = vsub.f32 %v9477, %v9588
    %v9601 = vsub.f32 %v9479, %v9589
    %v9602 = vsub.f32 %v9560, %v9590
    %v9603 = vsub.f32 %v9562, %v9591
    %v9604 = vsub.f32 %v9483, %v9592
    %v9605 = vsub.f32 %v9485, %v9593
    %v9606 = vsub.f32 %v9566, %v9594
    %v9607 = vsub.f32 %v9568, %v9595
    %v9608 = vsub.f32 %v9489, %v9596
    %v9609 = vsub.f32 %v9491, %v9597
    %v9610 = vsub.f32 %v9572, %v9598
    %v9611 = vsub.f32 %v9574, %v9599
    %s9612 = sld [smem:[#allocation3 + $0x26]]
    %v9613 = vsub.f32 %v9600, %v9360
    %v9614 = vsub.f32 %v9601, %v9361
    %v9615 = vsub.f32 %v9602, %v9362
    %v9616 = vsub.f32 %v9603, %v9363
    %v9617 = vsub.f32 %v9604, %v9364
    %v9618 = vsub.f32 %v9605, %v9365
    %v9619 = vsub.f32 %v9606, %v9366
    %v9620 = vsub.f32 %v9607, %v9367
    %v9621 = vsub.f32 %v9608, %v9368
    %v9622 = vsub.f32 %v9609, %v9369
    %v9623 = vsub.f32 %v9610, %v9370
    %v9624 = vsub.f32 %v9611, %v9371
    %v9625 = vstv %s9612
    %v9626 = vmul.f32 %v9625, %v9613
    %v9627 = vmul.f32 %v9625, %v9614
    %v9628 = vmul.f32 %v9625, %v9615
    %v9629 = vmul.f32 %v9625, %v9616
    %v9630 = vmul.f32 %v9625, %v9617
    %v9631 = vmul.f32 %v9625, %v9618
    %v9632 = vmul.f32 %v9625, %v9619
    %v9633 = vmul.f32 %v9625, %v9620
    %v9634 = vmul.f32 %v9625, %v9621
    %v9635 = vmul.f32 %v9625, %v9622
    %v9636 = vmul.f32 %v9625, %v9623
    %v9637 = vmul.f32 %v9625, %v9624
    %v9638 = vadd.f32 %v9600, %v9626
    %v9639 = vadd.f32 %v9601, %v9627
    %v9640 = vadd.f32 %v9602, %v9628
    %v9641 = vadd.f32 %v9603, %v9629
    %v9642 = vadd.f32 %v9604, %v9630
    %v9643 = vadd.f32 %v9605, %v9631
    %v9644 = vadd.f32 %v9606, %v9632
    %v9645 = vadd.f32 %v9607, %v9633
    %v9646 = vadd.f32 %v9608, %v9634
    %v9647 = vadd.f32 %v9609, %v9635
    %v9648 = vadd.f32 %v9610, %v9636
    %v9649 = vadd.f32 %v9611, %v9637
    %9650 = vmatprep.subr.mxu0 0.0
    %9651 = vmatpush1.msra.mxu0 0.0
    %9652 = vmatprep.subr.mxu0 0.0
    %9653 = vmatpush1.msra.mxu0 0.0
    %9654 = vmatprep.subr.mxu0 0.0
    %9655 = vmatpush1.msra.mxu0 0.0
    %9656 = vmatprep.subr.mxu0 0.0
    %9657 = vmatpush1.msra.mxu0 0.0
    %9658 = vmatprep.subr.mxu0 0.0
    %9659 = vmatpush1.msra.mxu0 0.0
    %9660 = vmatprep.subr.mxu0 0.0
    %9661 = vmatpush1.msra.mxu0 0.0
    %9662 = vmatprep.subr.mxu0 0.0
    %9663 = vmatpush1.msra.mxu0 0.0
    %9664 = vmatprep.subr.mxu0 0.0
    %9665 = vmatpush1.msra.mxu0 0.0
    %9666 = vmatprep.subr.mxu0 0.0
    %9667 = vmatpush1.msra.mxu0 0.0
    %9668 = vmatprep.subr.mxu0 0.0
    %9669 = vmatpush1.msra.mxu0 0.0
    %9670 = vmatprep.subr.mxu0 0.0
    %9671 = vmatpush1.msra.mxu0 0.0
    %9672 = vmatprep.subr.mxu0 0.0
    %9673 = vmatpush1.msra.mxu0 0.0
    %9674 = vmatprep.subr.mxu0 0.0
    %9675 = vmatpush1.msra.mxu0 0.0
    %9676 = vmatprep.subr.mxu0 %v9647
    %9677 = vmatpush1.msra.mxu0 %v9646
    %9678 = vmatprep.subr.mxu0 %v9643
    %9679 = vmatpush1.msra.mxu0 %v9642
    %9680 = vmatprep.subr.mxu0 %v9639
    %9681 = vmatpush1.msra.mxu0 %v9638
    %9682 = vmatprep.subr.mxu0 0.0
    %9683 = vmatpush2.msra.mxu0 0.0
    %9684 = vmatprep.subr.mxu0 0.0
    %9685 = vmatpush2.msra.mxu0 0.0
    %9686 = vmatprep.subr.mxu0 0.0
    %9687 = vmatpush2.msra.mxu0 0.0
    %9688 = vmatprep.subr.mxu0 0.0
    %9689 = vmatpush2.msra.mxu0 0.0
    %9690 = vmatprep.subr.mxu0 0.0
    %9691 = vmatpush2.msra.mxu0 0.0
    %9692 = vmatprep.subr.mxu0 0.0
    %9693 = vmatpush2.msra.mxu0 0.0
    %9694 = vmatprep.subr.mxu0 0.0
    %9695 = vmatpush2.msra.mxu0 0.0
    %9696 = vmatprep.subr.mxu0 0.0
    %9697 = vmatpush2.msra.mxu0 0.0
    %9698 = vmatprep.subr.mxu0 0.0
    %9699 = vmatpush2.msra.mxu0 0.0
    %9700 = vmatprep.subr.mxu0 0.0
    %9701 = vmatpush2.msra.mxu0 0.0
    %9702 = vmatprep.subr.mxu0 0.0
    %9703 = vmatpush2.msra.mxu0 0.0
    %9704 = vmatprep.subr.mxu0 0.0
    %9705 = vmatpush2.msra.mxu0 0.0
    %9706 = vmatprep.subr.mxu0 0.0
    %9707 = vmatpush2.msra.mxu0 0.0
    %9708 = vmatprep.subr.mxu0 0.0
    %9709 = vmatpush2.msra.mxu0 0.0
    %9710 = vmatprep.subr.mxu0 0.0
    %9711 = vmatpush2.msra.mxu0 0.0
    %9712 = vmatprep.subr.mxu0 0.0
    %9713 = vmatpush2.msra.mxu0 0.0
    %9714 = vmatprep.mubr.f32.mxu0 0.0
    %9715 = vmatmul.mubr.f32.gmra.mxu0 %v292
    %v9716 = vpop.f32.mrf.mxu0
    %v9717 = vadd.f32 %v191, %v9716
    %v9718 = vpop.f32.mrf.mxu0
    %v9719 = vadd.f32 %v193, %v9718
    %9720 = vmatprep.mubr.f32.mxu0 0.0
    %9721 = vmatmul.mubr.f32.gmra.mxu0 %v295
    %v9722 = vpop.f32.mrf.mxu0
    %v9723 = vadd.f32 %v197, %v9722
    %v9724 = vpop.f32.mrf.mxu0
    %v9725 = vadd.f32 %v199, %v9724
    %9726 = vmatprep.mubr.f32.mxu0 0.0
    %9727 = vmatmul.mubr.f32.gmra.mxu0 %v298
    %v9728 = vpop.f32.mrf.mxu0
    %v9729 = vadd.f32 %v203, %v9728
    %v9730 = vpop.f32.mrf.mxu0
    %v9731 = vadd.f32 %v205, %v9730
    %9732 = vdwg.mxu0
    %9733 = vmatprep.subr.mxu0 0.0
    %9734 = vmatpush1.msra.mxu0 0.0
    %9735 = vmatprep.subr.mxu0 0.0
    %9736 = vmatpush1.msra.mxu0 0.0
    %9737 = vmatprep.subr.mxu0 0.0
    %9738 = vmatpush1.msra.mxu0 0.0
    %9739 = vmatprep.subr.mxu0 0.0
    %9740 = vmatpush1.msra.mxu0 0.0
    %9741 = vmatprep.subr.mxu0 0.0
    %9742 = vmatpush1.msra.mxu0 0.0
    %9743 = vmatprep.subr.mxu0 0.0
    %9744 = vmatpush1.msra.mxu0 0.0
    %9745 = vmatprep.subr.mxu0 0.0
    %9746 = vmatpush1.msra.mxu0 0.0
    %9747 = vmatprep.subr.mxu0 0.0
    %9748 = vmatpush1.msra.mxu0 0.0
    %9749 = vmatprep.subr.mxu0 0.0
    %9750 = vmatpush1.msra.mxu0 0.0
    %9751 = vmatprep.subr.mxu0 0.0
    %9752 = vmatpush1.msra.mxu0 0.0
    %9753 = vmatprep.subr.mxu0 0.0
    %9754 = vmatpush1.msra.mxu0 0.0
    %9755 = vmatprep.subr.mxu0 0.0
    %9756 = vmatpush1.msra.mxu0 0.0
    %9757 = vmatprep.subr.mxu0 0.0
    %9758 = vmatpush1.msra.mxu0 0.0
    %9759 = vmatprep.subr.mxu0 %v9649
    %9760 = vmatpush1.msra.mxu0 %v9648
    %9761 = vmatprep.subr.mxu0 %v9645
    %9762 = vmatpush1.msra.mxu0 %v9644
    %9763 = vmatprep.subr.mxu0 %v9641
    %9764 = vmatpush1.msra.mxu0 %v9640
    %9765 = vmatprep.subr.mxu0 0.0
    %9766 = vmatpush2.msra.mxu0 0.0
    %9767 = vmatprep.subr.mxu0 0.0
    %9768 = vmatpush2.msra.mxu0 0.0
    %9769 = vmatprep.subr.mxu0 0.0
    %9770 = vmatpush2.msra.mxu0 0.0
    %9771 = vmatprep.subr.mxu0 0.0
    %9772 = vmatpush2.msra.mxu0 0.0
    %9773 = vmatprep.subr.mxu0 0.0
    %9774 = vmatpush2.msra.mxu0 0.0
    %9775 = vmatprep.subr.mxu0 0.0
    %9776 = vmatpush2.msra.mxu0 0.0
    %9777 = vmatprep.subr.mxu0 0.0
    %9778 = vmatpush2.msra.mxu0 0.0
    %9779 = vmatprep.subr.mxu0 0.0
    %9780 = vmatpush2.msra.mxu0 0.0
    %9781 = vmatprep.subr.mxu0 0.0
    %9782 = vmatpush2.msra.mxu0 0.0
    %9783 = vmatprep.subr.mxu0 0.0
    %9784 = vmatpush2.msra.mxu0 0.0
    %9785 = vmatprep.subr.mxu0 0.0
    %9786 = vmatpush2.msra.mxu0 0.0
    %9787 = vmatprep.subr.mxu0 0.0
    %9788 = vmatpush2.msra.mxu0 0.0
    %9789 = vmatprep.subr.mxu0 0.0
    %9790 = vmatpush2.msra.mxu0 0.0
    %9791 = vmatprep.subr.mxu0 0.0
    %9792 = vmatpush2.msra.mxu0 0.0
    %9793 = vmatprep.subr.mxu0 0.0
    %9794 = vmatpush2.msra.mxu0 0.0
    %9795 = vmatprep.subr.mxu0 0.0
    %9796 = vmatpush2.msra.mxu0 0.0
    %9797 = vmatprep.mubr.f32.mxu0 0.0
    %9798 = vmatmul.mubr.f32.gmra.mxu0 %v292
    %v9799 = vpop.f32.mrf.mxu0
    %v9800 = vadd.f32 %v274, %v9799
    %v9801 = vpop.f32.mrf.mxu0
    %v9802 = vadd.f32 %v276, %v9801
    %9803 = vmatprep.mubr.f32.mxu0 0.0
    %9804 = vmatmul.mubr.f32.gmra.mxu0 %v295
    %v9805 = vpop.f32.mrf.mxu0
    %v9806 = vadd.f32 %v280, %v9805
    %v9807 = vpop.f32.mrf.mxu0
    %v9808 = vadd.f32 %v282, %v9807
    %9809 = vmatprep.mubr.f32.mxu0 0.0
    %9810 = vmatmul.mubr.f32.gmra.mxu0 %v298
    %v9811 = vpop.f32.mrf.mxu0
    %v9812 = vadd.f32 %v286, %v9811
    %v9813 = vpop.f32.mrf.mxu0
    %v9814 = vadd.f32 %v288, %v9813
    %9815 = vdwg.mxu0
    %v9816 = vmax.f32 %v466, %v9717
    %v9817 = vmax.f32 %v466, %v9719
    %v9818 = vmax.f32 %v466, %v9800
    %v9819 = vmax.f32 %v466, %v9802
    %v9820 = vmax.f32 %v466, %v9723
    %v9821 = vmax.f32 %v466, %v9725
    %v9822 = vmax.f32 %v466, %v9806
    %v9823 = vmax.f32 %v466, %v9808
    %v9824 = vmax.f32 %v466, %v9729
    %v9825 = vmax.f32 %v466, %v9731
    %v9826 = vmax.f32 %v466, %v9812
    %v9827 = vmax.f32 %v466, %v9814
    %v9828 = vmin.f32 %v479, %v9816
    %v9829 = vmin.f32 %v479, %v9817
    %v9830 = vmin.f32 %v479, %v9818
    %v9831 = vmin.f32 %v479, %v9819
    %v9832 = vmin.f32 %v479, %v9820
    %v9833 = vmin.f32 %v479, %v9821
    %v9834 = vmin.f32 %v479, %v9822
    %v9835 = vmin.f32 %v479, %v9823
    %v9836 = vmin.f32 %v479, %v9824
    %v9837 = vmin.f32 %v479, %v9825
    %v9838 = vmin.f32 %v479, %v9826
    %v9839 = vmin.f32 %v479, %v9827
    %v9840 = vsub.f32 %v9717, %v9828
    %v9841 = vsub.f32 %v9719, %v9829
    %v9842 = vsub.f32 %v9800, %v9830
    %v9843 = vsub.f32 %v9802, %v9831
    %v9844 = vsub.f32 %v9723, %v9832
    %v9845 = vsub.f32 %v9725, %v9833
    %v9846 = vsub.f32 %v9806, %v9834
    %v9847 = vsub.f32 %v9808, %v9835
    %v9848 = vsub.f32 %v9729, %v9836
    %v9849 = vsub.f32 %v9731, %v9837
    %v9850 = vsub.f32 %v9812, %v9838
    %v9851 = vsub.f32 %v9814, %v9839
    %9852 = vst [vmem:[#allocation11] sm:$0xff] %v9840
    %9853 = vst [vmem:[#allocation11 + $0x8] sm:$0xff] %v9841
    %9854 = vst [vmem:[#allocation11 + $0x10] sm:$0xff] %v9842
    %9855 = vst [vmem:[#allocation11 + $0x18] sm:$0xff] %v9843
    %9856 = vst [vmem:[#allocation11 + $0x20] sm:$0xff] %v9844
    %9857 = vst [vmem:[#allocation11 + $0x28] sm:$0xff] %v9845
    %9858 = vst [vmem:[#allocation11 + $0x30] sm:$0xff] %v9846
    %9859 = vst [vmem:[#allocation11 + $0x38] sm:$0xff] %v9847
    %9860 = vst [vmem:[#allocation11 + $0x40] sm:$0xff] %v9848
    %9861 = vst [vmem:[#allocation11 + $0x48] sm:$0xff] %v9849
    %9862 = vst [vmem:[#allocation11 + $0x50] sm:$0xff] %v9850
    %9863 = vst [vmem:[#allocation11 + $0x58] sm:$0xff] %v9851
    // Predicated region
    $region38: #{tpu_custom_call.1} parent=1 // pred_check
      _
    $region39: #{tpu_custom_call.1} parent=1 // pred_check_branch
      %9865 = sbr.rel (0) target = $region41
    $region40: #{tpu_custom_call.1} parent=1 // pred_region
      %s9867 = ssub.s32 1536, 1536
      %9868 = vsyncadd [#allocation5], %s9867
      %s9869 = sshll.u32 [#allocation11], 4
      %s9870 = int_to_ptr.vmem [resolvable:$true] %s9869
      %9875 = dma.vmem_to_hbm [thread:$0]  %s9870, 1536, %s5, [#allocation5], 512, 512, 32
    $region41: #{tpu_custom_call.1} parent=1 // pred_fallthru
      _
    // Predicated region
    $region42: #{tpu_custom_call.1} parent=1 // pred_check
      _
    $region43: #{tpu_custom_call.1} parent=1 // pred_check_branch
      %9877 = sbr.rel (0) target = $region45
    $region44: #{tpu_custom_call.1} parent=1 // pred_region
      %9878 = dma.done [#allocation5], 1536
    $region45: #{tpu_custom_call.1} parent=1 // pred_fallthru
      _
    %9879 = vsyncpa [#allocation4], 1
    %9880 = vsyncpa [#allocation9], 1
    %9881 = vsyncpa [#allocation5], 1
    %9882 = vsyncpa [#allocation6], 1

</llo_original>
